<compile_context>
chip_gen: v7x
topology: tpu7x:2x2x1
jax: 0.10.0
libtpu: 0.0.40
codegen_flags: <defaults>
</compile_context>

<pallas_src>
import functools

import numpy as np
import jax
import jax.numpy as jnp
from jax.experimental import pallas as pl
from jax.experimental.pallas import tpu as pltpu

_GAUSS5X5 = np.float32([
    [0.003765, 0.015019, 0.023792, 0.015019, 0.003765],
    [0.015019, 0.059912, 0.094907, 0.059912, 0.015019],
    [0.023792, 0.094907, 0.150342, 0.094907, 0.023792],
    [0.015019, 0.059912, 0.094907, 0.059912, 0.015019],
    [0.003765, 0.015019, 0.023792, 0.015019, 0.003765]])


# ---------------------------------------------------------------------------
# shape-only / parameter-only precompute (host side, tiny)
# ---------------------------------------------------------------------------
def _level_sizes(H, W, scale_n):
    sizes = [(H, W)]
    for _ in range(scale_n):
        h, w = sizes[-1]
        sizes.append(((h + 1) // 2, (w + 1) // 2))
    return sizes


def _down_combs(w_in, w_out):
    """Horizontal tap-comb matrices: lo[q, r] = sum_i cur_row(2q+i-2) @ C[i].
    C[i][x, r] = k[i, x - 2r + 2]; 'same' zero padding handled by dropping
    out-of-range taps."""
    Cm = np.zeros((5, w_in, w_out), np.float32)
    for i in range(5):
        for r in range(w_out):
            for j in range(5):
                x = 2 * r + j - 2
                if 0 <= x < w_in:
                    Cm[i, x, r] = _GAUSS5X5[i, j]
    return Cm


def _upsample_matrix(h_out, w_out, h_in, w_in):
    """conv_transpose2d(lo, k, stride=2, padding=2, output_padding=(h_out+1)%2,...) as a
    dense (h_out*w_out, h_in*w_in) operator: U[(y,x),(q,r)] = k[y-2q+2, x-2r+2]."""
    U = np.zeros((h_out * w_out, h_in * w_in), np.float32)
    for y in range(h_out):
        for q in range(h_in):
            i = y - 2 * q + 2
            if not (0 <= i < 5):
                continue
            for x in range(w_out):
                for r in range(w_in):
                    j = x - 2 * r + 2
                    if 0 <= j < 5:
                        U[y * w_out + x, q * w_in + r] = _GAUSS5X5[i, j]
    return U


def _bilinear_sampler(grid_xy, H, W, o_pad):
    """F.grid_sample (bilinear, zeros padding, align_corners=False) at size (H, W) as a
    dense (H*W, o_pad) matrix built from the (clamped) grid parameter only."""
    gx = grid_xy[:, 0]
    gy = grid_xy[:, 1]
    ix = ((gx + 1.0) * W - 1.0) * 0.5
    iy = ((gy + 1.0) * H - 1.0) * 0.5
    x0 = jnp.floor(ix)
    y0 = jnp.floor(iy)
    wx1 = ix - x0
    wx0 = 1.0 - wx1
    wy1 = iy - y0
    wy0 = 1.0 - wy1

    def corner(xi, yi, wgt):
        valid = (xi >= 0) & (xi <= W - 1) & (yi >= 0) & (yi <= H - 1)
        wgt = jnp.where(valid, wgt, 0.0)
        xi_c = jnp.clip(xi, 0, W - 1).astype(jnp.int32)
        yi_c = jnp.clip(yi, 0, H - 1).astype(jnp.int32)
        ohx = jax.nn.one_hot(xi_c, W, dtype=jnp.float32)   # (O, W)
        ohy = jax.nn.one_hot(yi_c, H, dtype=jnp.float32)   # (O, H)
        return wgt[:, None, None] * ohy[:, :, None] * ohx[:, None, :]

    G = (corner(x0, y0, wx0 * wy0) + corner(x0 + 1.0, y0, wx1 * wy0)
         + corner(x0, y0 + 1.0, wx0 * wy1) + corner(x0 + 1.0, y0 + 1.0, wx1 * wy1))
    O = grid_xy.shape[0]
    Gt = jnp.transpose(G.reshape(O, H * W))                 # (H*W, O), rows = y*W + x
    out = jnp.zeros((H * W, o_pad), jnp.float32)
    return out.at[:, :O].set(Gt)                            # lane-dense (pad O -> 128k)


# ---------------------------------------------------------------------------
# The fused Pallas kernel (one grid step = one batch element)
# ---------------------------------------------------------------------------
def _make_fused_kernel(C, sizes, o_pad, scale_n):
    n = scale_n
    m = n + 1

    def kernel(*refs):
        x_ref = refs[0]                                  # (1, C, H0*W0)
        cp_refs = refs[1:1 + n]                          # (5, W_l, W_{l+1}) tap combs
        g_refs = refs[1 + n:1 + n + m]                   # (S_l, o_pad) samplers
        gp_refs = refs[1 + n + m:1 + 2 * n + m]          # (S_{l+1}, o_pad) up-folded samplers
        feat_ref = refs[1 + 2 * n + m]                   # (m*C, o_pad)
        bias_ref = refs[2 + 2 * n + m]                   # (1, o_pad)
        out_ref = refs[3 + 2 * n + m]                    # (1, 1, o_pad)

        f32 = jnp.float32
        x2 = x_ref[0]                                    # (C, S0) flattened level-0 image
        feat = feat_ref[...]

        # level-0 "cur" term:  feat_0 (.) grid_sample(cur_0)
        wsum = feat[0:C, :] * jnp.dot(x2, g_refs[0][...],
                                      preferred_element_type=f32)

        prev_rows = None                                 # rows of the current level (l >= 1)
        for l in range(n):
            H, W = sizes[l]
            H2, W2 = sizes[l + 1]
            cpk = cp_refs[l]
            acc_up = jnp.zeros((C, o_pad), f32)          # grid_sample(upsample(lo_l))
            acc_nx = jnp.zeros((C, o_pad), f32)          # grid_sample(cur_{l+1} = lo_l)
            new_rows = []
            for q in range(H2):
                # lo_l[q, r] = sum_{i,j} k[i,j] * cur_l[2q+i-2, 2r+j-2]
                # vertical taps -> explicit row picks (only the 5 needed rows),
                # horizontal taps + stride-2 -> one small MXU matmul per tap row.
                row = None
                for i in range(5):
                    yy = 2 * q + i - 2
                    if 0 <= yy < H:
                        src = (x2[:, yy * W:(yy + 1) * W] if l == 0
                               else prev_rows[yy])
                        t = jnp.dot(src, cpk[i], preferred_element_type=f32)
                        row = t if row is None else row + t
                new_rows.append(row)
                # pooled projections of this lo row (row-blocks of the samplers)
                acc_up = acc_up + jnp.dot(row, gp_refs[l][q * W2:(q + 1) * W2, :],
                                          preferred_element_type=f32)
                acc_nx = acc_nx + jnp.dot(row, g_refs[l + 1][q * W2:(q + 1) * W2, :],
                                          preferred_element_type=f32)
            # hi_l = cur_l - 4 * upsample(lo_l)  =>  subtract folded upsample term;
            # cur_{l+1} = lo_l term (this is the final low-pass level when l+1 == n).
            wsum = (wsum
                    - 4.0 * (feat[l * C:(l + 1) * C, :] * acc_up)
                    + feat[(l + 1) * C:(l + 2) * C, :] * acc_nx)
            prev_rows = new_rows

        # channel sum + bias -> lane-dense (1, o_pad) output row
        out_ref[0] = jnp.sum(wsum, axis=0, keepdims=True) + bias_ref[...]

    return kernel


# ---------------------------------------------------------------------------
# Forward
# ---------------------------------------------------------------------------
def spatial_transformer_pyramid2d(x, grid, features, bias, scale_n=4):
    N, C, H, W = x.shape
    O = features.shape[-1]
    n = scale_n
    m = n + 1
    o_pad = ((O + 127) // 128) * 128

    grid = jnp.clip(grid.astype(jnp.float32), -1.0, 1.0)   # torch.clamp(grid, -1, 1)
    sizes = _level_sizes(H, W, n)

    # parameter / shape only precompute (tiny; no data-dependent work)
    g_mats = [_bilinear_sampler(grid, h, w, o_pad) for (h, w) in sizes]
    gp_mats = []
    for l in range(n):
        h, w = sizes[l]
        h2, w2 = sizes[l + 1]
        U = _upsample_matrix(h, w, h2, w2)                  # numpy, shape-only
        gp_mats.append(jnp.dot(jnp.asarray(U).T, g_mats[l]))  # (h2*w2, o_pad)
    cpacks = [jnp.asarray(_down_combs(sizes[l][1], sizes[l + 1][1])) for l in range(n)]

    featp = jnp.zeros((m * C, o_pad), jnp.float32).at[:, :O].set(
        features.astype(jnp.float32))
    biasp = jnp.zeros((1, o_pad), jnp.float32).at[:, :O].set(
        bias.reshape(1, O).astype(jnp.float32))
    x3 = x.reshape(N, C, H * W).astype(jnp.float32)         # free view, flat spatial

    def _bcast(arr):
        zeros = (0,) * arr.ndim
        return pl.BlockSpec(arr.shape, lambda b, _z=zeros: _z)

    in_specs = ([pl.BlockSpec((1, C, H * W), lambda b: (b, 0, 0))]
                + [_bcast(a) for a in cpacks]
                + [_bcast(a) for a in g_mats]
                + [_bcast(a) for a in gp_mats]
                + [_bcast(featp), _bcast(biasp)])

    out = pl.pallas_call(
        _make_fused_kernel(C, sizes, o_pad, n),
        out_shape=jax.ShapeDtypeStruct((N, 1, o_pad), jnp.float32),
        grid_spec=pltpu.PrefetchScalarGridSpec(
            num_scalar_prefetch=0,
            grid=(N,),
            in_specs=in_specs,
            out_specs=pl.BlockSpec((1, 1, o_pad), lambda b: (b, 0, 0))),
        compiler_params=pltpu.CompilerParams(
            dimension_semantics=("parallel",)),
    )(x3, *cpacks, *g_mats, *gp_mats, featp, biasp)

    return out.reshape(N, o_pad)[:, :O]


def init_params(key, in_shape, outdims, scale_n, init_range=0.1):
    """Deterministic init matching SpatialTransformerPyramid2d.initialize()."""
    c = in_shape[0]
    grid = jax.random.uniform(key, (outdims, 2), jnp.float32, -init_range, init_range)
    features = jnp.full((c * (scale_n + 1), outdims), 1.0 / c, jnp.float32)
    bias = jnp.zeros((outdims,), jnp.float32)
    return grid, features, bias


if __name__ == "__main__":
    key = jax.random.PRNGKey(0)
    kx, kg = jax.random.split(key)

    N, C, H, W = 2, 4, 16, 16
    outdims, scale_n = 10, 4

    x = jax.random.normal(kx, (N, C, H, W), jnp.float32)
    grid, features, bias = init_params(kg, (C, H, W), outdims, scale_n)

    fwd = jax.jit(functools.partial(spatial_transformer_pyramid2d, scale_n=scale_n))
    y = fwd(x, grid, features, bias)
    jax.block_until_ready(y)

    assert y.shape == (N, outdims) and y.dtype == jnp.float32
    assert bool(jnp.all(jnp.isfinite(y)))
    print("KERNEL_OK")
</pallas_src>

<mosaic_0001>
module attributes {stable_mosaic.version = 11 : i64} {
  func.func @kernel(%arg0: i32, %arg1: memref<1x4x256xf32, #tpu.memory_space<vmem>>, %arg2: memref<5x16x8xf32, #tpu.memory_space<vmem>>, %arg3: memref<5x8x4xf32, #tpu.memory_space<vmem>>, %arg4: memref<5x4x2xf32, #tpu.memory_space<vmem>>, %arg5: memref<5x2x1xf32, #tpu.memory_space<vmem>>, %arg6: memref<256x128xf32, #tpu.memory_space<vmem>>, %arg7: memref<64x128xf32, #tpu.memory_space<vmem>>, %arg8: memref<16x128xf32, #tpu.memory_space<vmem>>, %arg9: memref<4x128xf32, #tpu.memory_space<vmem>>, %arg10: memref<1x128xf32, #tpu.memory_space<vmem>>, %arg11: memref<64x128xf32, #tpu.memory_space<vmem>>, %arg12: memref<16x128xf32, #tpu.memory_space<vmem>>, %arg13: memref<4x128xf32, #tpu.memory_space<vmem>>, %arg14: memref<1x128xf32, #tpu.memory_space<vmem>>, %arg15: memref<20x128xf32, #tpu.memory_space<vmem>>, %arg16: memref<1x128xf32, #tpu.memory_space<vmem>>, %arg17: memref<1x1x128xf32, #tpu.memory_space<vmem>>) attributes {dimension_semantics = [#tpu.dimension_semantics<parallel>], iteration_bounds = array<i64: 2>, scalar_prefetch = 0 : i64, scratch_operands = 0 : i64, tpu.core_type = #tpu.core_type<tc>, window_params = [{transform_indices = @transform_0, window_bounds = array<i64: 1, 4, 256>}, {pipeline_mode = #tpu.pipeline_mode<synchronous>, transform_indices = @transform_1, window_bounds = array<i64: 5, 16, 8>}, {pipeline_mode = #tpu.pipeline_mode<synchronous>, transform_indices = @transform_2, window_bounds = array<i64: 5, 8, 4>}, {pipeline_mode = #tpu.pipeline_mode<synchronous>, transform_indices = @transform_3, window_bounds = array<i64: 5, 4, 2>}, {pipeline_mode = #tpu.pipeline_mode<synchronous>, transform_indices = @transform_4, window_bounds = array<i64: 5, 2, 1>}, {pipeline_mode = #tpu.pipeline_mode<synchronous>, transform_indices = @transform_5, window_bounds = array<i64: 256, 128>}, {pipeline_mode = #tpu.pipeline_mode<synchronous>, transform_indices = @transform_6, window_bounds = array<i64: 64, 128>}, {pipeline_mode = #tpu.pipeline_mode<synchronous>, transform_indices = @transform_7, window_bounds = array<i64: 16, 128>}, {pipeline_mode = #tpu.pipeline_mode<synchronous>, transform_indices = @transform_8, window_bounds = array<i64: 4, 128>}, {pipeline_mode = #tpu.pipeline_mode<synchronous>, transform_indices = @transform_9, window_bounds = array<i64: 1, 128>}, {pipeline_mode = #tpu.pipeline_mode<synchronous>, transform_indices = @transform_10, window_bounds = array<i64: 64, 128>}, {pipeline_mode = #tpu.pipeline_mode<synchronous>, transform_indices = @transform_11, window_bounds = array<i64: 16, 128>}, {pipeline_mode = #tpu.pipeline_mode<synchronous>, transform_indices = @transform_12, window_bounds = array<i64: 4, 128>}, {pipeline_mode = #tpu.pipeline_mode<synchronous>, transform_indices = @transform_13, window_bounds = array<i64: 1, 128>}, {pipeline_mode = #tpu.pipeline_mode<synchronous>, transform_indices = @transform_14, window_bounds = array<i64: 20, 128>}, {pipeline_mode = #tpu.pipeline_mode<synchronous>, transform_indices = @transform_15, window_bounds = array<i64: 1, 128>}, {transform_indices = @transform_16, window_bounds = array<i64: 1, 1, 128>}]} {
    %c0 = arith.constant 0 : index
    %c0_0 = arith.constant 0 : index
    %c0_1 = arith.constant 0 : index
    %0 = vector.load %arg1[%c0, %c0_0, %c0_1] : memref<1x4x256xf32, #tpu.memory_space<vmem>>, vector<1x4x256xf32>
    %1 = vector.shape_cast %0 : vector<1x4x256xf32> to vector<4x256xf32>
    %c0_2 = arith.constant 0 : index
    %c0_3 = arith.constant 0 : index
    %2 = vector.load %arg15[%c0_2, %c0_3] : memref<20x128xf32, #tpu.memory_space<vmem>>, vector<20x128xf32>
    %3 = vector.extract_strided_slice %2 {offsets = [0, 0], sizes = [4, 128], strides = [1, 1]} : vector<20x128xf32> to vector<4x128xf32>
    %c0_4 = arith.constant 0 : index
    %c0_5 = arith.constant 0 : index
    %4 = vector.load %arg6[%c0_4, %c0_5] : memref<256x128xf32, #tpu.memory_space<vmem>>, vector<256x128xf32>
    %cst = arith.constant dense<0.000000e+00> : vector<4x128xf32>
    %5 = tpu.matmul %1, %4, %cst {dimension_numbers = #tpu.dot_dimension_numbers<[1], [0], [0], [1], [0, 0, 1, 1], [], []>} : vector<4x256xf32>, vector<256x128xf32>, vector<4x128xf32> -> vector<4x128xf32>
    %6 = arith.mulf %3, %5 : vector<4x128xf32>
    %cst_6 = arith.constant 0.000000e+00 : f32
    %7 = vector.broadcast %cst_6 : f32 to vector<4x128xf32>
    %cst_7 = arith.constant 0.000000e+00 : f32
    %8 = vector.broadcast %cst_7 : f32 to vector<4x128xf32>
    %9 = vector.extract_strided_slice %1 {offsets = [0, 0], sizes = [4, 16], strides = [1, 1]} : vector<4x256xf32> to vector<4x16xf32>
    %c2 = arith.constant 2 : index
    %c0_8 = arith.constant 0 : index
    %c0_9 = arith.constant 0 : index
    %10 = vector.load %arg2[%c2, %c0_8, %c0_9] : memref<5x16x8xf32, #tpu.memory_space<vmem>>, vector<1x16x8xf32>
    %11 = vector.shape_cast %10 : vector<1x16x8xf32> to vector<16x8xf32>
    %cst_10 = arith.constant dense<0.000000e+00> : vector<4x8xf32>
    %12 = tpu.matmul %9, %11, %cst_10 {dimension_numbers = #tpu.dot_dimension_numbers<[1], [0], [0], [1], [0, 0, 1, 1], [], []>} : vector<4x16xf32>, vector<16x8xf32>, vector<4x8xf32> -> vector<4x8xf32>
    %13 = vector.extract_strided_slice %1 {offsets = [0, 16], sizes = [4, 16], strides = [1, 1]} : vector<4x256xf32> to vector<4x16xf32>
    %c3 = arith.constant 3 : index
    %c0_11 = arith.constant 0 : index
    %c0_12 = arith.constant 0 : index
    %14 = vector.load %arg2[%c3, %c0_11, %c0_12] : memref<5x16x8xf32, #tpu.memory_space<vmem>>, vector<1x16x8xf32>
    %15 = vector.shape_cast %14 : vector<1x16x8xf32> to vector<16x8xf32>
    %cst_13 = arith.constant dense<0.000000e+00> : vector<4x8xf32>
    %16 = tpu.matmul %13, %15, %cst_13 {dimension_numbers = #tpu.dot_dimension_numbers<[1], [0], [0], [1], [0, 0, 1, 1], [], []>} : vector<4x16xf32>, vector<16x8xf32>, vector<4x8xf32> -> vector<4x8xf32>
    %17 = arith.addf %12, %16 : vector<4x8xf32>
    %18 = vector.extract_strided_slice %1 {offsets = [0, 32], sizes = [4, 16], strides = [1, 1]} : vector<4x256xf32> to vector<4x16xf32>
    %c4 = arith.constant 4 : index
    %c0_14 = arith.constant 0 : index
    %c0_15 = arith.constant 0 : index
    %19 = vector.load %arg2[%c4, %c0_14, %c0_15] : memref<5x16x8xf32, #tpu.memory_space<vmem>>, vector<1x16x8xf32>
    %20 = vector.shape_cast %19 : vector<1x16x8xf32> to vector<16x8xf32>
    %cst_16 = arith.constant dense<0.000000e+00> : vector<4x8xf32>
    %21 = tpu.matmul %18, %20, %cst_16 {dimension_numbers = #tpu.dot_dimension_numbers<[1], [0], [0], [1], [0, 0, 1, 1], [], []>} : vector<4x16xf32>, vector<16x8xf32>, vector<4x8xf32> -> vector<4x8xf32>
    %22 = arith.addf %17, %21 : vector<4x8xf32>
    %c0_17 = arith.constant 0 : index
    %c0_18 = arith.constant 0 : index
    %23 = vector.load %arg11[%c0_17, %c0_18] : memref<64x128xf32, #tpu.memory_space<vmem>>, vector<8x128xf32>
    %cst_19 = arith.constant dense<0.000000e+00> : vector<4x128xf32>
    %24 = tpu.matmul %22, %23, %cst_19 {dimension_numbers = #tpu.dot_dimension_numbers<[1], [0], [0], [1], [0, 0, 1, 1], [], []>} : vector<4x8xf32>, vector<8x128xf32>, vector<4x128xf32> -> vector<4x128xf32>
    %25 = arith.addf %7, %24 : vector<4x128xf32>
    %c0_20 = arith.constant 0 : index
    %c0_21 = arith.constant 0 : index
    %26 = vector.load %arg7[%c0_20, %c0_21] : memref<64x128xf32, #tpu.memory_space<vmem>>, vector<8x128xf32>
    %cst_22 = arith.constant dense<0.000000e+00> : vector<4x128xf32>
    %27 = tpu.matmul %22, %26, %cst_22 {dimension_numbers = #tpu.dot_dimension_numbers<[1], [0], [0], [1], [0, 0, 1, 1], [], []>} : vector<4x8xf32>, vector<8x128xf32>, vector<4x128xf32> -> vector<4x128xf32>
    %28 = arith.addf %8, %27 : vector<4x128xf32>
    %29 = vector.extract_strided_slice %1 {offsets = [0, 0], sizes = [4, 16], strides = [1, 1]} : vector<4x256xf32> to vector<4x16xf32>
    %c0_23 = arith.constant 0 : index
    %c0_24 = arith.constant 0 : index
    %c0_25 = arith.constant 0 : index
    %30 = vector.load %arg2[%c0_23, %c0_24, %c0_25] : memref<5x16x8xf32, #tpu.memory_space<vmem>>, vector<1x16x8xf32>
    %31 = vector.shape_cast %30 : vector<1x16x8xf32> to vector<16x8xf32>
    %cst_26 = arith.constant dense<0.000000e+00> : vector<4x8xf32>
    %32 = tpu.matmul %29, %31, %cst_26 {dimension_numbers = #tpu.dot_dimension_numbers<[1], [0], [0], [1], [0, 0, 1, 1], [], []>} : vector<4x16xf32>, vector<16x8xf32>, vector<4x8xf32> -> vector<4x8xf32>
    %33 = vector.extract_strided_slice %1 {offsets = [0, 16], sizes = [4, 16], strides = [1, 1]} : vector<4x256xf32> to vector<4x16xf32>
    %c1 = arith.constant 1 : index
    %c0_27 = arith.constant 0 : index
    %c0_28 = arith.constant 0 : index
    %34 = vector.load %arg2[%c1, %c0_27, %c0_28] : memref<5x16x8xf32, #tpu.memory_space<vmem>>, vector<1x16x8xf32>
    %35 = vector.shape_cast %34 : vector<1x16x8xf32> to vector<16x8xf32>
    %cst_29 = arith.constant dense<0.000000e+00> : vector<4x8xf32>
    %36 = tpu.matmul %33, %35, %cst_29 {dimension_numbers = #tpu.dot_dimension_numbers<[1], [0], [0], [1], [0, 0, 1, 1], [], []>} : vector<4x16xf32>, vector<16x8xf32>, vector<4x8xf32> -> vector<4x8xf32>
    %37 = arith.addf %32, %36 : vector<4x8xf32>
    %38 = vector.extract_strided_slice %1 {offsets = [0, 32], sizes = [4, 16], strides = [1, 1]} : vector<4x256xf32> to vector<4x16xf32>
    %c2_30 = arith.constant 2 : index
    %c0_31 = arith.constant 0 : index
    %c0_32 = arith.constant 0 : index
    %39 = vector.load %arg2[%c2_30, %c0_31, %c0_32] : memref<5x16x8xf32, #tpu.memory_space<vmem>>, vector<1x16x8xf32>
    %40 = vector.shape_cast %39 : vector<1x16x8xf32> to vector<16x8xf32>
    %cst_33 = arith.constant dense<0.000000e+00> : vector<4x8xf32>
    %41 = tpu.matmul %38, %40, %cst_33 {dimension_numbers = #tpu.dot_dimension_numbers<[1], [0], [0], [1], [0, 0, 1, 1], [], []>} : vector<4x16xf32>, vector<16x8xf32>, vector<4x8xf32> -> vector<4x8xf32>
    %42 = arith.addf %37, %41 : vector<4x8xf32>
    %43 = vector.extract_strided_slice %1 {offsets = [0, 48], sizes = [4, 16], strides = [1, 1]} : vector<4x256xf32> to vector<4x16xf32>
    %c3_34 = arith.constant 3 : index
    %c0_35 = arith.constant 0 : index
    %c0_36 = arith.constant 0 : index
    %44 = vector.load %arg2[%c3_34, %c0_35, %c0_36] : memref<5x16x8xf32, #tpu.memory_space<vmem>>, vector<1x16x8xf32>
    %45 = vector.shape_cast %44 : vector<1x16x8xf32> to vector<16x8xf32>
    %cst_37 = arith.constant dense<0.000000e+00> : vector<4x8xf32>
    %46 = tpu.matmul %43, %45, %cst_37 {dimension_numbers = #tpu.dot_dimension_numbers<[1], [0], [0], [1], [0, 0, 1, 1], [], []>} : vector<4x16xf32>, vector<16x8xf32>, vector<4x8xf32> -> vector<4x8xf32>
    %47 = arith.addf %42, %46 : vector<4x8xf32>
    %48 = vector.extract_strided_slice %1 {offsets = [0, 64], sizes = [4, 16], strides = [1, 1]} : vector<4x256xf32> to vector<4x16xf32>
    %c4_38 = arith.constant 4 : index
    %c0_39 = arith.constant 0 : index
    %c0_40 = arith.constant 0 : index
    %49 = vector.load %arg2[%c4_38, %c0_39, %c0_40] : memref<5x16x8xf32, #tpu.memory_space<vmem>>, vector<1x16x8xf32>
    %50 = vector.shape_cast %49 : vector<1x16x8xf32> to vector<16x8xf32>
    %cst_41 = arith.constant dense<0.000000e+00> : vector<4x8xf32>
    %51 = tpu.matmul %48, %50, %cst_41 {dimension_numbers = #tpu.dot_dimension_numbers<[1], [0], [0], [1], [0, 0, 1, 1], [], []>} : vector<4x16xf32>, vector<16x8xf32>, vector<4x8xf32> -> vector<4x8xf32>
    %52 = arith.addf %47, %51 : vector<4x8xf32>
    %c8 = arith.constant 8 : index
    %c0_42 = arith.constant 0 : index
    %53 = vector.load %arg11[%c8, %c0_42] : memref<64x128xf32, #tpu.memory_space<vmem>>, vector<8x128xf32>
    %cst_43 = arith.constant dense<0.000000e+00> : vector<4x128xf32>
    %54 = tpu.matmul %52, %53, %cst_43 {dimension_numbers = #tpu.dot_dimension_numbers<[1], [0], [0], [1], [0, 0, 1, 1], [], []>} : vector<4x8xf32>, vector<8x128xf32>, vector<4x128xf32> -> vector<4x128xf32>
    %55 = arith.addf %25, %54 : vector<4x128xf32>
    %c8_44 = arith.constant 8 : index
    %c0_45 = arith.constant 0 : index
    %56 = vector.load %arg7[%c8_44, %c0_45] : memref<64x128xf32, #tpu.memory_space<vmem>>, vector<8x128xf32>
    %cst_46 = arith.constant dense<0.000000e+00> : vector<4x128xf32>
    %57 = tpu.matmul %52, %56, %cst_46 {dimension_numbers = #tpu.dot_dimension_numbers<[1], [0], [0], [1], [0, 0, 1, 1], [], []>} : vector<4x8xf32>, vector<8x128xf32>, vector<4x128xf32> -> vector<4x128xf32>
    %58 = arith.addf %28, %57 : vector<4x128xf32>
    %59 = vector.extract_strided_slice %1 {offsets = [0, 32], sizes = [4, 16], strides = [1, 1]} : vector<4x256xf32> to vector<4x16xf32>
    %c0_47 = arith.constant 0 : index
    %c0_48 = arith.constant 0 : index
    %c0_49 = arith.constant 0 : index
    %60 = vector.load %arg2[%c0_47, %c0_48, %c0_49] : memref<5x16x8xf32, #tpu.memory_space<vmem>>, vector<1x16x8xf32>
    %61 = vector.shape_cast %60 : vector<1x16x8xf32> to vector<16x8xf32>
    %cst_50 = arith.constant dense<0.000000e+00> : vector<4x8xf32>
    %62 = tpu.matmul %59, %61, %cst_50 {dimension_numbers = #tpu.dot_dimension_numbers<[1], [0], [0], [1], [0, 0, 1, 1], [], []>} : vector<4x16xf32>, vector<16x8xf32>, vector<4x8xf32> -> vector<4x8xf32>
    %63 = vector.extract_strided_slice %1 {offsets = [0, 48], sizes = [4, 16], strides = [1, 1]} : vector<4x256xf32> to vector<4x16xf32>
    %c1_51 = arith.constant 1 : index
    %c0_52 = arith.constant 0 : index
    %c0_53 = arith.constant 0 : index
    %64 = vector.load %arg2[%c1_51, %c0_52, %c0_53] : memref<5x16x8xf32, #tpu.memory_space<vmem>>, vector<1x16x8xf32>
    %65 = vector.shape_cast %64 : vector<1x16x8xf32> to vector<16x8xf32>
    %cst_54 = arith.constant dense<0.000000e+00> : vector<4x8xf32>
    %66 = tpu.matmul %63, %65, %cst_54 {dimension_numbers = #tpu.dot_dimension_numbers<[1], [0], [0], [1], [0, 0, 1, 1], [], []>} : vector<4x16xf32>, vector<16x8xf32>, vector<4x8xf32> -> vector<4x8xf32>
    %67 = arith.addf %62, %66 : vector<4x8xf32>
    %68 = vector.extract_strided_slice %1 {offsets = [0, 64], sizes = [4, 16], strides = [1, 1]} : vector<4x256xf32> to vector<4x16xf32>
    %c2_55 = arith.constant 2 : index
    %c0_56 = arith.constant 0 : index
    %c0_57 = arith.constant 0 : index
    %69 = vector.load %arg2[%c2_55, %c0_56, %c0_57] : memref<5x16x8xf32, #tpu.memory_space<vmem>>, vector<1x16x8xf32>
    %70 = vector.shape_cast %69 : vector<1x16x8xf32> to vector<16x8xf32>
    %cst_58 = arith.constant dense<0.000000e+00> : vector<4x8xf32>
    %71 = tpu.matmul %68, %70, %cst_58 {dimension_numbers = #tpu.dot_dimension_numbers<[1], [0], [0], [1], [0, 0, 1, 1], [], []>} : vector<4x16xf32>, vector<16x8xf32>, vector<4x8xf32> -> vector<4x8xf32>
    %72 = arith.addf %67, %71 : vector<4x8xf32>
    %73 = vector.extract_strided_slice %1 {offsets = [0, 80], sizes = [4, 16], strides = [1, 1]} : vector<4x256xf32> to vector<4x16xf32>
    %c3_59 = arith.constant 3 : index
    %c0_60 = arith.constant 0 : index
    %c0_61 = arith.constant 0 : index
    %74 = vector.load %arg2[%c3_59, %c0_60, %c0_61] : memref<5x16x8xf32, #tpu.memory_space<vmem>>, vector<1x16x8xf32>
    %75 = vector.shape_cast %74 : vector<1x16x8xf32> to vector<16x8xf32>
    %cst_62 = arith.constant dense<0.000000e+00> : vector<4x8xf32>
    %76 = tpu.matmul %73, %75, %cst_62 {dimension_numbers = #tpu.dot_dimension_numbers<[1], [0], [0], [1], [0, 0, 1, 1], [], []>} : vector<4x16xf32>, vector<16x8xf32>, vector<4x8xf32> -> vector<4x8xf32>
    %77 = arith.addf %72, %76 : vector<4x8xf32>
    %78 = vector.extract_strided_slice %1 {offsets = [0, 96], sizes = [4, 16], strides = [1, 1]} : vector<4x256xf32> to vector<4x16xf32>
    %c4_63 = arith.constant 4 : index
    %c0_64 = arith.constant 0 : index
    %c0_65 = arith.constant 0 : index
    %79 = vector.load %arg2[%c4_63, %c0_64, %c0_65] : memref<5x16x8xf32, #tpu.memory_space<vmem>>, vector<1x16x8xf32>
    %80 = vector.shape_cast %79 : vector<1x16x8xf32> to vector<16x8xf32>
    %cst_66 = arith.constant dense<0.000000e+00> : vector<4x8xf32>
    %81 = tpu.matmul %78, %80, %cst_66 {dimension_numbers = #tpu.dot_dimension_numbers<[1], [0], [0], [1], [0, 0, 1, 1], [], []>} : vector<4x16xf32>, vector<16x8xf32>, vector<4x8xf32> -> vector<4x8xf32>
    %82 = arith.addf %77, %81 : vector<4x8xf32>
    %c16 = arith.constant 16 : index
    %c0_67 = arith.constant 0 : index
    %83 = vector.load %arg11[%c16, %c0_67] : memref<64x128xf32, #tpu.memory_space<vmem>>, vector<8x128xf32>
    %cst_68 = arith.constant dense<0.000000e+00> : vector<4x128xf32>
    %84 = tpu.matmul %82, %83, %cst_68 {dimension_numbers = #tpu.dot_dimension_numbers<[1], [0], [0], [1], [0, 0, 1, 1], [], []>} : vector<4x8xf32>, vector<8x128xf32>, vector<4x128xf32> -> vector<4x128xf32>
    %85 = arith.addf %55, %84 : vector<4x128xf32>
    %c16_69 = arith.constant 16 : index
    %c0_70 = arith.constant 0 : index
    %86 = vector.load %arg7[%c16_69, %c0_70] : memref<64x128xf32, #tpu.memory_space<vmem>>, vector<8x128xf32>
    %cst_71 = arith.constant dense<0.000000e+00> : vector<4x128xf32>
    %87 = tpu.matmul %82, %86, %cst_71 {dimension_numbers = #tpu.dot_dimension_numbers<[1], [0], [0], [1], [0, 0, 1, 1], [], []>} : vector<4x8xf32>, vector<8x128xf32>, vector<4x128xf32> -> vector<4x128xf32>
    %88 = arith.addf %58, %87 : vector<4x128xf32>
    %89 = vector.extract_strided_slice %1 {offsets = [0, 64], sizes = [4, 16], strides = [1, 1]} : vector<4x256xf32> to vector<4x16xf32>
    %c0_72 = arith.constant 0 : index
    %c0_73 = arith.constant 0 : index
    %c0_74 = arith.constant 0 : index
    %90 = vector.load %arg2[%c0_72, %c0_73, %c0_74] : memref<5x16x8xf32, #tpu.memory_space<vmem>>, vector<1x16x8xf32>
    %91 = vector.shape_cast %90 : vector<1x16x8xf32> to vector<16x8xf32>
    %cst_75 = arith.constant dense<0.000000e+00> : vector<4x8xf32>
    %92 = tpu.matmul %89, %91, %cst_75 {dimension_numbers = #tpu.dot_dimension_numbers<[1], [0], [0], [1], [0, 0, 1, 1], [], []>} : vector<4x16xf32>, vector<16x8xf32>, vector<4x8xf32> -> vector<4x8xf32>
    %93 = vector.extract_strided_slice %1 {offsets = [0, 80], sizes = [4, 16], strides = [1, 1]} : vector<4x256xf32> to vector<4x16xf32>
    %c1_76 = arith.constant 1 : index
    %c0_77 = arith.constant 0 : index
    %c0_78 = arith.constant 0 : index
    %94 = vector.load %arg2[%c1_76, %c0_77, %c0_78] : memref<5x16x8xf32, #tpu.memory_space<vmem>>, vector<1x16x8xf32>
    %95 = vector.shape_cast %94 : vector<1x16x8xf32> to vector<16x8xf32>
    %cst_79 = arith.constant dense<0.000000e+00> : vector<4x8xf32>
    %96 = tpu.matmul %93, %95, %cst_79 {dimension_numbers = #tpu.dot_dimension_numbers<[1], [0], [0], [1], [0, 0, 1, 1], [], []>} : vector<4x16xf32>, vector<16x8xf32>, vector<4x8xf32> -> vector<4x8xf32>
    %97 = arith.addf %92, %96 : vector<4x8xf32>
    %98 = vector.extract_strided_slice %1 {offsets = [0, 96], sizes = [4, 16], strides = [1, 1]} : vector<4x256xf32> to vector<4x16xf32>
    %c2_80 = arith.constant 2 : index
    %c0_81 = arith.constant 0 : index
    %c0_82 = arith.constant 0 : index
    %99 = vector.load %arg2[%c2_80, %c0_81, %c0_82] : memref<5x16x8xf32, #tpu.memory_space<vmem>>, vector<1x16x8xf32>
    %100 = vector.shape_cast %99 : vector<1x16x8xf32> to vector<16x8xf32>
    %cst_83 = arith.constant dense<0.000000e+00> : vector<4x8xf32>
    %101 = tpu.matmul %98, %100, %cst_83 {dimension_numbers = #tpu.dot_dimension_numbers<[1], [0], [0], [1], [0, 0, 1, 1], [], []>} : vector<4x16xf32>, vector<16x8xf32>, vector<4x8xf32> -> vector<4x8xf32>
    %102 = arith.addf %97, %101 : vector<4x8xf32>
    %103 = vector.extract_strided_slice %1 {offsets = [0, 112], sizes = [4, 16], strides = [1, 1]} : vector<4x256xf32> to vector<4x16xf32>
    %c3_84 = arith.constant 3 : index
    %c0_85 = arith.constant 0 : index
    %c0_86 = arith.constant 0 : index
    %104 = vector.load %arg2[%c3_84, %c0_85, %c0_86] : memref<5x16x8xf32, #tpu.memory_space<vmem>>, vector<1x16x8xf32>
    %105 = vector.shape_cast %104 : vector<1x16x8xf32> to vector<16x8xf32>
    %cst_87 = arith.constant dense<0.000000e+00> : vector<4x8xf32>
    %106 = tpu.matmul %103, %105, %cst_87 {dimension_numbers = #tpu.dot_dimension_numbers<[1], [0], [0], [1], [0, 0, 1, 1], [], []>} : vector<4x16xf32>, vector<16x8xf32>, vector<4x8xf32> -> vector<4x8xf32>
    %107 = arith.addf %102, %106 : vector<4x8xf32>
    %108 = vector.extract_strided_slice %1 {offsets = [0, 128], sizes = [4, 16], strides = [1, 1]} : vector<4x256xf32> to vector<4x16xf32>
    %c4_88 = arith.constant 4 : index
    %c0_89 = arith.constant 0 : index
    %c0_90 = arith.constant 0 : index
    %109 = vector.load %arg2[%c4_88, %c0_89, %c0_90] : memref<5x16x8xf32, #tpu.memory_space<vmem>>, vector<1x16x8xf32>
    %110 = vector.shape_cast %109 : vector<1x16x8xf32> to vector<16x8xf32>
    %cst_91 = arith.constant dense<0.000000e+00> : vector<4x8xf32>
    %111 = tpu.matmul %108, %110, %cst_91 {dimension_numbers = #tpu.dot_dimension_numbers<[1], [0], [0], [1], [0, 0, 1, 1], [], []>} : vector<4x16xf32>, vector<16x8xf32>, vector<4x8xf32> -> vector<4x8xf32>
    %112 = arith.addf %107, %111 : vector<4x8xf32>
    %c24 = arith.constant 24 : index
    %c0_92 = arith.constant 0 : index
    %113 = vector.load %arg11[%c24, %c0_92] : memref<64x128xf32, #tpu.memory_space<vmem>>, vector<8x128xf32>
    %cst_93 = arith.constant dense<0.000000e+00> : vector<4x128xf32>
    %114 = tpu.matmul %112, %113, %cst_93 {dimension_numbers = #tpu.dot_dimension_numbers<[1], [0], [0], [1], [0, 0, 1, 1], [], []>} : vector<4x8xf32>, vector<8x128xf32>, vector<4x128xf32> -> vector<4x128xf32>
    %115 = arith.addf %85, %114 : vector<4x128xf32>
    %c24_94 = arith.constant 24 : index
    %c0_95 = arith.constant 0 : index
    %116 = vector.load %arg7[%c24_94, %c0_95] : memref<64x128xf32, #tpu.memory_space<vmem>>, vector<8x128xf32>
    %cst_96 = arith.constant dense<0.000000e+00> : vector<4x128xf32>
    %117 = tpu.matmul %112, %116, %cst_96 {dimension_numbers = #tpu.dot_dimension_numbers<[1], [0], [0], [1], [0, 0, 1, 1], [], []>} : vector<4x8xf32>, vector<8x128xf32>, vector<4x128xf32> -> vector<4x128xf32>
    %118 = arith.addf %88, %117 : vector<4x128xf32>
    %119 = vector.extract_strided_slice %1 {offsets = [0, 96], sizes = [4, 16], strides = [1, 1]} : vector<4x256xf32> to vector<4x16xf32>
    %c0_97 = arith.constant 0 : index
    %c0_98 = arith.constant 0 : index
    %c0_99 = arith.constant 0 : index
    %120 = vector.load %arg2[%c0_97, %c0_98, %c0_99] : memref<5x16x8xf32, #tpu.memory_space<vmem>>, vector<1x16x8xf32>
    %121 = vector.shape_cast %120 : vector<1x16x8xf32> to vector<16x8xf32>
    %cst_100 = arith.constant dense<0.000000e+00> : vector<4x8xf32>
    %122 = tpu.matmul %119, %121, %cst_100 {dimension_numbers = #tpu.dot_dimension_numbers<[1], [0], [0], [1], [0, 0, 1, 1], [], []>} : vector<4x16xf32>, vector<16x8xf32>, vector<4x8xf32> -> vector<4x8xf32>
    %123 = vector.extract_strided_slice %1 {offsets = [0, 112], sizes = [4, 16], strides = [1, 1]} : vector<4x256xf32> to vector<4x16xf32>
    %c1_101 = arith.constant 1 : index
    %c0_102 = arith.constant 0 : index
    %c0_103 = arith.constant 0 : index
    %124 = vector.load %arg2[%c1_101, %c0_102, %c0_103] : memref<5x16x8xf32, #tpu.memory_space<vmem>>, vector<1x16x8xf32>
    %125 = vector.shape_cast %124 : vector<1x16x8xf32> to vector<16x8xf32>
    %cst_104 = arith.constant dense<0.000000e+00> : vector<4x8xf32>
    %126 = tpu.matmul %123, %125, %cst_104 {dimension_numbers = #tpu.dot_dimension_numbers<[1], [0], [0], [1], [0, 0, 1, 1], [], []>} : vector<4x16xf32>, vector<16x8xf32>, vector<4x8xf32> -> vector<4x8xf32>
    %127 = arith.addf %122, %126 : vector<4x8xf32>
    %128 = vector.extract_strided_slice %1 {offsets = [0, 128], sizes = [4, 16], strides = [1, 1]} : vector<4x256xf32> to vector<4x16xf32>
    %c2_105 = arith.constant 2 : index
    %c0_106 = arith.constant 0 : index
    %c0_107 = arith.constant 0 : index
    %129 = vector.load %arg2[%c2_105, %c0_106, %c0_107] : memref<5x16x8xf32, #tpu.memory_space<vmem>>, vector<1x16x8xf32>
    %130 = vector.shape_cast %129 : vector<1x16x8xf32> to vector<16x8xf32>
    %cst_108 = arith.constant dense<0.000000e+00> : vector<4x8xf32>
    %131 = tpu.matmul %128, %130, %cst_108 {dimension_numbers = #tpu.dot_dimension_numbers<[1], [0], [0], [1], [0, 0, 1, 1], [], []>} : vector<4x16xf32>, vector<16x8xf32>, vector<4x8xf32> -> vector<4x8xf32>
    %132 = arith.addf %127, %131 : vector<4x8xf32>
    %133 = vector.extract_strided_slice %1 {offsets = [0, 144], sizes = [4, 16], strides = [1, 1]} : vector<4x256xf32> to vector<4x16xf32>
    %c3_109 = arith.constant 3 : index
    %c0_110 = arith.constant 0 : index
    %c0_111 = arith.constant 0 : index
    %134 = vector.load %arg2[%c3_109, %c0_110, %c0_111] : memref<5x16x8xf32, #tpu.memory_space<vmem>>, vector<1x16x8xf32>
    %135 = vector.shape_cast %134 : vector<1x16x8xf32> to vector<16x8xf32>
    %cst_112 = arith.constant dense<0.000000e+00> : vector<4x8xf32>
    %136 = tpu.matmul %133, %135, %cst_112 {dimension_numbers = #tpu.dot_dimension_numbers<[1], [0], [0], [1], [0, 0, 1, 1], [], []>} : vector<4x16xf32>, vector<16x8xf32>, vector<4x8xf32> -> vector<4x8xf32>
    %137 = arith.addf %132, %136 : vector<4x8xf32>
    %138 = vector.extract_strided_slice %1 {offsets = [0, 160], sizes = [4, 16], strides = [1, 1]} : vector<4x256xf32> to vector<4x16xf32>
    %c4_113 = arith.constant 4 : index
    %c0_114 = arith.constant 0 : index
    %c0_115 = arith.constant 0 : index
    %139 = vector.load %arg2[%c4_113, %c0_114, %c0_115] : memref<5x16x8xf32, #tpu.memory_space<vmem>>, vector<1x16x8xf32>
    %140 = vector.shape_cast %139 : vector<1x16x8xf32> to vector<16x8xf32>
    %cst_116 = arith.constant dense<0.000000e+00> : vector<4x8xf32>
    %141 = tpu.matmul %138, %140, %cst_116 {dimension_numbers = #tpu.dot_dimension_numbers<[1], [0], [0], [1], [0, 0, 1, 1], [], []>} : vector<4x16xf32>, vector<16x8xf32>, vector<4x8xf32> -> vector<4x8xf32>
    %142 = arith.addf %137, %141 : vector<4x8xf32>
    %c32 = arith.constant 32 : index
    %c0_117 = arith.constant 0 : index
    %143 = vector.load %arg11[%c32, %c0_117] : memref<64x128xf32, #tpu.memory_space<vmem>>, vector<8x128xf32>
    %cst_118 = arith.constant dense<0.000000e+00> : vector<4x128xf32>
    %144 = tpu.matmul %142, %143, %cst_118 {dimension_numbers = #tpu.dot_dimension_numbers<[1], [0], [0], [1], [0, 0, 1, 1], [], []>} : vector<4x8xf32>, vector<8x128xf32>, vector<4x128xf32> -> vector<4x128xf32>
    %145 = arith.addf %115, %144 : vector<4x128xf32>
    %c32_119 = arith.constant 32 : index
    %c0_120 = arith.constant 0 : index
    %146 = vector.load %arg7[%c32_119, %c0_120] : memref<64x128xf32, #tpu.memory_space<vmem>>, vector<8x128xf32>
    %cst_121 = arith.constant dense<0.000000e+00> : vector<4x128xf32>
    %147 = tpu.matmul %142, %146, %cst_121 {dimension_numbers = #tpu.dot_dimension_numbers<[1], [0], [0], [1], [0, 0, 1, 1], [], []>} : vector<4x8xf32>, vector<8x128xf32>, vector<4x128xf32> -> vector<4x128xf32>
    %148 = arith.addf %118, %147 : vector<4x128xf32>
    %149 = vector.extract_strided_slice %1 {offsets = [0, 128], sizes = [4, 16], strides = [1, 1]} : vector<4x256xf32> to vector<4x16xf32>
    %c0_122 = arith.constant 0 : index
    %c0_123 = arith.constant 0 : index
    %c0_124 = arith.constant 0 : index
    %150 = vector.load %arg2[%c0_122, %c0_123, %c0_124] : memref<5x16x8xf32, #tpu.memory_space<vmem>>, vector<1x16x8xf32>
    %151 = vector.shape_cast %150 : vector<1x16x8xf32> to vector<16x8xf32>
    %cst_125 = arith.constant dense<0.000000e+00> : vector<4x8xf32>
    %152 = tpu.matmul %149, %151, %cst_125 {dimension_numbers = #tpu.dot_dimension_numbers<[1], [0], [0], [1], [0, 0, 1, 1], [], []>} : vector<4x16xf32>, vector<16x8xf32>, vector<4x8xf32> -> vector<4x8xf32>
    %153 = vector.extract_strided_slice %1 {offsets = [0, 144], sizes = [4, 16], strides = [1, 1]} : vector<4x256xf32> to vector<4x16xf32>
    %c1_126 = arith.constant 1 : index
    %c0_127 = arith.constant 0 : index
    %c0_128 = arith.constant 0 : index
    %154 = vector.load %arg2[%c1_126, %c0_127, %c0_128] : memref<5x16x8xf32, #tpu.memory_space<vmem>>, vector<1x16x8xf32>
    %155 = vector.shape_cast %154 : vector<1x16x8xf32> to vector<16x8xf32>
    %cst_129 = arith.constant dense<0.000000e+00> : vector<4x8xf32>
    %156 = tpu.matmul %153, %155, %cst_129 {dimension_numbers = #tpu.dot_dimension_numbers<[1], [0], [0], [1], [0, 0, 1, 1], [], []>} : vector<4x16xf32>, vector<16x8xf32>, vector<4x8xf32> -> vector<4x8xf32>
    %157 = arith.addf %152, %156 : vector<4x8xf32>
    %158 = vector.extract_strided_slice %1 {offsets = [0, 160], sizes = [4, 16], strides = [1, 1]} : vector<4x256xf32> to vector<4x16xf32>
    %c2_130 = arith.constant 2 : index
    %c0_131 = arith.constant 0 : index
    %c0_132 = arith.constant 0 : index
    %159 = vector.load %arg2[%c2_130, %c0_131, %c0_132] : memref<5x16x8xf32, #tpu.memory_space<vmem>>, vector<1x16x8xf32>
    %160 = vector.shape_cast %159 : vector<1x16x8xf32> to vector<16x8xf32>
    %cst_133 = arith.constant dense<0.000000e+00> : vector<4x8xf32>
    %161 = tpu.matmul %158, %160, %cst_133 {dimension_numbers = #tpu.dot_dimension_numbers<[1], [0], [0], [1], [0, 0, 1, 1], [], []>} : vector<4x16xf32>, vector<16x8xf32>, vector<4x8xf32> -> vector<4x8xf32>
    %162 = arith.addf %157, %161 : vector<4x8xf32>
    %163 = vector.extract_strided_slice %1 {offsets = [0, 176], sizes = [4, 16], strides = [1, 1]} : vector<4x256xf32> to vector<4x16xf32>
    %c3_134 = arith.constant 3 : index
    %c0_135 = arith.constant 0 : index
    %c0_136 = arith.constant 0 : index
    %164 = vector.load %arg2[%c3_134, %c0_135, %c0_136] : memref<5x16x8xf32, #tpu.memory_space<vmem>>, vector<1x16x8xf32>
    %165 = vector.shape_cast %164 : vector<1x16x8xf32> to vector<16x8xf32>
    %cst_137 = arith.constant dense<0.000000e+00> : vector<4x8xf32>
    %166 = tpu.matmul %163, %165, %cst_137 {dimension_numbers = #tpu.dot_dimension_numbers<[1], [0], [0], [1], [0, 0, 1, 1], [], []>} : vector<4x16xf32>, vector<16x8xf32>, vector<4x8xf32> -> vector<4x8xf32>
    %167 = arith.addf %162, %166 : vector<4x8xf32>
    %168 = vector.extract_strided_slice %1 {offsets = [0, 192], sizes = [4, 16], strides = [1, 1]} : vector<4x256xf32> to vector<4x16xf32>
    %c4_138 = arith.constant 4 : index
    %c0_139 = arith.constant 0 : index
    %c0_140 = arith.constant 0 : index
    %169 = vector.load %arg2[%c4_138, %c0_139, %c0_140] : memref<5x16x8xf32, #tpu.memory_space<vmem>>, vector<1x16x8xf32>
    %170 = vector.shape_cast %169 : vector<1x16x8xf32> to vector<16x8xf32>
    %cst_141 = arith.constant dense<0.000000e+00> : vector<4x8xf32>
    %171 = tpu.matmul %168, %170, %cst_141 {dimension_numbers = #tpu.dot_dimension_numbers<[1], [0], [0], [1], [0, 0, 1, 1], [], []>} : vector<4x16xf32>, vector<16x8xf32>, vector<4x8xf32> -> vector<4x8xf32>
    %172 = arith.addf %167, %171 : vector<4x8xf32>
    %c40 = arith.constant 40 : index
    %c0_142 = arith.constant 0 : index
    %173 = vector.load %arg11[%c40, %c0_142] : memref<64x128xf32, #tpu.memory_space<vmem>>, vector<8x128xf32>
    %cst_143 = arith.constant dense<0.000000e+00> : vector<4x128xf32>
    %174 = tpu.matmul %172, %173, %cst_143 {dimension_numbers = #tpu.dot_dimension_numbers<[1], [0], [0], [1], [0, 0, 1, 1], [], []>} : vector<4x8xf32>, vector<8x128xf32>, vector<4x128xf32> -> vector<4x128xf32>
    %175 = arith.addf %145, %174 : vector<4x128xf32>
    %c40_144 = arith.constant 40 : index
    %c0_145 = arith.constant 0 : index
    %176 = vector.load %arg7[%c40_144, %c0_145] : memref<64x128xf32, #tpu.memory_space<vmem>>, vector<8x128xf32>
    %cst_146 = arith.constant dense<0.000000e+00> : vector<4x128xf32>
    %177 = tpu.matmul %172, %176, %cst_146 {dimension_numbers = #tpu.dot_dimension_numbers<[1], [0], [0], [1], [0, 0, 1, 1], [], []>} : vector<4x8xf32>, vector<8x128xf32>, vector<4x128xf32> -> vector<4x128xf32>
    %178 = arith.addf %148, %177 : vector<4x128xf32>
    %179 = vector.extract_strided_slice %1 {offsets = [0, 160], sizes = [4, 16], strides = [1, 1]} : vector<4x256xf32> to vector<4x16xf32>
    %c0_147 = arith.constant 0 : index
    %c0_148 = arith.constant 0 : index
    %c0_149 = arith.constant 0 : index
    %180 = vector.load %arg2[%c0_147, %c0_148, %c0_149] : memref<5x16x8xf32, #tpu.memory_space<vmem>>, vector<1x16x8xf32>
    %181 = vector.shape_cast %180 : vector<1x16x8xf32> to vector<16x8xf32>
    %cst_150 = arith.constant dense<0.000000e+00> : vector<4x8xf32>
    %182 = tpu.matmul %179, %181, %cst_150 {dimension_numbers = #tpu.dot_dimension_numbers<[1], [0], [0], [1], [0, 0, 1, 1], [], []>} : vector<4x16xf32>, vector<16x8xf32>, vector<4x8xf32> -> vector<4x8xf32>
    %183 = vector.extract_strided_slice %1 {offsets = [0, 176], sizes = [4, 16], strides = [1, 1]} : vector<4x256xf32> to vector<4x16xf32>
    %c1_151 = arith.constant 1 : index
    %c0_152 = arith.constant 0 : index
    %c0_153 = arith.constant 0 : index
    %184 = vector.load %arg2[%c1_151, %c0_152, %c0_153] : memref<5x16x8xf32, #tpu.memory_space<vmem>>, vector<1x16x8xf32>
    %185 = vector.shape_cast %184 : vector<1x16x8xf32> to vector<16x8xf32>
    %cst_154 = arith.constant dense<0.000000e+00> : vector<4x8xf32>
    %186 = tpu.matmul %183, %185, %cst_154 {dimension_numbers = #tpu.dot_dimension_numbers<[1], [0], [0], [1], [0, 0, 1, 1], [], []>} : vector<4x16xf32>, vector<16x8xf32>, vector<4x8xf32> -> vector<4x8xf32>
    %187 = arith.addf %182, %186 : vector<4x8xf32>
    %188 = vector.extract_strided_slice %1 {offsets = [0, 192], sizes = [4, 16], strides = [1, 1]} : vector<4x256xf32> to vector<4x16xf32>
    %c2_155 = arith.constant 2 : index
    %c0_156 = arith.constant 0 : index
    %c0_157 = arith.constant 0 : index
    %189 = vector.load %arg2[%c2_155, %c0_156, %c0_157] : memref<5x16x8xf32, #tpu.memory_space<vmem>>, vector<1x16x8xf32>
    %190 = vector.shape_cast %189 : vector<1x16x8xf32> to vector<16x8xf32>
    %cst_158 = arith.constant dense<0.000000e+00> : vector<4x8xf32>
    %191 = tpu.matmul %188, %190, %cst_158 {dimension_numbers = #tpu.dot_dimension_numbers<[1], [0], [0], [1], [0, 0, 1, 1], [], []>} : vector<4x16xf32>, vector<16x8xf32>, vector<4x8xf32> -> vector<4x8xf32>
    %192 = arith.addf %187, %191 : vector<4x8xf32>
    %193 = vector.extract_strided_slice %1 {offsets = [0, 208], sizes = [4, 16], strides = [1, 1]} : vector<4x256xf32> to vector<4x16xf32>
    %c3_159 = arith.constant 3 : index
    %c0_160 = arith.constant 0 : index
    %c0_161 = arith.constant 0 : index
    %194 = vector.load %arg2[%c3_159, %c0_160, %c0_161] : memref<5x16x8xf32, #tpu.memory_space<vmem>>, vector<1x16x8xf32>
    %195 = vector.shape_cast %194 : vector<1x16x8xf32> to vector<16x8xf32>
    %cst_162 = arith.constant dense<0.000000e+00> : vector<4x8xf32>
    %196 = tpu.matmul %193, %195, %cst_162 {dimension_numbers = #tpu.dot_dimension_numbers<[1], [0], [0], [1], [0, 0, 1, 1], [], []>} : vector<4x16xf32>, vector<16x8xf32>, vector<4x8xf32> -> vector<4x8xf32>
    %197 = arith.addf %192, %196 : vector<4x8xf32>
    %198 = vector.extract_strided_slice %1 {offsets = [0, 224], sizes = [4, 16], strides = [1, 1]} : vector<4x256xf32> to vector<4x16xf32>
    %c4_163 = arith.constant 4 : index
    %c0_164 = arith.constant 0 : index
    %c0_165 = arith.constant 0 : index
    %199 = vector.load %arg2[%c4_163, %c0_164, %c0_165] : memref<5x16x8xf32, #tpu.memory_space<vmem>>, vector<1x16x8xf32>
    %200 = vector.shape_cast %199 : vector<1x16x8xf32> to vector<16x8xf32>
    %cst_166 = arith.constant dense<0.000000e+00> : vector<4x8xf32>
    %201 = tpu.matmul %198, %200, %cst_166 {dimension_numbers = #tpu.dot_dimension_numbers<[1], [0], [0], [1], [0, 0, 1, 1], [], []>} : vector<4x16xf32>, vector<16x8xf32>, vector<4x8xf32> -> vector<4x8xf32>
    %202 = arith.addf %197, %201 : vector<4x8xf32>
    %c48 = arith.constant 48 : index
    %c0_167 = arith.constant 0 : index
    %203 = vector.load %arg11[%c48, %c0_167] : memref<64x128xf32, #tpu.memory_space<vmem>>, vector<8x128xf32>
    %cst_168 = arith.constant dense<0.000000e+00> : vector<4x128xf32>
    %204 = tpu.matmul %202, %203, %cst_168 {dimension_numbers = #tpu.dot_dimension_numbers<[1], [0], [0], [1], [0, 0, 1, 1], [], []>} : vector<4x8xf32>, vector<8x128xf32>, vector<4x128xf32> -> vector<4x128xf32>
    %205 = arith.addf %175, %204 : vector<4x128xf32>
    %c48_169 = arith.constant 48 : index
    %c0_170 = arith.constant 0 : index
    %206 = vector.load %arg7[%c48_169, %c0_170] : memref<64x128xf32, #tpu.memory_space<vmem>>, vector<8x128xf32>
    %cst_171 = arith.constant dense<0.000000e+00> : vector<4x128xf32>
    %207 = tpu.matmul %202, %206, %cst_171 {dimension_numbers = #tpu.dot_dimension_numbers<[1], [0], [0], [1], [0, 0, 1, 1], [], []>} : vector<4x8xf32>, vector<8x128xf32>, vector<4x128xf32> -> vector<4x128xf32>
    %208 = arith.addf %178, %207 : vector<4x128xf32>
    %209 = vector.extract_strided_slice %1 {offsets = [0, 192], sizes = [4, 16], strides = [1, 1]} : vector<4x256xf32> to vector<4x16xf32>
    %c0_172 = arith.constant 0 : index
    %c0_173 = arith.constant 0 : index
    %c0_174 = arith.constant 0 : index
    %210 = vector.load %arg2[%c0_172, %c0_173, %c0_174] : memref<5x16x8xf32, #tpu.memory_space<vmem>>, vector<1x16x8xf32>
    %211 = vector.shape_cast %210 : vector<1x16x8xf32> to vector<16x8xf32>
    %cst_175 = arith.constant dense<0.000000e+00> : vector<4x8xf32>
    %212 = tpu.matmul %209, %211, %cst_175 {dimension_numbers = #tpu.dot_dimension_numbers<[1], [0], [0], [1], [0, 0, 1, 1], [], []>} : vector<4x16xf32>, vector<16x8xf32>, vector<4x8xf32> -> vector<4x8xf32>
    %213 = vector.extract_strided_slice %1 {offsets = [0, 208], sizes = [4, 16], strides = [1, 1]} : vector<4x256xf32> to vector<4x16xf32>
    %c1_176 = arith.constant 1 : index
    %c0_177 = arith.constant 0 : index
    %c0_178 = arith.constant 0 : index
    %214 = vector.load %arg2[%c1_176, %c0_177, %c0_178] : memref<5x16x8xf32, #tpu.memory_space<vmem>>, vector<1x16x8xf32>
    %215 = vector.shape_cast %214 : vector<1x16x8xf32> to vector<16x8xf32>
    %cst_179 = arith.constant dense<0.000000e+00> : vector<4x8xf32>
    %216 = tpu.matmul %213, %215, %cst_179 {dimension_numbers = #tpu.dot_dimension_numbers<[1], [0], [0], [1], [0, 0, 1, 1], [], []>} : vector<4x16xf32>, vector<16x8xf32>, vector<4x8xf32> -> vector<4x8xf32>
    %217 = arith.addf %212, %216 : vector<4x8xf32>
    %218 = vector.extract_strided_slice %1 {offsets = [0, 224], sizes = [4, 16], strides = [1, 1]} : vector<4x256xf32> to vector<4x16xf32>
    %c2_180 = arith.constant 2 : index
    %c0_181 = arith.constant 0 : index
    %c0_182 = arith.constant 0 : index
    %219 = vector.load %arg2[%c2_180, %c0_181, %c0_182] : memref<5x16x8xf32, #tpu.memory_space<vmem>>, vector<1x16x8xf32>
    %220 = vector.shape_cast %219 : vector<1x16x8xf32> to vector<16x8xf32>
    %cst_183 = arith.constant dense<0.000000e+00> : vector<4x8xf32>
    %221 = tpu.matmul %218, %220, %cst_183 {dimension_numbers = #tpu.dot_dimension_numbers<[1], [0], [0], [1], [0, 0, 1, 1], [], []>} : vector<4x16xf32>, vector<16x8xf32>, vector<4x8xf32> -> vector<4x8xf32>
    %222 = arith.addf %217, %221 : vector<4x8xf32>
    %223 = vector.extract_strided_slice %1 {offsets = [0, 240], sizes = [4, 16], strides = [1, 1]} : vector<4x256xf32> to vector<4x16xf32>
    %c3_184 = arith.constant 3 : index
    %c0_185 = arith.constant 0 : index
    %c0_186 = arith.constant 0 : index
    %224 = vector.load %arg2[%c3_184, %c0_185, %c0_186] : memref<5x16x8xf32, #tpu.memory_space<vmem>>, vector<1x16x8xf32>
    %225 = vector.shape_cast %224 : vector<1x16x8xf32> to vector<16x8xf32>
    %cst_187 = arith.constant dense<0.000000e+00> : vector<4x8xf32>
    %226 = tpu.matmul %223, %225, %cst_187 {dimension_numbers = #tpu.dot_dimension_numbers<[1], [0], [0], [1], [0, 0, 1, 1], [], []>} : vector<4x16xf32>, vector<16x8xf32>, vector<4x8xf32> -> vector<4x8xf32>
    %227 = arith.addf %222, %226 : vector<4x8xf32>
    %c56 = arith.constant 56 : index
    %c0_188 = arith.constant 0 : index
    %228 = vector.load %arg11[%c56, %c0_188] : memref<64x128xf32, #tpu.memory_space<vmem>>, vector<8x128xf32>
    %cst_189 = arith.constant dense<0.000000e+00> : vector<4x128xf32>
    %229 = tpu.matmul %227, %228, %cst_189 {dimension_numbers = #tpu.dot_dimension_numbers<[1], [0], [0], [1], [0, 0, 1, 1], [], []>} : vector<4x8xf32>, vector<8x128xf32>, vector<4x128xf32> -> vector<4x128xf32>
    %230 = arith.addf %205, %229 : vector<4x128xf32>
    %c56_190 = arith.constant 56 : index
    %c0_191 = arith.constant 0 : index
    %231 = vector.load %arg7[%c56_190, %c0_191] : memref<64x128xf32, #tpu.memory_space<vmem>>, vector<8x128xf32>
    %cst_192 = arith.constant dense<0.000000e+00> : vector<4x128xf32>
    %232 = tpu.matmul %227, %231, %cst_192 {dimension_numbers = #tpu.dot_dimension_numbers<[1], [0], [0], [1], [0, 0, 1, 1], [], []>} : vector<4x8xf32>, vector<8x128xf32>, vector<4x128xf32> -> vector<4x128xf32>
    %233 = arith.addf %208, %232 : vector<4x128xf32>
    %234 = vector.extract_strided_slice %2 {offsets = [0, 0], sizes = [4, 128], strides = [1, 1]} : vector<20x128xf32> to vector<4x128xf32>
    %235 = arith.mulf %234, %230 : vector<4x128xf32>
    %cst_193 = arith.constant 4.000000e+00 : f32
    %236 = vector.broadcast %cst_193 : f32 to vector<4x128xf32>
    %237 = arith.mulf %236, %235 : vector<4x128xf32>
    %238 = arith.subf %6, %237 : vector<4x128xf32>
    %239 = vector.extract_strided_slice %2 {offsets = [4, 0], sizes = [4, 128], strides = [1, 1]} : vector<20x128xf32> to vector<4x128xf32>
    %240 = arith.mulf %239, %233 : vector<4x128xf32>
    %241 = arith.addf %238, %240 : vector<4x128xf32>
    %cst_194 = arith.constant 0.000000e+00 : f32
    %242 = vector.broadcast %cst_194 : f32 to vector<4x128xf32>
    %cst_195 = arith.constant 0.000000e+00 : f32
    %243 = vector.broadcast %cst_195 : f32 to vector<4x128xf32>
    %c2_196 = arith.constant 2 : index
    %c0_197 = arith.constant 0 : index
    %c0_198 = arith.constant 0 : index
    %244 = vector.load %arg3[%c2_196, %c0_197, %c0_198] : memref<5x8x4xf32, #tpu.memory_space<vmem>>, vector<1x8x4xf32>
    %245 = vector.shape_cast %244 : vector<1x8x4xf32> to vector<8x4xf32>
    %cst_199 = arith.constant dense<0.000000e+00> : vector<4x4xf32>
    %246 = tpu.matmul %22, %245, %cst_199 {dimension_numbers = #tpu.dot_dimension_numbers<[1], [0], [0], [1], [0, 0, 1, 1], [], []>} : vector<4x8xf32>, vector<8x4xf32>, vector<4x4xf32> -> vector<4x4xf32>
    %c3_200 = arith.constant 3 : index
    %c0_201 = arith.constant 0 : index
    %c0_202 = arith.constant 0 : index
    %247 = vector.load %arg3[%c3_200, %c0_201, %c0_202] : memref<5x8x4xf32, #tpu.memory_space<vmem>>, vector<1x8x4xf32>
    %248 = vector.shape_cast %247 : vector<1x8x4xf32> to vector<8x4xf32>
    %cst_203 = arith.constant dense<0.000000e+00> : vector<4x4xf32>
    %249 = tpu.matmul %52, %248, %cst_203 {dimension_numbers = #tpu.dot_dimension_numbers<[1], [0], [0], [1], [0, 0, 1, 1], [], []>} : vector<4x8xf32>, vector<8x4xf32>, vector<4x4xf32> -> vector<4x4xf32>
    %250 = arith.addf %246, %249 : vector<4x4xf32>
    %c4_204 = arith.constant 4 : index
    %c0_205 = arith.constant 0 : index
    %c0_206 = arith.constant 0 : index
    %251 = vector.load %arg3[%c4_204, %c0_205, %c0_206] : memref<5x8x4xf32, #tpu.memory_space<vmem>>, vector<1x8x4xf32>
    %252 = vector.shape_cast %251 : vector<1x8x4xf32> to vector<8x4xf32>
    %cst_207 = arith.constant dense<0.000000e+00> : vector<4x4xf32>
    %253 = tpu.matmul %82, %252, %cst_207 {dimension_numbers = #tpu.dot_dimension_numbers<[1], [0], [0], [1], [0, 0, 1, 1], [], []>} : vector<4x8xf32>, vector<8x4xf32>, vector<4x4xf32> -> vector<4x4xf32>
    %254 = arith.addf %250, %253 : vector<4x4xf32>
    %c0_208 = arith.constant 0 : index
    %c0_209 = arith.constant 0 : index
    %255 = vector.load %arg12[%c0_208, %c0_209] : memref<16x128xf32, #tpu.memory_space<vmem>>, vector<4x128xf32>
    %cst_210 = arith.constant dense<0.000000e+00> : vector<4x128xf32>
    %256 = tpu.matmul %254, %255, %cst_210 {dimension_numbers = #tpu.dot_dimension_numbers<[1], [0], [0], [1], [0, 0, 1, 1], [], []>} : vector<4x4xf32>, vector<4x128xf32>, vector<4x128xf32> -> vector<4x128xf32>
    %257 = arith.addf %242, %256 : vector<4x128xf32>
    %c0_211 = arith.constant 0 : index
    %c0_212 = arith.constant 0 : index
    %258 = vector.load %arg8[%c0_211, %c0_212] : memref<16x128xf32, #tpu.memory_space<vmem>>, vector<4x128xf32>
    %cst_213 = arith.constant dense<0.000000e+00> : vector<4x128xf32>
    %259 = tpu.matmul %254, %258, %cst_213 {dimension_numbers = #tpu.dot_dimension_numbers<[1], [0], [0], [1], [0, 0, 1, 1], [], []>} : vector<4x4xf32>, vector<4x128xf32>, vector<4x128xf32> -> vector<4x128xf32>
    %260 = arith.addf %243, %259 : vector<4x128xf32>
    %c0_214 = arith.constant 0 : index
    %c0_215 = arith.constant 0 : index
    %c0_216 = arith.constant 0 : index
    %261 = vector.load %arg3[%c0_214, %c0_215, %c0_216] : memref<5x8x4xf32, #tpu.memory_space<vmem>>, vector<1x8x4xf32>
    %262 = vector.shape_cast %261 : vector<1x8x4xf32> to vector<8x4xf32>
    %cst_217 = arith.constant dense<0.000000e+00> : vector<4x4xf32>
    %263 = tpu.matmul %22, %262, %cst_217 {dimension_numbers = #tpu.dot_dimension_numbers<[1], [0], [0], [1], [0, 0, 1, 1], [], []>} : vector<4x8xf32>, vector<8x4xf32>, vector<4x4xf32> -> vector<4x4xf32>
    %c1_218 = arith.constant 1 : index
    %c0_219 = arith.constant 0 : index
    %c0_220 = arith.constant 0 : index
    %264 = vector.load %arg3[%c1_218, %c0_219, %c0_220] : memref<5x8x4xf32, #tpu.memory_space<vmem>>, vector<1x8x4xf32>
    %265 = vector.shape_cast %264 : vector<1x8x4xf32> to vector<8x4xf32>
    %cst_221 = arith.constant dense<0.000000e+00> : vector<4x4xf32>
    %266 = tpu.matmul %52, %265, %cst_221 {dimension_numbers = #tpu.dot_dimension_numbers<[1], [0], [0], [1], [0, 0, 1, 1], [], []>} : vector<4x8xf32>, vector<8x4xf32>, vector<4x4xf32> -> vector<4x4xf32>
    %267 = arith.addf %263, %266 : vector<4x4xf32>
    %c2_222 = arith.constant 2 : index
    %c0_223 = arith.constant 0 : index
    %c0_224 = arith.constant 0 : index
    %268 = vector.load %arg3[%c2_222, %c0_223, %c0_224] : memref<5x8x4xf32, #tpu.memory_space<vmem>>, vector<1x8x4xf32>
    %269 = vector.shape_cast %268 : vector<1x8x4xf32> to vector<8x4xf32>
    %cst_225 = arith.constant dense<0.000000e+00> : vector<4x4xf32>
    %270 = tpu.matmul %82, %269, %cst_225 {dimension_numbers = #tpu.dot_dimension_numbers<[1], [0], [0], [1], [0, 0, 1, 1], [], []>} : vector<4x8xf32>, vector<8x4xf32>, vector<4x4xf32> -> vector<4x4xf32>
    %271 = arith.addf %267, %270 : vector<4x4xf32>
    %c3_226 = arith.constant 3 : index
    %c0_227 = arith.constant 0 : index
    %c0_228 = arith.constant 0 : index
    %272 = vector.load %arg3[%c3_226, %c0_227, %c0_228] : memref<5x8x4xf32, #tpu.memory_space<vmem>>, vector<1x8x4xf32>
    %273 = vector.shape_cast %272 : vector<1x8x4xf32> to vector<8x4xf32>
    %cst_229 = arith.constant dense<0.000000e+00> : vector<4x4xf32>
    %274 = tpu.matmul %112, %273, %cst_229 {dimension_numbers = #tpu.dot_dimension_numbers<[1], [0], [0], [1], [0, 0, 1, 1], [], []>} : vector<4x8xf32>, vector<8x4xf32>, vector<4x4xf32> -> vector<4x4xf32>
    %275 = arith.addf %271, %274 : vector<4x4xf32>
    %c4_230 = arith.constant 4 : index
    %c0_231 = arith.constant 0 : index
    %c0_232 = arith.constant 0 : index
    %276 = vector.load %arg3[%c4_230, %c0_231, %c0_232] : memref<5x8x4xf32, #tpu.memory_space<vmem>>, vector<1x8x4xf32>
    %277 = vector.shape_cast %276 : vector<1x8x4xf32> to vector<8x4xf32>
    %cst_233 = arith.constant dense<0.000000e+00> : vector<4x4xf32>
    %278 = tpu.matmul %142, %277, %cst_233 {dimension_numbers = #tpu.dot_dimension_numbers<[1], [0], [0], [1], [0, 0, 1, 1], [], []>} : vector<4x8xf32>, vector<8x4xf32>, vector<4x4xf32> -> vector<4x4xf32>
    %279 = arith.addf %275, %278 : vector<4x4xf32>
    %c4_234 = arith.constant 4 : index
    %c0_235 = arith.constant 0 : index
    %280 = vector.load %arg12[%c4_234, %c0_235] : memref<16x128xf32, #tpu.memory_space<vmem>>, vector<4x128xf32>
    %cst_236 = arith.constant dense<0.000000e+00> : vector<4x128xf32>
    %281 = tpu.matmul %279, %280, %cst_236 {dimension_numbers = #tpu.dot_dimension_numbers<[1], [0], [0], [1], [0, 0, 1, 1], [], []>} : vector<4x4xf32>, vector<4x128xf32>, vector<4x128xf32> -> vector<4x128xf32>
    %282 = arith.addf %257, %281 : vector<4x128xf32>
    %c4_237 = arith.constant 4 : index
    %c0_238 = arith.constant 0 : index
    %283 = vector.load %arg8[%c4_237, %c0_238] : memref<16x128xf32, #tpu.memory_space<vmem>>, vector<4x128xf32>
    %cst_239 = arith.constant dense<0.000000e+00> : vector<4x128xf32>
    %284 = tpu.matmul %279, %283, %cst_239 {dimension_numbers = #tpu.dot_dimension_numbers<[1], [0], [0], [1], [0, 0, 1, 1], [], []>} : vector<4x4xf32>, vector<4x128xf32>, vector<4x128xf32> -> vector<4x128xf32>
    %285 = arith.addf %260, %284 : vector<4x128xf32>
    %c0_240 = arith.constant 0 : index
    %c0_241 = arith.constant 0 : index
    %c0_242 = arith.constant 0 : index
    %286 = vector.load %arg3[%c0_240, %c0_241, %c0_242] : memref<5x8x4xf32, #tpu.memory_space<vmem>>, vector<1x8x4xf32>
    %287 = vector.shape_cast %286 : vector<1x8x4xf32> to vector<8x4xf32>
    %cst_243 = arith.constant dense<0.000000e+00> : vector<4x4xf32>
    %288 = tpu.matmul %82, %287, %cst_243 {dimension_numbers = #tpu.dot_dimension_numbers<[1], [0], [0], [1], [0, 0, 1, 1], [], []>} : vector<4x8xf32>, vector<8x4xf32>, vector<4x4xf32> -> vector<4x4xf32>
    %c1_244 = arith.constant 1 : index
    %c0_245 = arith.constant 0 : index
    %c0_246 = arith.constant 0 : index
    %289 = vector.load %arg3[%c1_244, %c0_245, %c0_246] : memref<5x8x4xf32, #tpu.memory_space<vmem>>, vector<1x8x4xf32>
    %290 = vector.shape_cast %289 : vector<1x8x4xf32> to vector<8x4xf32>
    %cst_247 = arith.constant dense<0.000000e+00> : vector<4x4xf32>
    %291 = tpu.matmul %112, %290, %cst_247 {dimension_numbers = #tpu.dot_dimension_numbers<[1], [0], [0], [1], [0, 0, 1, 1], [], []>} : vector<4x8xf32>, vector<8x4xf32>, vector<4x4xf32> -> vector<4x4xf32>
    %292 = arith.addf %288, %291 : vector<4x4xf32>
    %c2_248 = arith.constant 2 : index
    %c0_249 = arith.constant 0 : index
    %c0_250 = arith.constant 0 : index
    %293 = vector.load %arg3[%c2_248, %c0_249, %c0_250] : memref<5x8x4xf32, #tpu.memory_space<vmem>>, vector<1x8x4xf32>
    %294 = vector.shape_cast %293 : vector<1x8x4xf32> to vector<8x4xf32>
    %cst_251 = arith.constant dense<0.000000e+00> : vector<4x4xf32>
    %295 = tpu.matmul %142, %294, %cst_251 {dimension_numbers = #tpu.dot_dimension_numbers<[1], [0], [0], [1], [0, 0, 1, 1], [], []>} : vector<4x8xf32>, vector<8x4xf32>, vector<4x4xf32> -> vector<4x4xf32>
    %296 = arith.addf %292, %295 : vector<4x4xf32>
    %c3_252 = arith.constant 3 : index
    %c0_253 = arith.constant 0 : index
    %c0_254 = arith.constant 0 : index
    %297 = vector.load %arg3[%c3_252, %c0_253, %c0_254] : memref<5x8x4xf32, #tpu.memory_space<vmem>>, vector<1x8x4xf32>
    %298 = vector.shape_cast %297 : vector<1x8x4xf32> to vector<8x4xf32>
    %cst_255 = arith.constant dense<0.000000e+00> : vector<4x4xf32>
    %299 = tpu.matmul %172, %298, %cst_255 {dimension_numbers = #tpu.dot_dimension_numbers<[1], [0], [0], [1], [0, 0, 1, 1], [], []>} : vector<4x8xf32>, vector<8x4xf32>, vector<4x4xf32> -> vector<4x4xf32>
    %300 = arith.addf %296, %299 : vector<4x4xf32>
    %c4_256 = arith.constant 4 : index
    %c0_257 = arith.constant 0 : index
    %c0_258 = arith.constant 0 : index
    %301 = vector.load %arg3[%c4_256, %c0_257, %c0_258] : memref<5x8x4xf32, #tpu.memory_space<vmem>>, vector<1x8x4xf32>
    %302 = vector.shape_cast %301 : vector<1x8x4xf32> to vector<8x4xf32>
    %cst_259 = arith.constant dense<0.000000e+00> : vector<4x4xf32>
    %303 = tpu.matmul %202, %302, %cst_259 {dimension_numbers = #tpu.dot_dimension_numbers<[1], [0], [0], [1], [0, 0, 1, 1], [], []>} : vector<4x8xf32>, vector<8x4xf32>, vector<4x4xf32> -> vector<4x4xf32>
    %304 = arith.addf %300, %303 : vector<4x4xf32>
    %c8_260 = arith.constant 8 : index
    %c0_261 = arith.constant 0 : index
    %305 = vector.load %arg12[%c8_260, %c0_261] : memref<16x128xf32, #tpu.memory_space<vmem>>, vector<4x128xf32>
    %cst_262 = arith.constant dense<0.000000e+00> : vector<4x128xf32>
    %306 = tpu.matmul %304, %305, %cst_262 {dimension_numbers = #tpu.dot_dimension_numbers<[1], [0], [0], [1], [0, 0, 1, 1], [], []>} : vector<4x4xf32>, vector<4x128xf32>, vector<4x128xf32> -> vector<4x128xf32>
    %307 = arith.addf %282, %306 : vector<4x128xf32>
    %c8_263 = arith.constant 8 : index
    %c0_264 = arith.constant 0 : index
    %308 = vector.load %arg8[%c8_263, %c0_264] : memref<16x128xf32, #tpu.memory_space<vmem>>, vector<4x128xf32>
    %cst_265 = arith.constant dense<0.000000e+00> : vector<4x128xf32>
    %309 = tpu.matmul %304, %308, %cst_265 {dimension_numbers = #tpu.dot_dimension_numbers<[1], [0], [0], [1], [0, 0, 1, 1], [], []>} : vector<4x4xf32>, vector<4x128xf32>, vector<4x128xf32> -> vector<4x128xf32>
    %310 = arith.addf %285, %309 : vector<4x128xf32>
    %c0_266 = arith.constant 0 : index
    %c0_267 = arith.constant 0 : index
    %c0_268 = arith.constant 0 : index
    %311 = vector.load %arg3[%c0_266, %c0_267, %c0_268] : memref<5x8x4xf32, #tpu.memory_space<vmem>>, vector<1x8x4xf32>
    %312 = vector.shape_cast %311 : vector<1x8x4xf32> to vector<8x4xf32>
    %cst_269 = arith.constant dense<0.000000e+00> : vector<4x4xf32>
    %313 = tpu.matmul %142, %312, %cst_269 {dimension_numbers = #tpu.dot_dimension_numbers<[1], [0], [0], [1], [0, 0, 1, 1], [], []>} : vector<4x8xf32>, vector<8x4xf32>, vector<4x4xf32> -> vector<4x4xf32>
    %c1_270 = arith.constant 1 : index
    %c0_271 = arith.constant 0 : index
    %c0_272 = arith.constant 0 : index
    %314 = vector.load %arg3[%c1_270, %c0_271, %c0_272] : memref<5x8x4xf32, #tpu.memory_space<vmem>>, vector<1x8x4xf32>
    %315 = vector.shape_cast %314 : vector<1x8x4xf32> to vector<8x4xf32>
    %cst_273 = arith.constant dense<0.000000e+00> : vector<4x4xf32>
    %316 = tpu.matmul %172, %315, %cst_273 {dimension_numbers = #tpu.dot_dimension_numbers<[1], [0], [0], [1], [0, 0, 1, 1], [], []>} : vector<4x8xf32>, vector<8x4xf32>, vector<4x4xf32> -> vector<4x4xf32>
    %317 = arith.addf %313, %316 : vector<4x4xf32>
    %c2_274 = arith.constant 2 : index
    %c0_275 = arith.constant 0 : index
    %c0_276 = arith.constant 0 : index
    %318 = vector.load %arg3[%c2_274, %c0_275, %c0_276] : memref<5x8x4xf32, #tpu.memory_space<vmem>>, vector<1x8x4xf32>
    %319 = vector.shape_cast %318 : vector<1x8x4xf32> to vector<8x4xf32>
    %cst_277 = arith.constant dense<0.000000e+00> : vector<4x4xf32>
    %320 = tpu.matmul %202, %319, %cst_277 {dimension_numbers = #tpu.dot_dimension_numbers<[1], [0], [0], [1], [0, 0, 1, 1], [], []>} : vector<4x8xf32>, vector<8x4xf32>, vector<4x4xf32> -> vector<4x4xf32>
    %321 = arith.addf %317, %320 : vector<4x4xf32>
    %c3_278 = arith.constant 3 : index
    %c0_279 = arith.constant 0 : index
    %c0_280 = arith.constant 0 : index
    %322 = vector.load %arg3[%c3_278, %c0_279, %c0_280] : memref<5x8x4xf32, #tpu.memory_space<vmem>>, vector<1x8x4xf32>
    %323 = vector.shape_cast %322 : vector<1x8x4xf32> to vector<8x4xf32>
    %cst_281 = arith.constant dense<0.000000e+00> : vector<4x4xf32>
    %324 = tpu.matmul %227, %323, %cst_281 {dimension_numbers = #tpu.dot_dimension_numbers<[1], [0], [0], [1], [0, 0, 1, 1], [], []>} : vector<4x8xf32>, vector<8x4xf32>, vector<4x4xf32> -> vector<4x4xf32>
    %325 = arith.addf %321, %324 : vector<4x4xf32>
    %c12 = arith.constant 12 : index
    %c0_282 = arith.constant 0 : index
    %326 = vector.load %arg12[%c12, %c0_282] : memref<16x128xf32, #tpu.memory_space<vmem>>, vector<4x128xf32>
    %cst_283 = arith.constant dense<0.000000e+00> : vector<4x128xf32>
    %327 = tpu.matmul %325, %326, %cst_283 {dimension_numbers = #tpu.dot_dimension_numbers<[1], [0], [0], [1], [0, 0, 1, 1], [], []>} : vector<4x4xf32>, vector<4x128xf32>, vector<4x128xf32> -> vector<4x128xf32>
    %328 = arith.addf %307, %327 : vector<4x128xf32>
    %c12_284 = arith.constant 12 : index
    %c0_285 = arith.constant 0 : index
    %329 = vector.load %arg8[%c12_284, %c0_285] : memref<16x128xf32, #tpu.memory_space<vmem>>, vector<4x128xf32>
    %cst_286 = arith.constant dense<0.000000e+00> : vector<4x128xf32>
    %330 = tpu.matmul %325, %329, %cst_286 {dimension_numbers = #tpu.dot_dimension_numbers<[1], [0], [0], [1], [0, 0, 1, 1], [], []>} : vector<4x4xf32>, vector<4x128xf32>, vector<4x128xf32> -> vector<4x128xf32>
    %331 = arith.addf %310, %330 : vector<4x128xf32>
    %332 = vector.extract_strided_slice %2 {offsets = [4, 0], sizes = [4, 128], strides = [1, 1]} : vector<20x128xf32> to vector<4x128xf32>
    %333 = arith.mulf %332, %328 : vector<4x128xf32>
    %cst_287 = arith.constant 4.000000e+00 : f32
    %334 = vector.broadcast %cst_287 : f32 to vector<4x128xf32>
    %335 = arith.mulf %334, %333 : vector<4x128xf32>
    %336 = arith.subf %241, %335 : vector<4x128xf32>
    %337 = vector.extract_strided_slice %2 {offsets = [8, 0], sizes = [4, 128], strides = [1, 1]} : vector<20x128xf32> to vector<4x128xf32>
    %338 = arith.mulf %337, %331 : vector<4x128xf32>
    %339 = arith.addf %336, %338 : vector<4x128xf32>
    %cst_288 = arith.constant 0.000000e+00 : f32
    %340 = vector.broadcast %cst_288 : f32 to vector<4x128xf32>
    %cst_289 = arith.constant 0.000000e+00 : f32
    %341 = vector.broadcast %cst_289 : f32 to vector<4x128xf32>
    %c2_290 = arith.constant 2 : index
    %c0_291 = arith.constant 0 : index
    %c0_292 = arith.constant 0 : index
    %342 = vector.load %arg4[%c2_290, %c0_291, %c0_292] : memref<5x4x2xf32, #tpu.memory_space<vmem>>, vector<1x4x2xf32>
    %343 = vector.shape_cast %342 : vector<1x4x2xf32> to vector<4x2xf32>
    %cst_293 = arith.constant dense<0.000000e+00> : vector<4x2xf32>
    %344 = tpu.matmul %254, %343, %cst_293 {dimension_numbers = #tpu.dot_dimension_numbers<[1], [0], [0], [1], [0, 0, 1, 1], [], []>} : vector<4x4xf32>, vector<4x2xf32>, vector<4x2xf32> -> vector<4x2xf32>
    %c3_294 = arith.constant 3 : index
    %c0_295 = arith.constant 0 : index
    %c0_296 = arith.constant 0 : index
    %345 = vector.load %arg4[%c3_294, %c0_295, %c0_296] : memref<5x4x2xf32, #tpu.memory_space<vmem>>, vector<1x4x2xf32>
    %346 = vector.shape_cast %345 : vector<1x4x2xf32> to vector<4x2xf32>
    %cst_297 = arith.constant dense<0.000000e+00> : vector<4x2xf32>
    %347 = tpu.matmul %279, %346, %cst_297 {dimension_numbers = #tpu.dot_dimension_numbers<[1], [0], [0], [1], [0, 0, 1, 1], [], []>} : vector<4x4xf32>, vector<4x2xf32>, vector<4x2xf32> -> vector<4x2xf32>
    %348 = arith.addf %344, %347 : vector<4x2xf32>
    %c4_298 = arith.constant 4 : index
    %c0_299 = arith.constant 0 : index
    %c0_300 = arith.constant 0 : index
    %349 = vector.load %arg4[%c4_298, %c0_299, %c0_300] : memref<5x4x2xf32, #tpu.memory_space<vmem>>, vector<1x4x2xf32>
    %350 = vector.shape_cast %349 : vector<1x4x2xf32> to vector<4x2xf32>
    %cst_301 = arith.constant dense<0.000000e+00> : vector<4x2xf32>
    %351 = tpu.matmul %304, %350, %cst_301 {dimension_numbers = #tpu.dot_dimension_numbers<[1], [0], [0], [1], [0, 0, 1, 1], [], []>} : vector<4x4xf32>, vector<4x2xf32>, vector<4x2xf32> -> vector<4x2xf32>
    %352 = arith.addf %348, %351 : vector<4x2xf32>
    %c0_302 = arith.constant 0 : index
    %c0_303 = arith.constant 0 : index
    %353 = vector.load %arg13[%c0_302, %c0_303] : memref<4x128xf32, #tpu.memory_space<vmem>>, vector<2x128xf32>
    %cst_304 = arith.constant dense<0.000000e+00> : vector<4x128xf32>
    %354 = tpu.matmul %352, %353, %cst_304 {dimension_numbers = #tpu.dot_dimension_numbers<[1], [0], [0], [1], [0, 0, 1, 1], [], []>} : vector<4x2xf32>, vector<2x128xf32>, vector<4x128xf32> -> vector<4x128xf32>
    %355 = arith.addf %340, %354 : vector<4x128xf32>
    %c0_305 = arith.constant 0 : index
    %c0_306 = arith.constant 0 : index
    %356 = vector.load %arg9[%c0_305, %c0_306] : memref<4x128xf32, #tpu.memory_space<vmem>>, vector<2x128xf32>
    %cst_307 = arith.constant dense<0.000000e+00> : vector<4x128xf32>
    %357 = tpu.matmul %352, %356, %cst_307 {dimension_numbers = #tpu.dot_dimension_numbers<[1], [0], [0], [1], [0, 0, 1, 1], [], []>} : vector<4x2xf32>, vector<2x128xf32>, vector<4x128xf32> -> vector<4x128xf32>
    %358 = arith.addf %341, %357 : vector<4x128xf32>
    %c0_308 = arith.constant 0 : index
    %c0_309 = arith.constant 0 : index
    %c0_310 = arith.constant 0 : index
    %359 = vector.load %arg4[%c0_308, %c0_309, %c0_310] : memref<5x4x2xf32, #tpu.memory_space<vmem>>, vector<1x4x2xf32>
    %360 = vector.shape_cast %359 : vector<1x4x2xf32> to vector<4x2xf32>
    %cst_311 = arith.constant dense<0.000000e+00> : vector<4x2xf32>
    %361 = tpu.matmul %254, %360, %cst_311 {dimension_numbers = #tpu.dot_dimension_numbers<[1], [0], [0], [1], [0, 0, 1, 1], [], []>} : vector<4x4xf32>, vector<4x2xf32>, vector<4x2xf32> -> vector<4x2xf32>
    %c1_312 = arith.constant 1 : index
    %c0_313 = arith.constant 0 : index
    %c0_314 = arith.constant 0 : index
    %362 = vector.load %arg4[%c1_312, %c0_313, %c0_314] : memref<5x4x2xf32, #tpu.memory_space<vmem>>, vector<1x4x2xf32>
    %363 = vector.shape_cast %362 : vector<1x4x2xf32> to vector<4x2xf32>
    %cst_315 = arith.constant dense<0.000000e+00> : vector<4x2xf32>
    %364 = tpu.matmul %279, %363, %cst_315 {dimension_numbers = #tpu.dot_dimension_numbers<[1], [0], [0], [1], [0, 0, 1, 1], [], []>} : vector<4x4xf32>, vector<4x2xf32>, vector<4x2xf32> -> vector<4x2xf32>
    %365 = arith.addf %361, %364 : vector<4x2xf32>
    %c2_316 = arith.constant 2 : index
    %c0_317 = arith.constant 0 : index
    %c0_318 = arith.constant 0 : index
    %366 = vector.load %arg4[%c2_316, %c0_317, %c0_318] : memref<5x4x2xf32, #tpu.memory_space<vmem>>, vector<1x4x2xf32>
    %367 = vector.shape_cast %366 : vector<1x4x2xf32> to vector<4x2xf32>
    %cst_319 = arith.constant dense<0.000000e+00> : vector<4x2xf32>
    %368 = tpu.matmul %304, %367, %cst_319 {dimension_numbers = #tpu.dot_dimension_numbers<[1], [0], [0], [1], [0, 0, 1, 1], [], []>} : vector<4x4xf32>, vector<4x2xf32>, vector<4x2xf32> -> vector<4x2xf32>
    %369 = arith.addf %365, %368 : vector<4x2xf32>
    %c3_320 = arith.constant 3 : index
    %c0_321 = arith.constant 0 : index
    %c0_322 = arith.constant 0 : index
    %370 = vector.load %arg4[%c3_320, %c0_321, %c0_322] : memref<5x4x2xf32, #tpu.memory_space<vmem>>, vector<1x4x2xf32>
    %371 = vector.shape_cast %370 : vector<1x4x2xf32> to vector<4x2xf32>
    %cst_323 = arith.constant dense<0.000000e+00> : vector<4x2xf32>
    %372 = tpu.matmul %325, %371, %cst_323 {dimension_numbers = #tpu.dot_dimension_numbers<[1], [0], [0], [1], [0, 0, 1, 1], [], []>} : vector<4x4xf32>, vector<4x2xf32>, vector<4x2xf32> -> vector<4x2xf32>
    %373 = arith.addf %369, %372 : vector<4x2xf32>
    %c2_324 = arith.constant 2 : index
    %c0_325 = arith.constant 0 : index
    %374 = vector.load %arg13[%c2_324, %c0_325] : memref<4x128xf32, #tpu.memory_space<vmem>>, vector<2x128xf32>
    %cst_326 = arith.constant dense<0.000000e+00> : vector<4x128xf32>
    %375 = tpu.matmul %373, %374, %cst_326 {dimension_numbers = #tpu.dot_dimension_numbers<[1], [0], [0], [1], [0, 0, 1, 1], [], []>} : vector<4x2xf32>, vector<2x128xf32>, vector<4x128xf32> -> vector<4x128xf32>
    %376 = arith.addf %355, %375 : vector<4x128xf32>
    %c2_327 = arith.constant 2 : index
    %c0_328 = arith.constant 0 : index
    %377 = vector.load %arg9[%c2_327, %c0_328] : memref<4x128xf32, #tpu.memory_space<vmem>>, vector<2x128xf32>
    %cst_329 = arith.constant dense<0.000000e+00> : vector<4x128xf32>
    %378 = tpu.matmul %373, %377, %cst_329 {dimension_numbers = #tpu.dot_dimension_numbers<[1], [0], [0], [1], [0, 0, 1, 1], [], []>} : vector<4x2xf32>, vector<2x128xf32>, vector<4x128xf32> -> vector<4x128xf32>
    %379 = arith.addf %358, %378 : vector<4x128xf32>
    %380 = vector.extract_strided_slice %2 {offsets = [8, 0], sizes = [4, 128], strides = [1, 1]} : vector<20x128xf32> to vector<4x128xf32>
    %381 = arith.mulf %380, %376 : vector<4x128xf32>
    %cst_330 = arith.constant 4.000000e+00 : f32
    %382 = vector.broadcast %cst_330 : f32 to vector<4x128xf32>
    %383 = arith.mulf %382, %381 : vector<4x128xf32>
    %384 = arith.subf %339, %383 : vector<4x128xf32>
    %385 = vector.extract_strided_slice %2 {offsets = [12, 0], sizes = [4, 128], strides = [1, 1]} : vector<20x128xf32> to vector<4x128xf32>
    %386 = arith.mulf %385, %379 : vector<4x128xf32>
    %387 = arith.addf %384, %386 : vector<4x128xf32>
    %cst_331 = arith.constant 0.000000e+00 : f32
    %388 = vector.broadcast %cst_331 : f32 to vector<4x128xf32>
    %cst_332 = arith.constant 0.000000e+00 : f32
    %389 = vector.broadcast %cst_332 : f32 to vector<4x128xf32>
    %c2_333 = arith.constant 2 : index
    %c0_334 = arith.constant 0 : index
    %c0_335 = arith.constant 0 : index
    %390 = vector.load %arg5[%c2_333, %c0_334, %c0_335] : memref<5x2x1xf32, #tpu.memory_space<vmem>>, vector<1x2x1xf32>
    %391 = vector.shape_cast %390 : vector<1x2x1xf32> to vector<2x1xf32>
    %cst_336 = arith.constant dense<0.000000e+00> : vector<4x1xf32>
    %392 = tpu.matmul %352, %391, %cst_336 {dimension_numbers = #tpu.dot_dimension_numbers<[1], [0], [0], [1], [0, 0, 1, 1], [], []>} : vector<4x2xf32>, vector<2x1xf32>, vector<4x1xf32> -> vector<4x1xf32>
    %c3_337 = arith.constant 3 : index
    %c0_338 = arith.constant 0 : index
    %c0_339 = arith.constant 0 : index
    %393 = vector.load %arg5[%c3_337, %c0_338, %c0_339] : memref<5x2x1xf32, #tpu.memory_space<vmem>>, vector<1x2x1xf32>
    %394 = vector.shape_cast %393 : vector<1x2x1xf32> to vector<2x1xf32>
    %cst_340 = arith.constant dense<0.000000e+00> : vector<4x1xf32>
    %395 = tpu.matmul %373, %394, %cst_340 {dimension_numbers = #tpu.dot_dimension_numbers<[1], [0], [0], [1], [0, 0, 1, 1], [], []>} : vector<4x2xf32>, vector<2x1xf32>, vector<4x1xf32> -> vector<4x1xf32>
    %396 = arith.addf %392, %395 : vector<4x1xf32>
    %c0_341 = arith.constant 0 : index
    %c0_342 = arith.constant 0 : index
    %397 = vector.load %arg14[%c0_341, %c0_342] : memref<1x128xf32, #tpu.memory_space<vmem>>, vector<1x128xf32>
    %cst_343 = arith.constant dense<0.000000e+00> : vector<4x128xf32>
    %398 = tpu.matmul %396, %397, %cst_343 {dimension_numbers = #tpu.dot_dimension_numbers<[1], [0], [0], [1], [0, 0, 1, 1], [], []>} : vector<4x1xf32>, vector<1x128xf32>, vector<4x128xf32> -> vector<4x128xf32>
    %399 = arith.addf %388, %398 : vector<4x128xf32>
    %c0_344 = arith.constant 0 : index
    %c0_345 = arith.constant 0 : index
    %400 = vector.load %arg10[%c0_344, %c0_345] : memref<1x128xf32, #tpu.memory_space<vmem>>, vector<1x128xf32>
    %cst_346 = arith.constant dense<0.000000e+00> : vector<4x128xf32>
    %401 = tpu.matmul %396, %400, %cst_346 {dimension_numbers = #tpu.dot_dimension_numbers<[1], [0], [0], [1], [0, 0, 1, 1], [], []>} : vector<4x1xf32>, vector<1x128xf32>, vector<4x128xf32> -> vector<4x128xf32>
    %402 = arith.addf %389, %401 : vector<4x128xf32>
    %403 = vector.extract_strided_slice %2 {offsets = [12, 0], sizes = [4, 128], strides = [1, 1]} : vector<20x128xf32> to vector<4x128xf32>
    %404 = arith.mulf %403, %399 : vector<4x128xf32>
    %cst_347 = arith.constant 4.000000e+00 : f32
    %405 = vector.broadcast %cst_347 : f32 to vector<4x128xf32>
    %406 = arith.mulf %405, %404 : vector<4x128xf32>
    %407 = arith.subf %387, %406 : vector<4x128xf32>
    %408 = vector.extract_strided_slice %2 {offsets = [16, 0], sizes = [4, 128], strides = [1, 1]} : vector<20x128xf32> to vector<4x128xf32>
    %409 = arith.mulf %408, %402 : vector<4x128xf32>
    %410 = arith.addf %407, %409 : vector<4x128xf32>
    %cst_348 = arith.constant dense<0.000000e+00> : vector<128xf32>
    %411 = vector.multi_reduction <add>, %410, %cst_348 [0] : vector<4x128xf32> to vector<128xf32>
    %412 = vector.shape_cast %411 : vector<128xf32> to vector<1x128xf32>
    %c0_349 = arith.constant 0 : index
    %c0_350 = arith.constant 0 : index
    %413 = vector.load %arg16[%c0_349, %c0_350] : memref<1x128xf32, #tpu.memory_space<vmem>>, vector<1x128xf32>
    %414 = arith.addf %412, %413 : vector<1x128xf32>
    %c0_351 = arith.constant 0 : index
    %c0_352 = arith.constant 0 : index
    %c0_353 = arith.constant 0 : index
    %415 = vector.load %arg17[%c0_351, %c0_352, %c0_353] : memref<1x1x128xf32, #tpu.memory_space<vmem>>, vector<1x1x128xf32>
    %416 = vector.shape_cast %415 : vector<1x1x128xf32> to vector<1x128xf32>
    %417 = vector.shape_cast %414 : vector<1x128xf32> to vector<1x1x128xf32>
    tpu.vector_store %arg17[%c0_351, %c0_352, %c0_353], %417 {strides = array<i32>} : memref<1x1x128xf32, #tpu.memory_space<vmem>>, vector<1x1x128xf32>,
    return
  }
  func.func @transform_0(%arg0: i32) -> (i32, i32, i32) {
    %c0_i32 = arith.constant 0 : i32
    %c0_i32_0 = arith.constant 0 : i32
    %c0_i32_1 = arith.constant 0 : i32
    return %arg0, %c0_i32, %c0_i32_0 : i32, i32, i32
  }
  func.func @transform_1(%arg0: i32) -> (i32, i32, i32) {
    %c0_i32 = arith.constant 0 : i32
    %c0_i32_0 = arith.constant 0 : i32
    %c0_i32_1 = arith.constant 0 : i32
    %c0_i32_2 = arith.constant 0 : i32
    return %c0_i32, %c0_i32_0, %c0_i32_1 : i32, i32, i32
  }
  func.func @transform_2(%arg0: i32) -> (i32, i32, i32) {
    %c0_i32 = arith.constant 0 : i32
    %c0_i32_0 = arith.constant 0 : i32
    %c0_i32_1 = arith.constant 0 : i32
    %c0_i32_2 = arith.constant 0 : i32
    return %c0_i32, %c0_i32_0, %c0_i32_1 : i32, i32, i32
  }
  func.func @transform_3(%arg0: i32) -> (i32, i32, i32) {
    %c0_i32 = arith.constant 0 : i32
    %c0_i32_0 = arith.constant 0 : i32
    %c0_i32_1 = arith.constant 0 : i32
    %c0_i32_2 = arith.constant 0 : i32
    return %c0_i32, %c0_i32_0, %c0_i32_1 : i32, i32, i32
  }
  func.func @transform_4(%arg0: i32) -> (i32, i32, i32) {
    %c0_i32 = arith.constant 0 : i32
    %c0_i32_0 = arith.constant 0 : i32
    %c0_i32_1 = arith.constant 0 : i32
    %c0_i32_2 = arith.constant 0 : i32
    return %c0_i32, %c0_i32_0, %c0_i32_1 : i32, i32, i32
  }
  func.func @transform_5(%arg0: i32) -> (i32, i32) {
    %c0_i32 = arith.constant 0 : i32
    %c0_i32_0 = arith.constant 0 : i32
    %c0_i32_1 = arith.constant 0 : i32
    return %c0_i32, %c0_i32_0 : i32, i32
  }
  func.func @transform_6(%arg0: i32) -> (i32, i32) {
    %c0_i32 = arith.constant 0 : i32
    %c0_i32_0 = arith.constant 0 : i32
    %c0_i32_1 = arith.constant 0 : i32
    return %c0_i32, %c0_i32_0 : i32, i32
  }
  func.func @transform_7(%arg0: i32) -> (i32, i32) {
    %c0_i32 = arith.constant 0 : i32
    %c0_i32_0 = arith.constant 0 : i32
    %c0_i32_1 = arith.constant 0 : i32
    return %c0_i32, %c0_i32_0 : i32, i32
  }
  func.func @transform_8(%arg0: i32) -> (i32, i32) {
    %c0_i32 = arith.constant 0 : i32
    %c0_i32_0 = arith.constant 0 : i32
    %c0_i32_1 = arith.constant 0 : i32
    return %c0_i32, %c0_i32_0 : i32, i32
  }
  func.func @transform_9(%arg0: i32) -> (i32, i32) {
    %c0_i32 = arith.constant 0 : i32
    %c0_i32_0 = arith.constant 0 : i32
    %c0_i32_1 = arith.constant 0 : i32
    return %c0_i32, %c0_i32_0 : i32, i32
  }
  func.func @transform_10(%arg0: i32) -> (i32, i32) {
    %c0_i32 = arith.constant 0 : i32
    %c0_i32_0 = arith.constant 0 : i32
    %c0_i32_1 = arith.constant 0 : i32
    return %c0_i32, %c0_i32_0 : i32, i32
  }
  func.func @transform_11(%arg0: i32) -> (i32, i32) {
    %c0_i32 = arith.constant 0 : i32
    %c0_i32_0 = arith.constant 0 : i32
    %c0_i32_1 = arith.constant 0 : i32
    return %c0_i32, %c0_i32_0 : i32, i32
  }
  func.func @transform_12(%arg0: i32) -> (i32, i32) {
    %c0_i32 = arith.constant 0 : i32
    %c0_i32_0 = arith.constant 0 : i32
    %c0_i32_1 = arith.constant 0 : i32
    return %c0_i32, %c0_i32_0 : i32, i32
  }
  func.func @transform_13(%arg0: i32) -> (i32, i32) {
    %c0_i32 = arith.constant 0 : i32
    %c0_i32_0 = arith.constant 0 : i32
    %c0_i32_1 = arith.constant 0 : i32
    return %c0_i32, %c0_i32_0 : i32, i32
  }
  func.func @transform_14(%arg0: i32) -> (i32, i32) {
    %c0_i32 = arith.constant 0 : i32
    %c0_i32_0 = arith.constant 0 : i32
    %c0_i32_1 = arith.constant 0 : i32
    return %c0_i32, %c0_i32_0 : i32, i32
  }
  func.func @transform_15(%arg0: i32) -> (i32, i32) {
    %c0_i32 = arith.constant 0 : i32
    %c0_i32_0 = arith.constant 0 : i32
    %c0_i32_1 = arith.constant 0 : i32
    return %c0_i32, %c0_i32_0 : i32, i32
  }
  func.func @transform_16(%arg0: i32) -> (i32, i32, i32) {
    %c0_i32 = arith.constant 0 : i32
    %c0_i32_0 = arith.constant 0 : i32
    %c0_i32_1 = arith.constant 0 : i32
    return %arg0, %c0_i32, %c0_i32_0 : i32, i32, i32
  }
}

</mosaic_0001>

<llo_original>
// kernel: spatial_transformer_pyramid2d.1
$region0: #{spatial_transformer_pyramid2d.1}
  #allocation0 [shape = 'u32[]', space=smem, size = 0x4, offset = 0x4, fixed_abs, tag = 'smem constant byte address 0x4 - core index']
  #allocation1 [shape = 'u32[144,128]{1,0:T(1,128)}', space=vmem, size = 0x12000, scoped, tag = 'internal scratch']
  %s0 = inlined_call_operand.vmem [shape: f32[2,4,256], index: 0, kind: input, shape index: {}]
  %s1 = inlined_call_operand.vmem [shape: f32[5,16,8], index: 1, kind: input, shape index: {}]
  %s2 = inlined_call_operand.vmem [shape: f32[5,8,4], index: 2, kind: input, shape index: {}]
  %s3 = inlined_call_operand.vmem [shape: f32[5,4,2], index: 3, kind: input, shape index: {}]
  %s4 = inlined_call_operand.vmem [shape: f32[5,2,1], index: 4, kind: input, shape index: {}]
  %s5 = inlined_call_operand.vmem [shape: f32[256,128], index: 5, kind: input, shape index: {}]
  %s6 = inlined_call_operand.vmem [shape: f32[64,128], index: 6, kind: input, shape index: {}]
  %s7 = inlined_call_operand.vmem [shape: f32[16,128], index: 7, kind: input, shape index: {}]
  %s8 = inlined_call_operand.vmem [shape: f32[4,128], index: 8, kind: input, shape index: {}]
  %s9 = inlined_call_operand.vmem [shape: f32[1,128], index: 9, kind: input, shape index: {}]
  %s10 = inlined_call_operand.vmem [shape: f32[64,128], index: 10, kind: input, shape index: {}]
  %s11 = inlined_call_operand.vmem [shape: f32[16,128], index: 11, kind: input, shape index: {}]
  %s12 = inlined_call_operand.vmem [shape: f32[4,128], index: 12, kind: input, shape index: {}]
  %s13 = inlined_call_operand.vmem [shape: f32[1,128], index: 13, kind: input, shape index: {}]
  %s14 = inlined_call_operand.vmem [shape: f32[20,128], index: 14, kind: input, shape index: {}]
  %s15 = inlined_call_operand.vmem [shape: f32[1,128], index: 15, kind: input, shape index: {}]
  %s16 = inlined_call_operand.hbm [shape: f32[2,1,128], index: 16, kind: output, shape index: {}]
  %s17 = sld [smem:[#allocation0]]
  $region97: #{spatial_transformer_pyramid2d.1} parent=0
    _
  %s19 = ssub.s32 1, %s17
  %s20 = scalar_select 0, %s19, %s17
  $region1: #{spatial_transformer_pyramid2d.1} parent=0
    #allocation2 [shape = 'u8[1024]{0}', space=vmem, size = 0x400, scoped, tag = 'output window, operand 0']
    #allocation3 [shape = 's32[2]{0}', space=sflag, size = 0x8, scoped, tag = 'scoped memory for spatial_transformer_pyramid2d.1']
    %21 = vsyncpa [#allocation3], 0
    %s22 = scalar_lea.sflag [#allocation3], 1
    %23 = vsyncpa %s22, 0
    loop: start=0, step=1, limit=4
    $region2: #{spatial_transformer_pyramid2d.1} parent=1 // loop_pre_header
      _
    $region3: #{spatial_transformer_pyramid2d.1} parent=1 // loop_header
      %s25 = sphi 0, %s29
      %p26 = scmp.ge.s32.totalorder %s25, 4
      %s35 = sphi 0, %s37
      %s38 = sphi 0, %s35
      %s39 = sphi 0, %s38
      %s55 = sphi 0, %s39
      %s59 = sphi 0, %s59
      %s61 = sphi 0, %s59
      %s62 = sphi 0, %s61
      %s76 = sphi 0, %s62
      %s80 = sphi 0, %s80
      %s82 = sphi 0, %s80
      %s83 = sphi 0, %s82
      %s97 = sphi 0, %s83
      %s101 = sphi 0, %s101
      %s103 = sphi 0, %s101
      %s104 = sphi 0, %s103
      %s118 = sphi 0, %s104
      %s122 = sphi 0, %s122
      %s124 = sphi 0, %s122
      %s125 = sphi 0, %s124
      %s139 = sphi 0, %s125
      %s143 = sphi 0, %s143
      %s145 = sphi 0, %s143
      %s146 = sphi 0, %s145
      %s160 = sphi 0, %s146
      %s164 = sphi 0, %s164
      %s166 = sphi 0, %s164
      %s167 = sphi 0, %s166
      %s181 = sphi 0, %s167
      %s185 = sphi 0, %s185
      %s187 = sphi 0, %s185
      %s188 = sphi 0, %s187
      %s202 = sphi 0, %s188
      %s206 = sphi 0, %s206
      %s208 = sphi 0, %s206
      %s209 = sphi 0, %s208
      %s223 = sphi 0, %s209
      %s227 = sphi 0, %s227
      %s229 = sphi 0, %s227
      %s230 = sphi 0, %s229
      %s244 = sphi 0, %s230
      %s248 = sphi 0, %s248
      %s250 = sphi 0, %s248
      %s251 = sphi 0, %s250
      %s265 = sphi 0, %s251
      %s269 = sphi 0, %s269
      %s271 = sphi 0, %s269
      %s272 = sphi 0, %s271
      %s286 = sphi 0, %s272
      %s290 = sphi 0, %s290
      %s292 = sphi 0, %s290
      %s293 = sphi 0, %s292
      %s307 = sphi 0, %s293
      %s311 = sphi 0, %s311
      %s313 = sphi 0, %s311
      %s314 = sphi 0, %s313
      %s328 = sphi 0, %s314
      %s332 = sphi 0, %s332
      %s334 = sphi 0, %s332
      %s335 = sphi 0, %s334
      %s349 = sphi 0, %s335
      %s353 = sphi 0, %s353
      %s355 = sphi 0, %s353
      %s356 = sphi 0, %s355
      %s370 = sphi 0, %s356
      %s376 = sphi 0, %s378
      %s379 = sphi 0, %s376
      %s380 = sphi 0, %s379
      %s396 = sphi 0, %s380
    $region4: #{spatial_transformer_pyramid2d.1} parent=1 // loop_header_branch
      %28 = sbr.rel (%p26) target = $region8
    $region5: #{spatial_transformer_pyramid2d.1} parent=1 // loop_body
      %s30 = ssub.s32 %s25, 1
      %s31 = ssub.s32 %s25, 2
      %s32 = sadd.s32 %s25, 1
      %s33 = ssub.s32 %s25, %s32
      %p34 = scmp.eq.s32.totalorder %s33, 0
      %s36 = sadd.s32 %s35, 1
      %s37 = scalar_select %p34, %s35, %s36
      %p40 = pneg %p34
      %p41 = scmp.eq.s32.totalorder %s25, 1
      %p42 = por %p40, %p41
      %p43 = scmp.ne.s32.totalorder %s35, %s38
      %p44 = scmp.eq.s32.totalorder %s25, 0
      %p45 = por %p43, %p44
      %p46 = scmp.ne.s32.totalorder %s35, %s38
      %p47 = scmp.eq.s32.totalorder %s30, 1
      %p48 = por %p46, %p47
      %p49 = scmp.ne.s32.totalorder %s38, %s39
      %p50 = scmp.eq.s32.totalorder %s30, 0
      %p51 = por %p49, %p50
      %p52 = scmp.ne.s32.totalorder %s38, %s39
      %p53 = scmp.eq.s32.totalorder %s31, 1
      %p54 = por %p52, %p53
      %p56 = scmp.ne.s32.totalorder %s39, %s55
      %p57 = scmp.eq.s32.totalorder %s31, 0
      %p58 = por %p56, %p57
      %s60 = sadd.s32 %s59, 1
      %p63 = scmp.eq.s32.totalorder %s25, 1
      %p64 = scmp.ne.s32.totalorder %s59, %s61
      %p65 = scmp.eq.s32.totalorder %s25, 0
      %p66 = por %p64, %p65
      %p67 = scmp.ne.s32.totalorder %s59, %s61
      %p68 = scmp.eq.s32.totalorder %s30, 1
      %p69 = por %p67, %p68
      %p70 = scmp.ne.s32.totalorder %s61, %s62
      %p71 = scmp.eq.s32.totalorder %s30, 0
      %p72 = por %p70, %p71
      %p73 = scmp.ne.s32.totalorder %s61, %s62
      %p74 = scmp.eq.s32.totalorder %s31, 1
      %p75 = por %p73, %p74
      %p77 = scmp.ne.s32.totalorder %s62, %s76
      %p78 = scmp.eq.s32.totalorder %s31, 0
      %p79 = por %p77, %p78
      %s81 = sadd.s32 %s80, 1
      %p84 = scmp.eq.s32.totalorder %s25, 1
      %p85 = scmp.ne.s32.totalorder %s80, %s82
      %p86 = scmp.eq.s32.totalorder %s25, 0
      %p87 = por %p85, %p86
      %p88 = scmp.ne.s32.totalorder %s80, %s82
      %p89 = scmp.eq.s32.totalorder %s30, 1
      %p90 = por %p88, %p89
      %p91 = scmp.ne.s32.totalorder %s82, %s83
      %p92 = scmp.eq.s32.totalorder %s30, 0
      %p93 = por %p91, %p92
      %p94 = scmp.ne.s32.totalorder %s82, %s83
      %p95 = scmp.eq.s32.totalorder %s31, 1
      %p96 = por %p94, %p95
      %p98 = scmp.ne.s32.totalorder %s83, %s97
      %p99 = scmp.eq.s32.totalorder %s31, 0
      %p100 = por %p98, %p99
      %s102 = sadd.s32 %s101, 1
      %p105 = scmp.eq.s32.totalorder %s25, 1
      %p106 = scmp.ne.s32.totalorder %s101, %s103
      %p107 = scmp.eq.s32.totalorder %s25, 0
      %p108 = por %p106, %p107
      %p109 = scmp.ne.s32.totalorder %s101, %s103
      %p110 = scmp.eq.s32.totalorder %s30, 1
      %p111 = por %p109, %p110
      %p112 = scmp.ne.s32.totalorder %s103, %s104
      %p113 = scmp.eq.s32.totalorder %s30, 0
      %p114 = por %p112, %p113
      %p115 = scmp.ne.s32.totalorder %s103, %s104
      %p116 = scmp.eq.s32.totalorder %s31, 1
      %p117 = por %p115, %p116
      %p119 = scmp.ne.s32.totalorder %s104, %s118
      %p120 = scmp.eq.s32.totalorder %s31, 0
      %p121 = por %p119, %p120
      %s123 = sadd.s32 %s122, 1
      %p126 = scmp.eq.s32.totalorder %s25, 1
      %p127 = scmp.ne.s32.totalorder %s122, %s124
      %p128 = scmp.eq.s32.totalorder %s25, 0
      %p129 = por %p127, %p128
      %p130 = scmp.ne.s32.totalorder %s122, %s124
      %p131 = scmp.eq.s32.totalorder %s30, 1
      %p132 = por %p130, %p131
      %p133 = scmp.ne.s32.totalorder %s124, %s125
      %p134 = scmp.eq.s32.totalorder %s30, 0
      %p135 = por %p133, %p134
      %p136 = scmp.ne.s32.totalorder %s124, %s125
      %p137 = scmp.eq.s32.totalorder %s31, 1
      %p138 = por %p136, %p137
      %p140 = scmp.ne.s32.totalorder %s125, %s139
      %p141 = scmp.eq.s32.totalorder %s31, 0
      %p142 = por %p140, %p141
      %s144 = sadd.s32 %s143, 1
      %p147 = scmp.eq.s32.totalorder %s25, 1
      %p148 = scmp.ne.s32.totalorder %s143, %s145
      %p149 = scmp.eq.s32.totalorder %s25, 0
      %p150 = por %p148, %p149
      %p151 = scmp.ne.s32.totalorder %s143, %s145
      %p152 = scmp.eq.s32.totalorder %s30, 1
      %p153 = por %p151, %p152
      %p154 = scmp.ne.s32.totalorder %s145, %s146
      %p155 = scmp.eq.s32.totalorder %s30, 0
      %p156 = por %p154, %p155
      %p157 = scmp.ne.s32.totalorder %s145, %s146
      %p158 = scmp.eq.s32.totalorder %s31, 1
      %p159 = por %p157, %p158
      %p161 = scmp.ne.s32.totalorder %s146, %s160
      %p162 = scmp.eq.s32.totalorder %s31, 0
      %p163 = por %p161, %p162
      %s165 = sadd.s32 %s164, 1
      %p168 = scmp.eq.s32.totalorder %s25, 1
      %p169 = scmp.ne.s32.totalorder %s164, %s166
      %p170 = scmp.eq.s32.totalorder %s25, 0
      %p171 = por %p169, %p170
      %p172 = scmp.ne.s32.totalorder %s164, %s166
      %p173 = scmp.eq.s32.totalorder %s30, 1
      %p174 = por %p172, %p173
      %p175 = scmp.ne.s32.totalorder %s166, %s167
      %p176 = scmp.eq.s32.totalorder %s30, 0
      %p177 = por %p175, %p176
      %p178 = scmp.ne.s32.totalorder %s166, %s167
      %p179 = scmp.eq.s32.totalorder %s31, 1
      %p180 = por %p178, %p179
      %p182 = scmp.ne.s32.totalorder %s167, %s181
      %p183 = scmp.eq.s32.totalorder %s31, 0
      %p184 = por %p182, %p183
      %s186 = sadd.s32 %s185, 1
      %p189 = scmp.eq.s32.totalorder %s25, 1
      %p190 = scmp.ne.s32.totalorder %s185, %s187
      %p191 = scmp.eq.s32.totalorder %s25, 0
      %p192 = por %p190, %p191
      %p193 = scmp.ne.s32.totalorder %s185, %s187
      %p194 = scmp.eq.s32.totalorder %s30, 1
      %p195 = por %p193, %p194
      %p196 = scmp.ne.s32.totalorder %s187, %s188
      %p197 = scmp.eq.s32.totalorder %s30, 0
      %p198 = por %p196, %p197
      %p199 = scmp.ne.s32.totalorder %s187, %s188
      %p200 = scmp.eq.s32.totalorder %s31, 1
      %p201 = por %p199, %p200
      %p203 = scmp.ne.s32.totalorder %s188, %s202
      %p204 = scmp.eq.s32.totalorder %s31, 0
      %p205 = por %p203, %p204
      %s207 = sadd.s32 %s206, 1
      %p210 = scmp.eq.s32.totalorder %s25, 1
      %p211 = scmp.ne.s32.totalorder %s206, %s208
      %p212 = scmp.eq.s32.totalorder %s25, 0
      %p213 = por %p211, %p212
      %p214 = scmp.ne.s32.totalorder %s206, %s208
      %p215 = scmp.eq.s32.totalorder %s30, 1
      %p216 = por %p214, %p215
      %p217 = scmp.ne.s32.totalorder %s208, %s209
      %p218 = scmp.eq.s32.totalorder %s30, 0
      %p219 = por %p217, %p218
      %p220 = scmp.ne.s32.totalorder %s208, %s209
      %p221 = scmp.eq.s32.totalorder %s31, 1
      %p222 = por %p220, %p221
      %p224 = scmp.ne.s32.totalorder %s209, %s223
      %p225 = scmp.eq.s32.totalorder %s31, 0
      %p226 = por %p224, %p225
      %s228 = sadd.s32 %s227, 1
      %p231 = scmp.eq.s32.totalorder %s25, 1
      %p232 = scmp.ne.s32.totalorder %s227, %s229
      %p233 = scmp.eq.s32.totalorder %s25, 0
      %p234 = por %p232, %p233
      %p235 = scmp.ne.s32.totalorder %s227, %s229
      %p236 = scmp.eq.s32.totalorder %s30, 1
      %p237 = por %p235, %p236
      %p238 = scmp.ne.s32.totalorder %s229, %s230
      %p239 = scmp.eq.s32.totalorder %s30, 0
      %p240 = por %p238, %p239
      %p241 = scmp.ne.s32.totalorder %s229, %s230
      %p242 = scmp.eq.s32.totalorder %s31, 1
      %p243 = por %p241, %p242
      %p245 = scmp.ne.s32.totalorder %s230, %s244
      %p246 = scmp.eq.s32.totalorder %s31, 0
      %p247 = por %p245, %p246
      %s249 = sadd.s32 %s248, 1
      %p252 = scmp.eq.s32.totalorder %s25, 1
      %p253 = scmp.ne.s32.totalorder %s248, %s250
      %p254 = scmp.eq.s32.totalorder %s25, 0
      %p255 = por %p253, %p254
      %p256 = scmp.ne.s32.totalorder %s248, %s250
      %p257 = scmp.eq.s32.totalorder %s30, 1
      %p258 = por %p256, %p257
      %p259 = scmp.ne.s32.totalorder %s250, %s251
      %p260 = scmp.eq.s32.totalorder %s30, 0
      %p261 = por %p259, %p260
      %p262 = scmp.ne.s32.totalorder %s250, %s251
      %p263 = scmp.eq.s32.totalorder %s31, 1
      %p264 = por %p262, %p263
      %p266 = scmp.ne.s32.totalorder %s251, %s265
      %p267 = scmp.eq.s32.totalorder %s31, 0
      %p268 = por %p266, %p267
      %s270 = sadd.s32 %s269, 1
      %p273 = scmp.eq.s32.totalorder %s25, 1
      %p274 = scmp.ne.s32.totalorder %s269, %s271
      %p275 = scmp.eq.s32.totalorder %s25, 0
      %p276 = por %p274, %p275
      %p277 = scmp.ne.s32.totalorder %s269, %s271
      %p278 = scmp.eq.s32.totalorder %s30, 1
      %p279 = por %p277, %p278
      %p280 = scmp.ne.s32.totalorder %s271, %s272
      %p281 = scmp.eq.s32.totalorder %s30, 0
      %p282 = por %p280, %p281
      %p283 = scmp.ne.s32.totalorder %s271, %s272
      %p284 = scmp.eq.s32.totalorder %s31, 1
      %p285 = por %p283, %p284
      %p287 = scmp.ne.s32.totalorder %s272, %s286
      %p288 = scmp.eq.s32.totalorder %s31, 0
      %p289 = por %p287, %p288
      %s291 = sadd.s32 %s290, 1
      %p294 = scmp.eq.s32.totalorder %s25, 1
      %p295 = scmp.ne.s32.totalorder %s290, %s292
      %p296 = scmp.eq.s32.totalorder %s25, 0
      %p297 = por %p295, %p296
      %p298 = scmp.ne.s32.totalorder %s290, %s292
      %p299 = scmp.eq.s32.totalorder %s30, 1
      %p300 = por %p298, %p299
      %p301 = scmp.ne.s32.totalorder %s292, %s293
      %p302 = scmp.eq.s32.totalorder %s30, 0
      %p303 = por %p301, %p302
      %p304 = scmp.ne.s32.totalorder %s292, %s293
      %p305 = scmp.eq.s32.totalorder %s31, 1
      %p306 = por %p304, %p305
      %p308 = scmp.ne.s32.totalorder %s293, %s307
      %p309 = scmp.eq.s32.totalorder %s31, 0
      %p310 = por %p308, %p309
      %s312 = sadd.s32 %s311, 1
      %p315 = scmp.eq.s32.totalorder %s25, 1
      %p316 = scmp.ne.s32.totalorder %s311, %s313
      %p317 = scmp.eq.s32.totalorder %s25, 0
      %p318 = por %p316, %p317
      %p319 = scmp.ne.s32.totalorder %s311, %s313
      %p320 = scmp.eq.s32.totalorder %s30, 1
      %p321 = por %p319, %p320
      %p322 = scmp.ne.s32.totalorder %s313, %s314
      %p323 = scmp.eq.s32.totalorder %s30, 0
      %p324 = por %p322, %p323
      %p325 = scmp.ne.s32.totalorder %s313, %s314
      %p326 = scmp.eq.s32.totalorder %s31, 1
      %p327 = por %p325, %p326
      %p329 = scmp.ne.s32.totalorder %s314, %s328
      %p330 = scmp.eq.s32.totalorder %s31, 0
      %p331 = por %p329, %p330
      %s333 = sadd.s32 %s332, 1
      %p336 = scmp.eq.s32.totalorder %s25, 1
      %p337 = scmp.ne.s32.totalorder %s332, %s334
      %p338 = scmp.eq.s32.totalorder %s25, 0
      %p339 = por %p337, %p338
      %p340 = scmp.ne.s32.totalorder %s332, %s334
      %p341 = scmp.eq.s32.totalorder %s30, 1
      %p342 = por %p340, %p341
      %p343 = scmp.ne.s32.totalorder %s334, %s335
      %p344 = scmp.eq.s32.totalorder %s30, 0
      %p345 = por %p343, %p344
      %p346 = scmp.ne.s32.totalorder %s334, %s335
      %p347 = scmp.eq.s32.totalorder %s31, 1
      %p348 = por %p346, %p347
      %p350 = scmp.ne.s32.totalorder %s335, %s349
      %p351 = scmp.eq.s32.totalorder %s31, 0
      %p352 = por %p350, %p351
      %s354 = sadd.s32 %s353, 1
      %p357 = scmp.eq.s32.totalorder %s25, 1
      %p358 = scmp.ne.s32.totalorder %s353, %s355
      %p359 = scmp.eq.s32.totalorder %s25, 0
      %p360 = por %p358, %p359
      %p361 = scmp.ne.s32.totalorder %s353, %s355
      %p362 = scmp.eq.s32.totalorder %s30, 1
      %p363 = por %p361, %p362
      %p364 = scmp.ne.s32.totalorder %s355, %s356
      %p365 = scmp.eq.s32.totalorder %s30, 0
      %p366 = por %p364, %p365
      %p367 = scmp.ne.s32.totalorder %s355, %s356
      %p368 = scmp.eq.s32.totalorder %s31, 1
      %p369 = por %p367, %p368
      %p371 = scmp.ne.s32.totalorder %s356, %s370
      %p372 = scmp.eq.s32.totalorder %s31, 0
      %p373 = por %p371, %p372
      %s374 = ssub.s32 %s25, %s32
      %p375 = scmp.eq.s32.totalorder %s374, 0
      %s377 = sadd.s32 %s376, 1
      %s378 = scalar_select %p375, %s376, %s377
      %p381 = pneg %p375
      %p382 = scmp.eq.s32.totalorder %s25, 1
      %p383 = por %p381, %p382
      %p384 = scmp.ne.s32.totalorder %s376, %s379
      %p385 = scmp.eq.s32.totalorder %s25, 0
      %p386 = por %p384, %p385
      %p387 = scmp.ne.s32.totalorder %s376, %s379
      %p388 = scmp.eq.s32.totalorder %s30, 1
      %p389 = por %p387, %p388
      %p390 = scmp.ne.s32.totalorder %s379, %s380
      %p391 = scmp.eq.s32.totalorder %s30, 0
      %p392 = por %p390, %p391
      %p393 = scmp.ne.s32.totalorder %s379, %s380
      %p394 = scmp.eq.s32.totalorder %s31, 1
      %p395 = por %p393, %p394
      %p397 = scmp.ne.s32.totalorder %s380, %s396
      %p398 = scmp.eq.s32.totalorder %s31, 0
      %p399 = por %p397, %p398
      %p400 = scmp.le.s32.totalorder 1, %s25
      %p401 = scmp.lt.s32.totalorder %s25, 3
      %p402 = pnand %p400, %p401
      %p403 = pneg %p402
      // Predicated region
      $region9: #{spatial_transformer_pyramid2d.1} parent=5 // pred_check
        _
      $region10: #{spatial_transformer_pyramid2d.1} parent=5 // pred_check_branch
        %405 = sbr.rel (%p402) target = $region12
      $region11: #{spatial_transformer_pyramid2d.1} parent=5 // pred_region
        %s406 = ssub.s32 %s25, 1
        // Predicated region
        $region13: #{spatial_transformer_pyramid2d.1} parent=11 // pred_check
          %p407 = pneg %p72
        $region14: #{spatial_transformer_pyramid2d.1} parent=11 // pred_check_branch
          %409 = sbr.rel (%p407) target = $region16
        $region15: #{spatial_transformer_pyramid2d.1} parent=11 // pred_region
          _
        $region16: #{spatial_transformer_pyramid2d.1} parent=11 // pred_fallthru
          _
        // Predicated region
        $region17: #{spatial_transformer_pyramid2d.1} parent=11 // pred_check
          %p410 = pneg %p93
        $region18: #{spatial_transformer_pyramid2d.1} parent=11 // pred_check_branch
          %412 = sbr.rel (%p410) target = $region20
        $region19: #{spatial_transformer_pyramid2d.1} parent=11 // pred_region
          _
        $region20: #{spatial_transformer_pyramid2d.1} parent=11 // pred_fallthru
          _
        // Predicated region
        $region21: #{spatial_transformer_pyramid2d.1} parent=11 // pred_check
          %p413 = pneg %p114
        $region22: #{spatial_transformer_pyramid2d.1} parent=11 // pred_check_branch
          %415 = sbr.rel (%p413) target = $region24
        $region23: #{spatial_transformer_pyramid2d.1} parent=11 // pred_region
          _
        $region24: #{spatial_transformer_pyramid2d.1} parent=11 // pred_fallthru
          _
        // Predicated region
        $region25: #{spatial_transformer_pyramid2d.1} parent=11 // pred_check
          %p416 = pneg %p135
        $region26: #{spatial_transformer_pyramid2d.1} parent=11 // pred_check_branch
          %418 = sbr.rel (%p416) target = $region28
        $region27: #{spatial_transformer_pyramid2d.1} parent=11 // pred_region
          _
        $region28: #{spatial_transformer_pyramid2d.1} parent=11 // pred_fallthru
          _
        // Predicated region
        $region29: #{spatial_transformer_pyramid2d.1} parent=11 // pred_check
          %p419 = pneg %p156
        $region30: #{spatial_transformer_pyramid2d.1} parent=11 // pred_check_branch
          %421 = sbr.rel (%p419) target = $region32
        $region31: #{spatial_transformer_pyramid2d.1} parent=11 // pred_region
          _
        $region32: #{spatial_transformer_pyramid2d.1} parent=11 // pred_fallthru
          _
        // Predicated region
        $region33: #{spatial_transformer_pyramid2d.1} parent=11 // pred_check
          %p422 = pneg %p177
        $region34: #{spatial_transformer_pyramid2d.1} parent=11 // pred_check_branch
          %424 = sbr.rel (%p422) target = $region36
        $region35: #{spatial_transformer_pyramid2d.1} parent=11 // pred_region
          _
        $region36: #{spatial_transformer_pyramid2d.1} parent=11 // pred_fallthru
          _
        // Predicated region
        $region37: #{spatial_transformer_pyramid2d.1} parent=11 // pred_check
          %p425 = pneg %p198
        $region38: #{spatial_transformer_pyramid2d.1} parent=11 // pred_check_branch
          %427 = sbr.rel (%p425) target = $region40
        $region39: #{spatial_transformer_pyramid2d.1} parent=11 // pred_region
          _
        $region40: #{spatial_transformer_pyramid2d.1} parent=11 // pred_fallthru
          _
        // Predicated region
        $region41: #{spatial_transformer_pyramid2d.1} parent=11 // pred_check
          %p428 = pneg %p219
        $region42: #{spatial_transformer_pyramid2d.1} parent=11 // pred_check_branch
          %430 = sbr.rel (%p428) target = $region44
        $region43: #{spatial_transformer_pyramid2d.1} parent=11 // pred_region
          _
        $region44: #{spatial_transformer_pyramid2d.1} parent=11 // pred_fallthru
          _
        // Predicated region
        $region45: #{spatial_transformer_pyramid2d.1} parent=11 // pred_check
          %p431 = pneg %p240
        $region46: #{spatial_transformer_pyramid2d.1} parent=11 // pred_check_branch
          %433 = sbr.rel (%p431) target = $region48
        $region47: #{spatial_transformer_pyramid2d.1} parent=11 // pred_region
          _
        $region48: #{spatial_transformer_pyramid2d.1} parent=11 // pred_fallthru
          _
        // Predicated region
        $region49: #{spatial_transformer_pyramid2d.1} parent=11 // pred_check
          %p434 = pneg %p261
        $region50: #{spatial_transformer_pyramid2d.1} parent=11 // pred_check_branch
          %436 = sbr.rel (%p434) target = $region52
        $region51: #{spatial_transformer_pyramid2d.1} parent=11 // pred_region
          _
        $region52: #{spatial_transformer_pyramid2d.1} parent=11 // pred_fallthru
          _
        // Predicated region
        $region53: #{spatial_transformer_pyramid2d.1} parent=11 // pred_check
          %p437 = pneg %p282
        $region54: #{spatial_transformer_pyramid2d.1} parent=11 // pred_check_branch
          %439 = sbr.rel (%p437) target = $region56
        $region55: #{spatial_transformer_pyramid2d.1} parent=11 // pred_region
          _
        $region56: #{spatial_transformer_pyramid2d.1} parent=11 // pred_fallthru
          _
        // Predicated region
        $region57: #{spatial_transformer_pyramid2d.1} parent=11 // pred_check
          %p440 = pneg %p303
        $region58: #{spatial_transformer_pyramid2d.1} parent=11 // pred_check_branch
          %442 = sbr.rel (%p440) target = $region60
        $region59: #{spatial_transformer_pyramid2d.1} parent=11 // pred_region
          _
        $region60: #{spatial_transformer_pyramid2d.1} parent=11 // pred_fallthru
          _
        // Predicated region
        $region61: #{spatial_transformer_pyramid2d.1} parent=11 // pred_check
          %p443 = pneg %p324
        $region62: #{spatial_transformer_pyramid2d.1} parent=11 // pred_check_branch
          %445 = sbr.rel (%p443) target = $region64
        $region63: #{spatial_transformer_pyramid2d.1} parent=11 // pred_region
          _
        $region64: #{spatial_transformer_pyramid2d.1} parent=11 // pred_fallthru
          _
        // Predicated region
        $region65: #{spatial_transformer_pyramid2d.1} parent=11 // pred_check
          %p446 = pneg %p345
        $region66: #{spatial_transformer_pyramid2d.1} parent=11 // pred_check_branch
          %448 = sbr.rel (%p446) target = $region68
        $region67: #{spatial_transformer_pyramid2d.1} parent=11 // pred_region
          _
        $region68: #{spatial_transformer_pyramid2d.1} parent=11 // pred_fallthru
          _
        // Predicated region
        $region69: #{spatial_transformer_pyramid2d.1} parent=11 // pred_check
          %p449 = pneg %p366
        $region70: #{spatial_transformer_pyramid2d.1} parent=11 // pred_check_branch
          %451 = sbr.rel (%p449) target = $region72
        $region71: #{spatial_transformer_pyramid2d.1} parent=11 // pred_region
          _
        $region72: #{spatial_transformer_pyramid2d.1} parent=11 // pred_fallthru
          _
      $region12: #{spatial_transformer_pyramid2d.1} parent=5 // pred_fallthru
        _
      %p452 = scmp.lt.s32.totalorder %s25, 2
      // Predicated region
      $region73: #{spatial_transformer_pyramid2d.1} parent=5 // pred_check
        %p453 = pneg %p452
      $region74: #{spatial_transformer_pyramid2d.1} parent=5 // pred_check_branch
        %455 = sbr.rel (%p453) target = $region76
      $region75: #{spatial_transformer_pyramid2d.1} parent=5 // pred_region
        // Predicated region
        $region77: #{spatial_transformer_pyramid2d.1} parent=75 // pred_check
          %p456 = pneg %p45
        $region78: #{spatial_transformer_pyramid2d.1} parent=75 // pred_check_branch
          %458 = sbr.rel (%p456) target = $region80
        $region79: #{spatial_transformer_pyramid2d.1} parent=75 // pred_region
          %p459 = scmp.lt.s32.totalorder %s25, 1
          %s460 = scalar_select %p459, %s25, 1
          %s461 = smul.addr %s460, 2
          %s462 = smul.addr %s461, 4
          %s463 = scalar_lea.vmem %s0, %s462
        $region80: #{spatial_transformer_pyramid2d.1} parent=75 // pred_fallthru
          _
      $region76: #{spatial_transformer_pyramid2d.1} parent=5 // pred_fallthru
        _
      %p464 = scmp.le.s32.totalorder 1, %s25
      %p465 = scmp.lt.s32.totalorder %s25, 3
      %p466 = pnand %p464, %p465
      %p467 = pneg %p466
      // Predicated region
      $region81: #{spatial_transformer_pyramid2d.1} parent=5 // pred_check
        _
      $region82: #{spatial_transformer_pyramid2d.1} parent=5 // pred_check_branch
        %469 = sbr.rel (%p466) target = $region84
      $region83: #{spatial_transformer_pyramid2d.1} parent=5 // pred_region
        %s470 = ssub.s32 %s25, 1
        %p471 = scmp.lt.s32.totalorder %s30, 1
        %s472 = scalar_select %p471, %s30, 1
        %s473 = smul.addr %s472, 2
        %s474 = smul.addr %s473, 4
        %s475 = scalar_lea.vmem %s0, %s474
        %p476 = pneg %p51
        %p477 = pneg %p48
        %p478 = pneg %p72
        %p479 = pneg %p69
        %p480 = pneg %p93
        %p481 = pneg %p90
        %p482 = pneg %p114
        %p483 = pneg %p111
        %p484 = pneg %p135
        %p485 = pneg %p132
        %p486 = pneg %p156
        %p487 = pneg %p153
        %p488 = pneg %p177
        %p489 = pneg %p174
        %p490 = pneg %p198
        %p491 = pneg %p195
        %p492 = pneg %p219
        %p493 = pneg %p216
        %p494 = pneg %p240
        %p495 = pneg %p237
        %p496 = pneg %p261
        %p497 = pneg %p258
        %p498 = pneg %p282
        %p499 = pneg %p279
        %p500 = pneg %p303
        %p501 = pneg %p300
        %p502 = pneg %p324
        %p503 = pneg %p321
        %p504 = pneg %p345
        %p505 = pneg %p342
        %p506 = pneg %p366
        %p507 = pneg %p363
        %p508 = pneg %p392
        %p509 = pneg %p389
        %s510 = sand.u32 %s379, 1
        %s511 = scalar_lea.sflag [#allocation3], %s510
        %s512 = sand.u32 %s379, 1
        %s513 = scalar_lea.vmem [#allocation2], %s512
        %p514 = scmp.lt.s32.totalorder %s30, 1
        %s515 = scalar_select %p514, %s30, 1
        %s516 = smul.addr %s515, 2
        %s517 = smul.addr %s516, 4
        %s518 = scalar_lea.vmem %s0, %s517
        %v519 = vld [vmem:[%s518] sm:$0xff]
        %v520 = vld [vmem:[%s14] sm:$0xff]
        %v521 = vld [vmem:[%s14 + $0x8] sm:$0xff]
        %v522 = vld [vmem:[%s14 + $0x10] sm:$0xf]
        %v523 = vld [vmem:[%s5] sm:$0xff]
        %v524 = vld [vmem:[%s5 + $0x8] sm:$0xff]
        %v525 = vld [vmem:[%s5 + $0x10] sm:$0xff]
        %v526 = vld [vmem:[%s5 + $0x18] sm:$0xff]
        %v527 = vld [vmem:[%s5 + $0x20] sm:$0xff]
        %v528 = vld [vmem:[%s5 + $0x28] sm:$0xff]
        %v529 = vld [vmem:[%s5 + $0x30] sm:$0xff]
        %v530 = vld [vmem:[%s5 + $0x38] sm:$0xff]
        %v531 = vld [vmem:[%s5 + $0x40] sm:$0xff]
        %v532 = vld [vmem:[%s5 + $0x48] sm:$0xff]
        %v533 = vld [vmem:[%s5 + $0x50] sm:$0xff]
        %v534 = vld [vmem:[%s5 + $0x58] sm:$0xff]
        %v535 = vld [vmem:[%s5 + $0x60] sm:$0xff]
        %v536 = vld [vmem:[%s5 + $0x68] sm:$0xff]
        %v537 = vld [vmem:[%s5 + $0x70] sm:$0xff]
        %v538 = vld [vmem:[%s5 + $0x78] sm:$0xff]
        %v539 = vld [vmem:[%s5 + $0x80] sm:$0xff]
        %v540 = vld [vmem:[%s5 + $0x88] sm:$0xff]
        %v541 = vld [vmem:[%s5 + $0x90] sm:$0xff]
        %v542 = vld [vmem:[%s5 + $0x98] sm:$0xff]
        %v543 = vld [vmem:[%s5 + $0xa0] sm:$0xff]
        %v544 = vld [vmem:[%s5 + $0xa8] sm:$0xff]
        %v545 = vld [vmem:[%s5 + $0xb0] sm:$0xff]
        %v546 = vld [vmem:[%s5 + $0xb8] sm:$0xff]
        %v547 = vld [vmem:[%s5 + $0xc0] sm:$0xff]
        %v548 = vld [vmem:[%s5 + $0xc8] sm:$0xff]
        %v549 = vld [vmem:[%s5 + $0xd0] sm:$0xff]
        %v550 = vld [vmem:[%s5 + $0xd8] sm:$0xff]
        %v551 = vld [vmem:[%s5 + $0xe0] sm:$0xff]
        %v552 = vld [vmem:[%s5 + $0xe8] sm:$0xff]
        %v553 = vld [vmem:[%s5 + $0xf0] sm:$0xff]
        %v554 = vld [vmem:[%s5 + $0xf8] sm:$0xff]
        %v556 = vcombine.high %v519, %v519
        %558 = vmatprep.subr.mxu0 0.0
        %559 = vmatpush1.msra.mxu0 %v523
        %560 = vmatprep.subr.mxu0 0.0
        %561 = vmatpush1.msra.mxu0 %v524
        %562 = vmatprep.subr.mxu0 0.0
        %563 = vmatpush1.msra.mxu0 %v525
        %564 = vmatprep.subr.mxu0 0.0
        %565 = vmatpush1.msra.mxu0 %v526
        %566 = vmatprep.subr.mxu0 0.0
        %567 = vmatpush1.msra.mxu0 %v527
        %568 = vmatprep.subr.mxu0 0.0
        %569 = vmatpush1.msra.mxu0 %v528
        %570 = vmatprep.subr.mxu0 0.0
        %571 = vmatpush1.msra.mxu0 %v529
        %572 = vmatprep.subr.mxu0 0.0
        %573 = vmatpush1.msra.mxu0 %v530
        %574 = vmatprep.subr.mxu0 0.0
        %575 = vmatpush1.msra.mxu0 %v531
        %576 = vmatprep.subr.mxu0 0.0
        %577 = vmatpush1.msra.mxu0 %v532
        %578 = vmatprep.subr.mxu0 0.0
        %579 = vmatpush1.msra.mxu0 %v533
        %580 = vmatprep.subr.mxu0 0.0
        %581 = vmatpush1.msra.mxu0 %v534
        %582 = vmatprep.subr.mxu0 0.0
        %583 = vmatpush1.msra.mxu0 %v535
        %584 = vmatprep.subr.mxu0 0.0
        %585 = vmatpush1.msra.mxu0 %v536
        %586 = vmatprep.subr.mxu0 0.0
        %587 = vmatpush1.msra.mxu0 %v537
        %588 = vmatprep.subr.mxu0 0.0
        %589 = vmatpush1.msra.mxu0 %v538
        %590 = vmatprep.subr.mxu0 0.0
        %591 = vmatpush1.msra.mxu0 %v539
        %592 = vmatprep.subr.mxu0 0.0
        %593 = vmatpush1.msra.mxu0 %v540
        %594 = vmatprep.subr.mxu0 0.0
        %595 = vmatpush1.msra.mxu0 %v541
        %596 = vmatprep.subr.mxu0 0.0
        %597 = vmatpush1.msra.mxu0 %v542
        %598 = vmatprep.subr.mxu0 0.0
        %599 = vmatpush1.msra.mxu0 %v543
        %600 = vmatprep.subr.mxu0 0.0
        %601 = vmatpush1.msra.mxu0 %v544
        %602 = vmatprep.subr.mxu0 0.0
        %603 = vmatpush1.msra.mxu0 %v545
        %604 = vmatprep.subr.mxu0 0.0
        %605 = vmatpush1.msra.mxu0 %v546
        %606 = vmatprep.subr.mxu0 0.0
        %607 = vmatpush1.msra.mxu0 %v547
        %608 = vmatprep.subr.mxu0 0.0
        %609 = vmatpush1.msra.mxu0 %v548
        %610 = vmatprep.subr.mxu0 0.0
        %611 = vmatpush1.msra.mxu0 %v549
        %612 = vmatprep.subr.mxu0 0.0
        %613 = vmatpush1.msra.mxu0 %v550
        %614 = vmatprep.subr.mxu0 0.0
        %615 = vmatpush1.msra.mxu0 %v551
        %616 = vmatprep.subr.mxu0 0.0
        %617 = vmatpush1.msra.mxu0 %v552
        %618 = vmatprep.subr.mxu0 0.0
        %619 = vmatpush1.msra.mxu0 %v553
        %620 = vmatprep.subr.mxu0 0.0
        %621 = vmatpush1.msra.mxu0 %v554
        %622 = vmatprep.mubr.f32.mxu0 %v556
        %623 = vmatmul.mubr.f32.gmra.mrb[0].mxu0 %v519
        %v624 = vpop.f32.mrb[0].mxu0
        %v625 = vadd.f32 0.0, %v624
        %v626 = vpop.f32.mrb[0].mxu0
        %627 = vdwg.mxu0
        %v628 = vmul.f32 %v520, %v625
        %s629 = scalar_lea.vmem %s1, 32
        %v630 = vld [vmem:[%s629] sm:$0xff]
        %v631 = vld [vmem:[%s629 + $0x8] sm:$0xff]
        %s632 = scalar_lea.vmem %s1, 48
        %v633 = vld [vmem:[%s632] sm:$0xff]
        %v634 = vld [vmem:[%s632 + $0x8] sm:$0xff]
        %635 = vrot.lane.b32.xlu0 %v519, 112
        %v636 = vpop.permute.xlu0 %635
        %vm637 = vcmask 130048
        %v638 = vsel %vm637, %v636, 0
        %640 = vmatprep.subr.mxu0 0.0
        %641 = vmatpush1.msra.mxu0 %v633
        %642 = vmatprep.subr.mxu0 0.0
        %643 = vmatpush1.msra.mxu0 %v634
        %644 = vmatprep.subr.mxu0 0.0
        %645 = vmatpush1.msra.mxu0 0.0
        %646 = vmatprep.subr.mxu0 0.0
        %647 = vmatpush1.msra.mxu0 0.0
        %648 = vmatprep.subr.mxu0 0.0
        %649 = vmatpush1.msra.mxu0 0.0
        %650 = vmatprep.subr.mxu0 0.0
        %651 = vmatpush1.msra.mxu0 0.0
        %652 = vmatprep.subr.mxu0 0.0
        %653 = vmatpush1.msra.mxu0 0.0
        %654 = vmatprep.subr.mxu0 0.0
        %655 = vmatpush1.msra.mxu0 0.0
        %656 = vmatprep.subr.mxu0 0.0
        %657 = vmatpush1.msra.mxu0 0.0
        %658 = vmatprep.subr.mxu0 0.0
        %659 = vmatpush1.msra.mxu0 0.0
        %660 = vmatprep.subr.mxu0 0.0
        %661 = vmatpush1.msra.mxu0 0.0
        %662 = vmatprep.subr.mxu0 0.0
        %663 = vmatpush1.msra.mxu0 0.0
        %664 = vmatprep.subr.mxu0 0.0
        %665 = vmatpush1.msra.mxu0 0.0
        %666 = vmatprep.subr.mxu0 0.0
        %667 = vmatpush1.msra.mxu0 0.0
        %668 = vmatprep.subr.mxu0 0.0
        %669 = vmatpush1.msra.mxu0 0.0
        %670 = vmatprep.subr.mxu0 0.0
        %671 = vmatpush1.msra.mxu0 0.0
        %672 = vmatprep.subr.mxu0 0.0
        %673 = vmatpush1.msra.mxu0 0.0
        %674 = vmatprep.subr.mxu0 0.0
        %675 = vmatpush1.msra.mxu0 0.0
        %676 = vmatprep.subr.mxu0 0.0
        %677 = vmatpush1.msra.mxu0 0.0
        %678 = vmatprep.subr.mxu0 0.0
        %679 = vmatpush1.msra.mxu0 0.0
        %680 = vmatprep.subr.mxu0 0.0
        %681 = vmatpush1.msra.mxu0 0.0
        %682 = vmatprep.subr.mxu0 0.0
        %683 = vmatpush1.msra.mxu0 0.0
        %684 = vmatprep.subr.mxu0 0.0
        %685 = vmatpush1.msra.mxu0 0.0
        %686 = vmatprep.subr.mxu0 0.0
        %687 = vmatpush1.msra.mxu0 0.0
        %688 = vmatprep.subr.mxu0 0.0
        %689 = vmatpush1.msra.mxu0 0.0
        %690 = vmatprep.subr.mxu0 0.0
        %691 = vmatpush1.msra.mxu0 0.0
        %692 = vmatprep.subr.mxu0 0.0
        %693 = vmatpush1.msra.mxu0 0.0
        %694 = vmatprep.subr.mxu0 0.0
        %695 = vmatpush1.msra.mxu0 0.0
        %696 = vmatprep.subr.mxu0 0.0
        %697 = vmatpush1.msra.mxu0 0.0
        %698 = vmatprep.subr.mxu0 0.0
        %699 = vmatpush1.msra.mxu0 0.0
        %700 = vmatprep.subr.mxu0 0.0
        %701 = vmatpush1.msra.mxu0 0.0
        %702 = vmatprep.subr.mxu0 0.0
        %703 = vmatpush1.msra.mxu0 0.0
        %704 = vmatprep.mubr.f32.mxu0 0.0
        %705 = vmatmul.mubr.f32.gmra.mrb[0].mxu0 %v638
        %v706 = vpop.f32.mrb[0].mxu0
        %v707 = vadd.f32 0.0, %v706
        %v708 = vpop.f32.mrb[0].mxu0
        %709 = vdwg.mxu0
        %v710 = vsel %vm637, %v519, 0
        %712 = vmatprep.subr.mxu0 0.0
        %713 = vmatpush1.msra.mxu0 %v630
        %714 = vmatprep.subr.mxu0 0.0
        %715 = vmatpush1.msra.mxu0 %v631
        %716 = vmatprep.subr.mxu0 0.0
        %717 = vmatpush1.msra.mxu0 0.0
        %718 = vmatprep.subr.mxu0 0.0
        %719 = vmatpush1.msra.mxu0 0.0
        %720 = vmatprep.subr.mxu0 0.0
        %721 = vmatpush1.msra.mxu0 0.0
        %722 = vmatprep.subr.mxu0 0.0
        %723 = vmatpush1.msra.mxu0 0.0
        %724 = vmatprep.subr.mxu0 0.0
        %725 = vmatpush1.msra.mxu0 0.0
        %726 = vmatprep.subr.mxu0 0.0
        %727 = vmatpush1.msra.mxu0 0.0
        %728 = vmatprep.subr.mxu0 0.0
        %729 = vmatpush1.msra.mxu0 0.0
        %730 = vmatprep.subr.mxu0 0.0
        %731 = vmatpush1.msra.mxu0 0.0
        %732 = vmatprep.subr.mxu0 0.0
        %733 = vmatpush1.msra.mxu0 0.0
        %734 = vmatprep.subr.mxu0 0.0
        %735 = vmatpush1.msra.mxu0 0.0
        %736 = vmatprep.subr.mxu0 0.0
        %737 = vmatpush1.msra.mxu0 0.0
        %738 = vmatprep.subr.mxu0 0.0
        %739 = vmatpush1.msra.mxu0 0.0
        %740 = vmatprep.subr.mxu0 0.0
        %741 = vmatpush1.msra.mxu0 0.0
        %742 = vmatprep.subr.mxu0 0.0
        %743 = vmatpush1.msra.mxu0 0.0
        %744 = vmatprep.subr.mxu0 0.0
        %745 = vmatpush1.msra.mxu0 0.0
        %746 = vmatprep.subr.mxu0 0.0
        %747 = vmatpush1.msra.mxu0 0.0
        %748 = vmatprep.subr.mxu0 0.0
        %749 = vmatpush1.msra.mxu0 0.0
        %750 = vmatprep.subr.mxu0 0.0
        %751 = vmatpush1.msra.mxu0 0.0
        %752 = vmatprep.subr.mxu0 0.0
        %753 = vmatpush1.msra.mxu0 0.0
        %754 = vmatprep.subr.mxu0 0.0
        %755 = vmatpush1.msra.mxu0 0.0
        %756 = vmatprep.subr.mxu0 0.0
        %757 = vmatpush1.msra.mxu0 0.0
        %758 = vmatprep.subr.mxu0 0.0
        %759 = vmatpush1.msra.mxu0 0.0
        %760 = vmatprep.subr.mxu0 0.0
        %761 = vmatpush1.msra.mxu0 0.0
        %762 = vmatprep.subr.mxu0 0.0
        %763 = vmatpush1.msra.mxu0 0.0
        %764 = vmatprep.subr.mxu0 0.0
        %765 = vmatpush1.msra.mxu0 0.0
        %766 = vmatprep.subr.mxu0 0.0
        %767 = vmatpush1.msra.mxu0 0.0
        %768 = vmatprep.subr.mxu0 0.0
        %769 = vmatpush1.msra.mxu0 0.0
        %770 = vmatprep.subr.mxu0 0.0
        %771 = vmatpush1.msra.mxu0 0.0
        %772 = vmatprep.subr.mxu0 0.0
        %773 = vmatpush1.msra.mxu0 0.0
        %774 = vmatprep.subr.mxu0 0.0
        %775 = vmatpush1.msra.mxu0 0.0
        %776 = vmatprep.mubr.f32.mxu0 0.0
        %777 = vmatmul.mubr.f32.gmra.mrb[0].mxu0 %v710
        %v778 = vpop.f32.mrb[0].mxu0
        %v779 = vadd.f32 %v707, %v778
        %v780 = vpop.f32.mrb[0].mxu0
        %781 = vdwg.mxu0
        %s782 = scalar_lea.vmem %s1, 64
        %v783 = vld [vmem:[%s782] sm:$0xff]
        %v784 = vld [vmem:[%s782 + $0x8] sm:$0xff]
        %785 = vrot.lane.b32.xlu0 %v519, 96
        %v786 = vpop.permute.xlu0 %785
        %v787 = vsel %vm637, %v786, 0
        %789 = vmatprep.subr.mxu0 0.0
        %790 = vmatpush1.msra.mxu0 %v783
        %791 = vmatprep.subr.mxu0 0.0
        %792 = vmatpush1.msra.mxu0 %v784
        %793 = vmatprep.subr.mxu0 0.0
        %794 = vmatpush1.msra.mxu0 0.0
        %795 = vmatprep.subr.mxu0 0.0
        %796 = vmatpush1.msra.mxu0 0.0
        %797 = vmatprep.subr.mxu0 0.0
        %798 = vmatpush1.msra.mxu0 0.0
        %799 = vmatprep.subr.mxu0 0.0
        %800 = vmatpush1.msra.mxu0 0.0
        %801 = vmatprep.subr.mxu0 0.0
        %802 = vmatpush1.msra.mxu0 0.0
        %803 = vmatprep.subr.mxu0 0.0
        %804 = vmatpush1.msra.mxu0 0.0
        %805 = vmatprep.subr.mxu0 0.0
        %806 = vmatpush1.msra.mxu0 0.0
        %807 = vmatprep.subr.mxu0 0.0
        %808 = vmatpush1.msra.mxu0 0.0
        %809 = vmatprep.subr.mxu0 0.0
        %810 = vmatpush1.msra.mxu0 0.0
        %811 = vmatprep.subr.mxu0 0.0
        %812 = vmatpush1.msra.mxu0 0.0
        %813 = vmatprep.subr.mxu0 0.0
        %814 = vmatpush1.msra.mxu0 0.0
        %815 = vmatprep.subr.mxu0 0.0
        %816 = vmatpush1.msra.mxu0 0.0
        %817 = vmatprep.subr.mxu0 0.0
        %818 = vmatpush1.msra.mxu0 0.0
        %819 = vmatprep.subr.mxu0 0.0
        %820 = vmatpush1.msra.mxu0 0.0
        %821 = vmatprep.subr.mxu0 0.0
        %822 = vmatpush1.msra.mxu0 0.0
        %823 = vmatprep.subr.mxu0 0.0
        %824 = vmatpush1.msra.mxu0 0.0
        %825 = vmatprep.subr.mxu0 0.0
        %826 = vmatpush1.msra.mxu0 0.0
        %827 = vmatprep.subr.mxu0 0.0
        %828 = vmatpush1.msra.mxu0 0.0
        %829 = vmatprep.subr.mxu0 0.0
        %830 = vmatpush1.msra.mxu0 0.0
        %831 = vmatprep.subr.mxu0 0.0
        %832 = vmatpush1.msra.mxu0 0.0
        %833 = vmatprep.subr.mxu0 0.0
        %834 = vmatpush1.msra.mxu0 0.0
        %835 = vmatprep.subr.mxu0 0.0
        %836 = vmatpush1.msra.mxu0 0.0
        %837 = vmatprep.subr.mxu0 0.0
        %838 = vmatpush1.msra.mxu0 0.0
        %839 = vmatprep.subr.mxu0 0.0
        %840 = vmatpush1.msra.mxu0 0.0
        %841 = vmatprep.subr.mxu0 0.0
        %842 = vmatpush1.msra.mxu0 0.0
        %843 = vmatprep.subr.mxu0 0.0
        %844 = vmatpush1.msra.mxu0 0.0
        %845 = vmatprep.subr.mxu0 0.0
        %846 = vmatpush1.msra.mxu0 0.0
        %847 = vmatprep.subr.mxu0 0.0
        %848 = vmatpush1.msra.mxu0 0.0
        %849 = vmatprep.subr.mxu0 0.0
        %850 = vmatpush1.msra.mxu0 0.0
        %851 = vmatprep.subr.mxu0 0.0
        %852 = vmatpush1.msra.mxu0 0.0
        %853 = vmatprep.mubr.f32.mxu0 0.0
        %854 = vmatmul.mubr.f32.gmra.mrb[0].mxu0 %v787
        %v855 = vpop.f32.mrb[0].mxu0
        %v856 = vadd.f32 0.0, %v855
        %v857 = vpop.f32.mrb[0].mxu0
        %858 = vdwg.mxu0
        %v859 = vadd.f32 %v779, %v856
        %v860 = vld [vmem:[%s10] sm:$0xff]
        %v861 = vld [vmem:[%s6] sm:$0xff]
        %v862 = vld [vmem:[%s1] sm:$0xff]
        %v863 = vld [vmem:[%s1 + $0x8] sm:$0xff]
        %s864 = scalar_lea.vmem %s1, 16
        %v865 = vld [vmem:[%s864] sm:$0xff]
        %v866 = vld [vmem:[%s864 + $0x8] sm:$0xff]
        %867 = vmatprep.subr.mxu0 0.0
        %868 = vmatpush1.msra.mxu0 %v865
        %869 = vmatprep.subr.mxu0 0.0
        %870 = vmatpush1.msra.mxu0 %v866
        %871 = vmatprep.subr.mxu0 0.0
        %872 = vmatpush1.msra.mxu0 0.0
        %873 = vmatprep.subr.mxu0 0.0
        %874 = vmatpush1.msra.mxu0 0.0
        %875 = vmatprep.subr.mxu0 0.0
        %876 = vmatpush1.msra.mxu0 0.0
        %877 = vmatprep.subr.mxu0 0.0
        %878 = vmatpush1.msra.mxu0 0.0
        %879 = vmatprep.subr.mxu0 0.0
        %880 = vmatpush1.msra.mxu0 0.0
        %881 = vmatprep.subr.mxu0 0.0
        %882 = vmatpush1.msra.mxu0 0.0
        %883 = vmatprep.subr.mxu0 0.0
        %884 = vmatpush1.msra.mxu0 0.0
        %885 = vmatprep.subr.mxu0 0.0
        %886 = vmatpush1.msra.mxu0 0.0
        %887 = vmatprep.subr.mxu0 0.0
        %888 = vmatpush1.msra.mxu0 0.0
        %889 = vmatprep.subr.mxu0 0.0
        %890 = vmatpush1.msra.mxu0 0.0
        %891 = vmatprep.subr.mxu0 0.0
        %892 = vmatpush1.msra.mxu0 0.0
        %893 = vmatprep.subr.mxu0 0.0
        %894 = vmatpush1.msra.mxu0 0.0
        %895 = vmatprep.subr.mxu0 0.0
        %896 = vmatpush1.msra.mxu0 0.0
        %897 = vmatprep.subr.mxu0 0.0
        %898 = vmatpush1.msra.mxu0 0.0
        %899 = vmatprep.subr.mxu0 0.0
        %900 = vmatpush1.msra.mxu0 0.0
        %901 = vmatprep.subr.mxu0 0.0
        %902 = vmatpush1.msra.mxu0 0.0
        %903 = vmatprep.subr.mxu0 0.0
        %904 = vmatpush1.msra.mxu0 0.0
        %905 = vmatprep.subr.mxu0 0.0
        %906 = vmatpush1.msra.mxu0 0.0
        %907 = vmatprep.subr.mxu0 0.0
        %908 = vmatpush1.msra.mxu0 0.0
        %909 = vmatprep.subr.mxu0 0.0
        %910 = vmatpush1.msra.mxu0 0.0
        %911 = vmatprep.subr.mxu0 0.0
        %912 = vmatpush1.msra.mxu0 0.0
        %913 = vmatprep.subr.mxu0 0.0
        %914 = vmatpush1.msra.mxu0 0.0
        %915 = vmatprep.subr.mxu0 0.0
        %916 = vmatpush1.msra.mxu0 0.0
        %917 = vmatprep.subr.mxu0 0.0
        %918 = vmatpush1.msra.mxu0 0.0
        %919 = vmatprep.subr.mxu0 0.0
        %920 = vmatpush1.msra.mxu0 0.0
        %921 = vmatprep.subr.mxu0 0.0
        %922 = vmatpush1.msra.mxu0 0.0
        %923 = vmatprep.subr.mxu0 0.0
        %924 = vmatpush1.msra.mxu0 0.0
        %925 = vmatprep.subr.mxu0 0.0
        %926 = vmatpush1.msra.mxu0 0.0
        %927 = vmatprep.subr.mxu0 0.0
        %928 = vmatpush1.msra.mxu0 0.0
        %929 = vmatprep.subr.mxu0 0.0
        %930 = vmatpush1.msra.mxu0 0.0
        %931 = vmatprep.mubr.f32.mxu0 0.0
        %932 = vmatmul.mubr.f32.gmra.mrb[0].mxu0 %v638
        %v933 = vpop.f32.mrb[0].mxu0
        %v934 = vadd.f32 0.0, %v933
        %v935 = vpop.f32.mrb[0].mxu0
        %936 = vdwg.mxu0
        %937 = vmatprep.subr.mxu0 0.0
        %938 = vmatpush1.msra.mxu0 %v862
        %939 = vmatprep.subr.mxu0 0.0
        %940 = vmatpush1.msra.mxu0 %v863
        %941 = vmatprep.subr.mxu0 0.0
        %942 = vmatpush1.msra.mxu0 0.0
        %943 = vmatprep.subr.mxu0 0.0
        %944 = vmatpush1.msra.mxu0 0.0
        %945 = vmatprep.subr.mxu0 0.0
        %946 = vmatpush1.msra.mxu0 0.0
        %947 = vmatprep.subr.mxu0 0.0
        %948 = vmatpush1.msra.mxu0 0.0
        %949 = vmatprep.subr.mxu0 0.0
        %950 = vmatpush1.msra.mxu0 0.0
        %951 = vmatprep.subr.mxu0 0.0
        %952 = vmatpush1.msra.mxu0 0.0
        %953 = vmatprep.subr.mxu0 0.0
        %954 = vmatpush1.msra.mxu0 0.0
        %955 = vmatprep.subr.mxu0 0.0
        %956 = vmatpush1.msra.mxu0 0.0
        %957 = vmatprep.subr.mxu0 0.0
        %958 = vmatpush1.msra.mxu0 0.0
        %959 = vmatprep.subr.mxu0 0.0
        %960 = vmatpush1.msra.mxu0 0.0
        %961 = vmatprep.subr.mxu0 0.0
        %962 = vmatpush1.msra.mxu0 0.0
        %963 = vmatprep.subr.mxu0 0.0
        %964 = vmatpush1.msra.mxu0 0.0
        %965 = vmatprep.subr.mxu0 0.0
        %966 = vmatpush1.msra.mxu0 0.0
        %967 = vmatprep.subr.mxu0 0.0
        %968 = vmatpush1.msra.mxu0 0.0
        %969 = vmatprep.subr.mxu0 0.0
        %970 = vmatpush1.msra.mxu0 0.0
        %971 = vmatprep.subr.mxu0 0.0
        %972 = vmatpush1.msra.mxu0 0.0
        %973 = vmatprep.subr.mxu0 0.0
        %974 = vmatpush1.msra.mxu0 0.0
        %975 = vmatprep.subr.mxu0 0.0
        %976 = vmatpush1.msra.mxu0 0.0
        %977 = vmatprep.subr.mxu0 0.0
        %978 = vmatpush1.msra.mxu0 0.0
        %979 = vmatprep.subr.mxu0 0.0
        %980 = vmatpush1.msra.mxu0 0.0
        %981 = vmatprep.subr.mxu0 0.0
        %982 = vmatpush1.msra.mxu0 0.0
        %983 = vmatprep.subr.mxu0 0.0
        %984 = vmatpush1.msra.mxu0 0.0
        %985 = vmatprep.subr.mxu0 0.0
        %986 = vmatpush1.msra.mxu0 0.0
        %987 = vmatprep.subr.mxu0 0.0
        %988 = vmatpush1.msra.mxu0 0.0
        %989 = vmatprep.subr.mxu0 0.0
        %990 = vmatpush1.msra.mxu0 0.0
        %991 = vmatprep.subr.mxu0 0.0
        %992 = vmatpush1.msra.mxu0 0.0
        %993 = vmatprep.subr.mxu0 0.0
        %994 = vmatpush1.msra.mxu0 0.0
        %995 = vmatprep.subr.mxu0 0.0
        %996 = vmatpush1.msra.mxu0 0.0
        %997 = vmatprep.subr.mxu0 0.0
        %998 = vmatpush1.msra.mxu0 0.0
        %999 = vmatprep.subr.mxu0 0.0
        %1000 = vmatpush1.msra.mxu0 0.0
        %1001 = vmatprep.mubr.f32.mxu0 0.0
        %1002 = vmatmul.mubr.f32.gmra.mrb[0].mxu0 %v710
        %v1003 = vpop.f32.mrb[0].mxu0
        %v1004 = vadd.f32 %v934, %v1003
        %v1005 = vpop.f32.mrb[0].mxu0
        %1006 = vdwg.mxu0
        %1007 = vmatprep.subr.mxu0 0.0
        %1008 = vmatpush1.msra.mxu0 %v630
        %1009 = vmatprep.subr.mxu0 0.0
        %1010 = vmatpush1.msra.mxu0 %v631
        %1011 = vmatprep.subr.mxu0 0.0
        %1012 = vmatpush1.msra.mxu0 0.0
        %1013 = vmatprep.subr.mxu0 0.0
        %1014 = vmatpush1.msra.mxu0 0.0
        %1015 = vmatprep.subr.mxu0 0.0
        %1016 = vmatpush1.msra.mxu0 0.0
        %1017 = vmatprep.subr.mxu0 0.0
        %1018 = vmatpush1.msra.mxu0 0.0
        %1019 = vmatprep.subr.mxu0 0.0
        %1020 = vmatpush1.msra.mxu0 0.0
        %1021 = vmatprep.subr.mxu0 0.0
        %1022 = vmatpush1.msra.mxu0 0.0
        %1023 = vmatprep.subr.mxu0 0.0
        %1024 = vmatpush1.msra.mxu0 0.0
        %1025 = vmatprep.subr.mxu0 0.0
        %1026 = vmatpush1.msra.mxu0 0.0
        %1027 = vmatprep.subr.mxu0 0.0
        %1028 = vmatpush1.msra.mxu0 0.0
        %1029 = vmatprep.subr.mxu0 0.0
        %1030 = vmatpush1.msra.mxu0 0.0
        %1031 = vmatprep.subr.mxu0 0.0
        %1032 = vmatpush1.msra.mxu0 0.0
        %1033 = vmatprep.subr.mxu0 0.0
        %1034 = vmatpush1.msra.mxu0 0.0
        %1035 = vmatprep.subr.mxu0 0.0
        %1036 = vmatpush1.msra.mxu0 0.0
        %1037 = vmatprep.subr.mxu0 0.0
        %1038 = vmatpush1.msra.mxu0 0.0
        %1039 = vmatprep.subr.mxu0 0.0
        %1040 = vmatpush1.msra.mxu0 0.0
        %1041 = vmatprep.subr.mxu0 0.0
        %1042 = vmatpush1.msra.mxu0 0.0
        %1043 = vmatprep.subr.mxu0 0.0
        %1044 = vmatpush1.msra.mxu0 0.0
        %1045 = vmatprep.subr.mxu0 0.0
        %1046 = vmatpush1.msra.mxu0 0.0
        %1047 = vmatprep.subr.mxu0 0.0
        %1048 = vmatpush1.msra.mxu0 0.0
        %1049 = vmatprep.subr.mxu0 0.0
        %1050 = vmatpush1.msra.mxu0 0.0
        %1051 = vmatprep.subr.mxu0 0.0
        %1052 = vmatpush1.msra.mxu0 0.0
        %1053 = vmatprep.subr.mxu0 0.0
        %1054 = vmatpush1.msra.mxu0 0.0
        %1055 = vmatprep.subr.mxu0 0.0
        %1056 = vmatpush1.msra.mxu0 0.0
        %1057 = vmatprep.subr.mxu0 0.0
        %1058 = vmatpush1.msra.mxu0 0.0
        %1059 = vmatprep.subr.mxu0 0.0
        %1060 = vmatpush1.msra.mxu0 0.0
        %1061 = vmatprep.subr.mxu0 0.0
        %1062 = vmatpush1.msra.mxu0 0.0
        %1063 = vmatprep.subr.mxu0 0.0
        %1064 = vmatpush1.msra.mxu0 0.0
        %1065 = vmatprep.subr.mxu0 0.0
        %1066 = vmatpush1.msra.mxu0 0.0
        %1067 = vmatprep.subr.mxu0 0.0
        %1068 = vmatpush1.msra.mxu0 0.0
        %1069 = vmatprep.subr.mxu0 0.0
        %1070 = vmatpush1.msra.mxu0 0.0
        %1071 = vmatprep.mubr.f32.mxu0 0.0
        %1072 = vmatmul.mubr.f32.gmra.mrb[0].mxu0 %v787
        %v1073 = vpop.f32.mrb[0].mxu0
        %v1074 = vadd.f32 0.0, %v1073
        %v1075 = vpop.f32.mrb[0].mxu0
        %1076 = vdwg.mxu0
        %v1077 = vadd.f32 %v1004, %v1074
        %1078 = vrot.lane.b32.xlu0 %v519, 80
        %v1079 = vpop.permute.xlu0 %1078
        %v1080 = vsel %vm637, %v1079, 0
        %1082 = vmatprep.subr.mxu0 0.0
        %1083 = vmatpush1.msra.mxu0 %v633
        %1084 = vmatprep.subr.mxu0 0.0
        %1085 = vmatpush1.msra.mxu0 %v634
        %1086 = vmatprep.subr.mxu0 0.0
        %1087 = vmatpush1.msra.mxu0 0.0
        %1088 = vmatprep.subr.mxu0 0.0
        %1089 = vmatpush1.msra.mxu0 0.0
        %1090 = vmatprep.subr.mxu0 0.0
        %1091 = vmatpush1.msra.mxu0 0.0
        %1092 = vmatprep.subr.mxu0 0.0
        %1093 = vmatpush1.msra.mxu0 0.0
        %1094 = vmatprep.subr.mxu0 0.0
        %1095 = vmatpush1.msra.mxu0 0.0
        %1096 = vmatprep.subr.mxu0 0.0
        %1097 = vmatpush1.msra.mxu0 0.0
        %1098 = vmatprep.subr.mxu0 0.0
        %1099 = vmatpush1.msra.mxu0 0.0
        %1100 = vmatprep.subr.mxu0 0.0
        %1101 = vmatpush1.msra.mxu0 0.0
        %1102 = vmatprep.subr.mxu0 0.0
        %1103 = vmatpush1.msra.mxu0 0.0
        %1104 = vmatprep.subr.mxu0 0.0
        %1105 = vmatpush1.msra.mxu0 0.0
        %1106 = vmatprep.subr.mxu0 0.0
        %1107 = vmatpush1.msra.mxu0 0.0
        %1108 = vmatprep.subr.mxu0 0.0
        %1109 = vmatpush1.msra.mxu0 0.0
        %1110 = vmatprep.subr.mxu0 0.0
        %1111 = vmatpush1.msra.mxu0 0.0
        %1112 = vmatprep.subr.mxu0 0.0
        %1113 = vmatpush1.msra.mxu0 0.0
        %1114 = vmatprep.subr.mxu0 0.0
        %1115 = vmatpush1.msra.mxu0 0.0
        %1116 = vmatprep.subr.mxu0 0.0
        %1117 = vmatpush1.msra.mxu0 0.0
        %1118 = vmatprep.subr.mxu0 0.0
        %1119 = vmatpush1.msra.mxu0 0.0
        %1120 = vmatprep.subr.mxu0 0.0
        %1121 = vmatpush1.msra.mxu0 0.0
        %1122 = vmatprep.subr.mxu0 0.0
        %1123 = vmatpush1.msra.mxu0 0.0
        %1124 = vmatprep.subr.mxu0 0.0
        %1125 = vmatpush1.msra.mxu0 0.0
        %1126 = vmatprep.subr.mxu0 0.0
        %1127 = vmatpush1.msra.mxu0 0.0
        %1128 = vmatprep.subr.mxu0 0.0
        %1129 = vmatpush1.msra.mxu0 0.0
        %1130 = vmatprep.subr.mxu0 0.0
        %1131 = vmatpush1.msra.mxu0 0.0
        %1132 = vmatprep.subr.mxu0 0.0
        %1133 = vmatpush1.msra.mxu0 0.0
        %1134 = vmatprep.subr.mxu0 0.0
        %1135 = vmatpush1.msra.mxu0 0.0
        %1136 = vmatprep.subr.mxu0 0.0
        %1137 = vmatpush1.msra.mxu0 0.0
        %1138 = vmatprep.subr.mxu0 0.0
        %1139 = vmatpush1.msra.mxu0 0.0
        %1140 = vmatprep.subr.mxu0 0.0
        %1141 = vmatpush1.msra.mxu0 0.0
        %1142 = vmatprep.subr.mxu0 0.0
        %1143 = vmatpush1.msra.mxu0 0.0
        %1144 = vmatprep.subr.mxu0 0.0
        %1145 = vmatpush1.msra.mxu0 0.0
        %1146 = vmatprep.mubr.f32.mxu0 0.0
        %1147 = vmatmul.mubr.f32.gmra.mrb[0].mxu0 %v1080
        %v1148 = vpop.f32.mrb[0].mxu0
        %v1149 = vadd.f32 0.0, %v1148
        %v1150 = vpop.f32.mrb[0].mxu0
        %1151 = vdwg.mxu0
        %v1152 = vadd.f32 %v1077, %v1149
        %1153 = vrot.lane.b32.xlu0 %v519, 64
        %v1154 = vpop.permute.xlu0 %1153
        %v1155 = vsel %vm637, %v1154, 0
        %1157 = vmatprep.subr.mxu0 0.0
        %1158 = vmatpush1.msra.mxu0 %v783
        %1159 = vmatprep.subr.mxu0 0.0
        %1160 = vmatpush1.msra.mxu0 %v784
        %1161 = vmatprep.subr.mxu0 0.0
        %1162 = vmatpush1.msra.mxu0 0.0
        %1163 = vmatprep.subr.mxu0 0.0
        %1164 = vmatpush1.msra.mxu0 0.0
        %1165 = vmatprep.subr.mxu0 0.0
        %1166 = vmatpush1.msra.mxu0 0.0
        %1167 = vmatprep.subr.mxu0 0.0
        %1168 = vmatpush1.msra.mxu0 0.0
        %1169 = vmatprep.subr.mxu0 0.0
        %1170 = vmatpush1.msra.mxu0 0.0
        %1171 = vmatprep.subr.mxu0 0.0
        %1172 = vmatpush1.msra.mxu0 0.0
        %1173 = vmatprep.subr.mxu0 0.0
        %1174 = vmatpush1.msra.mxu0 0.0
        %1175 = vmatprep.subr.mxu0 0.0
        %1176 = vmatpush1.msra.mxu0 0.0
        %1177 = vmatprep.subr.mxu0 0.0
        %1178 = vmatpush1.msra.mxu0 0.0
        %1179 = vmatprep.subr.mxu0 0.0
        %1180 = vmatpush1.msra.mxu0 0.0
        %1181 = vmatprep.subr.mxu0 0.0
        %1182 = vmatpush1.msra.mxu0 0.0
        %1183 = vmatprep.subr.mxu0 0.0
        %1184 = vmatpush1.msra.mxu0 0.0
        %1185 = vmatprep.subr.mxu0 0.0
        %1186 = vmatpush1.msra.mxu0 0.0
        %1187 = vmatprep.subr.mxu0 0.0
        %1188 = vmatpush1.msra.mxu0 0.0
        %1189 = vmatprep.subr.mxu0 0.0
        %1190 = vmatpush1.msra.mxu0 0.0
        %1191 = vmatprep.subr.mxu0 0.0
        %1192 = vmatpush1.msra.mxu0 0.0
        %1193 = vmatprep.subr.mxu0 0.0
        %1194 = vmatpush1.msra.mxu0 0.0
        %1195 = vmatprep.subr.mxu0 0.0
        %1196 = vmatpush1.msra.mxu0 0.0
        %1197 = vmatprep.subr.mxu0 0.0
        %1198 = vmatpush1.msra.mxu0 0.0
        %1199 = vmatprep.subr.mxu0 0.0
        %1200 = vmatpush1.msra.mxu0 0.0
        %1201 = vmatprep.subr.mxu0 0.0
        %1202 = vmatpush1.msra.mxu0 0.0
        %1203 = vmatprep.subr.mxu0 0.0
        %1204 = vmatpush1.msra.mxu0 0.0
        %1205 = vmatprep.subr.mxu0 0.0
        %1206 = vmatpush1.msra.mxu0 0.0
        %1207 = vmatprep.subr.mxu0 0.0
        %1208 = vmatpush1.msra.mxu0 0.0
        %1209 = vmatprep.subr.mxu0 0.0
        %1210 = vmatpush1.msra.mxu0 0.0
        %1211 = vmatprep.subr.mxu0 0.0
        %1212 = vmatpush1.msra.mxu0 0.0
        %1213 = vmatprep.subr.mxu0 0.0
        %1214 = vmatpush1.msra.mxu0 0.0
        %1215 = vmatprep.subr.mxu0 0.0
        %1216 = vmatpush1.msra.mxu0 0.0
        %1217 = vmatprep.subr.mxu0 0.0
        %1218 = vmatpush1.msra.mxu0 0.0
        %1219 = vmatprep.subr.mxu0 0.0
        %1220 = vmatpush1.msra.mxu0 0.0
        %1221 = vmatprep.mubr.f32.mxu0 0.0
        %1222 = vmatmul.mubr.f32.gmra.mrb[0].mxu0 %v1155
        %v1223 = vpop.f32.mrb[0].mxu0
        %v1224 = vadd.f32 0.0, %v1223
        %v1225 = vpop.f32.mrb[0].mxu0
        %1226 = vdwg.mxu0
        %v1227 = vadd.f32 %v1152, %v1224
        %v1228 = vld [vmem:[%s10 + $0x8] sm:$0xff]
        %vm1229 = vcmask 64512
        %v1231 = vsel %vm1229, %v1227, 0
        %1233 = vmatprep.subr.mxu0 0.0
        %1234 = vmatpush1.msra.mxu0 %v1228
        %1235 = vmatprep.subr.mxu0 0.0
        %1236 = vmatpush1.msra.mxu0 0.0
        %1237 = vmatprep.subr.mxu0 0.0
        %1238 = vmatpush1.msra.mxu0 0.0
        %1239 = vmatprep.subr.mxu0 0.0
        %1240 = vmatpush1.msra.mxu0 0.0
        %1241 = vmatprep.subr.mxu0 0.0
        %1242 = vmatpush1.msra.mxu0 0.0
        %1243 = vmatprep.subr.mxu0 0.0
        %1244 = vmatpush1.msra.mxu0 0.0
        %1245 = vmatprep.subr.mxu0 0.0
        %1246 = vmatpush1.msra.mxu0 0.0
        %1247 = vmatprep.subr.mxu0 0.0
        %1248 = vmatpush1.msra.mxu0 0.0
        %1249 = vmatprep.subr.mxu0 0.0
        %1250 = vmatpush1.msra.mxu0 0.0
        %1251 = vmatprep.subr.mxu0 0.0
        %1252 = vmatpush1.msra.mxu0 0.0
        %1253 = vmatprep.subr.mxu0 0.0
        %1254 = vmatpush1.msra.mxu0 0.0
        %1255 = vmatprep.subr.mxu0 0.0
        %1256 = vmatpush1.msra.mxu0 0.0
        %1257 = vmatprep.subr.mxu0 0.0
        %1258 = vmatpush1.msra.mxu0 0.0
        %1259 = vmatprep.subr.mxu0 0.0
        %1260 = vmatpush1.msra.mxu0 0.0
        %1261 = vmatprep.subr.mxu0 0.0
        %1262 = vmatpush1.msra.mxu0 0.0
        %1263 = vmatprep.subr.mxu0 0.0
        %1264 = vmatpush1.msra.mxu0 0.0
        %1265 = vmatprep.subr.mxu0 0.0
        %1266 = vmatpush1.msra.mxu0 0.0
        %1267 = vmatprep.subr.mxu0 0.0
        %1268 = vmatpush1.msra.mxu0 0.0
        %1269 = vmatprep.subr.mxu0 0.0
        %1270 = vmatpush1.msra.mxu0 0.0
        %1271 = vmatprep.subr.mxu0 0.0
        %1272 = vmatpush1.msra.mxu0 0.0
        %1273 = vmatprep.subr.mxu0 0.0
        %1274 = vmatpush1.msra.mxu0 0.0
        %1275 = vmatprep.subr.mxu0 0.0
        %1276 = vmatpush1.msra.mxu0 0.0
        %1277 = vmatprep.subr.mxu0 0.0
        %1278 = vmatpush1.msra.mxu0 0.0
        %1279 = vmatprep.subr.mxu0 0.0
        %1280 = vmatpush1.msra.mxu0 0.0
        %1281 = vmatprep.subr.mxu0 0.0
        %1282 = vmatpush1.msra.mxu0 0.0
        %1283 = vmatprep.subr.mxu0 0.0
        %1284 = vmatpush1.msra.mxu0 0.0
        %1285 = vmatprep.subr.mxu0 0.0
        %1286 = vmatpush1.msra.mxu0 0.0
        %1287 = vmatprep.subr.mxu0 0.0
        %1288 = vmatpush1.msra.mxu0 0.0
        %1289 = vmatprep.subr.mxu0 0.0
        %1290 = vmatpush1.msra.mxu0 0.0
        %1291 = vmatprep.subr.mxu0 0.0
        %1292 = vmatpush1.msra.mxu0 0.0
        %1293 = vmatprep.subr.mxu0 0.0
        %1294 = vmatpush1.msra.mxu0 0.0
        %1295 = vmatprep.subr.mxu0 0.0
        %1296 = vmatpush1.msra.mxu0 0.0
        %1297 = vmatprep.mubr.f32.mxu0 0.0
        %1298 = vmatmul.mubr.f32.gmra.mrb[0].mxu0 %v1231
        %v1299 = vpop.f32.mrb[0].mxu0
        %v1300 = vadd.f32 0.0, %v1299
        %v1301 = vpop.f32.mrb[0].mxu0
        %1302 = vdwg.mxu0
        %v1304 = vsel %vm1229, %v859, 0
        %1306 = vmatprep.subr.mxu0 0.0
        %1307 = vmatpush1.msra.mxu0 %v860
        %1308 = vmatprep.subr.mxu0 0.0
        %1309 = vmatpush1.msra.mxu0 0.0
        %1310 = vmatprep.subr.mxu0 0.0
        %1311 = vmatpush1.msra.mxu0 0.0
        %1312 = vmatprep.subr.mxu0 0.0
        %1313 = vmatpush1.msra.mxu0 0.0
        %1314 = vmatprep.subr.mxu0 0.0
        %1315 = vmatpush1.msra.mxu0 0.0
        %1316 = vmatprep.subr.mxu0 0.0
        %1317 = vmatpush1.msra.mxu0 0.0
        %1318 = vmatprep.subr.mxu0 0.0
        %1319 = vmatpush1.msra.mxu0 0.0
        %1320 = vmatprep.subr.mxu0 0.0
        %1321 = vmatpush1.msra.mxu0 0.0
        %1322 = vmatprep.subr.mxu0 0.0
        %1323 = vmatpush1.msra.mxu0 0.0
        %1324 = vmatprep.subr.mxu0 0.0
        %1325 = vmatpush1.msra.mxu0 0.0
        %1326 = vmatprep.subr.mxu0 0.0
        %1327 = vmatpush1.msra.mxu0 0.0
        %1328 = vmatprep.subr.mxu0 0.0
        %1329 = vmatpush1.msra.mxu0 0.0
        %1330 = vmatprep.subr.mxu0 0.0
        %1331 = vmatpush1.msra.mxu0 0.0
        %1332 = vmatprep.subr.mxu0 0.0
        %1333 = vmatpush1.msra.mxu0 0.0
        %1334 = vmatprep.subr.mxu0 0.0
        %1335 = vmatpush1.msra.mxu0 0.0
        %1336 = vmatprep.subr.mxu0 0.0
        %1337 = vmatpush1.msra.mxu0 0.0
        %1338 = vmatprep.subr.mxu0 0.0
        %1339 = vmatpush1.msra.mxu0 0.0
        %1340 = vmatprep.subr.mxu0 0.0
        %1341 = vmatpush1.msra.mxu0 0.0
        %1342 = vmatprep.subr.mxu0 0.0
        %1343 = vmatpush1.msra.mxu0 0.0
        %1344 = vmatprep.subr.mxu0 0.0
        %1345 = vmatpush1.msra.mxu0 0.0
        %1346 = vmatprep.subr.mxu0 0.0
        %1347 = vmatpush1.msra.mxu0 0.0
        %1348 = vmatprep.subr.mxu0 0.0
        %1349 = vmatpush1.msra.mxu0 0.0
        %1350 = vmatprep.subr.mxu0 0.0
        %1351 = vmatpush1.msra.mxu0 0.0
        %1352 = vmatprep.subr.mxu0 0.0
        %1353 = vmatpush1.msra.mxu0 0.0
        %1354 = vmatprep.subr.mxu0 0.0
        %1355 = vmatpush1.msra.mxu0 0.0
        %1356 = vmatprep.subr.mxu0 0.0
        %1357 = vmatpush1.msra.mxu0 0.0
        %1358 = vmatprep.subr.mxu0 0.0
        %1359 = vmatpush1.msra.mxu0 0.0
        %1360 = vmatprep.subr.mxu0 0.0
        %1361 = vmatpush1.msra.mxu0 0.0
        %1362 = vmatprep.subr.mxu0 0.0
        %1363 = vmatpush1.msra.mxu0 0.0
        %1364 = vmatprep.subr.mxu0 0.0
        %1365 = vmatpush1.msra.mxu0 0.0
        %1366 = vmatprep.subr.mxu0 0.0
        %1367 = vmatpush1.msra.mxu0 0.0
        %1368 = vmatprep.subr.mxu0 0.0
        %1369 = vmatpush1.msra.mxu0 0.0
        %1370 = vmatprep.mubr.f32.mxu0 0.0
        %1371 = vmatmul.mubr.f32.gmra.mrb[0].mxu0 %v1304
        %v1372 = vpop.f32.mrb[0].mxu0
        %v1373 = vadd.f32 %v1300, %v1372
        %v1374 = vpop.f32.mrb[0].mxu0
        %1375 = vdwg.mxu0
        %v1376 = vld [vmem:[%s6 + $0x8] sm:$0xff]
        %1377 = vmatprep.subr.mxu0 0.0
        %1378 = vmatpush1.msra.mxu0 %v1376
        %1379 = vmatprep.subr.mxu0 0.0
        %1380 = vmatpush1.msra.mxu0 0.0
        %1381 = vmatprep.subr.mxu0 0.0
        %1382 = vmatpush1.msra.mxu0 0.0
        %1383 = vmatprep.subr.mxu0 0.0
        %1384 = vmatpush1.msra.mxu0 0.0
        %1385 = vmatprep.subr.mxu0 0.0
        %1386 = vmatpush1.msra.mxu0 0.0
        %1387 = vmatprep.subr.mxu0 0.0
        %1388 = vmatpush1.msra.mxu0 0.0
        %1389 = vmatprep.subr.mxu0 0.0
        %1390 = vmatpush1.msra.mxu0 0.0
        %1391 = vmatprep.subr.mxu0 0.0
        %1392 = vmatpush1.msra.mxu0 0.0
        %1393 = vmatprep.subr.mxu0 0.0
        %1394 = vmatpush1.msra.mxu0 0.0
        %1395 = vmatprep.subr.mxu0 0.0
        %1396 = vmatpush1.msra.mxu0 0.0
        %1397 = vmatprep.subr.mxu0 0.0
        %1398 = vmatpush1.msra.mxu0 0.0
        %1399 = vmatprep.subr.mxu0 0.0
        %1400 = vmatpush1.msra.mxu0 0.0
        %1401 = vmatprep.subr.mxu0 0.0
        %1402 = vmatpush1.msra.mxu0 0.0
        %1403 = vmatprep.subr.mxu0 0.0
        %1404 = vmatpush1.msra.mxu0 0.0
        %1405 = vmatprep.subr.mxu0 0.0
        %1406 = vmatpush1.msra.mxu0 0.0
        %1407 = vmatprep.subr.mxu0 0.0
        %1408 = vmatpush1.msra.mxu0 0.0
        %1409 = vmatprep.subr.mxu0 0.0
        %1410 = vmatpush1.msra.mxu0 0.0
        %1411 = vmatprep.subr.mxu0 0.0
        %1412 = vmatpush1.msra.mxu0 0.0
        %1413 = vmatprep.subr.mxu0 0.0
        %1414 = vmatpush1.msra.mxu0 0.0
        %1415 = vmatprep.subr.mxu0 0.0
        %1416 = vmatpush1.msra.mxu0 0.0
        %1417 = vmatprep.subr.mxu0 0.0
        %1418 = vmatpush1.msra.mxu0 0.0
        %1419 = vmatprep.subr.mxu0 0.0
        %1420 = vmatpush1.msra.mxu0 0.0
        %1421 = vmatprep.subr.mxu0 0.0
        %1422 = vmatpush1.msra.mxu0 0.0
        %1423 = vmatprep.subr.mxu0 0.0
        %1424 = vmatpush1.msra.mxu0 0.0
        %1425 = vmatprep.subr.mxu0 0.0
        %1426 = vmatpush1.msra.mxu0 0.0
        %1427 = vmatprep.subr.mxu0 0.0
        %1428 = vmatpush1.msra.mxu0 0.0
        %1429 = vmatprep.subr.mxu0 0.0
        %1430 = vmatpush1.msra.mxu0 0.0
        %1431 = vmatprep.subr.mxu0 0.0
        %1432 = vmatpush1.msra.mxu0 0.0
        %1433 = vmatprep.subr.mxu0 0.0
        %1434 = vmatpush1.msra.mxu0 0.0
        %1435 = vmatprep.subr.mxu0 0.0
        %1436 = vmatpush1.msra.mxu0 0.0
        %1437 = vmatprep.subr.mxu0 0.0
        %1438 = vmatpush1.msra.mxu0 0.0
        %1439 = vmatprep.subr.mxu0 0.0
        %1440 = vmatpush1.msra.mxu0 0.0
        %1441 = vmatprep.mubr.f32.mxu0 0.0
        %1442 = vmatmul.mubr.f32.gmra.mrb[0].mxu0 %v1231
        %v1443 = vpop.f32.mrb[0].mxu0
        %v1444 = vadd.f32 0.0, %v1443
        %v1445 = vpop.f32.mrb[0].mxu0
        %1446 = vdwg.mxu0
        %1447 = vmatprep.subr.mxu0 0.0
        %1448 = vmatpush1.msra.mxu0 %v861
        %1449 = vmatprep.subr.mxu0 0.0
        %1450 = vmatpush1.msra.mxu0 0.0
        %1451 = vmatprep.subr.mxu0 0.0
        %1452 = vmatpush1.msra.mxu0 0.0
        %1453 = vmatprep.subr.mxu0 0.0
        %1454 = vmatpush1.msra.mxu0 0.0
        %1455 = vmatprep.subr.mxu0 0.0
        %1456 = vmatpush1.msra.mxu0 0.0
        %1457 = vmatprep.subr.mxu0 0.0
        %1458 = vmatpush1.msra.mxu0 0.0
        %1459 = vmatprep.subr.mxu0 0.0
        %1460 = vmatpush1.msra.mxu0 0.0
        %1461 = vmatprep.subr.mxu0 0.0
        %1462 = vmatpush1.msra.mxu0 0.0
        %1463 = vmatprep.subr.mxu0 0.0
        %1464 = vmatpush1.msra.mxu0 0.0
        %1465 = vmatprep.subr.mxu0 0.0
        %1466 = vmatpush1.msra.mxu0 0.0
        %1467 = vmatprep.subr.mxu0 0.0
        %1468 = vmatpush1.msra.mxu0 0.0
        %1469 = vmatprep.subr.mxu0 0.0
        %1470 = vmatpush1.msra.mxu0 0.0
        %1471 = vmatprep.subr.mxu0 0.0
        %1472 = vmatpush1.msra.mxu0 0.0
        %1473 = vmatprep.subr.mxu0 0.0
        %1474 = vmatpush1.msra.mxu0 0.0
        %1475 = vmatprep.subr.mxu0 0.0
        %1476 = vmatpush1.msra.mxu0 0.0
        %1477 = vmatprep.subr.mxu0 0.0
        %1478 = vmatpush1.msra.mxu0 0.0
        %1479 = vmatprep.subr.mxu0 0.0
        %1480 = vmatpush1.msra.mxu0 0.0
        %1481 = vmatprep.subr.mxu0 0.0
        %1482 = vmatpush1.msra.mxu0 0.0
        %1483 = vmatprep.subr.mxu0 0.0
        %1484 = vmatpush1.msra.mxu0 0.0
        %1485 = vmatprep.subr.mxu0 0.0
        %1486 = vmatpush1.msra.mxu0 0.0
        %1487 = vmatprep.subr.mxu0 0.0
        %1488 = vmatpush1.msra.mxu0 0.0
        %1489 = vmatprep.subr.mxu0 0.0
        %1490 = vmatpush1.msra.mxu0 0.0
        %1491 = vmatprep.subr.mxu0 0.0
        %1492 = vmatpush1.msra.mxu0 0.0
        %1493 = vmatprep.subr.mxu0 0.0
        %1494 = vmatpush1.msra.mxu0 0.0
        %1495 = vmatprep.subr.mxu0 0.0
        %1496 = vmatpush1.msra.mxu0 0.0
        %1497 = vmatprep.subr.mxu0 0.0
        %1498 = vmatpush1.msra.mxu0 0.0
        %1499 = vmatprep.subr.mxu0 0.0
        %1500 = vmatpush1.msra.mxu0 0.0
        %1501 = vmatprep.subr.mxu0 0.0
        %1502 = vmatpush1.msra.mxu0 0.0
        %1503 = vmatprep.subr.mxu0 0.0
        %1504 = vmatpush1.msra.mxu0 0.0
        %1505 = vmatprep.subr.mxu0 0.0
        %1506 = vmatpush1.msra.mxu0 0.0
        %1507 = vmatprep.subr.mxu0 0.0
        %1508 = vmatpush1.msra.mxu0 0.0
        %1509 = vmatprep.subr.mxu0 0.0
        %1510 = vmatpush1.msra.mxu0 0.0
        %1511 = vmatprep.mubr.f32.mxu0 0.0
        %1512 = vmatmul.mubr.f32.gmra.mrb[0].mxu0 %v1304
        %v1513 = vpop.f32.mrb[0].mxu0
        %v1514 = vadd.f32 %v1444, %v1513
        %v1515 = vpop.f32.mrb[0].mxu0
        %1516 = vdwg.mxu0
        %1517 = vmatprep.subr.mxu0 0.0
        %1518 = vmatpush1.msra.mxu0 %v865
        %1519 = vmatprep.subr.mxu0 0.0
        %1520 = vmatpush1.msra.mxu0 %v866
        %1521 = vmatprep.subr.mxu0 0.0
        %1522 = vmatpush1.msra.mxu0 0.0
        %1523 = vmatprep.subr.mxu0 0.0
        %1524 = vmatpush1.msra.mxu0 0.0
        %1525 = vmatprep.subr.mxu0 0.0
        %1526 = vmatpush1.msra.mxu0 0.0
        %1527 = vmatprep.subr.mxu0 0.0
        %1528 = vmatpush1.msra.mxu0 0.0
        %1529 = vmatprep.subr.mxu0 0.0
        %1530 = vmatpush1.msra.mxu0 0.0
        %1531 = vmatprep.subr.mxu0 0.0
        %1532 = vmatpush1.msra.mxu0 0.0
        %1533 = vmatprep.subr.mxu0 0.0
        %1534 = vmatpush1.msra.mxu0 0.0
        %1535 = vmatprep.subr.mxu0 0.0
        %1536 = vmatpush1.msra.mxu0 0.0
        %1537 = vmatprep.subr.mxu0 0.0
        %1538 = vmatpush1.msra.mxu0 0.0
        %1539 = vmatprep.subr.mxu0 0.0
        %1540 = vmatpush1.msra.mxu0 0.0
        %1541 = vmatprep.subr.mxu0 0.0
        %1542 = vmatpush1.msra.mxu0 0.0
        %1543 = vmatprep.subr.mxu0 0.0
        %1544 = vmatpush1.msra.mxu0 0.0
        %1545 = vmatprep.subr.mxu0 0.0
        %1546 = vmatpush1.msra.mxu0 0.0
        %1547 = vmatprep.subr.mxu0 0.0
        %1548 = vmatpush1.msra.mxu0 0.0
        %1549 = vmatprep.subr.mxu0 0.0
        %1550 = vmatpush1.msra.mxu0 0.0
        %1551 = vmatprep.subr.mxu0 0.0
        %1552 = vmatpush1.msra.mxu0 0.0
        %1553 = vmatprep.subr.mxu0 0.0
        %1554 = vmatpush1.msra.mxu0 0.0
        %1555 = vmatprep.subr.mxu0 0.0
        %1556 = vmatpush1.msra.mxu0 0.0
        %1557 = vmatprep.subr.mxu0 0.0
        %1558 = vmatpush1.msra.mxu0 0.0
        %1559 = vmatprep.subr.mxu0 0.0
        %1560 = vmatpush1.msra.mxu0 0.0
        %1561 = vmatprep.subr.mxu0 0.0
        %1562 = vmatpush1.msra.mxu0 0.0
        %1563 = vmatprep.subr.mxu0 0.0
        %1564 = vmatpush1.msra.mxu0 0.0
        %1565 = vmatprep.subr.mxu0 0.0
        %1566 = vmatpush1.msra.mxu0 0.0
        %1567 = vmatprep.subr.mxu0 0.0
        %1568 = vmatpush1.msra.mxu0 0.0
        %1569 = vmatprep.subr.mxu0 0.0
        %1570 = vmatpush1.msra.mxu0 0.0
        %1571 = vmatprep.subr.mxu0 0.0
        %1572 = vmatpush1.msra.mxu0 0.0
        %1573 = vmatprep.subr.mxu0 0.0
        %1574 = vmatpush1.msra.mxu0 0.0
        %1575 = vmatprep.subr.mxu0 0.0
        %1576 = vmatpush1.msra.mxu0 0.0
        %1577 = vmatprep.subr.mxu0 0.0
        %1578 = vmatpush1.msra.mxu0 0.0
        %1579 = vmatprep.subr.mxu0 0.0
        %1580 = vmatpush1.msra.mxu0 0.0
        %1581 = vmatprep.mubr.f32.mxu0 0.0
        %1582 = vmatmul.mubr.f32.gmra.mrb[0].mxu0 %v1080
        %v1583 = vpop.f32.mrb[0].mxu0
        %v1584 = vadd.f32 0.0, %v1583
        %v1585 = vpop.f32.mrb[0].mxu0
        %1586 = vdwg.mxu0
        %1587 = vmatprep.subr.mxu0 0.0
        %1588 = vmatpush1.msra.mxu0 %v862
        %1589 = vmatprep.subr.mxu0 0.0
        %1590 = vmatpush1.msra.mxu0 %v863
        %1591 = vmatprep.subr.mxu0 0.0
        %1592 = vmatpush1.msra.mxu0 0.0
        %1593 = vmatprep.subr.mxu0 0.0
        %1594 = vmatpush1.msra.mxu0 0.0
        %1595 = vmatprep.subr.mxu0 0.0
        %1596 = vmatpush1.msra.mxu0 0.0
        %1597 = vmatprep.subr.mxu0 0.0
        %1598 = vmatpush1.msra.mxu0 0.0
        %1599 = vmatprep.subr.mxu0 0.0
        %1600 = vmatpush1.msra.mxu0 0.0
        %1601 = vmatprep.subr.mxu0 0.0
        %1602 = vmatpush1.msra.mxu0 0.0
        %1603 = vmatprep.subr.mxu0 0.0
        %1604 = vmatpush1.msra.mxu0 0.0
        %1605 = vmatprep.subr.mxu0 0.0
        %1606 = vmatpush1.msra.mxu0 0.0
        %1607 = vmatprep.subr.mxu0 0.0
        %1608 = vmatpush1.msra.mxu0 0.0
        %1609 = vmatprep.subr.mxu0 0.0
        %1610 = vmatpush1.msra.mxu0 0.0
        %1611 = vmatprep.subr.mxu0 0.0
        %1612 = vmatpush1.msra.mxu0 0.0
        %1613 = vmatprep.subr.mxu0 0.0
        %1614 = vmatpush1.msra.mxu0 0.0
        %1615 = vmatprep.subr.mxu0 0.0
        %1616 = vmatpush1.msra.mxu0 0.0
        %1617 = vmatprep.subr.mxu0 0.0
        %1618 = vmatpush1.msra.mxu0 0.0
        %1619 = vmatprep.subr.mxu0 0.0
        %1620 = vmatpush1.msra.mxu0 0.0
        %1621 = vmatprep.subr.mxu0 0.0
        %1622 = vmatpush1.msra.mxu0 0.0
        %1623 = vmatprep.subr.mxu0 0.0
        %1624 = vmatpush1.msra.mxu0 0.0
        %1625 = vmatprep.subr.mxu0 0.0
        %1626 = vmatpush1.msra.mxu0 0.0
        %1627 = vmatprep.subr.mxu0 0.0
        %1628 = vmatpush1.msra.mxu0 0.0
        %1629 = vmatprep.subr.mxu0 0.0
        %1630 = vmatpush1.msra.mxu0 0.0
        %1631 = vmatprep.subr.mxu0 0.0
        %1632 = vmatpush1.msra.mxu0 0.0
        %1633 = vmatprep.subr.mxu0 0.0
        %1634 = vmatpush1.msra.mxu0 0.0
        %1635 = vmatprep.subr.mxu0 0.0
        %1636 = vmatpush1.msra.mxu0 0.0
        %1637 = vmatprep.subr.mxu0 0.0
        %1638 = vmatpush1.msra.mxu0 0.0
        %1639 = vmatprep.subr.mxu0 0.0
        %1640 = vmatpush1.msra.mxu0 0.0
        %1641 = vmatprep.subr.mxu0 0.0
        %1642 = vmatpush1.msra.mxu0 0.0
        %1643 = vmatprep.subr.mxu0 0.0
        %1644 = vmatpush1.msra.mxu0 0.0
        %1645 = vmatprep.subr.mxu0 0.0
        %1646 = vmatpush1.msra.mxu0 0.0
        %1647 = vmatprep.subr.mxu0 0.0
        %1648 = vmatpush1.msra.mxu0 0.0
        %1649 = vmatprep.subr.mxu0 0.0
        %1650 = vmatpush1.msra.mxu0 0.0
        %1651 = vmatprep.mubr.f32.mxu0 0.0
        %1652 = vmatmul.mubr.f32.gmra.mrb[0].mxu0 %v787
        %v1653 = vpop.f32.mrb[0].mxu0
        %v1654 = vadd.f32 %v1584, %v1653
        %v1655 = vpop.f32.mrb[0].mxu0
        %1656 = vdwg.mxu0
        %1657 = vmatprep.subr.mxu0 0.0
        %1658 = vmatpush1.msra.mxu0 %v630
        %1659 = vmatprep.subr.mxu0 0.0
        %1660 = vmatpush1.msra.mxu0 %v631
        %1661 = vmatprep.subr.mxu0 0.0
        %1662 = vmatpush1.msra.mxu0 0.0
        %1663 = vmatprep.subr.mxu0 0.0
        %1664 = vmatpush1.msra.mxu0 0.0
        %1665 = vmatprep.subr.mxu0 0.0
        %1666 = vmatpush1.msra.mxu0 0.0
        %1667 = vmatprep.subr.mxu0 0.0
        %1668 = vmatpush1.msra.mxu0 0.0
        %1669 = vmatprep.subr.mxu0 0.0
        %1670 = vmatpush1.msra.mxu0 0.0
        %1671 = vmatprep.subr.mxu0 0.0
        %1672 = vmatpush1.msra.mxu0 0.0
        %1673 = vmatprep.subr.mxu0 0.0
        %1674 = vmatpush1.msra.mxu0 0.0
        %1675 = vmatprep.subr.mxu0 0.0
        %1676 = vmatpush1.msra.mxu0 0.0
        %1677 = vmatprep.subr.mxu0 0.0
        %1678 = vmatpush1.msra.mxu0 0.0
        %1679 = vmatprep.subr.mxu0 0.0
        %1680 = vmatpush1.msra.mxu0 0.0
        %1681 = vmatprep.subr.mxu0 0.0
        %1682 = vmatpush1.msra.mxu0 0.0
        %1683 = vmatprep.subr.mxu0 0.0
        %1684 = vmatpush1.msra.mxu0 0.0
        %1685 = vmatprep.subr.mxu0 0.0
        %1686 = vmatpush1.msra.mxu0 0.0
        %1687 = vmatprep.subr.mxu0 0.0
        %1688 = vmatpush1.msra.mxu0 0.0
        %1689 = vmatprep.subr.mxu0 0.0
        %1690 = vmatpush1.msra.mxu0 0.0
        %1691 = vmatprep.subr.mxu0 0.0
        %1692 = vmatpush1.msra.mxu0 0.0
        %1693 = vmatprep.subr.mxu0 0.0
        %1694 = vmatpush1.msra.mxu0 0.0
        %1695 = vmatprep.subr.mxu0 0.0
        %1696 = vmatpush1.msra.mxu0 0.0
        %1697 = vmatprep.subr.mxu0 0.0
        %1698 = vmatpush1.msra.mxu0 0.0
        %1699 = vmatprep.subr.mxu0 0.0
        %1700 = vmatpush1.msra.mxu0 0.0
        %1701 = vmatprep.subr.mxu0 0.0
        %1702 = vmatpush1.msra.mxu0 0.0
        %1703 = vmatprep.subr.mxu0 0.0
        %1704 = vmatpush1.msra.mxu0 0.0
        %1705 = vmatprep.subr.mxu0 0.0
        %1706 = vmatpush1.msra.mxu0 0.0
        %1707 = vmatprep.subr.mxu0 0.0
        %1708 = vmatpush1.msra.mxu0 0.0
        %1709 = vmatprep.subr.mxu0 0.0
        %1710 = vmatpush1.msra.mxu0 0.0
        %1711 = vmatprep.subr.mxu0 0.0
        %1712 = vmatpush1.msra.mxu0 0.0
        %1713 = vmatprep.subr.mxu0 0.0
        %1714 = vmatpush1.msra.mxu0 0.0
        %1715 = vmatprep.subr.mxu0 0.0
        %1716 = vmatpush1.msra.mxu0 0.0
        %1717 = vmatprep.subr.mxu0 0.0
        %1718 = vmatpush1.msra.mxu0 0.0
        %1719 = vmatprep.subr.mxu0 0.0
        %1720 = vmatpush1.msra.mxu0 0.0
        %1721 = vmatprep.mubr.f32.mxu0 0.0
        %1722 = vmatmul.mubr.f32.gmra.mrb[0].mxu0 %v1155
        %v1723 = vpop.f32.mrb[0].mxu0
        %v1724 = vadd.f32 0.0, %v1723
        %v1725 = vpop.f32.mrb[0].mxu0
        %1726 = vdwg.mxu0
        %v1727 = vadd.f32 %v1654, %v1724
        %1728 = vrot.lane.b32.xlu0 %v519, 48
        %v1729 = vpop.permute.xlu0 %1728
        %v1730 = vsel %vm637, %v1729, 0
        %1732 = vmatprep.subr.mxu0 0.0
        %1733 = vmatpush1.msra.mxu0 %v633
        %1734 = vmatprep.subr.mxu0 0.0
        %1735 = vmatpush1.msra.mxu0 %v634
        %1736 = vmatprep.subr.mxu0 0.0
        %1737 = vmatpush1.msra.mxu0 0.0
        %1738 = vmatprep.subr.mxu0 0.0
        %1739 = vmatpush1.msra.mxu0 0.0
        %1740 = vmatprep.subr.mxu0 0.0
        %1741 = vmatpush1.msra.mxu0 0.0
        %1742 = vmatprep.subr.mxu0 0.0
        %1743 = vmatpush1.msra.mxu0 0.0
        %1744 = vmatprep.subr.mxu0 0.0
        %1745 = vmatpush1.msra.mxu0 0.0
        %1746 = vmatprep.subr.mxu0 0.0
        %1747 = vmatpush1.msra.mxu0 0.0
        %1748 = vmatprep.subr.mxu0 0.0
        %1749 = vmatpush1.msra.mxu0 0.0
        %1750 = vmatprep.subr.mxu0 0.0
        %1751 = vmatpush1.msra.mxu0 0.0
        %1752 = vmatprep.subr.mxu0 0.0
        %1753 = vmatpush1.msra.mxu0 0.0
        %1754 = vmatprep.subr.mxu0 0.0
        %1755 = vmatpush1.msra.mxu0 0.0
        %1756 = vmatprep.subr.mxu0 0.0
        %1757 = vmatpush1.msra.mxu0 0.0
        %1758 = vmatprep.subr.mxu0 0.0
        %1759 = vmatpush1.msra.mxu0 0.0
        %1760 = vmatprep.subr.mxu0 0.0
        %1761 = vmatpush1.msra.mxu0 0.0
        %1762 = vmatprep.subr.mxu0 0.0
        %1763 = vmatpush1.msra.mxu0 0.0
        %1764 = vmatprep.subr.mxu0 0.0
        %1765 = vmatpush1.msra.mxu0 0.0
        %1766 = vmatprep.subr.mxu0 0.0
        %1767 = vmatpush1.msra.mxu0 0.0
        %1768 = vmatprep.subr.mxu0 0.0
        %1769 = vmatpush1.msra.mxu0 0.0
        %1770 = vmatprep.subr.mxu0 0.0
        %1771 = vmatpush1.msra.mxu0 0.0
        %1772 = vmatprep.subr.mxu0 0.0
        %1773 = vmatpush1.msra.mxu0 0.0
        %1774 = vmatprep.subr.mxu0 0.0
        %1775 = vmatpush1.msra.mxu0 0.0
        %1776 = vmatprep.subr.mxu0 0.0
        %1777 = vmatpush1.msra.mxu0 0.0
        %1778 = vmatprep.subr.mxu0 0.0
        %1779 = vmatpush1.msra.mxu0 0.0
        %1780 = vmatprep.subr.mxu0 0.0
        %1781 = vmatpush1.msra.mxu0 0.0
        %1782 = vmatprep.subr.mxu0 0.0
        %1783 = vmatpush1.msra.mxu0 0.0
        %1784 = vmatprep.subr.mxu0 0.0
        %1785 = vmatpush1.msra.mxu0 0.0
        %1786 = vmatprep.subr.mxu0 0.0
        %1787 = vmatpush1.msra.mxu0 0.0
        %1788 = vmatprep.subr.mxu0 0.0
        %1789 = vmatpush1.msra.mxu0 0.0
        %1790 = vmatprep.subr.mxu0 0.0
        %1791 = vmatpush1.msra.mxu0 0.0
        %1792 = vmatprep.subr.mxu0 0.0
        %1793 = vmatpush1.msra.mxu0 0.0
        %1794 = vmatprep.subr.mxu0 0.0
        %1795 = vmatpush1.msra.mxu0 0.0
        %1796 = vmatprep.mubr.f32.mxu0 0.0
        %1797 = vmatmul.mubr.f32.gmra.mrb[0].mxu0 %v1730
        %v1798 = vpop.f32.mrb[0].mxu0
        %v1799 = vadd.f32 0.0, %v1798
        %v1800 = vpop.f32.mrb[0].mxu0
        %1801 = vdwg.mxu0
        %v1802 = vadd.f32 %v1727, %v1799
        %1803 = vrot.lane.b32.xlu0 %v519, 32
        %v1804 = vpop.permute.xlu0 %1803
        %v1805 = vsel %vm637, %v1804, 0
        %1807 = vmatprep.subr.mxu0 0.0
        %1808 = vmatpush1.msra.mxu0 %v783
        %1809 = vmatprep.subr.mxu0 0.0
        %1810 = vmatpush1.msra.mxu0 %v784
        %1811 = vmatprep.subr.mxu0 0.0
        %1812 = vmatpush1.msra.mxu0 0.0
        %1813 = vmatprep.subr.mxu0 0.0
        %1814 = vmatpush1.msra.mxu0 0.0
        %1815 = vmatprep.subr.mxu0 0.0
        %1816 = vmatpush1.msra.mxu0 0.0
        %1817 = vmatprep.subr.mxu0 0.0
        %1818 = vmatpush1.msra.mxu0 0.0
        %1819 = vmatprep.subr.mxu0 0.0
        %1820 = vmatpush1.msra.mxu0 0.0
        %1821 = vmatprep.subr.mxu0 0.0
        %1822 = vmatpush1.msra.mxu0 0.0
        %1823 = vmatprep.subr.mxu0 0.0
        %1824 = vmatpush1.msra.mxu0 0.0
        %1825 = vmatprep.subr.mxu0 0.0
        %1826 = vmatpush1.msra.mxu0 0.0
        %1827 = vmatprep.subr.mxu0 0.0
        %1828 = vmatpush1.msra.mxu0 0.0
        %1829 = vmatprep.subr.mxu0 0.0
        %1830 = vmatpush1.msra.mxu0 0.0
        %1831 = vmatprep.subr.mxu0 0.0
        %1832 = vmatpush1.msra.mxu0 0.0
        %1833 = vmatprep.subr.mxu0 0.0
        %1834 = vmatpush1.msra.mxu0 0.0
        %1835 = vmatprep.subr.mxu0 0.0
        %1836 = vmatpush1.msra.mxu0 0.0
        %1837 = vmatprep.subr.mxu0 0.0
        %1838 = vmatpush1.msra.mxu0 0.0
        %1839 = vmatprep.subr.mxu0 0.0
        %1840 = vmatpush1.msra.mxu0 0.0
        %1841 = vmatprep.subr.mxu0 0.0
        %1842 = vmatpush1.msra.mxu0 0.0
        %1843 = vmatprep.subr.mxu0 0.0
        %1844 = vmatpush1.msra.mxu0 0.0
        %1845 = vmatprep.subr.mxu0 0.0
        %1846 = vmatpush1.msra.mxu0 0.0
        %1847 = vmatprep.subr.mxu0 0.0
        %1848 = vmatpush1.msra.mxu0 0.0
        %1849 = vmatprep.subr.mxu0 0.0
        %1850 = vmatpush1.msra.mxu0 0.0
        %1851 = vmatprep.subr.mxu0 0.0
        %1852 = vmatpush1.msra.mxu0 0.0
        %1853 = vmatprep.subr.mxu0 0.0
        %1854 = vmatpush1.msra.mxu0 0.0
        %1855 = vmatprep.subr.mxu0 0.0
        %1856 = vmatpush1.msra.mxu0 0.0
        %1857 = vmatprep.subr.mxu0 0.0
        %1858 = vmatpush1.msra.mxu0 0.0
        %1859 = vmatprep.subr.mxu0 0.0
        %1860 = vmatpush1.msra.mxu0 0.0
        %1861 = vmatprep.subr.mxu0 0.0
        %1862 = vmatpush1.msra.mxu0 0.0
        %1863 = vmatprep.subr.mxu0 0.0
        %1864 = vmatpush1.msra.mxu0 0.0
        %1865 = vmatprep.subr.mxu0 0.0
        %1866 = vmatpush1.msra.mxu0 0.0
        %1867 = vmatprep.subr.mxu0 0.0
        %1868 = vmatpush1.msra.mxu0 0.0
        %1869 = vmatprep.subr.mxu0 0.0
        %1870 = vmatpush1.msra.mxu0 0.0
        %1871 = vmatprep.mubr.f32.mxu0 0.0
        %1872 = vmatmul.mubr.f32.gmra.mrb[0].mxu0 %v1805
        %v1873 = vpop.f32.mrb[0].mxu0
        %v1874 = vadd.f32 0.0, %v1873
        %v1875 = vpop.f32.mrb[0].mxu0
        %1876 = vdwg.mxu0
        %v1877 = vadd.f32 %v1802, %v1874
        %v1878 = vld [vmem:[%s10 + $0x10] sm:$0xff]
        %v1880 = vsel %vm1229, %v1877, 0
        %1882 = vmatprep.subr.mxu0 0.0
        %1883 = vmatpush1.msra.mxu0 %v1878
        %1884 = vmatprep.subr.mxu0 0.0
        %1885 = vmatpush1.msra.mxu0 0.0
        %1886 = vmatprep.subr.mxu0 0.0
        %1887 = vmatpush1.msra.mxu0 0.0
        %1888 = vmatprep.subr.mxu0 0.0
        %1889 = vmatpush1.msra.mxu0 0.0
        %1890 = vmatprep.subr.mxu0 0.0
        %1891 = vmatpush1.msra.mxu0 0.0
        %1892 = vmatprep.subr.mxu0 0.0
        %1893 = vmatpush1.msra.mxu0 0.0
        %1894 = vmatprep.subr.mxu0 0.0
        %1895 = vmatpush1.msra.mxu0 0.0
        %1896 = vmatprep.subr.mxu0 0.0
        %1897 = vmatpush1.msra.mxu0 0.0
        %1898 = vmatprep.subr.mxu0 0.0
        %1899 = vmatpush1.msra.mxu0 0.0
        %1900 = vmatprep.subr.mxu0 0.0
        %1901 = vmatpush1.msra.mxu0 0.0
        %1902 = vmatprep.subr.mxu0 0.0
        %1903 = vmatpush1.msra.mxu0 0.0
        %1904 = vmatprep.subr.mxu0 0.0
        %1905 = vmatpush1.msra.mxu0 0.0
        %1906 = vmatprep.subr.mxu0 0.0
        %1907 = vmatpush1.msra.mxu0 0.0
        %1908 = vmatprep.subr.mxu0 0.0
        %1909 = vmatpush1.msra.mxu0 0.0
        %1910 = vmatprep.subr.mxu0 0.0
        %1911 = vmatpush1.msra.mxu0 0.0
        %1912 = vmatprep.subr.mxu0 0.0
        %1913 = vmatpush1.msra.mxu0 0.0
        %1914 = vmatprep.subr.mxu0 0.0
        %1915 = vmatpush1.msra.mxu0 0.0
        %1916 = vmatprep.subr.mxu0 0.0
        %1917 = vmatpush1.msra.mxu0 0.0
        %1918 = vmatprep.subr.mxu0 0.0
        %1919 = vmatpush1.msra.mxu0 0.0
        %1920 = vmatprep.subr.mxu0 0.0
        %1921 = vmatpush1.msra.mxu0 0.0
        %1922 = vmatprep.subr.mxu0 0.0
        %1923 = vmatpush1.msra.mxu0 0.0
        %1924 = vmatprep.subr.mxu0 0.0
        %1925 = vmatpush1.msra.mxu0 0.0
        %1926 = vmatprep.subr.mxu0 0.0
        %1927 = vmatpush1.msra.mxu0 0.0
        %1928 = vmatprep.subr.mxu0 0.0
        %1929 = vmatpush1.msra.mxu0 0.0
        %1930 = vmatprep.subr.mxu0 0.0
        %1931 = vmatpush1.msra.mxu0 0.0
        %1932 = vmatprep.subr.mxu0 0.0
        %1933 = vmatpush1.msra.mxu0 0.0
        %1934 = vmatprep.subr.mxu0 0.0
        %1935 = vmatpush1.msra.mxu0 0.0
        %1936 = vmatprep.subr.mxu0 0.0
        %1937 = vmatpush1.msra.mxu0 0.0
        %1938 = vmatprep.subr.mxu0 0.0
        %1939 = vmatpush1.msra.mxu0 0.0
        %1940 = vmatprep.subr.mxu0 0.0
        %1941 = vmatpush1.msra.mxu0 0.0
        %1942 = vmatprep.subr.mxu0 0.0
        %1943 = vmatpush1.msra.mxu0 0.0
        %1944 = vmatprep.subr.mxu0 0.0
        %1945 = vmatpush1.msra.mxu0 0.0
        %1946 = vmatprep.mubr.f32.mxu0 0.0
        %1947 = vmatmul.mubr.f32.gmra.mrb[0].mxu0 %v1880
        %v1948 = vpop.f32.mrb[0].mxu0
        %v1949 = vadd.f32 0.0, %v1948
        %v1950 = vpop.f32.mrb[0].mxu0
        %1951 = vdwg.mxu0
        %v1952 = vadd.f32 %v1373, %v1949
        %v1953 = vld [vmem:[%s6 + $0x10] sm:$0xff]
        %1954 = vmatprep.subr.mxu0 0.0
        %1955 = vmatpush1.msra.mxu0 %v1953
        %1956 = vmatprep.subr.mxu0 0.0
        %1957 = vmatpush1.msra.mxu0 0.0
        %1958 = vmatprep.subr.mxu0 0.0
        %1959 = vmatpush1.msra.mxu0 0.0
        %1960 = vmatprep.subr.mxu0 0.0
        %1961 = vmatpush1.msra.mxu0 0.0
        %1962 = vmatprep.subr.mxu0 0.0
        %1963 = vmatpush1.msra.mxu0 0.0
        %1964 = vmatprep.subr.mxu0 0.0
        %1965 = vmatpush1.msra.mxu0 0.0
        %1966 = vmatprep.subr.mxu0 0.0
        %1967 = vmatpush1.msra.mxu0 0.0
        %1968 = vmatprep.subr.mxu0 0.0
        %1969 = vmatpush1.msra.mxu0 0.0
        %1970 = vmatprep.subr.mxu0 0.0
        %1971 = vmatpush1.msra.mxu0 0.0
        %1972 = vmatprep.subr.mxu0 0.0
        %1973 = vmatpush1.msra.mxu0 0.0
        %1974 = vmatprep.subr.mxu0 0.0
        %1975 = vmatpush1.msra.mxu0 0.0
        %1976 = vmatprep.subr.mxu0 0.0
        %1977 = vmatpush1.msra.mxu0 0.0
        %1978 = vmatprep.subr.mxu0 0.0
        %1979 = vmatpush1.msra.mxu0 0.0
        %1980 = vmatprep.subr.mxu0 0.0
        %1981 = vmatpush1.msra.mxu0 0.0
        %1982 = vmatprep.subr.mxu0 0.0
        %1983 = vmatpush1.msra.mxu0 0.0
        %1984 = vmatprep.subr.mxu0 0.0
        %1985 = vmatpush1.msra.mxu0 0.0
        %1986 = vmatprep.subr.mxu0 0.0
        %1987 = vmatpush1.msra.mxu0 0.0
        %1988 = vmatprep.subr.mxu0 0.0
        %1989 = vmatpush1.msra.mxu0 0.0
        %1990 = vmatprep.subr.mxu0 0.0
        %1991 = vmatpush1.msra.mxu0 0.0
        %1992 = vmatprep.subr.mxu0 0.0
        %1993 = vmatpush1.msra.mxu0 0.0
        %1994 = vmatprep.subr.mxu0 0.0
        %1995 = vmatpush1.msra.mxu0 0.0
        %1996 = vmatprep.subr.mxu0 0.0
        %1997 = vmatpush1.msra.mxu0 0.0
        %1998 = vmatprep.subr.mxu0 0.0
        %1999 = vmatpush1.msra.mxu0 0.0
        %2000 = vmatprep.subr.mxu0 0.0
        %2001 = vmatpush1.msra.mxu0 0.0
        %2002 = vmatprep.subr.mxu0 0.0
        %2003 = vmatpush1.msra.mxu0 0.0
        %2004 = vmatprep.subr.mxu0 0.0
        %2005 = vmatpush1.msra.mxu0 0.0
        %2006 = vmatprep.subr.mxu0 0.0
        %2007 = vmatpush1.msra.mxu0 0.0
        %2008 = vmatprep.subr.mxu0 0.0
        %2009 = vmatpush1.msra.mxu0 0.0
        %2010 = vmatprep.subr.mxu0 0.0
        %2011 = vmatpush1.msra.mxu0 0.0
        %2012 = vmatprep.subr.mxu0 0.0
        %2013 = vmatpush1.msra.mxu0 0.0
        %2014 = vmatprep.subr.mxu0 0.0
        %2015 = vmatpush1.msra.mxu0 0.0
        %2016 = vmatprep.subr.mxu0 0.0
        %2017 = vmatpush1.msra.mxu0 0.0
        %2018 = vmatprep.mubr.f32.mxu0 0.0
        %2019 = vmatmul.mubr.f32.gmra.mrb[0].mxu0 %v1880
        %v2020 = vpop.f32.mrb[0].mxu0
        %v2021 = vadd.f32 0.0, %v2020
        %v2022 = vpop.f32.mrb[0].mxu0
        %2023 = vdwg.mxu0
        %v2024 = vadd.f32 %v1514, %v2021
        %2025 = vmatprep.subr.mxu0 0.0
        %2026 = vmatpush1.msra.mxu0 %v865
        %2027 = vmatprep.subr.mxu0 0.0
        %2028 = vmatpush1.msra.mxu0 %v866
        %2029 = vmatprep.subr.mxu0 0.0
        %2030 = vmatpush1.msra.mxu0 0.0
        %2031 = vmatprep.subr.mxu0 0.0
        %2032 = vmatpush1.msra.mxu0 0.0
        %2033 = vmatprep.subr.mxu0 0.0
        %2034 = vmatpush1.msra.mxu0 0.0
        %2035 = vmatprep.subr.mxu0 0.0
        %2036 = vmatpush1.msra.mxu0 0.0
        %2037 = vmatprep.subr.mxu0 0.0
        %2038 = vmatpush1.msra.mxu0 0.0
        %2039 = vmatprep.subr.mxu0 0.0
        %2040 = vmatpush1.msra.mxu0 0.0
        %2041 = vmatprep.subr.mxu0 0.0
        %2042 = vmatpush1.msra.mxu0 0.0
        %2043 = vmatprep.subr.mxu0 0.0
        %2044 = vmatpush1.msra.mxu0 0.0
        %2045 = vmatprep.subr.mxu0 0.0
        %2046 = vmatpush1.msra.mxu0 0.0
        %2047 = vmatprep.subr.mxu0 0.0
        %2048 = vmatpush1.msra.mxu0 0.0
        %2049 = vmatprep.subr.mxu0 0.0
        %2050 = vmatpush1.msra.mxu0 0.0
        %2051 = vmatprep.subr.mxu0 0.0
        %2052 = vmatpush1.msra.mxu0 0.0
        %2053 = vmatprep.subr.mxu0 0.0
        %2054 = vmatpush1.msra.mxu0 0.0
        %2055 = vmatprep.subr.mxu0 0.0
        %2056 = vmatpush1.msra.mxu0 0.0
        %2057 = vmatprep.subr.mxu0 0.0
        %2058 = vmatpush1.msra.mxu0 0.0
        %2059 = vmatprep.subr.mxu0 0.0
        %2060 = vmatpush1.msra.mxu0 0.0
        %2061 = vmatprep.subr.mxu0 0.0
        %2062 = vmatpush1.msra.mxu0 0.0
        %2063 = vmatprep.subr.mxu0 0.0
        %2064 = vmatpush1.msra.mxu0 0.0
        %2065 = vmatprep.subr.mxu0 0.0
        %2066 = vmatpush1.msra.mxu0 0.0
        %2067 = vmatprep.subr.mxu0 0.0
        %2068 = vmatpush1.msra.mxu0 0.0
        %2069 = vmatprep.subr.mxu0 0.0
        %2070 = vmatpush1.msra.mxu0 0.0
        %2071 = vmatprep.subr.mxu0 0.0
        %2072 = vmatpush1.msra.mxu0 0.0
        %2073 = vmatprep.subr.mxu0 0.0
        %2074 = vmatpush1.msra.mxu0 0.0
        %2075 = vmatprep.subr.mxu0 0.0
        %2076 = vmatpush1.msra.mxu0 0.0
        %2077 = vmatprep.subr.mxu0 0.0
        %2078 = vmatpush1.msra.mxu0 0.0
        %2079 = vmatprep.subr.mxu0 0.0
        %2080 = vmatpush1.msra.mxu0 0.0
        %2081 = vmatprep.subr.mxu0 0.0
        %2082 = vmatpush1.msra.mxu0 0.0
        %2083 = vmatprep.subr.mxu0 0.0
        %2084 = vmatpush1.msra.mxu0 0.0
        %2085 = vmatprep.subr.mxu0 0.0
        %2086 = vmatpush1.msra.mxu0 0.0
        %2087 = vmatprep.subr.mxu0 0.0
        %2088 = vmatpush1.msra.mxu0 0.0
        %2089 = vmatprep.mubr.f32.mxu0 0.0
        %2090 = vmatmul.mubr.f32.gmra.mrb[0].mxu0 %v1730
        %v2091 = vpop.f32.mrb[0].mxu0
        %v2092 = vadd.f32 0.0, %v2091
        %v2093 = vpop.f32.mrb[0].mxu0
        %2094 = vdwg.mxu0
        %2095 = vmatprep.subr.mxu0 0.0
        %2096 = vmatpush1.msra.mxu0 %v862
        %2097 = vmatprep.subr.mxu0 0.0
        %2098 = vmatpush1.msra.mxu0 %v863
        %2099 = vmatprep.subr.mxu0 0.0
        %2100 = vmatpush1.msra.mxu0 0.0
        %2101 = vmatprep.subr.mxu0 0.0
        %2102 = vmatpush1.msra.mxu0 0.0
        %2103 = vmatprep.subr.mxu0 0.0
        %2104 = vmatpush1.msra.mxu0 0.0
        %2105 = vmatprep.subr.mxu0 0.0
        %2106 = vmatpush1.msra.mxu0 0.0
        %2107 = vmatprep.subr.mxu0 0.0
        %2108 = vmatpush1.msra.mxu0 0.0
        %2109 = vmatprep.subr.mxu0 0.0
        %2110 = vmatpush1.msra.mxu0 0.0
        %2111 = vmatprep.subr.mxu0 0.0
        %2112 = vmatpush1.msra.mxu0 0.0
        %2113 = vmatprep.subr.mxu0 0.0
        %2114 = vmatpush1.msra.mxu0 0.0
        %2115 = vmatprep.subr.mxu0 0.0
        %2116 = vmatpush1.msra.mxu0 0.0
        %2117 = vmatprep.subr.mxu0 0.0
        %2118 = vmatpush1.msra.mxu0 0.0
        %2119 = vmatprep.subr.mxu0 0.0
        %2120 = vmatpush1.msra.mxu0 0.0
        %2121 = vmatprep.subr.mxu0 0.0
        %2122 = vmatpush1.msra.mxu0 0.0
        %2123 = vmatprep.subr.mxu0 0.0
        %2124 = vmatpush1.msra.mxu0 0.0
        %2125 = vmatprep.subr.mxu0 0.0
        %2126 = vmatpush1.msra.mxu0 0.0
        %2127 = vmatprep.subr.mxu0 0.0
        %2128 = vmatpush1.msra.mxu0 0.0
        %2129 = vmatprep.subr.mxu0 0.0
        %2130 = vmatpush1.msra.mxu0 0.0
        %2131 = vmatprep.subr.mxu0 0.0
        %2132 = vmatpush1.msra.mxu0 0.0
        %2133 = vmatprep.subr.mxu0 0.0
        %2134 = vmatpush1.msra.mxu0 0.0
        %2135 = vmatprep.subr.mxu0 0.0
        %2136 = vmatpush1.msra.mxu0 0.0
        %2137 = vmatprep.subr.mxu0 0.0
        %2138 = vmatpush1.msra.mxu0 0.0
        %2139 = vmatprep.subr.mxu0 0.0
        %2140 = vmatpush1.msra.mxu0 0.0
        %2141 = vmatprep.subr.mxu0 0.0
        %2142 = vmatpush1.msra.mxu0 0.0
        %2143 = vmatprep.subr.mxu0 0.0
        %2144 = vmatpush1.msra.mxu0 0.0
        %2145 = vmatprep.subr.mxu0 0.0
        %2146 = vmatpush1.msra.mxu0 0.0
        %2147 = vmatprep.subr.mxu0 0.0
        %2148 = vmatpush1.msra.mxu0 0.0
        %2149 = vmatprep.subr.mxu0 0.0
        %2150 = vmatpush1.msra.mxu0 0.0
        %2151 = vmatprep.subr.mxu0 0.0
        %2152 = vmatpush1.msra.mxu0 0.0
        %2153 = vmatprep.subr.mxu0 0.0
        %2154 = vmatpush1.msra.mxu0 0.0
        %2155 = vmatprep.subr.mxu0 0.0
        %2156 = vmatpush1.msra.mxu0 0.0
        %2157 = vmatprep.subr.mxu0 0.0
        %2158 = vmatpush1.msra.mxu0 0.0
        %2159 = vmatprep.mubr.f32.mxu0 0.0
        %2160 = vmatmul.mubr.f32.gmra.mrb[0].mxu0 %v1155
        %v2161 = vpop.f32.mrb[0].mxu0
        %v2162 = vadd.f32 %v2092, %v2161
        %v2163 = vpop.f32.mrb[0].mxu0
        %2164 = vdwg.mxu0
        %2165 = vmatprep.subr.mxu0 0.0
        %2166 = vmatpush1.msra.mxu0 %v630
        %2167 = vmatprep.subr.mxu0 0.0
        %2168 = vmatpush1.msra.mxu0 %v631
        %2169 = vmatprep.subr.mxu0 0.0
        %2170 = vmatpush1.msra.mxu0 0.0
        %2171 = vmatprep.subr.mxu0 0.0
        %2172 = vmatpush1.msra.mxu0 0.0
        %2173 = vmatprep.subr.mxu0 0.0
        %2174 = vmatpush1.msra.mxu0 0.0
        %2175 = vmatprep.subr.mxu0 0.0
        %2176 = vmatpush1.msra.mxu0 0.0
        %2177 = vmatprep.subr.mxu0 0.0
        %2178 = vmatpush1.msra.mxu0 0.0
        %2179 = vmatprep.subr.mxu0 0.0
        %2180 = vmatpush1.msra.mxu0 0.0
        %2181 = vmatprep.subr.mxu0 0.0
        %2182 = vmatpush1.msra.mxu0 0.0
        %2183 = vmatprep.subr.mxu0 0.0
        %2184 = vmatpush1.msra.mxu0 0.0
        %2185 = vmatprep.subr.mxu0 0.0
        %2186 = vmatpush1.msra.mxu0 0.0
        %2187 = vmatprep.subr.mxu0 0.0
        %2188 = vmatpush1.msra.mxu0 0.0
        %2189 = vmatprep.subr.mxu0 0.0
        %2190 = vmatpush1.msra.mxu0 0.0
        %2191 = vmatprep.subr.mxu0 0.0
        %2192 = vmatpush1.msra.mxu0 0.0
        %2193 = vmatprep.subr.mxu0 0.0
        %2194 = vmatpush1.msra.mxu0 0.0
        %2195 = vmatprep.subr.mxu0 0.0
        %2196 = vmatpush1.msra.mxu0 0.0
        %2197 = vmatprep.subr.mxu0 0.0
        %2198 = vmatpush1.msra.mxu0 0.0
        %2199 = vmatprep.subr.mxu0 0.0
        %2200 = vmatpush1.msra.mxu0 0.0
        %2201 = vmatprep.subr.mxu0 0.0
        %2202 = vmatpush1.msra.mxu0 0.0
        %2203 = vmatprep.subr.mxu0 0.0
        %2204 = vmatpush1.msra.mxu0 0.0
        %2205 = vmatprep.subr.mxu0 0.0
        %2206 = vmatpush1.msra.mxu0 0.0
        %2207 = vmatprep.subr.mxu0 0.0
        %2208 = vmatpush1.msra.mxu0 0.0
        %2209 = vmatprep.subr.mxu0 0.0
        %2210 = vmatpush1.msra.mxu0 0.0
        %2211 = vmatprep.subr.mxu0 0.0
        %2212 = vmatpush1.msra.mxu0 0.0
        %2213 = vmatprep.subr.mxu0 0.0
        %2214 = vmatpush1.msra.mxu0 0.0
        %2215 = vmatprep.subr.mxu0 0.0
        %2216 = vmatpush1.msra.mxu0 0.0
        %2217 = vmatprep.subr.mxu0 0.0
        %2218 = vmatpush1.msra.mxu0 0.0
        %2219 = vmatprep.subr.mxu0 0.0
        %2220 = vmatpush1.msra.mxu0 0.0
        %2221 = vmatprep.subr.mxu0 0.0
        %2222 = vmatpush1.msra.mxu0 0.0
        %2223 = vmatprep.subr.mxu0 0.0
        %2224 = vmatpush1.msra.mxu0 0.0
        %2225 = vmatprep.subr.mxu0 0.0
        %2226 = vmatpush1.msra.mxu0 0.0
        %2227 = vmatprep.subr.mxu0 0.0
        %2228 = vmatpush1.msra.mxu0 0.0
        %2229 = vmatprep.mubr.f32.mxu0 0.0
        %2230 = vmatmul.mubr.f32.gmra.mrb[0].mxu0 %v1805
        %v2231 = vpop.f32.mrb[0].mxu0
        %v2232 = vadd.f32 0.0, %v2231
        %v2233 = vpop.f32.mrb[0].mxu0
        %2234 = vdwg.mxu0
        %v2235 = vadd.f32 %v2162, %v2232
        %2236 = vrot.lane.b32.xlu0 %v519, 16
        %v2237 = vpop.permute.xlu0 %2236
        %v2238 = vsel %vm637, %v2237, 0
        %2240 = vmatprep.subr.mxu0 0.0
        %2241 = vmatpush1.msra.mxu0 %v633
        %2242 = vmatprep.subr.mxu0 0.0
        %2243 = vmatpush1.msra.mxu0 %v634
        %2244 = vmatprep.subr.mxu0 0.0
        %2245 = vmatpush1.msra.mxu0 0.0
        %2246 = vmatprep.subr.mxu0 0.0
        %2247 = vmatpush1.msra.mxu0 0.0
        %2248 = vmatprep.subr.mxu0 0.0
        %2249 = vmatpush1.msra.mxu0 0.0
        %2250 = vmatprep.subr.mxu0 0.0
        %2251 = vmatpush1.msra.mxu0 0.0
        %2252 = vmatprep.subr.mxu0 0.0
        %2253 = vmatpush1.msra.mxu0 0.0
        %2254 = vmatprep.subr.mxu0 0.0
        %2255 = vmatpush1.msra.mxu0 0.0
        %2256 = vmatprep.subr.mxu0 0.0
        %2257 = vmatpush1.msra.mxu0 0.0
        %2258 = vmatprep.subr.mxu0 0.0
        %2259 = vmatpush1.msra.mxu0 0.0
        %2260 = vmatprep.subr.mxu0 0.0
        %2261 = vmatpush1.msra.mxu0 0.0
        %2262 = vmatprep.subr.mxu0 0.0
        %2263 = vmatpush1.msra.mxu0 0.0
        %2264 = vmatprep.subr.mxu0 0.0
        %2265 = vmatpush1.msra.mxu0 0.0
        %2266 = vmatprep.subr.mxu0 0.0
        %2267 = vmatpush1.msra.mxu0 0.0
        %2268 = vmatprep.subr.mxu0 0.0
        %2269 = vmatpush1.msra.mxu0 0.0
        %2270 = vmatprep.subr.mxu0 0.0
        %2271 = vmatpush1.msra.mxu0 0.0
        %2272 = vmatprep.subr.mxu0 0.0
        %2273 = vmatpush1.msra.mxu0 0.0
        %2274 = vmatprep.subr.mxu0 0.0
        %2275 = vmatpush1.msra.mxu0 0.0
        %2276 = vmatprep.subr.mxu0 0.0
        %2277 = vmatpush1.msra.mxu0 0.0
        %2278 = vmatprep.subr.mxu0 0.0
        %2279 = vmatpush1.msra.mxu0 0.0
        %2280 = vmatprep.subr.mxu0 0.0
        %2281 = vmatpush1.msra.mxu0 0.0
        %2282 = vmatprep.subr.mxu0 0.0
        %2283 = vmatpush1.msra.mxu0 0.0
        %2284 = vmatprep.subr.mxu0 0.0
        %2285 = vmatpush1.msra.mxu0 0.0
        %2286 = vmatprep.subr.mxu0 0.0
        %2287 = vmatpush1.msra.mxu0 0.0
        %2288 = vmatprep.subr.mxu0 0.0
        %2289 = vmatpush1.msra.mxu0 0.0
        %2290 = vmatprep.subr.mxu0 0.0
        %2291 = vmatpush1.msra.mxu0 0.0
        %2292 = vmatprep.subr.mxu0 0.0
        %2293 = vmatpush1.msra.mxu0 0.0
        %2294 = vmatprep.subr.mxu0 0.0
        %2295 = vmatpush1.msra.mxu0 0.0
        %2296 = vmatprep.subr.mxu0 0.0
        %2297 = vmatpush1.msra.mxu0 0.0
        %2298 = vmatprep.subr.mxu0 0.0
        %2299 = vmatpush1.msra.mxu0 0.0
        %2300 = vmatprep.subr.mxu0 0.0
        %2301 = vmatpush1.msra.mxu0 0.0
        %2302 = vmatprep.subr.mxu0 0.0
        %2303 = vmatpush1.msra.mxu0 0.0
        %2304 = vmatprep.mubr.f32.mxu0 0.0
        %2305 = vmatmul.mubr.f32.gmra.mrb[0].mxu0 %v2238
        %v2306 = vpop.f32.mrb[0].mxu0
        %v2307 = vadd.f32 0.0, %v2306
        %v2308 = vpop.f32.mrb[0].mxu0
        %2309 = vdwg.mxu0
        %v2310 = vadd.f32 %v2235, %v2307
        %v2311 = vsel %vm637, %v556, 0
        %2313 = vmatprep.subr.mxu0 0.0
        %2314 = vmatpush1.msra.mxu0 %v783
        %2315 = vmatprep.subr.mxu0 0.0
        %2316 = vmatpush1.msra.mxu0 %v784
        %2317 = vmatprep.subr.mxu0 0.0
        %2318 = vmatpush1.msra.mxu0 0.0
        %2319 = vmatprep.subr.mxu0 0.0
        %2320 = vmatpush1.msra.mxu0 0.0
        %2321 = vmatprep.subr.mxu0 0.0
        %2322 = vmatpush1.msra.mxu0 0.0
        %2323 = vmatprep.subr.mxu0 0.0
        %2324 = vmatpush1.msra.mxu0 0.0
        %2325 = vmatprep.subr.mxu0 0.0
        %2326 = vmatpush1.msra.mxu0 0.0
        %2327 = vmatprep.subr.mxu0 0.0
        %2328 = vmatpush1.msra.mxu0 0.0
        %2329 = vmatprep.subr.mxu0 0.0
        %2330 = vmatpush1.msra.mxu0 0.0
        %2331 = vmatprep.subr.mxu0 0.0
        %2332 = vmatpush1.msra.mxu0 0.0
        %2333 = vmatprep.subr.mxu0 0.0
        %2334 = vmatpush1.msra.mxu0 0.0
        %2335 = vmatprep.subr.mxu0 0.0
        %2336 = vmatpush1.msra.mxu0 0.0
        %2337 = vmatprep.subr.mxu0 0.0
        %2338 = vmatpush1.msra.mxu0 0.0
        %2339 = vmatprep.subr.mxu0 0.0
        %2340 = vmatpush1.msra.mxu0 0.0
        %2341 = vmatprep.subr.mxu0 0.0
        %2342 = vmatpush1.msra.mxu0 0.0
        %2343 = vmatprep.subr.mxu0 0.0
        %2344 = vmatpush1.msra.mxu0 0.0
        %2345 = vmatprep.subr.mxu0 0.0
        %2346 = vmatpush1.msra.mxu0 0.0
        %2347 = vmatprep.subr.mxu0 0.0
        %2348 = vmatpush1.msra.mxu0 0.0
        %2349 = vmatprep.subr.mxu0 0.0
        %2350 = vmatpush1.msra.mxu0 0.0
        %2351 = vmatprep.subr.mxu0 0.0
        %2352 = vmatpush1.msra.mxu0 0.0
        %2353 = vmatprep.subr.mxu0 0.0
        %2354 = vmatpush1.msra.mxu0 0.0
        %2355 = vmatprep.subr.mxu0 0.0
        %2356 = vmatpush1.msra.mxu0 0.0
        %2357 = vmatprep.subr.mxu0 0.0
        %2358 = vmatpush1.msra.mxu0 0.0
        %2359 = vmatprep.subr.mxu0 0.0
        %2360 = vmatpush1.msra.mxu0 0.0
        %2361 = vmatprep.subr.mxu0 0.0
        %2362 = vmatpush1.msra.mxu0 0.0
        %2363 = vmatprep.subr.mxu0 0.0
        %2364 = vmatpush1.msra.mxu0 0.0
        %2365 = vmatprep.subr.mxu0 0.0
        %2366 = vmatpush1.msra.mxu0 0.0
        %2367 = vmatprep.subr.mxu0 0.0
        %2368 = vmatpush1.msra.mxu0 0.0
        %2369 = vmatprep.subr.mxu0 0.0
        %2370 = vmatpush1.msra.mxu0 0.0
        %2371 = vmatprep.subr.mxu0 0.0
        %2372 = vmatpush1.msra.mxu0 0.0
        %2373 = vmatprep.subr.mxu0 0.0
        %2374 = vmatpush1.msra.mxu0 0.0
        %2375 = vmatprep.subr.mxu0 0.0
        %2376 = vmatpush1.msra.mxu0 0.0
        %2377 = vmatprep.mubr.f32.mxu0 0.0
        %2378 = vmatmul.mubr.f32.gmra.mrb[0].mxu0 %v2311
        %v2379 = vpop.f32.mrb[0].mxu0
        %v2380 = vadd.f32 0.0, %v2379
        %v2381 = vpop.f32.mrb[0].mxu0
        %2382 = vdwg.mxu0
        %v2383 = vadd.f32 %v2310, %v2380
        %v2384 = vld [vmem:[%s10 + $0x18] sm:$0xff]
        %v2386 = vsel %vm1229, %v2383, 0
        %2388 = vmatprep.subr.mxu0 0.0
        %2389 = vmatpush1.msra.mxu0 %v2384
        %2390 = vmatprep.subr.mxu0 0.0
        %2391 = vmatpush1.msra.mxu0 0.0
        %2392 = vmatprep.subr.mxu0 0.0
        %2393 = vmatpush1.msra.mxu0 0.0
        %2394 = vmatprep.subr.mxu0 0.0
        %2395 = vmatpush1.msra.mxu0 0.0
        %2396 = vmatprep.subr.mxu0 0.0
        %2397 = vmatpush1.msra.mxu0 0.0
        %2398 = vmatprep.subr.mxu0 0.0
        %2399 = vmatpush1.msra.mxu0 0.0
        %2400 = vmatprep.subr.mxu0 0.0
        %2401 = vmatpush1.msra.mxu0 0.0
        %2402 = vmatprep.subr.mxu0 0.0
        %2403 = vmatpush1.msra.mxu0 0.0
        %2404 = vmatprep.subr.mxu0 0.0
        %2405 = vmatpush1.msra.mxu0 0.0
        %2406 = vmatprep.subr.mxu0 0.0
        %2407 = vmatpush1.msra.mxu0 0.0
        %2408 = vmatprep.subr.mxu0 0.0
        %2409 = vmatpush1.msra.mxu0 0.0
        %2410 = vmatprep.subr.mxu0 0.0
        %2411 = vmatpush1.msra.mxu0 0.0
        %2412 = vmatprep.subr.mxu0 0.0
        %2413 = vmatpush1.msra.mxu0 0.0
        %2414 = vmatprep.subr.mxu0 0.0
        %2415 = vmatpush1.msra.mxu0 0.0
        %2416 = vmatprep.subr.mxu0 0.0
        %2417 = vmatpush1.msra.mxu0 0.0
        %2418 = vmatprep.subr.mxu0 0.0
        %2419 = vmatpush1.msra.mxu0 0.0
        %2420 = vmatprep.subr.mxu0 0.0
        %2421 = vmatpush1.msra.mxu0 0.0
        %2422 = vmatprep.subr.mxu0 0.0
        %2423 = vmatpush1.msra.mxu0 0.0
        %2424 = vmatprep.subr.mxu0 0.0
        %2425 = vmatpush1.msra.mxu0 0.0
        %2426 = vmatprep.subr.mxu0 0.0
        %2427 = vmatpush1.msra.mxu0 0.0
        %2428 = vmatprep.subr.mxu0 0.0
        %2429 = vmatpush1.msra.mxu0 0.0
        %2430 = vmatprep.subr.mxu0 0.0
        %2431 = vmatpush1.msra.mxu0 0.0
        %2432 = vmatprep.subr.mxu0 0.0
        %2433 = vmatpush1.msra.mxu0 0.0
        %2434 = vmatprep.subr.mxu0 0.0
        %2435 = vmatpush1.msra.mxu0 0.0
        %2436 = vmatprep.subr.mxu0 0.0
        %2437 = vmatpush1.msra.mxu0 0.0
        %2438 = vmatprep.subr.mxu0 0.0
        %2439 = vmatpush1.msra.mxu0 0.0
        %2440 = vmatprep.subr.mxu0 0.0
        %2441 = vmatpush1.msra.mxu0 0.0
        %2442 = vmatprep.subr.mxu0 0.0
        %2443 = vmatpush1.msra.mxu0 0.0
        %2444 = vmatprep.subr.mxu0 0.0
        %2445 = vmatpush1.msra.mxu0 0.0
        %2446 = vmatprep.subr.mxu0 0.0
        %2447 = vmatpush1.msra.mxu0 0.0
        %2448 = vmatprep.subr.mxu0 0.0
        %2449 = vmatpush1.msra.mxu0 0.0
        %2450 = vmatprep.subr.mxu0 0.0
        %2451 = vmatpush1.msra.mxu0 0.0
        %2452 = vmatprep.mubr.f32.mxu0 0.0
        %2453 = vmatmul.mubr.f32.gmra.mrb[0].mxu0 %v2386
        %v2454 = vpop.f32.mrb[0].mxu0
        %v2455 = vadd.f32 0.0, %v2454
        %v2456 = vpop.f32.mrb[0].mxu0
        %2457 = vdwg.mxu0
        %v2458 = vadd.f32 %v1952, %v2455
        %v2459 = vld [vmem:[%s6 + $0x18] sm:$0xff]
        %2460 = vmatprep.subr.mxu0 0.0
        %2461 = vmatpush1.msra.mxu0 %v2459
        %2462 = vmatprep.subr.mxu0 0.0
        %2463 = vmatpush1.msra.mxu0 0.0
        %2464 = vmatprep.subr.mxu0 0.0
        %2465 = vmatpush1.msra.mxu0 0.0
        %2466 = vmatprep.subr.mxu0 0.0
        %2467 = vmatpush1.msra.mxu0 0.0
        %2468 = vmatprep.subr.mxu0 0.0
        %2469 = vmatpush1.msra.mxu0 0.0
        %2470 = vmatprep.subr.mxu0 0.0
        %2471 = vmatpush1.msra.mxu0 0.0
        %2472 = vmatprep.subr.mxu0 0.0
        %2473 = vmatpush1.msra.mxu0 0.0
        %2474 = vmatprep.subr.mxu0 0.0
        %2475 = vmatpush1.msra.mxu0 0.0
        %2476 = vmatprep.subr.mxu0 0.0
        %2477 = vmatpush1.msra.mxu0 0.0
        %2478 = vmatprep.subr.mxu0 0.0
        %2479 = vmatpush1.msra.mxu0 0.0
        %2480 = vmatprep.subr.mxu0 0.0
        %2481 = vmatpush1.msra.mxu0 0.0
        %2482 = vmatprep.subr.mxu0 0.0
        %2483 = vmatpush1.msra.mxu0 0.0
        %2484 = vmatprep.subr.mxu0 0.0
        %2485 = vmatpush1.msra.mxu0 0.0
        %2486 = vmatprep.subr.mxu0 0.0
        %2487 = vmatpush1.msra.mxu0 0.0
        %2488 = vmatprep.subr.mxu0 0.0
        %2489 = vmatpush1.msra.mxu0 0.0
        %2490 = vmatprep.subr.mxu0 0.0
        %2491 = vmatpush1.msra.mxu0 0.0
        %2492 = vmatprep.subr.mxu0 0.0
        %2493 = vmatpush1.msra.mxu0 0.0
        %2494 = vmatprep.subr.mxu0 0.0
        %2495 = vmatpush1.msra.mxu0 0.0
        %2496 = vmatprep.subr.mxu0 0.0
        %2497 = vmatpush1.msra.mxu0 0.0
        %2498 = vmatprep.subr.mxu0 0.0
        %2499 = vmatpush1.msra.mxu0 0.0
        %2500 = vmatprep.subr.mxu0 0.0
        %2501 = vmatpush1.msra.mxu0 0.0
        %2502 = vmatprep.subr.mxu0 0.0
        %2503 = vmatpush1.msra.mxu0 0.0
        %2504 = vmatprep.subr.mxu0 0.0
        %2505 = vmatpush1.msra.mxu0 0.0
        %2506 = vmatprep.subr.mxu0 0.0
        %2507 = vmatpush1.msra.mxu0 0.0
        %2508 = vmatprep.subr.mxu0 0.0
        %2509 = vmatpush1.msra.mxu0 0.0
        %2510 = vmatprep.subr.mxu0 0.0
        %2511 = vmatpush1.msra.mxu0 0.0
        %2512 = vmatprep.subr.mxu0 0.0
        %2513 = vmatpush1.msra.mxu0 0.0
        %2514 = vmatprep.subr.mxu0 0.0
        %2515 = vmatpush1.msra.mxu0 0.0
        %2516 = vmatprep.subr.mxu0 0.0
        %2517 = vmatpush1.msra.mxu0 0.0
        %2518 = vmatprep.subr.mxu0 0.0
        %2519 = vmatpush1.msra.mxu0 0.0
        %2520 = vmatprep.subr.mxu0 0.0
        %2521 = vmatpush1.msra.mxu0 0.0
        %2522 = vmatprep.subr.mxu0 0.0
        %2523 = vmatpush1.msra.mxu0 0.0
        %2524 = vmatprep.mubr.f32.mxu0 0.0
        %2525 = vmatmul.mubr.f32.gmra.mrb[0].mxu0 %v2386
        %v2526 = vpop.f32.mrb[0].mxu0
        %v2527 = vadd.f32 0.0, %v2526
        %v2528 = vpop.f32.mrb[0].mxu0
        %2529 = vdwg.mxu0
        %v2530 = vadd.f32 %v2024, %v2527
        %2531 = vmatprep.subr.mxu0 0.0
        %2532 = vmatpush1.msra.mxu0 %v865
        %2533 = vmatprep.subr.mxu0 0.0
        %2534 = vmatpush1.msra.mxu0 %v866
        %2535 = vmatprep.subr.mxu0 0.0
        %2536 = vmatpush1.msra.mxu0 0.0
        %2537 = vmatprep.subr.mxu0 0.0
        %2538 = vmatpush1.msra.mxu0 0.0
        %2539 = vmatprep.subr.mxu0 0.0
        %2540 = vmatpush1.msra.mxu0 0.0
        %2541 = vmatprep.subr.mxu0 0.0
        %2542 = vmatpush1.msra.mxu0 0.0
        %2543 = vmatprep.subr.mxu0 0.0
        %2544 = vmatpush1.msra.mxu0 0.0
        %2545 = vmatprep.subr.mxu0 0.0
        %2546 = vmatpush1.msra.mxu0 0.0
        %2547 = vmatprep.subr.mxu0 0.0
        %2548 = vmatpush1.msra.mxu0 0.0
        %2549 = vmatprep.subr.mxu0 0.0
        %2550 = vmatpush1.msra.mxu0 0.0
        %2551 = vmatprep.subr.mxu0 0.0
        %2552 = vmatpush1.msra.mxu0 0.0
        %2553 = vmatprep.subr.mxu0 0.0
        %2554 = vmatpush1.msra.mxu0 0.0
        %2555 = vmatprep.subr.mxu0 0.0
        %2556 = vmatpush1.msra.mxu0 0.0
        %2557 = vmatprep.subr.mxu0 0.0
        %2558 = vmatpush1.msra.mxu0 0.0
        %2559 = vmatprep.subr.mxu0 0.0
        %2560 = vmatpush1.msra.mxu0 0.0
        %2561 = vmatprep.subr.mxu0 0.0
        %2562 = vmatpush1.msra.mxu0 0.0
        %2563 = vmatprep.subr.mxu0 0.0
        %2564 = vmatpush1.msra.mxu0 0.0
        %2565 = vmatprep.subr.mxu0 0.0
        %2566 = vmatpush1.msra.mxu0 0.0
        %2567 = vmatprep.subr.mxu0 0.0
        %2568 = vmatpush1.msra.mxu0 0.0
        %2569 = vmatprep.subr.mxu0 0.0
        %2570 = vmatpush1.msra.mxu0 0.0
        %2571 = vmatprep.subr.mxu0 0.0
        %2572 = vmatpush1.msra.mxu0 0.0
        %2573 = vmatprep.subr.mxu0 0.0
        %2574 = vmatpush1.msra.mxu0 0.0
        %2575 = vmatprep.subr.mxu0 0.0
        %2576 = vmatpush1.msra.mxu0 0.0
        %2577 = vmatprep.subr.mxu0 0.0
        %2578 = vmatpush1.msra.mxu0 0.0
        %2579 = vmatprep.subr.mxu0 0.0
        %2580 = vmatpush1.msra.mxu0 0.0
        %2581 = vmatprep.subr.mxu0 0.0
        %2582 = vmatpush1.msra.mxu0 0.0
        %2583 = vmatprep.subr.mxu0 0.0
        %2584 = vmatpush1.msra.mxu0 0.0
        %2585 = vmatprep.subr.mxu0 0.0
        %2586 = vmatpush1.msra.mxu0 0.0
        %2587 = vmatprep.subr.mxu0 0.0
        %2588 = vmatpush1.msra.mxu0 0.0
        %2589 = vmatprep.subr.mxu0 0.0
        %2590 = vmatpush1.msra.mxu0 0.0
        %2591 = vmatprep.subr.mxu0 0.0
        %2592 = vmatpush1.msra.mxu0 0.0
        %2593 = vmatprep.subr.mxu0 0.0
        %2594 = vmatpush1.msra.mxu0 0.0
        %2595 = vmatprep.mubr.f32.mxu0 0.0
        %2596 = vmatmul.mubr.f32.gmra.mrb[0].mxu0 %v2238
        %v2597 = vpop.f32.mrb[0].mxu0
        %v2598 = vadd.f32 0.0, %v2597
        %v2599 = vpop.f32.mrb[0].mxu0
        %2600 = vdwg.mxu0
        %2601 = vmatprep.subr.mxu0 0.0
        %2602 = vmatpush1.msra.mxu0 %v862
        %2603 = vmatprep.subr.mxu0 0.0
        %2604 = vmatpush1.msra.mxu0 %v863
        %2605 = vmatprep.subr.mxu0 0.0
        %2606 = vmatpush1.msra.mxu0 0.0
        %2607 = vmatprep.subr.mxu0 0.0
        %2608 = vmatpush1.msra.mxu0 0.0
        %2609 = vmatprep.subr.mxu0 0.0
        %2610 = vmatpush1.msra.mxu0 0.0
        %2611 = vmatprep.subr.mxu0 0.0
        %2612 = vmatpush1.msra.mxu0 0.0
        %2613 = vmatprep.subr.mxu0 0.0
        %2614 = vmatpush1.msra.mxu0 0.0
        %2615 = vmatprep.subr.mxu0 0.0
        %2616 = vmatpush1.msra.mxu0 0.0
        %2617 = vmatprep.subr.mxu0 0.0
        %2618 = vmatpush1.msra.mxu0 0.0
        %2619 = vmatprep.subr.mxu0 0.0
        %2620 = vmatpush1.msra.mxu0 0.0
        %2621 = vmatprep.subr.mxu0 0.0
        %2622 = vmatpush1.msra.mxu0 0.0
        %2623 = vmatprep.subr.mxu0 0.0
        %2624 = vmatpush1.msra.mxu0 0.0
        %2625 = vmatprep.subr.mxu0 0.0
        %2626 = vmatpush1.msra.mxu0 0.0
        %2627 = vmatprep.subr.mxu0 0.0
        %2628 = vmatpush1.msra.mxu0 0.0
        %2629 = vmatprep.subr.mxu0 0.0
        %2630 = vmatpush1.msra.mxu0 0.0
        %2631 = vmatprep.subr.mxu0 0.0
        %2632 = vmatpush1.msra.mxu0 0.0
        %2633 = vmatprep.subr.mxu0 0.0
        %2634 = vmatpush1.msra.mxu0 0.0
        %2635 = vmatprep.subr.mxu0 0.0
        %2636 = vmatpush1.msra.mxu0 0.0
        %2637 = vmatprep.subr.mxu0 0.0
        %2638 = vmatpush1.msra.mxu0 0.0
        %2639 = vmatprep.subr.mxu0 0.0
        %2640 = vmatpush1.msra.mxu0 0.0
        %2641 = vmatprep.subr.mxu0 0.0
        %2642 = vmatpush1.msra.mxu0 0.0
        %2643 = vmatprep.subr.mxu0 0.0
        %2644 = vmatpush1.msra.mxu0 0.0
        %2645 = vmatprep.subr.mxu0 0.0
        %2646 = vmatpush1.msra.mxu0 0.0
        %2647 = vmatprep.subr.mxu0 0.0
        %2648 = vmatpush1.msra.mxu0 0.0
        %2649 = vmatprep.subr.mxu0 0.0
        %2650 = vmatpush1.msra.mxu0 0.0
        %2651 = vmatprep.subr.mxu0 0.0
        %2652 = vmatpush1.msra.mxu0 0.0
        %2653 = vmatprep.subr.mxu0 0.0
        %2654 = vmatpush1.msra.mxu0 0.0
        %2655 = vmatprep.subr.mxu0 0.0
        %2656 = vmatpush1.msra.mxu0 0.0
        %2657 = vmatprep.subr.mxu0 0.0
        %2658 = vmatpush1.msra.mxu0 0.0
        %2659 = vmatprep.subr.mxu0 0.0
        %2660 = vmatpush1.msra.mxu0 0.0
        %2661 = vmatprep.subr.mxu0 0.0
        %2662 = vmatpush1.msra.mxu0 0.0
        %2663 = vmatprep.subr.mxu0 0.0
        %2664 = vmatpush1.msra.mxu0 0.0
        %2665 = vmatprep.mubr.f32.mxu0 0.0
        %2666 = vmatmul.mubr.f32.gmra.mrb[0].mxu0 %v1805
        %v2667 = vpop.f32.mrb[0].mxu0
        %v2668 = vadd.f32 %v2598, %v2667
        %v2669 = vpop.f32.mrb[0].mxu0
        %2670 = vdwg.mxu0
        %2671 = vmatprep.subr.mxu0 0.0
        %2672 = vmatpush1.msra.mxu0 %v630
        %2673 = vmatprep.subr.mxu0 0.0
        %2674 = vmatpush1.msra.mxu0 %v631
        %2675 = vmatprep.subr.mxu0 0.0
        %2676 = vmatpush1.msra.mxu0 0.0
        %2677 = vmatprep.subr.mxu0 0.0
        %2678 = vmatpush1.msra.mxu0 0.0
        %2679 = vmatprep.subr.mxu0 0.0
        %2680 = vmatpush1.msra.mxu0 0.0
        %2681 = vmatprep.subr.mxu0 0.0
        %2682 = vmatpush1.msra.mxu0 0.0
        %2683 = vmatprep.subr.mxu0 0.0
        %2684 = vmatpush1.msra.mxu0 0.0
        %2685 = vmatprep.subr.mxu0 0.0
        %2686 = vmatpush1.msra.mxu0 0.0
        %2687 = vmatprep.subr.mxu0 0.0
        %2688 = vmatpush1.msra.mxu0 0.0
        %2689 = vmatprep.subr.mxu0 0.0
        %2690 = vmatpush1.msra.mxu0 0.0
        %2691 = vmatprep.subr.mxu0 0.0
        %2692 = vmatpush1.msra.mxu0 0.0
        %2693 = vmatprep.subr.mxu0 0.0
        %2694 = vmatpush1.msra.mxu0 0.0
        %2695 = vmatprep.subr.mxu0 0.0
        %2696 = vmatpush1.msra.mxu0 0.0
        %2697 = vmatprep.subr.mxu0 0.0
        %2698 = vmatpush1.msra.mxu0 0.0
        %2699 = vmatprep.subr.mxu0 0.0
        %2700 = vmatpush1.msra.mxu0 0.0
        %2701 = vmatprep.subr.mxu0 0.0
        %2702 = vmatpush1.msra.mxu0 0.0
        %2703 = vmatprep.subr.mxu0 0.0
        %2704 = vmatpush1.msra.mxu0 0.0
        %2705 = vmatprep.subr.mxu0 0.0
        %2706 = vmatpush1.msra.mxu0 0.0
        %2707 = vmatprep.subr.mxu0 0.0
        %2708 = vmatpush1.msra.mxu0 0.0
        %2709 = vmatprep.subr.mxu0 0.0
        %2710 = vmatpush1.msra.mxu0 0.0
        %2711 = vmatprep.subr.mxu0 0.0
        %2712 = vmatpush1.msra.mxu0 0.0
        %2713 = vmatprep.subr.mxu0 0.0
        %2714 = vmatpush1.msra.mxu0 0.0
        %2715 = vmatprep.subr.mxu0 0.0
        %2716 = vmatpush1.msra.mxu0 0.0
        %2717 = vmatprep.subr.mxu0 0.0
        %2718 = vmatpush1.msra.mxu0 0.0
        %2719 = vmatprep.subr.mxu0 0.0
        %2720 = vmatpush1.msra.mxu0 0.0
        %2721 = vmatprep.subr.mxu0 0.0
        %2722 = vmatpush1.msra.mxu0 0.0
        %2723 = vmatprep.subr.mxu0 0.0
        %2724 = vmatpush1.msra.mxu0 0.0
        %2725 = vmatprep.subr.mxu0 0.0
        %2726 = vmatpush1.msra.mxu0 0.0
        %2727 = vmatprep.subr.mxu0 0.0
        %2728 = vmatpush1.msra.mxu0 0.0
        %2729 = vmatprep.subr.mxu0 0.0
        %2730 = vmatpush1.msra.mxu0 0.0
        %2731 = vmatprep.subr.mxu0 0.0
        %2732 = vmatpush1.msra.mxu0 0.0
        %2733 = vmatprep.subr.mxu0 0.0
        %2734 = vmatpush1.msra.mxu0 0.0
        %2735 = vmatprep.mubr.f32.mxu0 0.0
        %2736 = vmatmul.mubr.f32.gmra.mrb[0].mxu0 %v2311
        %v2737 = vpop.f32.mrb[0].mxu0
        %v2738 = vadd.f32 0.0, %v2737
        %v2739 = vpop.f32.mrb[0].mxu0
        %2740 = vdwg.mxu0
        %v2741 = vadd.f32 %v2668, %v2738
        %2742 = vrot.lane.b32.xlu0 %v556, 112
        %v2743 = vpop.permute.xlu0 %2742
        %v2744 = vsel %vm637, %v2743, 0
        %2746 = vmatprep.subr.mxu0 0.0
        %2747 = vmatpush1.msra.mxu0 %v633
        %2748 = vmatprep.subr.mxu0 0.0
        %2749 = vmatpush1.msra.mxu0 %v634
        %2750 = vmatprep.subr.mxu0 0.0
        %2751 = vmatpush1.msra.mxu0 0.0
        %2752 = vmatprep.subr.mxu0 0.0
        %2753 = vmatpush1.msra.mxu0 0.0
        %2754 = vmatprep.subr.mxu0 0.0
        %2755 = vmatpush1.msra.mxu0 0.0
        %2756 = vmatprep.subr.mxu0 0.0
        %2757 = vmatpush1.msra.mxu0 0.0
        %2758 = vmatprep.subr.mxu0 0.0
        %2759 = vmatpush1.msra.mxu0 0.0
        %2760 = vmatprep.subr.mxu0 0.0
        %2761 = vmatpush1.msra.mxu0 0.0
        %2762 = vmatprep.subr.mxu0 0.0
        %2763 = vmatpush1.msra.mxu0 0.0
        %2764 = vmatprep.subr.mxu0 0.0
        %2765 = vmatpush1.msra.mxu0 0.0
        %2766 = vmatprep.subr.mxu0 0.0
        %2767 = vmatpush1.msra.mxu0 0.0
        %2768 = vmatprep.subr.mxu0 0.0
        %2769 = vmatpush1.msra.mxu0 0.0
        %2770 = vmatprep.subr.mxu0 0.0
        %2771 = vmatpush1.msra.mxu0 0.0
        %2772 = vmatprep.subr.mxu0 0.0
        %2773 = vmatpush1.msra.mxu0 0.0
        %2774 = vmatprep.subr.mxu0 0.0
        %2775 = vmatpush1.msra.mxu0 0.0
        %2776 = vmatprep.subr.mxu0 0.0
        %2777 = vmatpush1.msra.mxu0 0.0
        %2778 = vmatprep.subr.mxu0 0.0
        %2779 = vmatpush1.msra.mxu0 0.0
        %2780 = vmatprep.subr.mxu0 0.0
        %2781 = vmatpush1.msra.mxu0 0.0
        %2782 = vmatprep.subr.mxu0 0.0
        %2783 = vmatpush1.msra.mxu0 0.0
        %2784 = vmatprep.subr.mxu0 0.0
        %2785 = vmatpush1.msra.mxu0 0.0
        %2786 = vmatprep.subr.mxu0 0.0
        %2787 = vmatpush1.msra.mxu0 0.0
        %2788 = vmatprep.subr.mxu0 0.0
        %2789 = vmatpush1.msra.mxu0 0.0
        %2790 = vmatprep.subr.mxu0 0.0
        %2791 = vmatpush1.msra.mxu0 0.0
        %2792 = vmatprep.subr.mxu0 0.0
        %2793 = vmatpush1.msra.mxu0 0.0
        %2794 = vmatprep.subr.mxu0 0.0
        %2795 = vmatpush1.msra.mxu0 0.0
        %2796 = vmatprep.subr.mxu0 0.0
        %2797 = vmatpush1.msra.mxu0 0.0
        %2798 = vmatprep.subr.mxu0 0.0
        %2799 = vmatpush1.msra.mxu0 0.0
        %2800 = vmatprep.subr.mxu0 0.0
        %2801 = vmatpush1.msra.mxu0 0.0
        %2802 = vmatprep.subr.mxu0 0.0
        %2803 = vmatpush1.msra.mxu0 0.0
        %2804 = vmatprep.subr.mxu0 0.0
        %2805 = vmatpush1.msra.mxu0 0.0
        %2806 = vmatprep.subr.mxu0 0.0
        %2807 = vmatpush1.msra.mxu0 0.0
        %2808 = vmatprep.subr.mxu0 0.0
        %2809 = vmatpush1.msra.mxu0 0.0
        %2810 = vmatprep.mubr.f32.mxu0 0.0
        %2811 = vmatmul.mubr.f32.gmra.mrb[0].mxu0 %v2744
        %v2812 = vpop.f32.mrb[0].mxu0
        %v2813 = vadd.f32 0.0, %v2812
        %v2814 = vpop.f32.mrb[0].mxu0
        %2815 = vdwg.mxu0
        %v2816 = vadd.f32 %v2741, %v2813
        %2817 = vrot.lane.b32.xlu0 %v556, 96
        %v2818 = vpop.permute.xlu0 %2817
        %v2819 = vsel %vm637, %v2818, 0
        %2821 = vmatprep.subr.mxu0 0.0
        %2822 = vmatpush1.msra.mxu0 %v783
        %2823 = vmatprep.subr.mxu0 0.0
        %2824 = vmatpush1.msra.mxu0 %v784
        %2825 = vmatprep.subr.mxu0 0.0
        %2826 = vmatpush1.msra.mxu0 0.0
        %2827 = vmatprep.subr.mxu0 0.0
        %2828 = vmatpush1.msra.mxu0 0.0
        %2829 = vmatprep.subr.mxu0 0.0
        %2830 = vmatpush1.msra.mxu0 0.0
        %2831 = vmatprep.subr.mxu0 0.0
        %2832 = vmatpush1.msra.mxu0 0.0
        %2833 = vmatprep.subr.mxu0 0.0
        %2834 = vmatpush1.msra.mxu0 0.0
        %2835 = vmatprep.subr.mxu0 0.0
        %2836 = vmatpush1.msra.mxu0 0.0
        %2837 = vmatprep.subr.mxu0 0.0
        %2838 = vmatpush1.msra.mxu0 0.0
        %2839 = vmatprep.subr.mxu0 0.0
        %2840 = vmatpush1.msra.mxu0 0.0
        %2841 = vmatprep.subr.mxu0 0.0
        %2842 = vmatpush1.msra.mxu0 0.0
        %2843 = vmatprep.subr.mxu0 0.0
        %2844 = vmatpush1.msra.mxu0 0.0
        %2845 = vmatprep.subr.mxu0 0.0
        %2846 = vmatpush1.msra.mxu0 0.0
        %2847 = vmatprep.subr.mxu0 0.0
        %2848 = vmatpush1.msra.mxu0 0.0
        %2849 = vmatprep.subr.mxu0 0.0
        %2850 = vmatpush1.msra.mxu0 0.0
        %2851 = vmatprep.subr.mxu0 0.0
        %2852 = vmatpush1.msra.mxu0 0.0
        %2853 = vmatprep.subr.mxu0 0.0
        %2854 = vmatpush1.msra.mxu0 0.0
        %2855 = vmatprep.subr.mxu0 0.0
        %2856 = vmatpush1.msra.mxu0 0.0
        %2857 = vmatprep.subr.mxu0 0.0
        %2858 = vmatpush1.msra.mxu0 0.0
        %2859 = vmatprep.subr.mxu0 0.0
        %2860 = vmatpush1.msra.mxu0 0.0
        %2861 = vmatprep.subr.mxu0 0.0
        %2862 = vmatpush1.msra.mxu0 0.0
        %2863 = vmatprep.subr.mxu0 0.0
        %2864 = vmatpush1.msra.mxu0 0.0
        %2865 = vmatprep.subr.mxu0 0.0
        %2866 = vmatpush1.msra.mxu0 0.0
        %2867 = vmatprep.subr.mxu0 0.0
        %2868 = vmatpush1.msra.mxu0 0.0
        %2869 = vmatprep.subr.mxu0 0.0
        %2870 = vmatpush1.msra.mxu0 0.0
        %2871 = vmatprep.subr.mxu0 0.0
        %2872 = vmatpush1.msra.mxu0 0.0
        %2873 = vmatprep.subr.mxu0 0.0
        %2874 = vmatpush1.msra.mxu0 0.0
        %2875 = vmatprep.subr.mxu0 0.0
        %2876 = vmatpush1.msra.mxu0 0.0
        %2877 = vmatprep.subr.mxu0 0.0
        %2878 = vmatpush1.msra.mxu0 0.0
        %2879 = vmatprep.subr.mxu0 0.0
        %2880 = vmatpush1.msra.mxu0 0.0
        %2881 = vmatprep.subr.mxu0 0.0
        %2882 = vmatpush1.msra.mxu0 0.0
        %2883 = vmatprep.subr.mxu0 0.0
        %2884 = vmatpush1.msra.mxu0 0.0
        %2885 = vmatprep.mubr.f32.mxu0 0.0
        %2886 = vmatmul.mubr.f32.gmra.mrb[0].mxu0 %v2819
        %v2887 = vpop.f32.mrb[0].mxu0
        %v2888 = vadd.f32 0.0, %v2887
        %v2889 = vpop.f32.mrb[0].mxu0
        %2890 = vdwg.mxu0
        %v2891 = vadd.f32 %v2816, %v2888
        %v2892 = vld [vmem:[%s10 + $0x20] sm:$0xff]
        %v2894 = vsel %vm1229, %v2891, 0
        %2896 = vmatprep.subr.mxu0 0.0
        %2897 = vmatpush1.msra.mxu0 %v2892
        %2898 = vmatprep.subr.mxu0 0.0
        %2899 = vmatpush1.msra.mxu0 0.0
        %2900 = vmatprep.subr.mxu0 0.0
        %2901 = vmatpush1.msra.mxu0 0.0
        %2902 = vmatprep.subr.mxu0 0.0
        %2903 = vmatpush1.msra.mxu0 0.0
        %2904 = vmatprep.subr.mxu0 0.0
        %2905 = vmatpush1.msra.mxu0 0.0
        %2906 = vmatprep.subr.mxu0 0.0
        %2907 = vmatpush1.msra.mxu0 0.0
        %2908 = vmatprep.subr.mxu0 0.0
        %2909 = vmatpush1.msra.mxu0 0.0
        %2910 = vmatprep.subr.mxu0 0.0
        %2911 = vmatpush1.msra.mxu0 0.0
        %2912 = vmatprep.subr.mxu0 0.0
        %2913 = vmatpush1.msra.mxu0 0.0
        %2914 = vmatprep.subr.mxu0 0.0
        %2915 = vmatpush1.msra.mxu0 0.0
        %2916 = vmatprep.subr.mxu0 0.0
        %2917 = vmatpush1.msra.mxu0 0.0
        %2918 = vmatprep.subr.mxu0 0.0
        %2919 = vmatpush1.msra.mxu0 0.0
        %2920 = vmatprep.subr.mxu0 0.0
        %2921 = vmatpush1.msra.mxu0 0.0
        %2922 = vmatprep.subr.mxu0 0.0
        %2923 = vmatpush1.msra.mxu0 0.0
        %2924 = vmatprep.subr.mxu0 0.0
        %2925 = vmatpush1.msra.mxu0 0.0
        %2926 = vmatprep.subr.mxu0 0.0
        %2927 = vmatpush1.msra.mxu0 0.0
        %2928 = vmatprep.subr.mxu0 0.0
        %2929 = vmatpush1.msra.mxu0 0.0
        %2930 = vmatprep.subr.mxu0 0.0
        %2931 = vmatpush1.msra.mxu0 0.0
        %2932 = vmatprep.subr.mxu0 0.0
        %2933 = vmatpush1.msra.mxu0 0.0
        %2934 = vmatprep.subr.mxu0 0.0
        %2935 = vmatpush1.msra.mxu0 0.0
        %2936 = vmatprep.subr.mxu0 0.0
        %2937 = vmatpush1.msra.mxu0 0.0
        %2938 = vmatprep.subr.mxu0 0.0
        %2939 = vmatpush1.msra.mxu0 0.0
        %2940 = vmatprep.subr.mxu0 0.0
        %2941 = vmatpush1.msra.mxu0 0.0
        %2942 = vmatprep.subr.mxu0 0.0
        %2943 = vmatpush1.msra.mxu0 0.0
        %2944 = vmatprep.subr.mxu0 0.0
        %2945 = vmatpush1.msra.mxu0 0.0
        %2946 = vmatprep.subr.mxu0 0.0
        %2947 = vmatpush1.msra.mxu0 0.0
        %2948 = vmatprep.subr.mxu0 0.0
        %2949 = vmatpush1.msra.mxu0 0.0
        %2950 = vmatprep.subr.mxu0 0.0
        %2951 = vmatpush1.msra.mxu0 0.0
        %2952 = vmatprep.subr.mxu0 0.0
        %2953 = vmatpush1.msra.mxu0 0.0
        %2954 = vmatprep.subr.mxu0 0.0
        %2955 = vmatpush1.msra.mxu0 0.0
        %2956 = vmatprep.subr.mxu0 0.0
        %2957 = vmatpush1.msra.mxu0 0.0
        %2958 = vmatprep.subr.mxu0 0.0
        %2959 = vmatpush1.msra.mxu0 0.0
        %2960 = vmatprep.mubr.f32.mxu0 0.0
        %2961 = vmatmul.mubr.f32.gmra.mrb[0].mxu0 %v2894
        %v2962 = vpop.f32.mrb[0].mxu0
        %v2963 = vadd.f32 0.0, %v2962
        %v2964 = vpop.f32.mrb[0].mxu0
        %2965 = vdwg.mxu0
        %v2966 = vadd.f32 %v2458, %v2963
        %v2967 = vld [vmem:[%s6 + $0x20] sm:$0xff]
        %2968 = vmatprep.subr.mxu0 0.0
        %2969 = vmatpush1.msra.mxu0 %v2967
        %2970 = vmatprep.subr.mxu0 0.0
        %2971 = vmatpush1.msra.mxu0 0.0
        %2972 = vmatprep.subr.mxu0 0.0
        %2973 = vmatpush1.msra.mxu0 0.0
        %2974 = vmatprep.subr.mxu0 0.0
        %2975 = vmatpush1.msra.mxu0 0.0
        %2976 = vmatprep.subr.mxu0 0.0
        %2977 = vmatpush1.msra.mxu0 0.0
        %2978 = vmatprep.subr.mxu0 0.0
        %2979 = vmatpush1.msra.mxu0 0.0
        %2980 = vmatprep.subr.mxu0 0.0
        %2981 = vmatpush1.msra.mxu0 0.0
        %2982 = vmatprep.subr.mxu0 0.0
        %2983 = vmatpush1.msra.mxu0 0.0
        %2984 = vmatprep.subr.mxu0 0.0
        %2985 = vmatpush1.msra.mxu0 0.0
        %2986 = vmatprep.subr.mxu0 0.0
        %2987 = vmatpush1.msra.mxu0 0.0
        %2988 = vmatprep.subr.mxu0 0.0
        %2989 = vmatpush1.msra.mxu0 0.0
        %2990 = vmatprep.subr.mxu0 0.0
        %2991 = vmatpush1.msra.mxu0 0.0
        %2992 = vmatprep.subr.mxu0 0.0
        %2993 = vmatpush1.msra.mxu0 0.0
        %2994 = vmatprep.subr.mxu0 0.0
        %2995 = vmatpush1.msra.mxu0 0.0
        %2996 = vmatprep.subr.mxu0 0.0
        %2997 = vmatpush1.msra.mxu0 0.0
        %2998 = vmatprep.subr.mxu0 0.0
        %2999 = vmatpush1.msra.mxu0 0.0
        %3000 = vmatprep.subr.mxu0 0.0
        %3001 = vmatpush1.msra.mxu0 0.0
        %3002 = vmatprep.subr.mxu0 0.0
        %3003 = vmatpush1.msra.mxu0 0.0
        %3004 = vmatprep.subr.mxu0 0.0
        %3005 = vmatpush1.msra.mxu0 0.0
        %3006 = vmatprep.subr.mxu0 0.0
        %3007 = vmatpush1.msra.mxu0 0.0
        %3008 = vmatprep.subr.mxu0 0.0
        %3009 = vmatpush1.msra.mxu0 0.0
        %3010 = vmatprep.subr.mxu0 0.0
        %3011 = vmatpush1.msra.mxu0 0.0
        %3012 = vmatprep.subr.mxu0 0.0
        %3013 = vmatpush1.msra.mxu0 0.0
        %3014 = vmatprep.subr.mxu0 0.0
        %3015 = vmatpush1.msra.mxu0 0.0
        %3016 = vmatprep.subr.mxu0 0.0
        %3017 = vmatpush1.msra.mxu0 0.0
        %3018 = vmatprep.subr.mxu0 0.0
        %3019 = vmatpush1.msra.mxu0 0.0
        %3020 = vmatprep.subr.mxu0 0.0
        %3021 = vmatpush1.msra.mxu0 0.0
        %3022 = vmatprep.subr.mxu0 0.0
        %3023 = vmatpush1.msra.mxu0 0.0
        %3024 = vmatprep.subr.mxu0 0.0
        %3025 = vmatpush1.msra.mxu0 0.0
        %3026 = vmatprep.subr.mxu0 0.0
        %3027 = vmatpush1.msra.mxu0 0.0
        %3028 = vmatprep.subr.mxu0 0.0
        %3029 = vmatpush1.msra.mxu0 0.0
        %3030 = vmatprep.subr.mxu0 0.0
        %3031 = vmatpush1.msra.mxu0 0.0
        %3032 = vmatprep.mubr.f32.mxu0 0.0
        %3033 = vmatmul.mubr.f32.gmra.mrb[0].mxu0 %v2894
        %v3034 = vpop.f32.mrb[0].mxu0
        %v3035 = vadd.f32 0.0, %v3034
        %v3036 = vpop.f32.mrb[0].mxu0
        %3037 = vdwg.mxu0
        %v3038 = vadd.f32 %v2530, %v3035
        %3039 = vmatprep.subr.mxu0 0.0
        %3040 = vmatpush1.msra.mxu0 %v865
        %3041 = vmatprep.subr.mxu0 0.0
        %3042 = vmatpush1.msra.mxu0 %v866
        %3043 = vmatprep.subr.mxu0 0.0
        %3044 = vmatpush1.msra.mxu0 0.0
        %3045 = vmatprep.subr.mxu0 0.0
        %3046 = vmatpush1.msra.mxu0 0.0
        %3047 = vmatprep.subr.mxu0 0.0
        %3048 = vmatpush1.msra.mxu0 0.0
        %3049 = vmatprep.subr.mxu0 0.0
        %3050 = vmatpush1.msra.mxu0 0.0
        %3051 = vmatprep.subr.mxu0 0.0
        %3052 = vmatpush1.msra.mxu0 0.0
        %3053 = vmatprep.subr.mxu0 0.0
        %3054 = vmatpush1.msra.mxu0 0.0
        %3055 = vmatprep.subr.mxu0 0.0
        %3056 = vmatpush1.msra.mxu0 0.0
        %3057 = vmatprep.subr.mxu0 0.0
        %3058 = vmatpush1.msra.mxu0 0.0
        %3059 = vmatprep.subr.mxu0 0.0
        %3060 = vmatpush1.msra.mxu0 0.0
        %3061 = vmatprep.subr.mxu0 0.0
        %3062 = vmatpush1.msra.mxu0 0.0
        %3063 = vmatprep.subr.mxu0 0.0
        %3064 = vmatpush1.msra.mxu0 0.0
        %3065 = vmatprep.subr.mxu0 0.0
        %3066 = vmatpush1.msra.mxu0 0.0
        %3067 = vmatprep.subr.mxu0 0.0
        %3068 = vmatpush1.msra.mxu0 0.0
        %3069 = vmatprep.subr.mxu0 0.0
        %3070 = vmatpush1.msra.mxu0 0.0
        %3071 = vmatprep.subr.mxu0 0.0
        %3072 = vmatpush1.msra.mxu0 0.0
        %3073 = vmatprep.subr.mxu0 0.0
        %3074 = vmatpush1.msra.mxu0 0.0
        %3075 = vmatprep.subr.mxu0 0.0
        %3076 = vmatpush1.msra.mxu0 0.0
        %3077 = vmatprep.subr.mxu0 0.0
        %3078 = vmatpush1.msra.mxu0 0.0
        %3079 = vmatprep.subr.mxu0 0.0
        %3080 = vmatpush1.msra.mxu0 0.0
        %3081 = vmatprep.subr.mxu0 0.0
        %3082 = vmatpush1.msra.mxu0 0.0
        %3083 = vmatprep.subr.mxu0 0.0
        %3084 = vmatpush1.msra.mxu0 0.0
        %3085 = vmatprep.subr.mxu0 0.0
        %3086 = vmatpush1.msra.mxu0 0.0
        %3087 = vmatprep.subr.mxu0 0.0
        %3088 = vmatpush1.msra.mxu0 0.0
        %3089 = vmatprep.subr.mxu0 0.0
        %3090 = vmatpush1.msra.mxu0 0.0
        %3091 = vmatprep.subr.mxu0 0.0
        %3092 = vmatpush1.msra.mxu0 0.0
        %3093 = vmatprep.subr.mxu0 0.0
        %3094 = vmatpush1.msra.mxu0 0.0
        %3095 = vmatprep.subr.mxu0 0.0
        %3096 = vmatpush1.msra.mxu0 0.0
        %3097 = vmatprep.subr.mxu0 0.0
        %3098 = vmatpush1.msra.mxu0 0.0
        %3099 = vmatprep.subr.mxu0 0.0
        %3100 = vmatpush1.msra.mxu0 0.0
        %3101 = vmatprep.subr.mxu0 0.0
        %3102 = vmatpush1.msra.mxu0 0.0
        %3103 = vmatprep.mubr.f32.mxu0 0.0
        %3104 = vmatmul.mubr.f32.gmra.mrb[0].mxu0 %v2744
        %v3105 = vpop.f32.mrb[0].mxu0
        %v3106 = vadd.f32 0.0, %v3105
        %v3107 = vpop.f32.mrb[0].mxu0
        %3108 = vdwg.mxu0
        %3109 = vmatprep.subr.mxu0 0.0
        %3110 = vmatpush1.msra.mxu0 %v862
        %3111 = vmatprep.subr.mxu0 0.0
        %3112 = vmatpush1.msra.mxu0 %v863
        %3113 = vmatprep.subr.mxu0 0.0
        %3114 = vmatpush1.msra.mxu0 0.0
        %3115 = vmatprep.subr.mxu0 0.0
        %3116 = vmatpush1.msra.mxu0 0.0
        %3117 = vmatprep.subr.mxu0 0.0
        %3118 = vmatpush1.msra.mxu0 0.0
        %3119 = vmatprep.subr.mxu0 0.0
        %3120 = vmatpush1.msra.mxu0 0.0
        %3121 = vmatprep.subr.mxu0 0.0
        %3122 = vmatpush1.msra.mxu0 0.0
        %3123 = vmatprep.subr.mxu0 0.0
        %3124 = vmatpush1.msra.mxu0 0.0
        %3125 = vmatprep.subr.mxu0 0.0
        %3126 = vmatpush1.msra.mxu0 0.0
        %3127 = vmatprep.subr.mxu0 0.0
        %3128 = vmatpush1.msra.mxu0 0.0
        %3129 = vmatprep.subr.mxu0 0.0
        %3130 = vmatpush1.msra.mxu0 0.0
        %3131 = vmatprep.subr.mxu0 0.0
        %3132 = vmatpush1.msra.mxu0 0.0
        %3133 = vmatprep.subr.mxu0 0.0
        %3134 = vmatpush1.msra.mxu0 0.0
        %3135 = vmatprep.subr.mxu0 0.0
        %3136 = vmatpush1.msra.mxu0 0.0
        %3137 = vmatprep.subr.mxu0 0.0
        %3138 = vmatpush1.msra.mxu0 0.0
        %3139 = vmatprep.subr.mxu0 0.0
        %3140 = vmatpush1.msra.mxu0 0.0
        %3141 = vmatprep.subr.mxu0 0.0
        %3142 = vmatpush1.msra.mxu0 0.0
        %3143 = vmatprep.subr.mxu0 0.0
        %3144 = vmatpush1.msra.mxu0 0.0
        %3145 = vmatprep.subr.mxu0 0.0
        %3146 = vmatpush1.msra.mxu0 0.0
        %3147 = vmatprep.subr.mxu0 0.0
        %3148 = vmatpush1.msra.mxu0 0.0
        %3149 = vmatprep.subr.mxu0 0.0
        %3150 = vmatpush1.msra.mxu0 0.0
        %3151 = vmatprep.subr.mxu0 0.0
        %3152 = vmatpush1.msra.mxu0 0.0
        %3153 = vmatprep.subr.mxu0 0.0
        %3154 = vmatpush1.msra.mxu0 0.0
        %3155 = vmatprep.subr.mxu0 0.0
        %3156 = vmatpush1.msra.mxu0 0.0
        %3157 = vmatprep.subr.mxu0 0.0
        %3158 = vmatpush1.msra.mxu0 0.0
        %3159 = vmatprep.subr.mxu0 0.0
        %3160 = vmatpush1.msra.mxu0 0.0
        %3161 = vmatprep.subr.mxu0 0.0
        %3162 = vmatpush1.msra.mxu0 0.0
        %3163 = vmatprep.subr.mxu0 0.0
        %3164 = vmatpush1.msra.mxu0 0.0
        %3165 = vmatprep.subr.mxu0 0.0
        %3166 = vmatpush1.msra.mxu0 0.0
        %3167 = vmatprep.subr.mxu0 0.0
        %3168 = vmatpush1.msra.mxu0 0.0
        %3169 = vmatprep.subr.mxu0 0.0
        %3170 = vmatpush1.msra.mxu0 0.0
        %3171 = vmatprep.subr.mxu0 0.0
        %3172 = vmatpush1.msra.mxu0 0.0
        %3173 = vmatprep.mubr.f32.mxu0 0.0
        %3174 = vmatmul.mubr.f32.gmra.mrb[0].mxu0 %v2311
        %v3175 = vpop.f32.mrb[0].mxu0
        %v3176 = vadd.f32 %v3106, %v3175
        %v3177 = vpop.f32.mrb[0].mxu0
        %3178 = vdwg.mxu0
        %3179 = vmatprep.subr.mxu0 0.0
        %3180 = vmatpush1.msra.mxu0 %v630
        %3181 = vmatprep.subr.mxu0 0.0
        %3182 = vmatpush1.msra.mxu0 %v631
        %3183 = vmatprep.subr.mxu0 0.0
        %3184 = vmatpush1.msra.mxu0 0.0
        %3185 = vmatprep.subr.mxu0 0.0
        %3186 = vmatpush1.msra.mxu0 0.0
        %3187 = vmatprep.subr.mxu0 0.0
        %3188 = vmatpush1.msra.mxu0 0.0
        %3189 = vmatprep.subr.mxu0 0.0
        %3190 = vmatpush1.msra.mxu0 0.0
        %3191 = vmatprep.subr.mxu0 0.0
        %3192 = vmatpush1.msra.mxu0 0.0
        %3193 = vmatprep.subr.mxu0 0.0
        %3194 = vmatpush1.msra.mxu0 0.0
        %3195 = vmatprep.subr.mxu0 0.0
        %3196 = vmatpush1.msra.mxu0 0.0
        %3197 = vmatprep.subr.mxu0 0.0
        %3198 = vmatpush1.msra.mxu0 0.0
        %3199 = vmatprep.subr.mxu0 0.0
        %3200 = vmatpush1.msra.mxu0 0.0
        %3201 = vmatprep.subr.mxu0 0.0
        %3202 = vmatpush1.msra.mxu0 0.0
        %3203 = vmatprep.subr.mxu0 0.0
        %3204 = vmatpush1.msra.mxu0 0.0
        %3205 = vmatprep.subr.mxu0 0.0
        %3206 = vmatpush1.msra.mxu0 0.0
        %3207 = vmatprep.subr.mxu0 0.0
        %3208 = vmatpush1.msra.mxu0 0.0
        %3209 = vmatprep.subr.mxu0 0.0
        %3210 = vmatpush1.msra.mxu0 0.0
        %3211 = vmatprep.subr.mxu0 0.0
        %3212 = vmatpush1.msra.mxu0 0.0
        %3213 = vmatprep.subr.mxu0 0.0
        %3214 = vmatpush1.msra.mxu0 0.0
        %3215 = vmatprep.subr.mxu0 0.0
        %3216 = vmatpush1.msra.mxu0 0.0
        %3217 = vmatprep.subr.mxu0 0.0
        %3218 = vmatpush1.msra.mxu0 0.0
        %3219 = vmatprep.subr.mxu0 0.0
        %3220 = vmatpush1.msra.mxu0 0.0
        %3221 = vmatprep.subr.mxu0 0.0
        %3222 = vmatpush1.msra.mxu0 0.0
        %3223 = vmatprep.subr.mxu0 0.0
        %3224 = vmatpush1.msra.mxu0 0.0
        %3225 = vmatprep.subr.mxu0 0.0
        %3226 = vmatpush1.msra.mxu0 0.0
        %3227 = vmatprep.subr.mxu0 0.0
        %3228 = vmatpush1.msra.mxu0 0.0
        %3229 = vmatprep.subr.mxu0 0.0
        %3230 = vmatpush1.msra.mxu0 0.0
        %3231 = vmatprep.subr.mxu0 0.0
        %3232 = vmatpush1.msra.mxu0 0.0
        %3233 = vmatprep.subr.mxu0 0.0
        %3234 = vmatpush1.msra.mxu0 0.0
        %3235 = vmatprep.subr.mxu0 0.0
        %3236 = vmatpush1.msra.mxu0 0.0
        %3237 = vmatprep.subr.mxu0 0.0
        %3238 = vmatpush1.msra.mxu0 0.0
        %3239 = vmatprep.subr.mxu0 0.0
        %3240 = vmatpush1.msra.mxu0 0.0
        %3241 = vmatprep.subr.mxu0 0.0
        %3242 = vmatpush1.msra.mxu0 0.0
        %3243 = vmatprep.mubr.f32.mxu0 0.0
        %3244 = vmatmul.mubr.f32.gmra.mrb[0].mxu0 %v2819
        %v3245 = vpop.f32.mrb[0].mxu0
        %v3246 = vadd.f32 0.0, %v3245
        %v3247 = vpop.f32.mrb[0].mxu0
        %3248 = vdwg.mxu0
        %v3249 = vadd.f32 %v3176, %v3246
        %3250 = vrot.lane.b32.xlu0 %v556, 80
        %v3251 = vpop.permute.xlu0 %3250
        %v3252 = vsel %vm637, %v3251, 0
        %3254 = vmatprep.subr.mxu0 0.0
        %3255 = vmatpush1.msra.mxu0 %v633
        %3256 = vmatprep.subr.mxu0 0.0
        %3257 = vmatpush1.msra.mxu0 %v634
        %3258 = vmatprep.subr.mxu0 0.0
        %3259 = vmatpush1.msra.mxu0 0.0
        %3260 = vmatprep.subr.mxu0 0.0
        %3261 = vmatpush1.msra.mxu0 0.0
        %3262 = vmatprep.subr.mxu0 0.0
        %3263 = vmatpush1.msra.mxu0 0.0
        %3264 = vmatprep.subr.mxu0 0.0
        %3265 = vmatpush1.msra.mxu0 0.0
        %3266 = vmatprep.subr.mxu0 0.0
        %3267 = vmatpush1.msra.mxu0 0.0
        %3268 = vmatprep.subr.mxu0 0.0
        %3269 = vmatpush1.msra.mxu0 0.0
        %3270 = vmatprep.subr.mxu0 0.0
        %3271 = vmatpush1.msra.mxu0 0.0
        %3272 = vmatprep.subr.mxu0 0.0
        %3273 = vmatpush1.msra.mxu0 0.0
        %3274 = vmatprep.subr.mxu0 0.0
        %3275 = vmatpush1.msra.mxu0 0.0
        %3276 = vmatprep.subr.mxu0 0.0
        %3277 = vmatpush1.msra.mxu0 0.0
        %3278 = vmatprep.subr.mxu0 0.0
        %3279 = vmatpush1.msra.mxu0 0.0
        %3280 = vmatprep.subr.mxu0 0.0
        %3281 = vmatpush1.msra.mxu0 0.0
        %3282 = vmatprep.subr.mxu0 0.0
        %3283 = vmatpush1.msra.mxu0 0.0
        %3284 = vmatprep.subr.mxu0 0.0
        %3285 = vmatpush1.msra.mxu0 0.0
        %3286 = vmatprep.subr.mxu0 0.0
        %3287 = vmatpush1.msra.mxu0 0.0
        %3288 = vmatprep.subr.mxu0 0.0
        %3289 = vmatpush1.msra.mxu0 0.0
        %3290 = vmatprep.subr.mxu0 0.0
        %3291 = vmatpush1.msra.mxu0 0.0
        %3292 = vmatprep.subr.mxu0 0.0
        %3293 = vmatpush1.msra.mxu0 0.0
        %3294 = vmatprep.subr.mxu0 0.0
        %3295 = vmatpush1.msra.mxu0 0.0
        %3296 = vmatprep.subr.mxu0 0.0
        %3297 = vmatpush1.msra.mxu0 0.0
        %3298 = vmatprep.subr.mxu0 0.0
        %3299 = vmatpush1.msra.mxu0 0.0
        %3300 = vmatprep.subr.mxu0 0.0
        %3301 = vmatpush1.msra.mxu0 0.0
        %3302 = vmatprep.subr.mxu0 0.0
        %3303 = vmatpush1.msra.mxu0 0.0
        %3304 = vmatprep.subr.mxu0 0.0
        %3305 = vmatpush1.msra.mxu0 0.0
        %3306 = vmatprep.subr.mxu0 0.0
        %3307 = vmatpush1.msra.mxu0 0.0
        %3308 = vmatprep.subr.mxu0 0.0
        %3309 = vmatpush1.msra.mxu0 0.0
        %3310 = vmatprep.subr.mxu0 0.0
        %3311 = vmatpush1.msra.mxu0 0.0
        %3312 = vmatprep.subr.mxu0 0.0
        %3313 = vmatpush1.msra.mxu0 0.0
        %3314 = vmatprep.subr.mxu0 0.0
        %3315 = vmatpush1.msra.mxu0 0.0
        %3316 = vmatprep.subr.mxu0 0.0
        %3317 = vmatpush1.msra.mxu0 0.0
        %3318 = vmatprep.mubr.f32.mxu0 0.0
        %3319 = vmatmul.mubr.f32.gmra.mrb[0].mxu0 %v3252
        %v3320 = vpop.f32.mrb[0].mxu0
        %v3321 = vadd.f32 0.0, %v3320
        %v3322 = vpop.f32.mrb[0].mxu0
        %3323 = vdwg.mxu0
        %v3324 = vadd.f32 %v3249, %v3321
        %3325 = vrot.lane.b32.xlu0 %v556, 64
        %v3326 = vpop.permute.xlu0 %3325
        %v3327 = vsel %vm637, %v3326, 0
        %3329 = vmatprep.subr.mxu0 0.0
        %3330 = vmatpush1.msra.mxu0 %v783
        %3331 = vmatprep.subr.mxu0 0.0
        %3332 = vmatpush1.msra.mxu0 %v784
        %3333 = vmatprep.subr.mxu0 0.0
        %3334 = vmatpush1.msra.mxu0 0.0
        %3335 = vmatprep.subr.mxu0 0.0
        %3336 = vmatpush1.msra.mxu0 0.0
        %3337 = vmatprep.subr.mxu0 0.0
        %3338 = vmatpush1.msra.mxu0 0.0
        %3339 = vmatprep.subr.mxu0 0.0
        %3340 = vmatpush1.msra.mxu0 0.0
        %3341 = vmatprep.subr.mxu0 0.0
        %3342 = vmatpush1.msra.mxu0 0.0
        %3343 = vmatprep.subr.mxu0 0.0
        %3344 = vmatpush1.msra.mxu0 0.0
        %3345 = vmatprep.subr.mxu0 0.0
        %3346 = vmatpush1.msra.mxu0 0.0
        %3347 = vmatprep.subr.mxu0 0.0
        %3348 = vmatpush1.msra.mxu0 0.0
        %3349 = vmatprep.subr.mxu0 0.0
        %3350 = vmatpush1.msra.mxu0 0.0
        %3351 = vmatprep.subr.mxu0 0.0
        %3352 = vmatpush1.msra.mxu0 0.0
        %3353 = vmatprep.subr.mxu0 0.0
        %3354 = vmatpush1.msra.mxu0 0.0
        %3355 = vmatprep.subr.mxu0 0.0
        %3356 = vmatpush1.msra.mxu0 0.0
        %3357 = vmatprep.subr.mxu0 0.0
        %3358 = vmatpush1.msra.mxu0 0.0
        %3359 = vmatprep.subr.mxu0 0.0
        %3360 = vmatpush1.msra.mxu0 0.0
        %3361 = vmatprep.subr.mxu0 0.0
        %3362 = vmatpush1.msra.mxu0 0.0
        %3363 = vmatprep.subr.mxu0 0.0
        %3364 = vmatpush1.msra.mxu0 0.0
        %3365 = vmatprep.subr.mxu0 0.0
        %3366 = vmatpush1.msra.mxu0 0.0
        %3367 = vmatprep.subr.mxu0 0.0
        %3368 = vmatpush1.msra.mxu0 0.0
        %3369 = vmatprep.subr.mxu0 0.0
        %3370 = vmatpush1.msra.mxu0 0.0
        %3371 = vmatprep.subr.mxu0 0.0
        %3372 = vmatpush1.msra.mxu0 0.0
        %3373 = vmatprep.subr.mxu0 0.0
        %3374 = vmatpush1.msra.mxu0 0.0
        %3375 = vmatprep.subr.mxu0 0.0
        %3376 = vmatpush1.msra.mxu0 0.0
        %3377 = vmatprep.subr.mxu0 0.0
        %3378 = vmatpush1.msra.mxu0 0.0
        %3379 = vmatprep.subr.mxu0 0.0
        %3380 = vmatpush1.msra.mxu0 0.0
        %3381 = vmatprep.subr.mxu0 0.0
        %3382 = vmatpush1.msra.mxu0 0.0
        %3383 = vmatprep.subr.mxu0 0.0
        %3384 = vmatpush1.msra.mxu0 0.0
        %3385 = vmatprep.subr.mxu0 0.0
        %3386 = vmatpush1.msra.mxu0 0.0
        %3387 = vmatprep.subr.mxu0 0.0
        %3388 = vmatpush1.msra.mxu0 0.0
        %3389 = vmatprep.subr.mxu0 0.0
        %3390 = vmatpush1.msra.mxu0 0.0
        %3391 = vmatprep.subr.mxu0 0.0
        %3392 = vmatpush1.msra.mxu0 0.0
        %3393 = vmatprep.mubr.f32.mxu0 0.0
        %3394 = vmatmul.mubr.f32.gmra.mrb[0].mxu0 %v3327
        %v3395 = vpop.f32.mrb[0].mxu0
        %v3396 = vadd.f32 0.0, %v3395
        %v3397 = vpop.f32.mrb[0].mxu0
        %3398 = vdwg.mxu0
        %v3399 = vadd.f32 %v3324, %v3396
        %v3400 = vld [vmem:[%s10 + $0x28] sm:$0xff]
        %v3402 = vsel %vm1229, %v3399, 0
        %3404 = vmatprep.subr.mxu0 0.0
        %3405 = vmatpush1.msra.mxu0 %v3400
        %3406 = vmatprep.subr.mxu0 0.0
        %3407 = vmatpush1.msra.mxu0 0.0
        %3408 = vmatprep.subr.mxu0 0.0
        %3409 = vmatpush1.msra.mxu0 0.0
        %3410 = vmatprep.subr.mxu0 0.0
        %3411 = vmatpush1.msra.mxu0 0.0
        %3412 = vmatprep.subr.mxu0 0.0
        %3413 = vmatpush1.msra.mxu0 0.0
        %3414 = vmatprep.subr.mxu0 0.0
        %3415 = vmatpush1.msra.mxu0 0.0
        %3416 = vmatprep.subr.mxu0 0.0
        %3417 = vmatpush1.msra.mxu0 0.0
        %3418 = vmatprep.subr.mxu0 0.0
        %3419 = vmatpush1.msra.mxu0 0.0
        %3420 = vmatprep.subr.mxu0 0.0
        %3421 = vmatpush1.msra.mxu0 0.0
        %3422 = vmatprep.subr.mxu0 0.0
        %3423 = vmatpush1.msra.mxu0 0.0
        %3424 = vmatprep.subr.mxu0 0.0
        %3425 = vmatpush1.msra.mxu0 0.0
        %3426 = vmatprep.subr.mxu0 0.0
        %3427 = vmatpush1.msra.mxu0 0.0
        %3428 = vmatprep.subr.mxu0 0.0
        %3429 = vmatpush1.msra.mxu0 0.0
        %3430 = vmatprep.subr.mxu0 0.0
        %3431 = vmatpush1.msra.mxu0 0.0
        %3432 = vmatprep.subr.mxu0 0.0
        %3433 = vmatpush1.msra.mxu0 0.0
        %3434 = vmatprep.subr.mxu0 0.0
        %3435 = vmatpush1.msra.mxu0 0.0
        %3436 = vmatprep.subr.mxu0 0.0
        %3437 = vmatpush1.msra.mxu0 0.0
        %3438 = vmatprep.subr.mxu0 0.0
        %3439 = vmatpush1.msra.mxu0 0.0
        %3440 = vmatprep.subr.mxu0 0.0
        %3441 = vmatpush1.msra.mxu0 0.0
        %3442 = vmatprep.subr.mxu0 0.0
        %3443 = vmatpush1.msra.mxu0 0.0
        %3444 = vmatprep.subr.mxu0 0.0
        %3445 = vmatpush1.msra.mxu0 0.0
        %3446 = vmatprep.subr.mxu0 0.0
        %3447 = vmatpush1.msra.mxu0 0.0
        %3448 = vmatprep.subr.mxu0 0.0
        %3449 = vmatpush1.msra.mxu0 0.0
        %3450 = vmatprep.subr.mxu0 0.0
        %3451 = vmatpush1.msra.mxu0 0.0
        %3452 = vmatprep.subr.mxu0 0.0
        %3453 = vmatpush1.msra.mxu0 0.0
        %3454 = vmatprep.subr.mxu0 0.0
        %3455 = vmatpush1.msra.mxu0 0.0
        %3456 = vmatprep.subr.mxu0 0.0
        %3457 = vmatpush1.msra.mxu0 0.0
        %3458 = vmatprep.subr.mxu0 0.0
        %3459 = vmatpush1.msra.mxu0 0.0
        %3460 = vmatprep.subr.mxu0 0.0
        %3461 = vmatpush1.msra.mxu0 0.0
        %3462 = vmatprep.subr.mxu0 0.0
        %3463 = vmatpush1.msra.mxu0 0.0
        %3464 = vmatprep.subr.mxu0 0.0
        %3465 = vmatpush1.msra.mxu0 0.0
        %3466 = vmatprep.subr.mxu0 0.0
        %3467 = vmatpush1.msra.mxu0 0.0
        %3468 = vmatprep.mubr.f32.mxu0 0.0
        %3469 = vmatmul.mubr.f32.gmra.mrb[0].mxu0 %v3402
        %v3470 = vpop.f32.mrb[0].mxu0
        %v3471 = vadd.f32 0.0, %v3470
        %v3472 = vpop.f32.mrb[0].mxu0
        %3473 = vdwg.mxu0
        %v3474 = vadd.f32 %v2966, %v3471
        %v3475 = vld [vmem:[%s6 + $0x28] sm:$0xff]
        %3476 = vmatprep.subr.mxu0 0.0
        %3477 = vmatpush1.msra.mxu0 %v3475
        %3478 = vmatprep.subr.mxu0 0.0
        %3479 = vmatpush1.msra.mxu0 0.0
        %3480 = vmatprep.subr.mxu0 0.0
        %3481 = vmatpush1.msra.mxu0 0.0
        %3482 = vmatprep.subr.mxu0 0.0
        %3483 = vmatpush1.msra.mxu0 0.0
        %3484 = vmatprep.subr.mxu0 0.0
        %3485 = vmatpush1.msra.mxu0 0.0
        %3486 = vmatprep.subr.mxu0 0.0
        %3487 = vmatpush1.msra.mxu0 0.0
        %3488 = vmatprep.subr.mxu0 0.0
        %3489 = vmatpush1.msra.mxu0 0.0
        %3490 = vmatprep.subr.mxu0 0.0
        %3491 = vmatpush1.msra.mxu0 0.0
        %3492 = vmatprep.subr.mxu0 0.0
        %3493 = vmatpush1.msra.mxu0 0.0
        %3494 = vmatprep.subr.mxu0 0.0
        %3495 = vmatpush1.msra.mxu0 0.0
        %3496 = vmatprep.subr.mxu0 0.0
        %3497 = vmatpush1.msra.mxu0 0.0
        %3498 = vmatprep.subr.mxu0 0.0
        %3499 = vmatpush1.msra.mxu0 0.0
        %3500 = vmatprep.subr.mxu0 0.0
        %3501 = vmatpush1.msra.mxu0 0.0
        %3502 = vmatprep.subr.mxu0 0.0
        %3503 = vmatpush1.msra.mxu0 0.0
        %3504 = vmatprep.subr.mxu0 0.0
        %3505 = vmatpush1.msra.mxu0 0.0
        %3506 = vmatprep.subr.mxu0 0.0
        %3507 = vmatpush1.msra.mxu0 0.0
        %3508 = vmatprep.subr.mxu0 0.0
        %3509 = vmatpush1.msra.mxu0 0.0
        %3510 = vmatprep.subr.mxu0 0.0
        %3511 = vmatpush1.msra.mxu0 0.0
        %3512 = vmatprep.subr.mxu0 0.0
        %3513 = vmatpush1.msra.mxu0 0.0
        %3514 = vmatprep.subr.mxu0 0.0
        %3515 = vmatpush1.msra.mxu0 0.0
        %3516 = vmatprep.subr.mxu0 0.0
        %3517 = vmatpush1.msra.mxu0 0.0
        %3518 = vmatprep.subr.mxu0 0.0
        %3519 = vmatpush1.msra.mxu0 0.0
        %3520 = vmatprep.subr.mxu0 0.0
        %3521 = vmatpush1.msra.mxu0 0.0
        %3522 = vmatprep.subr.mxu0 0.0
        %3523 = vmatpush1.msra.mxu0 0.0
        %3524 = vmatprep.subr.mxu0 0.0
        %3525 = vmatpush1.msra.mxu0 0.0
        %3526 = vmatprep.subr.mxu0 0.0
        %3527 = vmatpush1.msra.mxu0 0.0
        %3528 = vmatprep.subr.mxu0 0.0
        %3529 = vmatpush1.msra.mxu0 0.0
        %3530 = vmatprep.subr.mxu0 0.0
        %3531 = vmatpush1.msra.mxu0 0.0
        %3532 = vmatprep.subr.mxu0 0.0
        %3533 = vmatpush1.msra.mxu0 0.0
        %3534 = vmatprep.subr.mxu0 0.0
        %3535 = vmatpush1.msra.mxu0 0.0
        %3536 = vmatprep.subr.mxu0 0.0
        %3537 = vmatpush1.msra.mxu0 0.0
        %3538 = vmatprep.subr.mxu0 0.0
        %3539 = vmatpush1.msra.mxu0 0.0
        %3540 = vmatprep.mubr.f32.mxu0 0.0
        %3541 = vmatmul.mubr.f32.gmra.mrb[0].mxu0 %v3402
        %v3542 = vpop.f32.mrb[0].mxu0
        %v3543 = vadd.f32 0.0, %v3542
        %v3544 = vpop.f32.mrb[0].mxu0
        %3545 = vdwg.mxu0
        %v3546 = vadd.f32 %v3038, %v3543
        %3547 = vmatprep.subr.mxu0 0.0
        %3548 = vmatpush1.msra.mxu0 %v865
        %3549 = vmatprep.subr.mxu0 0.0
        %3550 = vmatpush1.msra.mxu0 %v866
        %3551 = vmatprep.subr.mxu0 0.0
        %3552 = vmatpush1.msra.mxu0 0.0
        %3553 = vmatprep.subr.mxu0 0.0
        %3554 = vmatpush1.msra.mxu0 0.0
        %3555 = vmatprep.subr.mxu0 0.0
        %3556 = vmatpush1.msra.mxu0 0.0
        %3557 = vmatprep.subr.mxu0 0.0
        %3558 = vmatpush1.msra.mxu0 0.0
        %3559 = vmatprep.subr.mxu0 0.0
        %3560 = vmatpush1.msra.mxu0 0.0
        %3561 = vmatprep.subr.mxu0 0.0
        %3562 = vmatpush1.msra.mxu0 0.0
        %3563 = vmatprep.subr.mxu0 0.0
        %3564 = vmatpush1.msra.mxu0 0.0
        %3565 = vmatprep.subr.mxu0 0.0
        %3566 = vmatpush1.msra.mxu0 0.0
        %3567 = vmatprep.subr.mxu0 0.0
        %3568 = vmatpush1.msra.mxu0 0.0
        %3569 = vmatprep.subr.mxu0 0.0
        %3570 = vmatpush1.msra.mxu0 0.0
        %3571 = vmatprep.subr.mxu0 0.0
        %3572 = vmatpush1.msra.mxu0 0.0
        %3573 = vmatprep.subr.mxu0 0.0
        %3574 = vmatpush1.msra.mxu0 0.0
        %3575 = vmatprep.subr.mxu0 0.0
        %3576 = vmatpush1.msra.mxu0 0.0
        %3577 = vmatprep.subr.mxu0 0.0
        %3578 = vmatpush1.msra.mxu0 0.0
        %3579 = vmatprep.subr.mxu0 0.0
        %3580 = vmatpush1.msra.mxu0 0.0
        %3581 = vmatprep.subr.mxu0 0.0
        %3582 = vmatpush1.msra.mxu0 0.0
        %3583 = vmatprep.subr.mxu0 0.0
        %3584 = vmatpush1.msra.mxu0 0.0
        %3585 = vmatprep.subr.mxu0 0.0
        %3586 = vmatpush1.msra.mxu0 0.0
        %3587 = vmatprep.subr.mxu0 0.0
        %3588 = vmatpush1.msra.mxu0 0.0
        %3589 = vmatprep.subr.mxu0 0.0
        %3590 = vmatpush1.msra.mxu0 0.0
        %3591 = vmatprep.subr.mxu0 0.0
        %3592 = vmatpush1.msra.mxu0 0.0
        %3593 = vmatprep.subr.mxu0 0.0
        %3594 = vmatpush1.msra.mxu0 0.0
        %3595 = vmatprep.subr.mxu0 0.0
        %3596 = vmatpush1.msra.mxu0 0.0
        %3597 = vmatprep.subr.mxu0 0.0
        %3598 = vmatpush1.msra.mxu0 0.0
        %3599 = vmatprep.subr.mxu0 0.0
        %3600 = vmatpush1.msra.mxu0 0.0
        %3601 = vmatprep.subr.mxu0 0.0
        %3602 = vmatpush1.msra.mxu0 0.0
        %3603 = vmatprep.subr.mxu0 0.0
        %3604 = vmatpush1.msra.mxu0 0.0
        %3605 = vmatprep.subr.mxu0 0.0
        %3606 = vmatpush1.msra.mxu0 0.0
        %3607 = vmatprep.subr.mxu0 0.0
        %3608 = vmatpush1.msra.mxu0 0.0
        %3609 = vmatprep.subr.mxu0 0.0
        %3610 = vmatpush1.msra.mxu0 0.0
        %3611 = vmatprep.mubr.f32.mxu0 0.0
        %3612 = vmatmul.mubr.f32.gmra.mrb[0].mxu0 %v3252
        %v3613 = vpop.f32.mrb[0].mxu0
        %v3614 = vadd.f32 0.0, %v3613
        %v3615 = vpop.f32.mrb[0].mxu0
        %3616 = vdwg.mxu0
        %3617 = vmatprep.subr.mxu0 0.0
        %3618 = vmatpush1.msra.mxu0 %v862
        %3619 = vmatprep.subr.mxu0 0.0
        %3620 = vmatpush1.msra.mxu0 %v863
        %3621 = vmatprep.subr.mxu0 0.0
        %3622 = vmatpush1.msra.mxu0 0.0
        %3623 = vmatprep.subr.mxu0 0.0
        %3624 = vmatpush1.msra.mxu0 0.0
        %3625 = vmatprep.subr.mxu0 0.0
        %3626 = vmatpush1.msra.mxu0 0.0
        %3627 = vmatprep.subr.mxu0 0.0
        %3628 = vmatpush1.msra.mxu0 0.0
        %3629 = vmatprep.subr.mxu0 0.0
        %3630 = vmatpush1.msra.mxu0 0.0
        %3631 = vmatprep.subr.mxu0 0.0
        %3632 = vmatpush1.msra.mxu0 0.0
        %3633 = vmatprep.subr.mxu0 0.0
        %3634 = vmatpush1.msra.mxu0 0.0
        %3635 = vmatprep.subr.mxu0 0.0
        %3636 = vmatpush1.msra.mxu0 0.0
        %3637 = vmatprep.subr.mxu0 0.0
        %3638 = vmatpush1.msra.mxu0 0.0
        %3639 = vmatprep.subr.mxu0 0.0
        %3640 = vmatpush1.msra.mxu0 0.0
        %3641 = vmatprep.subr.mxu0 0.0
        %3642 = vmatpush1.msra.mxu0 0.0
        %3643 = vmatprep.subr.mxu0 0.0
        %3644 = vmatpush1.msra.mxu0 0.0
        %3645 = vmatprep.subr.mxu0 0.0
        %3646 = vmatpush1.msra.mxu0 0.0
        %3647 = vmatprep.subr.mxu0 0.0
        %3648 = vmatpush1.msra.mxu0 0.0
        %3649 = vmatprep.subr.mxu0 0.0
        %3650 = vmatpush1.msra.mxu0 0.0
        %3651 = vmatprep.subr.mxu0 0.0
        %3652 = vmatpush1.msra.mxu0 0.0
        %3653 = vmatprep.subr.mxu0 0.0
        %3654 = vmatpush1.msra.mxu0 0.0
        %3655 = vmatprep.subr.mxu0 0.0
        %3656 = vmatpush1.msra.mxu0 0.0
        %3657 = vmatprep.subr.mxu0 0.0
        %3658 = vmatpush1.msra.mxu0 0.0
        %3659 = vmatprep.subr.mxu0 0.0
        %3660 = vmatpush1.msra.mxu0 0.0
        %3661 = vmatprep.subr.mxu0 0.0
        %3662 = vmatpush1.msra.mxu0 0.0
        %3663 = vmatprep.subr.mxu0 0.0
        %3664 = vmatpush1.msra.mxu0 0.0
        %3665 = vmatprep.subr.mxu0 0.0
        %3666 = vmatpush1.msra.mxu0 0.0
        %3667 = vmatprep.subr.mxu0 0.0
        %3668 = vmatpush1.msra.mxu0 0.0
        %3669 = vmatprep.subr.mxu0 0.0
        %3670 = vmatpush1.msra.mxu0 0.0
        %3671 = vmatprep.subr.mxu0 0.0
        %3672 = vmatpush1.msra.mxu0 0.0
        %3673 = vmatprep.subr.mxu0 0.0
        %3674 = vmatpush1.msra.mxu0 0.0
        %3675 = vmatprep.subr.mxu0 0.0
        %3676 = vmatpush1.msra.mxu0 0.0
        %3677 = vmatprep.subr.mxu0 0.0
        %3678 = vmatpush1.msra.mxu0 0.0
        %3679 = vmatprep.subr.mxu0 0.0
        %3680 = vmatpush1.msra.mxu0 0.0
        %3681 = vmatprep.mubr.f32.mxu0 0.0
        %3682 = vmatmul.mubr.f32.gmra.mrb[0].mxu0 %v2819
        %v3683 = vpop.f32.mrb[0].mxu0
        %v3684 = vadd.f32 %v3614, %v3683
        %v3685 = vpop.f32.mrb[0].mxu0
        %3686 = vdwg.mxu0
        %3687 = vmatprep.subr.mxu0 0.0
        %3688 = vmatpush1.msra.mxu0 %v630
        %3689 = vmatprep.subr.mxu0 0.0
        %3690 = vmatpush1.msra.mxu0 %v631
        %3691 = vmatprep.subr.mxu0 0.0
        %3692 = vmatpush1.msra.mxu0 0.0
        %3693 = vmatprep.subr.mxu0 0.0
        %3694 = vmatpush1.msra.mxu0 0.0
        %3695 = vmatprep.subr.mxu0 0.0
        %3696 = vmatpush1.msra.mxu0 0.0
        %3697 = vmatprep.subr.mxu0 0.0
        %3698 = vmatpush1.msra.mxu0 0.0
        %3699 = vmatprep.subr.mxu0 0.0
        %3700 = vmatpush1.msra.mxu0 0.0
        %3701 = vmatprep.subr.mxu0 0.0
        %3702 = vmatpush1.msra.mxu0 0.0
        %3703 = vmatprep.subr.mxu0 0.0
        %3704 = vmatpush1.msra.mxu0 0.0
        %3705 = vmatprep.subr.mxu0 0.0
        %3706 = vmatpush1.msra.mxu0 0.0
        %3707 = vmatprep.subr.mxu0 0.0
        %3708 = vmatpush1.msra.mxu0 0.0
        %3709 = vmatprep.subr.mxu0 0.0
        %3710 = vmatpush1.msra.mxu0 0.0
        %3711 = vmatprep.subr.mxu0 0.0
        %3712 = vmatpush1.msra.mxu0 0.0
        %3713 = vmatprep.subr.mxu0 0.0
        %3714 = vmatpush1.msra.mxu0 0.0
        %3715 = vmatprep.subr.mxu0 0.0
        %3716 = vmatpush1.msra.mxu0 0.0
        %3717 = vmatprep.subr.mxu0 0.0
        %3718 = vmatpush1.msra.mxu0 0.0
        %3719 = vmatprep.subr.mxu0 0.0
        %3720 = vmatpush1.msra.mxu0 0.0
        %3721 = vmatprep.subr.mxu0 0.0
        %3722 = vmatpush1.msra.mxu0 0.0
        %3723 = vmatprep.subr.mxu0 0.0
        %3724 = vmatpush1.msra.mxu0 0.0
        %3725 = vmatprep.subr.mxu0 0.0
        %3726 = vmatpush1.msra.mxu0 0.0
        %3727 = vmatprep.subr.mxu0 0.0
        %3728 = vmatpush1.msra.mxu0 0.0
        %3729 = vmatprep.subr.mxu0 0.0
        %3730 = vmatpush1.msra.mxu0 0.0
        %3731 = vmatprep.subr.mxu0 0.0
        %3732 = vmatpush1.msra.mxu0 0.0
        %3733 = vmatprep.subr.mxu0 0.0
        %3734 = vmatpush1.msra.mxu0 0.0
        %3735 = vmatprep.subr.mxu0 0.0
        %3736 = vmatpush1.msra.mxu0 0.0
        %3737 = vmatprep.subr.mxu0 0.0
        %3738 = vmatpush1.msra.mxu0 0.0
        %3739 = vmatprep.subr.mxu0 0.0
        %3740 = vmatpush1.msra.mxu0 0.0
        %3741 = vmatprep.subr.mxu0 0.0
        %3742 = vmatpush1.msra.mxu0 0.0
        %3743 = vmatprep.subr.mxu0 0.0
        %3744 = vmatpush1.msra.mxu0 0.0
        %3745 = vmatprep.subr.mxu0 0.0
        %3746 = vmatpush1.msra.mxu0 0.0
        %3747 = vmatprep.subr.mxu0 0.0
        %3748 = vmatpush1.msra.mxu0 0.0
        %3749 = vmatprep.subr.mxu0 0.0
        %3750 = vmatpush1.msra.mxu0 0.0
        %3751 = vmatprep.mubr.f32.mxu0 0.0
        %3752 = vmatmul.mubr.f32.gmra.mrb[0].mxu0 %v3327
        %v3753 = vpop.f32.mrb[0].mxu0
        %v3754 = vadd.f32 0.0, %v3753
        %v3755 = vpop.f32.mrb[0].mxu0
        %3756 = vdwg.mxu0
        %v3757 = vadd.f32 %v3684, %v3754
        %3758 = vrot.lane.b32.xlu0 %v556, 48
        %v3759 = vpop.permute.xlu0 %3758
        %v3760 = vsel %vm637, %v3759, 0
        %3762 = vmatprep.subr.mxu0 0.0
        %3763 = vmatpush1.msra.mxu0 %v633
        %3764 = vmatprep.subr.mxu0 0.0
        %3765 = vmatpush1.msra.mxu0 %v634
        %3766 = vmatprep.subr.mxu0 0.0
        %3767 = vmatpush1.msra.mxu0 0.0
        %3768 = vmatprep.subr.mxu0 0.0
        %3769 = vmatpush1.msra.mxu0 0.0
        %3770 = vmatprep.subr.mxu0 0.0
        %3771 = vmatpush1.msra.mxu0 0.0
        %3772 = vmatprep.subr.mxu0 0.0
        %3773 = vmatpush1.msra.mxu0 0.0
        %3774 = vmatprep.subr.mxu0 0.0
        %3775 = vmatpush1.msra.mxu0 0.0
        %3776 = vmatprep.subr.mxu0 0.0
        %3777 = vmatpush1.msra.mxu0 0.0
        %3778 = vmatprep.subr.mxu0 0.0
        %3779 = vmatpush1.msra.mxu0 0.0
        %3780 = vmatprep.subr.mxu0 0.0
        %3781 = vmatpush1.msra.mxu0 0.0
        %3782 = vmatprep.subr.mxu0 0.0
        %3783 = vmatpush1.msra.mxu0 0.0
        %3784 = vmatprep.subr.mxu0 0.0
        %3785 = vmatpush1.msra.mxu0 0.0
        %3786 = vmatprep.subr.mxu0 0.0
        %3787 = vmatpush1.msra.mxu0 0.0
        %3788 = vmatprep.subr.mxu0 0.0
        %3789 = vmatpush1.msra.mxu0 0.0
        %3790 = vmatprep.subr.mxu0 0.0
        %3791 = vmatpush1.msra.mxu0 0.0
        %3792 = vmatprep.subr.mxu0 0.0
        %3793 = vmatpush1.msra.mxu0 0.0
        %3794 = vmatprep.subr.mxu0 0.0
        %3795 = vmatpush1.msra.mxu0 0.0
        %3796 = vmatprep.subr.mxu0 0.0
        %3797 = vmatpush1.msra.mxu0 0.0
        %3798 = vmatprep.subr.mxu0 0.0
        %3799 = vmatpush1.msra.mxu0 0.0
        %3800 = vmatprep.subr.mxu0 0.0
        %3801 = vmatpush1.msra.mxu0 0.0
        %3802 = vmatprep.subr.mxu0 0.0
        %3803 = vmatpush1.msra.mxu0 0.0
        %3804 = vmatprep.subr.mxu0 0.0
        %3805 = vmatpush1.msra.mxu0 0.0
        %3806 = vmatprep.subr.mxu0 0.0
        %3807 = vmatpush1.msra.mxu0 0.0
        %3808 = vmatprep.subr.mxu0 0.0
        %3809 = vmatpush1.msra.mxu0 0.0
        %3810 = vmatprep.subr.mxu0 0.0
        %3811 = vmatpush1.msra.mxu0 0.0
        %3812 = vmatprep.subr.mxu0 0.0
        %3813 = vmatpush1.msra.mxu0 0.0
        %3814 = vmatprep.subr.mxu0 0.0
        %3815 = vmatpush1.msra.mxu0 0.0
        %3816 = vmatprep.subr.mxu0 0.0
        %3817 = vmatpush1.msra.mxu0 0.0
        %3818 = vmatprep.subr.mxu0 0.0
        %3819 = vmatpush1.msra.mxu0 0.0
        %3820 = vmatprep.subr.mxu0 0.0
        %3821 = vmatpush1.msra.mxu0 0.0
        %3822 = vmatprep.subr.mxu0 0.0
        %3823 = vmatpush1.msra.mxu0 0.0
        %3824 = vmatprep.subr.mxu0 0.0
        %3825 = vmatpush1.msra.mxu0 0.0
        %3826 = vmatprep.mubr.f32.mxu0 0.0
        %3827 = vmatmul.mubr.f32.gmra.mrb[0].mxu0 %v3760
        %v3828 = vpop.f32.mrb[0].mxu0
        %v3829 = vadd.f32 0.0, %v3828
        %v3830 = vpop.f32.mrb[0].mxu0
        %3831 = vdwg.mxu0
        %v3832 = vadd.f32 %v3757, %v3829
        %3833 = vrot.lane.b32.xlu0 %v556, 32
        %v3834 = vpop.permute.xlu0 %3833
        %v3835 = vsel %vm637, %v3834, 0
        %3837 = vmatprep.subr.mxu0 0.0
        %3838 = vmatpush1.msra.mxu0 %v783
        %3839 = vmatprep.subr.mxu0 0.0
        %3840 = vmatpush1.msra.mxu0 %v784
        %3841 = vmatprep.subr.mxu0 0.0
        %3842 = vmatpush1.msra.mxu0 0.0
        %3843 = vmatprep.subr.mxu0 0.0
        %3844 = vmatpush1.msra.mxu0 0.0
        %3845 = vmatprep.subr.mxu0 0.0
        %3846 = vmatpush1.msra.mxu0 0.0
        %3847 = vmatprep.subr.mxu0 0.0
        %3848 = vmatpush1.msra.mxu0 0.0
        %3849 = vmatprep.subr.mxu0 0.0
        %3850 = vmatpush1.msra.mxu0 0.0
        %3851 = vmatprep.subr.mxu0 0.0
        %3852 = vmatpush1.msra.mxu0 0.0
        %3853 = vmatprep.subr.mxu0 0.0
        %3854 = vmatpush1.msra.mxu0 0.0
        %3855 = vmatprep.subr.mxu0 0.0
        %3856 = vmatpush1.msra.mxu0 0.0
        %3857 = vmatprep.subr.mxu0 0.0
        %3858 = vmatpush1.msra.mxu0 0.0
        %3859 = vmatprep.subr.mxu0 0.0
        %3860 = vmatpush1.msra.mxu0 0.0
        %3861 = vmatprep.subr.mxu0 0.0
        %3862 = vmatpush1.msra.mxu0 0.0
        %3863 = vmatprep.subr.mxu0 0.0
        %3864 = vmatpush1.msra.mxu0 0.0
        %3865 = vmatprep.subr.mxu0 0.0
        %3866 = vmatpush1.msra.mxu0 0.0
        %3867 = vmatprep.subr.mxu0 0.0
        %3868 = vmatpush1.msra.mxu0 0.0
        %3869 = vmatprep.subr.mxu0 0.0
        %3870 = vmatpush1.msra.mxu0 0.0
        %3871 = vmatprep.subr.mxu0 0.0
        %3872 = vmatpush1.msra.mxu0 0.0
        %3873 = vmatprep.subr.mxu0 0.0
        %3874 = vmatpush1.msra.mxu0 0.0
        %3875 = vmatprep.subr.mxu0 0.0
        %3876 = vmatpush1.msra.mxu0 0.0
        %3877 = vmatprep.subr.mxu0 0.0
        %3878 = vmatpush1.msra.mxu0 0.0
        %3879 = vmatprep.subr.mxu0 0.0
        %3880 = vmatpush1.msra.mxu0 0.0
        %3881 = vmatprep.subr.mxu0 0.0
        %3882 = vmatpush1.msra.mxu0 0.0
        %3883 = vmatprep.subr.mxu0 0.0
        %3884 = vmatpush1.msra.mxu0 0.0
        %3885 = vmatprep.subr.mxu0 0.0
        %3886 = vmatpush1.msra.mxu0 0.0
        %3887 = vmatprep.subr.mxu0 0.0
        %3888 = vmatpush1.msra.mxu0 0.0
        %3889 = vmatprep.subr.mxu0 0.0
        %3890 = vmatpush1.msra.mxu0 0.0
        %3891 = vmatprep.subr.mxu0 0.0
        %3892 = vmatpush1.msra.mxu0 0.0
        %3893 = vmatprep.subr.mxu0 0.0
        %3894 = vmatpush1.msra.mxu0 0.0
        %3895 = vmatprep.subr.mxu0 0.0
        %3896 = vmatpush1.msra.mxu0 0.0
        %3897 = vmatprep.subr.mxu0 0.0
        %3898 = vmatpush1.msra.mxu0 0.0
        %3899 = vmatprep.subr.mxu0 0.0
        %3900 = vmatpush1.msra.mxu0 0.0
        %3901 = vmatprep.mubr.f32.mxu0 0.0
        %3902 = vmatmul.mubr.f32.gmra.mrb[0].mxu0 %v3835
        %v3903 = vpop.f32.mrb[0].mxu0
        %v3904 = vadd.f32 0.0, %v3903
        %v3905 = vpop.f32.mrb[0].mxu0
        %3906 = vdwg.mxu0
        %v3907 = vadd.f32 %v3832, %v3904
        %v3908 = vld [vmem:[%s10 + $0x30] sm:$0xff]
        %v3910 = vsel %vm1229, %v3907, 0
        %3912 = vmatprep.subr.mxu0 0.0
        %3913 = vmatpush1.msra.mxu0 %v3908
        %3914 = vmatprep.subr.mxu0 0.0
        %3915 = vmatpush1.msra.mxu0 0.0
        %3916 = vmatprep.subr.mxu0 0.0
        %3917 = vmatpush1.msra.mxu0 0.0
        %3918 = vmatprep.subr.mxu0 0.0
        %3919 = vmatpush1.msra.mxu0 0.0
        %3920 = vmatprep.subr.mxu0 0.0
        %3921 = vmatpush1.msra.mxu0 0.0
        %3922 = vmatprep.subr.mxu0 0.0
        %3923 = vmatpush1.msra.mxu0 0.0
        %3924 = vmatprep.subr.mxu0 0.0
        %3925 = vmatpush1.msra.mxu0 0.0
        %3926 = vmatprep.subr.mxu0 0.0
        %3927 = vmatpush1.msra.mxu0 0.0
        %3928 = vmatprep.subr.mxu0 0.0
        %3929 = vmatpush1.msra.mxu0 0.0
        %3930 = vmatprep.subr.mxu0 0.0
        %3931 = vmatpush1.msra.mxu0 0.0
        %3932 = vmatprep.subr.mxu0 0.0
        %3933 = vmatpush1.msra.mxu0 0.0
        %3934 = vmatprep.subr.mxu0 0.0
        %3935 = vmatpush1.msra.mxu0 0.0
        %3936 = vmatprep.subr.mxu0 0.0
        %3937 = vmatpush1.msra.mxu0 0.0
        %3938 = vmatprep.subr.mxu0 0.0
        %3939 = vmatpush1.msra.mxu0 0.0
        %3940 = vmatprep.subr.mxu0 0.0
        %3941 = vmatpush1.msra.mxu0 0.0
        %3942 = vmatprep.subr.mxu0 0.0
        %3943 = vmatpush1.msra.mxu0 0.0
        %3944 = vmatprep.subr.mxu0 0.0
        %3945 = vmatpush1.msra.mxu0 0.0
        %3946 = vmatprep.subr.mxu0 0.0
        %3947 = vmatpush1.msra.mxu0 0.0
        %3948 = vmatprep.subr.mxu0 0.0
        %3949 = vmatpush1.msra.mxu0 0.0
        %3950 = vmatprep.subr.mxu0 0.0
        %3951 = vmatpush1.msra.mxu0 0.0
        %3952 = vmatprep.subr.mxu0 0.0
        %3953 = vmatpush1.msra.mxu0 0.0
        %3954 = vmatprep.subr.mxu0 0.0
        %3955 = vmatpush1.msra.mxu0 0.0
        %3956 = vmatprep.subr.mxu0 0.0
        %3957 = vmatpush1.msra.mxu0 0.0
        %3958 = vmatprep.subr.mxu0 0.0
        %3959 = vmatpush1.msra.mxu0 0.0
        %3960 = vmatprep.subr.mxu0 0.0
        %3961 = vmatpush1.msra.mxu0 0.0
        %3962 = vmatprep.subr.mxu0 0.0
        %3963 = vmatpush1.msra.mxu0 0.0
        %3964 = vmatprep.subr.mxu0 0.0
        %3965 = vmatpush1.msra.mxu0 0.0
        %3966 = vmatprep.subr.mxu0 0.0
        %3967 = vmatpush1.msra.mxu0 0.0
        %3968 = vmatprep.subr.mxu0 0.0
        %3969 = vmatpush1.msra.mxu0 0.0
        %3970 = vmatprep.subr.mxu0 0.0
        %3971 = vmatpush1.msra.mxu0 0.0
        %3972 = vmatprep.subr.mxu0 0.0
        %3973 = vmatpush1.msra.mxu0 0.0
        %3974 = vmatprep.subr.mxu0 0.0
        %3975 = vmatpush1.msra.mxu0 0.0
        %3976 = vmatprep.mubr.f32.mxu0 0.0
        %3977 = vmatmul.mubr.f32.gmra.mrb[0].mxu0 %v3910
        %v3978 = vpop.f32.mrb[0].mxu0
        %v3979 = vadd.f32 0.0, %v3978
        %v3980 = vpop.f32.mrb[0].mxu0
        %3981 = vdwg.mxu0
        %v3982 = vadd.f32 %v3474, %v3979
        %v3983 = vld [vmem:[%s6 + $0x30] sm:$0xff]
        %3984 = vmatprep.subr.mxu0 0.0
        %3985 = vmatpush1.msra.mxu0 %v3983
        %3986 = vmatprep.subr.mxu0 0.0
        %3987 = vmatpush1.msra.mxu0 0.0
        %3988 = vmatprep.subr.mxu0 0.0
        %3989 = vmatpush1.msra.mxu0 0.0
        %3990 = vmatprep.subr.mxu0 0.0
        %3991 = vmatpush1.msra.mxu0 0.0
        %3992 = vmatprep.subr.mxu0 0.0
        %3993 = vmatpush1.msra.mxu0 0.0
        %3994 = vmatprep.subr.mxu0 0.0
        %3995 = vmatpush1.msra.mxu0 0.0
        %3996 = vmatprep.subr.mxu0 0.0
        %3997 = vmatpush1.msra.mxu0 0.0
        %3998 = vmatprep.subr.mxu0 0.0
        %3999 = vmatpush1.msra.mxu0 0.0
        %4000 = vmatprep.subr.mxu0 0.0
        %4001 = vmatpush1.msra.mxu0 0.0
        %4002 = vmatprep.subr.mxu0 0.0
        %4003 = vmatpush1.msra.mxu0 0.0
        %4004 = vmatprep.subr.mxu0 0.0
        %4005 = vmatpush1.msra.mxu0 0.0
        %4006 = vmatprep.subr.mxu0 0.0
        %4007 = vmatpush1.msra.mxu0 0.0
        %4008 = vmatprep.subr.mxu0 0.0
        %4009 = vmatpush1.msra.mxu0 0.0
        %4010 = vmatprep.subr.mxu0 0.0
        %4011 = vmatpush1.msra.mxu0 0.0
        %4012 = vmatprep.subr.mxu0 0.0
        %4013 = vmatpush1.msra.mxu0 0.0
        %4014 = vmatprep.subr.mxu0 0.0
        %4015 = vmatpush1.msra.mxu0 0.0
        %4016 = vmatprep.subr.mxu0 0.0
        %4017 = vmatpush1.msra.mxu0 0.0
        %4018 = vmatprep.subr.mxu0 0.0
        %4019 = vmatpush1.msra.mxu0 0.0
        %4020 = vmatprep.subr.mxu0 0.0
        %4021 = vmatpush1.msra.mxu0 0.0
        %4022 = vmatprep.subr.mxu0 0.0
        %4023 = vmatpush1.msra.mxu0 0.0
        %4024 = vmatprep.subr.mxu0 0.0
        %4025 = vmatpush1.msra.mxu0 0.0
        %4026 = vmatprep.subr.mxu0 0.0
        %4027 = vmatpush1.msra.mxu0 0.0
        %4028 = vmatprep.subr.mxu0 0.0
        %4029 = vmatpush1.msra.mxu0 0.0
        %4030 = vmatprep.subr.mxu0 0.0
        %4031 = vmatpush1.msra.mxu0 0.0
        %4032 = vmatprep.subr.mxu0 0.0
        %4033 = vmatpush1.msra.mxu0 0.0
        %4034 = vmatprep.subr.mxu0 0.0
        %4035 = vmatpush1.msra.mxu0 0.0
        %4036 = vmatprep.subr.mxu0 0.0
        %4037 = vmatpush1.msra.mxu0 0.0
        %4038 = vmatprep.subr.mxu0 0.0
        %4039 = vmatpush1.msra.mxu0 0.0
        %4040 = vmatprep.subr.mxu0 0.0
        %4041 = vmatpush1.msra.mxu0 0.0
        %4042 = vmatprep.subr.mxu0 0.0
        %4043 = vmatpush1.msra.mxu0 0.0
        %4044 = vmatprep.subr.mxu0 0.0
        %4045 = vmatpush1.msra.mxu0 0.0
        %4046 = vmatprep.subr.mxu0 0.0
        %4047 = vmatpush1.msra.mxu0 0.0
        %4048 = vmatprep.mubr.f32.mxu0 0.0
        %4049 = vmatmul.mubr.f32.gmra.mrb[0].mxu0 %v3910
        %v4050 = vpop.f32.mrb[0].mxu0
        %v4051 = vadd.f32 0.0, %v4050
        %v4052 = vpop.f32.mrb[0].mxu0
        %4053 = vdwg.mxu0
        %v4054 = vadd.f32 %v3546, %v4051
        %4055 = vmatprep.subr.mxu0 0.0
        %4056 = vmatpush1.msra.mxu0 %v865
        %4057 = vmatprep.subr.mxu0 0.0
        %4058 = vmatpush1.msra.mxu0 %v866
        %4059 = vmatprep.subr.mxu0 0.0
        %4060 = vmatpush1.msra.mxu0 0.0
        %4061 = vmatprep.subr.mxu0 0.0
        %4062 = vmatpush1.msra.mxu0 0.0
        %4063 = vmatprep.subr.mxu0 0.0
        %4064 = vmatpush1.msra.mxu0 0.0
        %4065 = vmatprep.subr.mxu0 0.0
        %4066 = vmatpush1.msra.mxu0 0.0
        %4067 = vmatprep.subr.mxu0 0.0
        %4068 = vmatpush1.msra.mxu0 0.0
        %4069 = vmatprep.subr.mxu0 0.0
        %4070 = vmatpush1.msra.mxu0 0.0
        %4071 = vmatprep.subr.mxu0 0.0
        %4072 = vmatpush1.msra.mxu0 0.0
        %4073 = vmatprep.subr.mxu0 0.0
        %4074 = vmatpush1.msra.mxu0 0.0
        %4075 = vmatprep.subr.mxu0 0.0
        %4076 = vmatpush1.msra.mxu0 0.0
        %4077 = vmatprep.subr.mxu0 0.0
        %4078 = vmatpush1.msra.mxu0 0.0
        %4079 = vmatprep.subr.mxu0 0.0
        %4080 = vmatpush1.msra.mxu0 0.0
        %4081 = vmatprep.subr.mxu0 0.0
        %4082 = vmatpush1.msra.mxu0 0.0
        %4083 = vmatprep.subr.mxu0 0.0
        %4084 = vmatpush1.msra.mxu0 0.0
        %4085 = vmatprep.subr.mxu0 0.0
        %4086 = vmatpush1.msra.mxu0 0.0
        %4087 = vmatprep.subr.mxu0 0.0
        %4088 = vmatpush1.msra.mxu0 0.0
        %4089 = vmatprep.subr.mxu0 0.0
        %4090 = vmatpush1.msra.mxu0 0.0
        %4091 = vmatprep.subr.mxu0 0.0
        %4092 = vmatpush1.msra.mxu0 0.0
        %4093 = vmatprep.subr.mxu0 0.0
        %4094 = vmatpush1.msra.mxu0 0.0
        %4095 = vmatprep.subr.mxu0 0.0
        %4096 = vmatpush1.msra.mxu0 0.0
        %4097 = vmatprep.subr.mxu0 0.0
        %4098 = vmatpush1.msra.mxu0 0.0
        %4099 = vmatprep.subr.mxu0 0.0
        %4100 = vmatpush1.msra.mxu0 0.0
        %4101 = vmatprep.subr.mxu0 0.0
        %4102 = vmatpush1.msra.mxu0 0.0
        %4103 = vmatprep.subr.mxu0 0.0
        %4104 = vmatpush1.msra.mxu0 0.0
        %4105 = vmatprep.subr.mxu0 0.0
        %4106 = vmatpush1.msra.mxu0 0.0
        %4107 = vmatprep.subr.mxu0 0.0
        %4108 = vmatpush1.msra.mxu0 0.0
        %4109 = vmatprep.subr.mxu0 0.0
        %4110 = vmatpush1.msra.mxu0 0.0
        %4111 = vmatprep.subr.mxu0 0.0
        %4112 = vmatpush1.msra.mxu0 0.0
        %4113 = vmatprep.subr.mxu0 0.0
        %4114 = vmatpush1.msra.mxu0 0.0
        %4115 = vmatprep.subr.mxu0 0.0
        %4116 = vmatpush1.msra.mxu0 0.0
        %4117 = vmatprep.subr.mxu0 0.0
        %4118 = vmatpush1.msra.mxu0 0.0
        %4119 = vmatprep.mubr.f32.mxu0 0.0
        %4120 = vmatmul.mubr.f32.gmra.mrb[0].mxu0 %v3760
        %v4121 = vpop.f32.mrb[0].mxu0
        %v4122 = vadd.f32 0.0, %v4121
        %v4123 = vpop.f32.mrb[0].mxu0
        %4124 = vdwg.mxu0
        %4125 = vmatprep.subr.mxu0 0.0
        %4126 = vmatpush1.msra.mxu0 %v862
        %4127 = vmatprep.subr.mxu0 0.0
        %4128 = vmatpush1.msra.mxu0 %v863
        %4129 = vmatprep.subr.mxu0 0.0
        %4130 = vmatpush1.msra.mxu0 0.0
        %4131 = vmatprep.subr.mxu0 0.0
        %4132 = vmatpush1.msra.mxu0 0.0
        %4133 = vmatprep.subr.mxu0 0.0
        %4134 = vmatpush1.msra.mxu0 0.0
        %4135 = vmatprep.subr.mxu0 0.0
        %4136 = vmatpush1.msra.mxu0 0.0
        %4137 = vmatprep.subr.mxu0 0.0
        %4138 = vmatpush1.msra.mxu0 0.0
        %4139 = vmatprep.subr.mxu0 0.0
        %4140 = vmatpush1.msra.mxu0 0.0
        %4141 = vmatprep.subr.mxu0 0.0
        %4142 = vmatpush1.msra.mxu0 0.0
        %4143 = vmatprep.subr.mxu0 0.0
        %4144 = vmatpush1.msra.mxu0 0.0
        %4145 = vmatprep.subr.mxu0 0.0
        %4146 = vmatpush1.msra.mxu0 0.0
        %4147 = vmatprep.subr.mxu0 0.0
        %4148 = vmatpush1.msra.mxu0 0.0
        %4149 = vmatprep.subr.mxu0 0.0
        %4150 = vmatpush1.msra.mxu0 0.0
        %4151 = vmatprep.subr.mxu0 0.0
        %4152 = vmatpush1.msra.mxu0 0.0
        %4153 = vmatprep.subr.mxu0 0.0
        %4154 = vmatpush1.msra.mxu0 0.0
        %4155 = vmatprep.subr.mxu0 0.0
        %4156 = vmatpush1.msra.mxu0 0.0
        %4157 = vmatprep.subr.mxu0 0.0
        %4158 = vmatpush1.msra.mxu0 0.0
        %4159 = vmatprep.subr.mxu0 0.0
        %4160 = vmatpush1.msra.mxu0 0.0
        %4161 = vmatprep.subr.mxu0 0.0
        %4162 = vmatpush1.msra.mxu0 0.0
        %4163 = vmatprep.subr.mxu0 0.0
        %4164 = vmatpush1.msra.mxu0 0.0
        %4165 = vmatprep.subr.mxu0 0.0
        %4166 = vmatpush1.msra.mxu0 0.0
        %4167 = vmatprep.subr.mxu0 0.0
        %4168 = vmatpush1.msra.mxu0 0.0
        %4169 = vmatprep.subr.mxu0 0.0
        %4170 = vmatpush1.msra.mxu0 0.0
        %4171 = vmatprep.subr.mxu0 0.0
        %4172 = vmatpush1.msra.mxu0 0.0
        %4173 = vmatprep.subr.mxu0 0.0
        %4174 = vmatpush1.msra.mxu0 0.0
        %4175 = vmatprep.subr.mxu0 0.0
        %4176 = vmatpush1.msra.mxu0 0.0
        %4177 = vmatprep.subr.mxu0 0.0
        %4178 = vmatpush1.msra.mxu0 0.0
        %4179 = vmatprep.subr.mxu0 0.0
        %4180 = vmatpush1.msra.mxu0 0.0
        %4181 = vmatprep.subr.mxu0 0.0
        %4182 = vmatpush1.msra.mxu0 0.0
        %4183 = vmatprep.subr.mxu0 0.0
        %4184 = vmatpush1.msra.mxu0 0.0
        %4185 = vmatprep.subr.mxu0 0.0
        %4186 = vmatpush1.msra.mxu0 0.0
        %4187 = vmatprep.subr.mxu0 0.0
        %4188 = vmatpush1.msra.mxu0 0.0
        %4189 = vmatprep.mubr.f32.mxu0 0.0
        %4190 = vmatmul.mubr.f32.gmra.mrb[0].mxu0 %v3327
        %v4191 = vpop.f32.mrb[0].mxu0
        %v4192 = vadd.f32 %v4122, %v4191
        %v4193 = vpop.f32.mrb[0].mxu0
        %4194 = vdwg.mxu0
        %4195 = vmatprep.subr.mxu0 0.0
        %4196 = vmatpush1.msra.mxu0 %v630
        %4197 = vmatprep.subr.mxu0 0.0
        %4198 = vmatpush1.msra.mxu0 %v631
        %4199 = vmatprep.subr.mxu0 0.0
        %4200 = vmatpush1.msra.mxu0 0.0
        %4201 = vmatprep.subr.mxu0 0.0
        %4202 = vmatpush1.msra.mxu0 0.0
        %4203 = vmatprep.subr.mxu0 0.0
        %4204 = vmatpush1.msra.mxu0 0.0
        %4205 = vmatprep.subr.mxu0 0.0
        %4206 = vmatpush1.msra.mxu0 0.0
        %4207 = vmatprep.subr.mxu0 0.0
        %4208 = vmatpush1.msra.mxu0 0.0
        %4209 = vmatprep.subr.mxu0 0.0
        %4210 = vmatpush1.msra.mxu0 0.0
        %4211 = vmatprep.subr.mxu0 0.0
        %4212 = vmatpush1.msra.mxu0 0.0
        %4213 = vmatprep.subr.mxu0 0.0
        %4214 = vmatpush1.msra.mxu0 0.0
        %4215 = vmatprep.subr.mxu0 0.0
        %4216 = vmatpush1.msra.mxu0 0.0
        %4217 = vmatprep.subr.mxu0 0.0
        %4218 = vmatpush1.msra.mxu0 0.0
        %4219 = vmatprep.subr.mxu0 0.0
        %4220 = vmatpush1.msra.mxu0 0.0
        %4221 = vmatprep.subr.mxu0 0.0
        %4222 = vmatpush1.msra.mxu0 0.0
        %4223 = vmatprep.subr.mxu0 0.0
        %4224 = vmatpush1.msra.mxu0 0.0
        %4225 = vmatprep.subr.mxu0 0.0
        %4226 = vmatpush1.msra.mxu0 0.0
        %4227 = vmatprep.subr.mxu0 0.0
        %4228 = vmatpush1.msra.mxu0 0.0
        %4229 = vmatprep.subr.mxu0 0.0
        %4230 = vmatpush1.msra.mxu0 0.0
        %4231 = vmatprep.subr.mxu0 0.0
        %4232 = vmatpush1.msra.mxu0 0.0
        %4233 = vmatprep.subr.mxu0 0.0
        %4234 = vmatpush1.msra.mxu0 0.0
        %4235 = vmatprep.subr.mxu0 0.0
        %4236 = vmatpush1.msra.mxu0 0.0
        %4237 = vmatprep.subr.mxu0 0.0
        %4238 = vmatpush1.msra.mxu0 0.0
        %4239 = vmatprep.subr.mxu0 0.0
        %4240 = vmatpush1.msra.mxu0 0.0
        %4241 = vmatprep.subr.mxu0 0.0
        %4242 = vmatpush1.msra.mxu0 0.0
        %4243 = vmatprep.subr.mxu0 0.0
        %4244 = vmatpush1.msra.mxu0 0.0
        %4245 = vmatprep.subr.mxu0 0.0
        %4246 = vmatpush1.msra.mxu0 0.0
        %4247 = vmatprep.subr.mxu0 0.0
        %4248 = vmatpush1.msra.mxu0 0.0
        %4249 = vmatprep.subr.mxu0 0.0
        %4250 = vmatpush1.msra.mxu0 0.0
        %4251 = vmatprep.subr.mxu0 0.0
        %4252 = vmatpush1.msra.mxu0 0.0
        %4253 = vmatprep.subr.mxu0 0.0
        %4254 = vmatpush1.msra.mxu0 0.0
        %4255 = vmatprep.subr.mxu0 0.0
        %4256 = vmatpush1.msra.mxu0 0.0
        %4257 = vmatprep.subr.mxu0 0.0
        %4258 = vmatpush1.msra.mxu0 0.0
        %4259 = vmatprep.mubr.f32.mxu0 0.0
        %4260 = vmatmul.mubr.f32.gmra.mrb[0].mxu0 %v3835
        %v4261 = vpop.f32.mrb[0].mxu0
        %v4262 = vadd.f32 0.0, %v4261
        %v4263 = vpop.f32.mrb[0].mxu0
        %4264 = vdwg.mxu0
        %v4265 = vadd.f32 %v4192, %v4262
        %4266 = vrot.lane.b32.xlu0 %v556, 16
        %v4267 = vpop.permute.xlu0 %4266
        %v4268 = vsel %vm637, %v4267, 0
        %4270 = vmatprep.subr.mxu0 0.0
        %4271 = vmatpush1.msra.mxu0 %v633
        %4272 = vmatprep.subr.mxu0 0.0
        %4273 = vmatpush1.msra.mxu0 %v634
        %4274 = vmatprep.subr.mxu0 0.0
        %4275 = vmatpush1.msra.mxu0 0.0
        %4276 = vmatprep.subr.mxu0 0.0
        %4277 = vmatpush1.msra.mxu0 0.0
        %4278 = vmatprep.subr.mxu0 0.0
        %4279 = vmatpush1.msra.mxu0 0.0
        %4280 = vmatprep.subr.mxu0 0.0
        %4281 = vmatpush1.msra.mxu0 0.0
        %4282 = vmatprep.subr.mxu0 0.0
        %4283 = vmatpush1.msra.mxu0 0.0
        %4284 = vmatprep.subr.mxu0 0.0
        %4285 = vmatpush1.msra.mxu0 0.0
        %4286 = vmatprep.subr.mxu0 0.0
        %4287 = vmatpush1.msra.mxu0 0.0
        %4288 = vmatprep.subr.mxu0 0.0
        %4289 = vmatpush1.msra.mxu0 0.0
        %4290 = vmatprep.subr.mxu0 0.0
        %4291 = vmatpush1.msra.mxu0 0.0
        %4292 = vmatprep.subr.mxu0 0.0
        %4293 = vmatpush1.msra.mxu0 0.0
        %4294 = vmatprep.subr.mxu0 0.0
        %4295 = vmatpush1.msra.mxu0 0.0
        %4296 = vmatprep.subr.mxu0 0.0
        %4297 = vmatpush1.msra.mxu0 0.0
        %4298 = vmatprep.subr.mxu0 0.0
        %4299 = vmatpush1.msra.mxu0 0.0
        %4300 = vmatprep.subr.mxu0 0.0
        %4301 = vmatpush1.msra.mxu0 0.0
        %4302 = vmatprep.subr.mxu0 0.0
        %4303 = vmatpush1.msra.mxu0 0.0
        %4304 = vmatprep.subr.mxu0 0.0
        %4305 = vmatpush1.msra.mxu0 0.0
        %4306 = vmatprep.subr.mxu0 0.0
        %4307 = vmatpush1.msra.mxu0 0.0
        %4308 = vmatprep.subr.mxu0 0.0
        %4309 = vmatpush1.msra.mxu0 0.0
        %4310 = vmatprep.subr.mxu0 0.0
        %4311 = vmatpush1.msra.mxu0 0.0
        %4312 = vmatprep.subr.mxu0 0.0
        %4313 = vmatpush1.msra.mxu0 0.0
        %4314 = vmatprep.subr.mxu0 0.0
        %4315 = vmatpush1.msra.mxu0 0.0
        %4316 = vmatprep.subr.mxu0 0.0
        %4317 = vmatpush1.msra.mxu0 0.0
        %4318 = vmatprep.subr.mxu0 0.0
        %4319 = vmatpush1.msra.mxu0 0.0
        %4320 = vmatprep.subr.mxu0 0.0
        %4321 = vmatpush1.msra.mxu0 0.0
        %4322 = vmatprep.subr.mxu0 0.0
        %4323 = vmatpush1.msra.mxu0 0.0
        %4324 = vmatprep.subr.mxu0 0.0
        %4325 = vmatpush1.msra.mxu0 0.0
        %4326 = vmatprep.subr.mxu0 0.0
        %4327 = vmatpush1.msra.mxu0 0.0
        %4328 = vmatprep.subr.mxu0 0.0
        %4329 = vmatpush1.msra.mxu0 0.0
        %4330 = vmatprep.subr.mxu0 0.0
        %4331 = vmatpush1.msra.mxu0 0.0
        %4332 = vmatprep.subr.mxu0 0.0
        %4333 = vmatpush1.msra.mxu0 0.0
        %4334 = vmatprep.mubr.f32.mxu0 0.0
        %4335 = vmatmul.mubr.f32.gmra.mrb[0].mxu0 %v4268
        %v4336 = vpop.f32.mrb[0].mxu0
        %v4337 = vadd.f32 0.0, %v4336
        %v4338 = vpop.f32.mrb[0].mxu0
        %4339 = vdwg.mxu0
        %v4340 = vadd.f32 %v4265, %v4337
        %v4341 = vld [vmem:[%s10 + $0x38] sm:$0xff]
        %v4343 = vsel %vm1229, %v4340, 0
        %4345 = vmatprep.subr.mxu0 0.0
        %4346 = vmatpush1.msra.mxu0 %v4341
        %4347 = vmatprep.subr.mxu0 0.0
        %4348 = vmatpush1.msra.mxu0 0.0
        %4349 = vmatprep.subr.mxu0 0.0
        %4350 = vmatpush1.msra.mxu0 0.0
        %4351 = vmatprep.subr.mxu0 0.0
        %4352 = vmatpush1.msra.mxu0 0.0
        %4353 = vmatprep.subr.mxu0 0.0
        %4354 = vmatpush1.msra.mxu0 0.0
        %4355 = vmatprep.subr.mxu0 0.0
        %4356 = vmatpush1.msra.mxu0 0.0
        %4357 = vmatprep.subr.mxu0 0.0
        %4358 = vmatpush1.msra.mxu0 0.0
        %4359 = vmatprep.subr.mxu0 0.0
        %4360 = vmatpush1.msra.mxu0 0.0
        %4361 = vmatprep.subr.mxu0 0.0
        %4362 = vmatpush1.msra.mxu0 0.0
        %4363 = vmatprep.subr.mxu0 0.0
        %4364 = vmatpush1.msra.mxu0 0.0
        %4365 = vmatprep.subr.mxu0 0.0
        %4366 = vmatpush1.msra.mxu0 0.0
        %4367 = vmatprep.subr.mxu0 0.0
        %4368 = vmatpush1.msra.mxu0 0.0
        %4369 = vmatprep.subr.mxu0 0.0
        %4370 = vmatpush1.msra.mxu0 0.0
        %4371 = vmatprep.subr.mxu0 0.0
        %4372 = vmatpush1.msra.mxu0 0.0
        %4373 = vmatprep.subr.mxu0 0.0
        %4374 = vmatpush1.msra.mxu0 0.0
        %4375 = vmatprep.subr.mxu0 0.0
        %4376 = vmatpush1.msra.mxu0 0.0
        %4377 = vmatprep.subr.mxu0 0.0
        %4378 = vmatpush1.msra.mxu0 0.0
        %4379 = vmatprep.subr.mxu0 0.0
        %4380 = vmatpush1.msra.mxu0 0.0
        %4381 = vmatprep.subr.mxu0 0.0
        %4382 = vmatpush1.msra.mxu0 0.0
        %4383 = vmatprep.subr.mxu0 0.0
        %4384 = vmatpush1.msra.mxu0 0.0
        %4385 = vmatprep.subr.mxu0 0.0
        %4386 = vmatpush1.msra.mxu0 0.0
        %4387 = vmatprep.subr.mxu0 0.0
        %4388 = vmatpush1.msra.mxu0 0.0
        %4389 = vmatprep.subr.mxu0 0.0
        %4390 = vmatpush1.msra.mxu0 0.0
        %4391 = vmatprep.subr.mxu0 0.0
        %4392 = vmatpush1.msra.mxu0 0.0
        %4393 = vmatprep.subr.mxu0 0.0
        %4394 = vmatpush1.msra.mxu0 0.0
        %4395 = vmatprep.subr.mxu0 0.0
        %4396 = vmatpush1.msra.mxu0 0.0
        %4397 = vmatprep.subr.mxu0 0.0
        %4398 = vmatpush1.msra.mxu0 0.0
        %4399 = vmatprep.subr.mxu0 0.0
        %4400 = vmatpush1.msra.mxu0 0.0
        %4401 = vmatprep.subr.mxu0 0.0
        %4402 = vmatpush1.msra.mxu0 0.0
        %4403 = vmatprep.subr.mxu0 0.0
        %4404 = vmatpush1.msra.mxu0 0.0
        %4405 = vmatprep.subr.mxu0 0.0
        %4406 = vmatpush1.msra.mxu0 0.0
        %4407 = vmatprep.subr.mxu0 0.0
        %4408 = vmatpush1.msra.mxu0 0.0
        %4409 = vmatprep.mubr.f32.mxu0 0.0
        %4410 = vmatmul.mubr.f32.gmra.mrb[0].mxu0 %v4343
        %v4411 = vpop.f32.mrb[0].mxu0
        %v4412 = vadd.f32 0.0, %v4411
        %v4413 = vpop.f32.mrb[0].mxu0
        %4414 = vdwg.mxu0
        %v4415 = vadd.f32 %v3982, %v4412
        %v4416 = vld [vmem:[%s6 + $0x38] sm:$0xff]
        %4417 = vmatprep.subr.mxu0 0.0
        %4418 = vmatpush1.msra.mxu0 %v4416
        %4419 = vmatprep.subr.mxu0 0.0
        %4420 = vmatpush1.msra.mxu0 0.0
        %4421 = vmatprep.subr.mxu0 0.0
        %4422 = vmatpush1.msra.mxu0 0.0
        %4423 = vmatprep.subr.mxu0 0.0
        %4424 = vmatpush1.msra.mxu0 0.0
        %4425 = vmatprep.subr.mxu0 0.0
        %4426 = vmatpush1.msra.mxu0 0.0
        %4427 = vmatprep.subr.mxu0 0.0
        %4428 = vmatpush1.msra.mxu0 0.0
        %4429 = vmatprep.subr.mxu0 0.0
        %4430 = vmatpush1.msra.mxu0 0.0
        %4431 = vmatprep.subr.mxu0 0.0
        %4432 = vmatpush1.msra.mxu0 0.0
        %4433 = vmatprep.subr.mxu0 0.0
        %4434 = vmatpush1.msra.mxu0 0.0
        %4435 = vmatprep.subr.mxu0 0.0
        %4436 = vmatpush1.msra.mxu0 0.0
        %4437 = vmatprep.subr.mxu0 0.0
        %4438 = vmatpush1.msra.mxu0 0.0
        %4439 = vmatprep.subr.mxu0 0.0
        %4440 = vmatpush1.msra.mxu0 0.0
        %4441 = vmatprep.subr.mxu0 0.0
        %4442 = vmatpush1.msra.mxu0 0.0
        %4443 = vmatprep.subr.mxu0 0.0
        %4444 = vmatpush1.msra.mxu0 0.0
        %4445 = vmatprep.subr.mxu0 0.0
        %4446 = vmatpush1.msra.mxu0 0.0
        %4447 = vmatprep.subr.mxu0 0.0
        %4448 = vmatpush1.msra.mxu0 0.0
        %4449 = vmatprep.subr.mxu0 0.0
        %4450 = vmatpush1.msra.mxu0 0.0
        %4451 = vmatprep.subr.mxu0 0.0
        %4452 = vmatpush1.msra.mxu0 0.0
        %4453 = vmatprep.subr.mxu0 0.0
        %4454 = vmatpush1.msra.mxu0 0.0
        %4455 = vmatprep.subr.mxu0 0.0
        %4456 = vmatpush1.msra.mxu0 0.0
        %4457 = vmatprep.subr.mxu0 0.0
        %4458 = vmatpush1.msra.mxu0 0.0
        %4459 = vmatprep.subr.mxu0 0.0
        %4460 = vmatpush1.msra.mxu0 0.0
        %4461 = vmatprep.subr.mxu0 0.0
        %4462 = vmatpush1.msra.mxu0 0.0
        %4463 = vmatprep.subr.mxu0 0.0
        %4464 = vmatpush1.msra.mxu0 0.0
        %4465 = vmatprep.subr.mxu0 0.0
        %4466 = vmatpush1.msra.mxu0 0.0
        %4467 = vmatprep.subr.mxu0 0.0
        %4468 = vmatpush1.msra.mxu0 0.0
        %4469 = vmatprep.subr.mxu0 0.0
        %4470 = vmatpush1.msra.mxu0 0.0
        %4471 = vmatprep.subr.mxu0 0.0
        %4472 = vmatpush1.msra.mxu0 0.0
        %4473 = vmatprep.subr.mxu0 0.0
        %4474 = vmatpush1.msra.mxu0 0.0
        %4475 = vmatprep.subr.mxu0 0.0
        %4476 = vmatpush1.msra.mxu0 0.0
        %4477 = vmatprep.subr.mxu0 0.0
        %4478 = vmatpush1.msra.mxu0 0.0
        %4479 = vmatprep.subr.mxu0 0.0
        %4480 = vmatpush1.msra.mxu0 0.0
        %4481 = vmatprep.mubr.f32.mxu0 0.0
        %4482 = vmatmul.mubr.f32.gmra.mrb[0].mxu0 %v4343
        %v4483 = vpop.f32.mrb[0].mxu0
        %v4484 = vadd.f32 0.0, %v4483
        %v4485 = vpop.f32.mrb[0].mxu0
        %4486 = vdwg.mxu0
        %v4487 = vadd.f32 %v4054, %v4484
        %v4488 = vmul.f32 %v520, %v4415
        %v4489 = vmul.f32 %v4488, 4.0
        %v4490 = vsub.f32 %v628, %v4489
        %v4492 = vrot.slane %v4487, 4
        %v4494 = vmul.f32 %v520, %v4492
        %v4496 = vrot.slane %v4494, 4
        %v4498 = vadd.f32 %v4490, %v4496
        %s4499 = scalar_lea.vmem %s2, 16
        %v4500 = vld [vmem:[%s4499] sm:$0xff]
        %s4501 = scalar_lea.vmem %s2, 24
        %v4502 = vld [vmem:[%s4501] sm:$0xff]
        %4503 = vmatprep.subr.mxu0 0.0
        %4504 = vmatpush1.msra.mxu0 %v4502
        %4505 = vmatprep.subr.mxu0 0.0
        %4506 = vmatpush1.msra.mxu0 0.0
        %4507 = vmatprep.subr.mxu0 0.0
        %4508 = vmatpush1.msra.mxu0 0.0
        %4509 = vmatprep.subr.mxu0 0.0
        %4510 = vmatpush1.msra.mxu0 0.0
        %4511 = vmatprep.subr.mxu0 0.0
        %4512 = vmatpush1.msra.mxu0 0.0
        %4513 = vmatprep.subr.mxu0 0.0
        %4514 = vmatpush1.msra.mxu0 0.0
        %4515 = vmatprep.subr.mxu0 0.0
        %4516 = vmatpush1.msra.mxu0 0.0
        %4517 = vmatprep.subr.mxu0 0.0
        %4518 = vmatpush1.msra.mxu0 0.0
        %4519 = vmatprep.subr.mxu0 0.0
        %4520 = vmatpush1.msra.mxu0 0.0
        %4521 = vmatprep.subr.mxu0 0.0
        %4522 = vmatpush1.msra.mxu0 0.0
        %4523 = vmatprep.subr.mxu0 0.0
        %4524 = vmatpush1.msra.mxu0 0.0
        %4525 = vmatprep.subr.mxu0 0.0
        %4526 = vmatpush1.msra.mxu0 0.0
        %4527 = vmatprep.subr.mxu0 0.0
        %4528 = vmatpush1.msra.mxu0 0.0
        %4529 = vmatprep.subr.mxu0 0.0
        %4530 = vmatpush1.msra.mxu0 0.0
        %4531 = vmatprep.subr.mxu0 0.0
        %4532 = vmatpush1.msra.mxu0 0.0
        %4533 = vmatprep.subr.mxu0 0.0
        %4534 = vmatpush1.msra.mxu0 0.0
        %4535 = vmatprep.subr.mxu0 0.0
        %4536 = vmatpush1.msra.mxu0 0.0
        %4537 = vmatprep.subr.mxu0 0.0
        %4538 = vmatpush1.msra.mxu0 0.0
        %4539 = vmatprep.subr.mxu0 0.0
        %4540 = vmatpush1.msra.mxu0 0.0
        %4541 = vmatprep.subr.mxu0 0.0
        %4542 = vmatpush1.msra.mxu0 0.0
        %4543 = vmatprep.subr.mxu0 0.0
        %4544 = vmatpush1.msra.mxu0 0.0
        %4545 = vmatprep.subr.mxu0 0.0
        %4546 = vmatpush1.msra.mxu0 0.0
        %4547 = vmatprep.subr.mxu0 0.0
        %4548 = vmatpush1.msra.mxu0 0.0
        %4549 = vmatprep.subr.mxu0 0.0
        %4550 = vmatpush1.msra.mxu0 0.0
        %4551 = vmatprep.subr.mxu0 0.0
        %4552 = vmatpush1.msra.mxu0 0.0
        %4553 = vmatprep.subr.mxu0 0.0
        %4554 = vmatpush1.msra.mxu0 0.0
        %4555 = vmatprep.subr.mxu0 0.0
        %4556 = vmatpush1.msra.mxu0 0.0
        %4557 = vmatprep.subr.mxu0 0.0
        %4558 = vmatpush1.msra.mxu0 0.0
        %4559 = vmatprep.subr.mxu0 0.0
        %4560 = vmatpush1.msra.mxu0 0.0
        %4561 = vmatprep.subr.mxu0 0.0
        %4562 = vmatpush1.msra.mxu0 0.0
        %4563 = vmatprep.subr.mxu0 0.0
        %4564 = vmatpush1.msra.mxu0 0.0
        %4565 = vmatprep.subr.mxu0 0.0
        %4566 = vmatpush1.msra.mxu0 0.0
        %4567 = vmatprep.mubr.f32.mxu0 0.0
        %4568 = vmatmul.mubr.f32.gmra.mrb[0].mxu0 %v1231
        %v4569 = vpop.f32.mrb[0].mxu0
        %v4570 = vadd.f32 0.0, %v4569
        %v4571 = vpop.f32.mrb[0].mxu0
        %4572 = vdwg.mxu0
        %4573 = vmatprep.subr.mxu0 0.0
        %4574 = vmatpush1.msra.mxu0 %v4500
        %4575 = vmatprep.subr.mxu0 0.0
        %4576 = vmatpush1.msra.mxu0 0.0
        %4577 = vmatprep.subr.mxu0 0.0
        %4578 = vmatpush1.msra.mxu0 0.0
        %4579 = vmatprep.subr.mxu0 0.0
        %4580 = vmatpush1.msra.mxu0 0.0
        %4581 = vmatprep.subr.mxu0 0.0
        %4582 = vmatpush1.msra.mxu0 0.0
        %4583 = vmatprep.subr.mxu0 0.0
        %4584 = vmatpush1.msra.mxu0 0.0
        %4585 = vmatprep.subr.mxu0 0.0
        %4586 = vmatpush1.msra.mxu0 0.0
        %4587 = vmatprep.subr.mxu0 0.0
        %4588 = vmatpush1.msra.mxu0 0.0
        %4589 = vmatprep.subr.mxu0 0.0
        %4590 = vmatpush1.msra.mxu0 0.0
        %4591 = vmatprep.subr.mxu0 0.0
        %4592 = vmatpush1.msra.mxu0 0.0
        %4593 = vmatprep.subr.mxu0 0.0
        %4594 = vmatpush1.msra.mxu0 0.0
        %4595 = vmatprep.subr.mxu0 0.0
        %4596 = vmatpush1.msra.mxu0 0.0
        %4597 = vmatprep.subr.mxu0 0.0
        %4598 = vmatpush1.msra.mxu0 0.0
        %4599 = vmatprep.subr.mxu0 0.0
        %4600 = vmatpush1.msra.mxu0 0.0
        %4601 = vmatprep.subr.mxu0 0.0
        %4602 = vmatpush1.msra.mxu0 0.0
        %4603 = vmatprep.subr.mxu0 0.0
        %4604 = vmatpush1.msra.mxu0 0.0
        %4605 = vmatprep.subr.mxu0 0.0
        %4606 = vmatpush1.msra.mxu0 0.0
        %4607 = vmatprep.subr.mxu0 0.0
        %4608 = vmatpush1.msra.mxu0 0.0
        %4609 = vmatprep.subr.mxu0 0.0
        %4610 = vmatpush1.msra.mxu0 0.0
        %4611 = vmatprep.subr.mxu0 0.0
        %4612 = vmatpush1.msra.mxu0 0.0
        %4613 = vmatprep.subr.mxu0 0.0
        %4614 = vmatpush1.msra.mxu0 0.0
        %4615 = vmatprep.subr.mxu0 0.0
        %4616 = vmatpush1.msra.mxu0 0.0
        %4617 = vmatprep.subr.mxu0 0.0
        %4618 = vmatpush1.msra.mxu0 0.0
        %4619 = vmatprep.subr.mxu0 0.0
        %4620 = vmatpush1.msra.mxu0 0.0
        %4621 = vmatprep.subr.mxu0 0.0
        %4622 = vmatpush1.msra.mxu0 0.0
        %4623 = vmatprep.subr.mxu0 0.0
        %4624 = vmatpush1.msra.mxu0 0.0
        %4625 = vmatprep.subr.mxu0 0.0
        %4626 = vmatpush1.msra.mxu0 0.0
        %4627 = vmatprep.subr.mxu0 0.0
        %4628 = vmatpush1.msra.mxu0 0.0
        %4629 = vmatprep.subr.mxu0 0.0
        %4630 = vmatpush1.msra.mxu0 0.0
        %4631 = vmatprep.subr.mxu0 0.0
        %4632 = vmatpush1.msra.mxu0 0.0
        %4633 = vmatprep.subr.mxu0 0.0
        %4634 = vmatpush1.msra.mxu0 0.0
        %4635 = vmatprep.subr.mxu0 0.0
        %4636 = vmatpush1.msra.mxu0 0.0
        %4637 = vmatprep.mubr.f32.mxu0 0.0
        %4638 = vmatmul.mubr.f32.gmra.mrb[0].mxu0 %v1304
        %v4639 = vpop.f32.mrb[0].mxu0
        %v4640 = vadd.f32 %v4570, %v4639
        %v4641 = vpop.f32.mrb[0].mxu0
        %4642 = vdwg.mxu0
        %s4643 = scalar_lea.vmem %s2, 32
        %v4644 = vld [vmem:[%s4643] sm:$0xff]
        %4645 = vmatprep.subr.mxu0 0.0
        %4646 = vmatpush1.msra.mxu0 %v4644
        %4647 = vmatprep.subr.mxu0 0.0
        %4648 = vmatpush1.msra.mxu0 0.0
        %4649 = vmatprep.subr.mxu0 0.0
        %4650 = vmatpush1.msra.mxu0 0.0
        %4651 = vmatprep.subr.mxu0 0.0
        %4652 = vmatpush1.msra.mxu0 0.0
        %4653 = vmatprep.subr.mxu0 0.0
        %4654 = vmatpush1.msra.mxu0 0.0
        %4655 = vmatprep.subr.mxu0 0.0
        %4656 = vmatpush1.msra.mxu0 0.0
        %4657 = vmatprep.subr.mxu0 0.0
        %4658 = vmatpush1.msra.mxu0 0.0
        %4659 = vmatprep.subr.mxu0 0.0
        %4660 = vmatpush1.msra.mxu0 0.0
        %4661 = vmatprep.subr.mxu0 0.0
        %4662 = vmatpush1.msra.mxu0 0.0
        %4663 = vmatprep.subr.mxu0 0.0
        %4664 = vmatpush1.msra.mxu0 0.0
        %4665 = vmatprep.subr.mxu0 0.0
        %4666 = vmatpush1.msra.mxu0 0.0
        %4667 = vmatprep.subr.mxu0 0.0
        %4668 = vmatpush1.msra.mxu0 0.0
        %4669 = vmatprep.subr.mxu0 0.0
        %4670 = vmatpush1.msra.mxu0 0.0
        %4671 = vmatprep.subr.mxu0 0.0
        %4672 = vmatpush1.msra.mxu0 0.0
        %4673 = vmatprep.subr.mxu0 0.0
        %4674 = vmatpush1.msra.mxu0 0.0
        %4675 = vmatprep.subr.mxu0 0.0
        %4676 = vmatpush1.msra.mxu0 0.0
        %4677 = vmatprep.subr.mxu0 0.0
        %4678 = vmatpush1.msra.mxu0 0.0
        %4679 = vmatprep.subr.mxu0 0.0
        %4680 = vmatpush1.msra.mxu0 0.0
        %4681 = vmatprep.subr.mxu0 0.0
        %4682 = vmatpush1.msra.mxu0 0.0
        %4683 = vmatprep.subr.mxu0 0.0
        %4684 = vmatpush1.msra.mxu0 0.0
        %4685 = vmatprep.subr.mxu0 0.0
        %4686 = vmatpush1.msra.mxu0 0.0
        %4687 = vmatprep.subr.mxu0 0.0
        %4688 = vmatpush1.msra.mxu0 0.0
        %4689 = vmatprep.subr.mxu0 0.0
        %4690 = vmatpush1.msra.mxu0 0.0
        %4691 = vmatprep.subr.mxu0 0.0
        %4692 = vmatpush1.msra.mxu0 0.0
        %4693 = vmatprep.subr.mxu0 0.0
        %4694 = vmatpush1.msra.mxu0 0.0
        %4695 = vmatprep.subr.mxu0 0.0
        %4696 = vmatpush1.msra.mxu0 0.0
        %4697 = vmatprep.subr.mxu0 0.0
        %4698 = vmatpush1.msra.mxu0 0.0
        %4699 = vmatprep.subr.mxu0 0.0
        %4700 = vmatpush1.msra.mxu0 0.0
        %4701 = vmatprep.subr.mxu0 0.0
        %4702 = vmatpush1.msra.mxu0 0.0
        %4703 = vmatprep.subr.mxu0 0.0
        %4704 = vmatpush1.msra.mxu0 0.0
        %4705 = vmatprep.subr.mxu0 0.0
        %4706 = vmatpush1.msra.mxu0 0.0
        %4707 = vmatprep.subr.mxu0 0.0
        %4708 = vmatpush1.msra.mxu0 0.0
        %4709 = vmatprep.mubr.f32.mxu0 0.0
        %4710 = vmatmul.mubr.f32.gmra.mrb[0].mxu0 %v1880
        %v4711 = vpop.f32.mrb[0].mxu0
        %v4712 = vadd.f32 0.0, %v4711
        %v4713 = vpop.f32.mrb[0].mxu0
        %4714 = vdwg.mxu0
        %v4715 = vadd.f32 %v4640, %v4712
        %v4716 = vld [vmem:[%s11] sm:$0xf]
        %v4717 = vld [vmem:[%s7] sm:$0xf]
        %v4718 = vld [vmem:[%s2] sm:$0xff]
        %s4719 = scalar_lea.vmem %s2, 8
        %v4720 = vld [vmem:[%s4719] sm:$0xff]
        %4721 = vmatprep.subr.mxu0 0.0
        %4722 = vmatpush1.msra.mxu0 %v4720
        %4723 = vmatprep.subr.mxu0 0.0
        %4724 = vmatpush1.msra.mxu0 0.0
        %4725 = vmatprep.subr.mxu0 0.0
        %4726 = vmatpush1.msra.mxu0 0.0
        %4727 = vmatprep.subr.mxu0 0.0
        %4728 = vmatpush1.msra.mxu0 0.0
        %4729 = vmatprep.subr.mxu0 0.0
        %4730 = vmatpush1.msra.mxu0 0.0
        %4731 = vmatprep.subr.mxu0 0.0
        %4732 = vmatpush1.msra.mxu0 0.0
        %4733 = vmatprep.subr.mxu0 0.0
        %4734 = vmatpush1.msra.mxu0 0.0
        %4735 = vmatprep.subr.mxu0 0.0
        %4736 = vmatpush1.msra.mxu0 0.0
        %4737 = vmatprep.subr.mxu0 0.0
        %4738 = vmatpush1.msra.mxu0 0.0
        %4739 = vmatprep.subr.mxu0 0.0
        %4740 = vmatpush1.msra.mxu0 0.0
        %4741 = vmatprep.subr.mxu0 0.0
        %4742 = vmatpush1.msra.mxu0 0.0
        %4743 = vmatprep.subr.mxu0 0.0
        %4744 = vmatpush1.msra.mxu0 0.0
        %4745 = vmatprep.subr.mxu0 0.0
        %4746 = vmatpush1.msra.mxu0 0.0
        %4747 = vmatprep.subr.mxu0 0.0
        %4748 = vmatpush1.msra.mxu0 0.0
        %4749 = vmatprep.subr.mxu0 0.0
        %4750 = vmatpush1.msra.mxu0 0.0
        %4751 = vmatprep.subr.mxu0 0.0
        %4752 = vmatpush1.msra.mxu0 0.0
        %4753 = vmatprep.subr.mxu0 0.0
        %4754 = vmatpush1.msra.mxu0 0.0
        %4755 = vmatprep.subr.mxu0 0.0
        %4756 = vmatpush1.msra.mxu0 0.0
        %4757 = vmatprep.subr.mxu0 0.0
        %4758 = vmatpush1.msra.mxu0 0.0
        %4759 = vmatprep.subr.mxu0 0.0
        %4760 = vmatpush1.msra.mxu0 0.0
        %4761 = vmatprep.subr.mxu0 0.0
        %4762 = vmatpush1.msra.mxu0 0.0
        %4763 = vmatprep.subr.mxu0 0.0
        %4764 = vmatpush1.msra.mxu0 0.0
        %4765 = vmatprep.subr.mxu0 0.0
        %4766 = vmatpush1.msra.mxu0 0.0
        %4767 = vmatprep.subr.mxu0 0.0
        %4768 = vmatpush1.msra.mxu0 0.0
        %4769 = vmatprep.subr.mxu0 0.0
        %4770 = vmatpush1.msra.mxu0 0.0
        %4771 = vmatprep.subr.mxu0 0.0
        %4772 = vmatpush1.msra.mxu0 0.0
        %4773 = vmatprep.subr.mxu0 0.0
        %4774 = vmatpush1.msra.mxu0 0.0
        %4775 = vmatprep.subr.mxu0 0.0
        %4776 = vmatpush1.msra.mxu0 0.0
        %4777 = vmatprep.subr.mxu0 0.0
        %4778 = vmatpush1.msra.mxu0 0.0
        %4779 = vmatprep.subr.mxu0 0.0
        %4780 = vmatpush1.msra.mxu0 0.0
        %4781 = vmatprep.subr.mxu0 0.0
        %4782 = vmatpush1.msra.mxu0 0.0
        %4783 = vmatprep.subr.mxu0 0.0
        %4784 = vmatpush1.msra.mxu0 0.0
        %4785 = vmatprep.mubr.f32.mxu0 0.0
        %4786 = vmatmul.mubr.f32.gmra.mrb[0].mxu0 %v1231
        %v4787 = vpop.f32.mrb[0].mxu0
        %v4788 = vadd.f32 0.0, %v4787
        %v4789 = vpop.f32.mrb[0].mxu0
        %4790 = vdwg.mxu0
        %4791 = vmatprep.subr.mxu0 0.0
        %4792 = vmatpush1.msra.mxu0 %v4718
        %4793 = vmatprep.subr.mxu0 0.0
        %4794 = vmatpush1.msra.mxu0 0.0
        %4795 = vmatprep.subr.mxu0 0.0
        %4796 = vmatpush1.msra.mxu0 0.0
        %4797 = vmatprep.subr.mxu0 0.0
        %4798 = vmatpush1.msra.mxu0 0.0
        %4799 = vmatprep.subr.mxu0 0.0
        %4800 = vmatpush1.msra.mxu0 0.0
        %4801 = vmatprep.subr.mxu0 0.0
        %4802 = vmatpush1.msra.mxu0 0.0
        %4803 = vmatprep.subr.mxu0 0.0
        %4804 = vmatpush1.msra.mxu0 0.0
        %4805 = vmatprep.subr.mxu0 0.0
        %4806 = vmatpush1.msra.mxu0 0.0
        %4807 = vmatprep.subr.mxu0 0.0
        %4808 = vmatpush1.msra.mxu0 0.0
        %4809 = vmatprep.subr.mxu0 0.0
        %4810 = vmatpush1.msra.mxu0 0.0
        %4811 = vmatprep.subr.mxu0 0.0
        %4812 = vmatpush1.msra.mxu0 0.0
        %4813 = vmatprep.subr.mxu0 0.0
        %4814 = vmatpush1.msra.mxu0 0.0
        %4815 = vmatprep.subr.mxu0 0.0
        %4816 = vmatpush1.msra.mxu0 0.0
        %4817 = vmatprep.subr.mxu0 0.0
        %4818 = vmatpush1.msra.mxu0 0.0
        %4819 = vmatprep.subr.mxu0 0.0
        %4820 = vmatpush1.msra.mxu0 0.0
        %4821 = vmatprep.subr.mxu0 0.0
        %4822 = vmatpush1.msra.mxu0 0.0
        %4823 = vmatprep.subr.mxu0 0.0
        %4824 = vmatpush1.msra.mxu0 0.0
        %4825 = vmatprep.subr.mxu0 0.0
        %4826 = vmatpush1.msra.mxu0 0.0
        %4827 = vmatprep.subr.mxu0 0.0
        %4828 = vmatpush1.msra.mxu0 0.0
        %4829 = vmatprep.subr.mxu0 0.0
        %4830 = vmatpush1.msra.mxu0 0.0
        %4831 = vmatprep.subr.mxu0 0.0
        %4832 = vmatpush1.msra.mxu0 0.0
        %4833 = vmatprep.subr.mxu0 0.0
        %4834 = vmatpush1.msra.mxu0 0.0
        %4835 = vmatprep.subr.mxu0 0.0
        %4836 = vmatpush1.msra.mxu0 0.0
        %4837 = vmatprep.subr.mxu0 0.0
        %4838 = vmatpush1.msra.mxu0 0.0
        %4839 = vmatprep.subr.mxu0 0.0
        %4840 = vmatpush1.msra.mxu0 0.0
        %4841 = vmatprep.subr.mxu0 0.0
        %4842 = vmatpush1.msra.mxu0 0.0
        %4843 = vmatprep.subr.mxu0 0.0
        %4844 = vmatpush1.msra.mxu0 0.0
        %4845 = vmatprep.subr.mxu0 0.0
        %4846 = vmatpush1.msra.mxu0 0.0
        %4847 = vmatprep.subr.mxu0 0.0
        %4848 = vmatpush1.msra.mxu0 0.0
        %4849 = vmatprep.subr.mxu0 0.0
        %4850 = vmatpush1.msra.mxu0 0.0
        %4851 = vmatprep.subr.mxu0 0.0
        %4852 = vmatpush1.msra.mxu0 0.0
        %4853 = vmatprep.subr.mxu0 0.0
        %4854 = vmatpush1.msra.mxu0 0.0
        %4855 = vmatprep.mubr.f32.mxu0 0.0
        %4856 = vmatmul.mubr.f32.gmra.mrb[0].mxu0 %v1304
        %v4857 = vpop.f32.mrb[0].mxu0
        %v4858 = vadd.f32 %v4788, %v4857
        %v4859 = vpop.f32.mrb[0].mxu0
        %4860 = vdwg.mxu0
        %4861 = vmatprep.subr.mxu0 0.0
        %4862 = vmatpush1.msra.mxu0 %v4500
        %4863 = vmatprep.subr.mxu0 0.0
        %4864 = vmatpush1.msra.mxu0 0.0
        %4865 = vmatprep.subr.mxu0 0.0
        %4866 = vmatpush1.msra.mxu0 0.0
        %4867 = vmatprep.subr.mxu0 0.0
        %4868 = vmatpush1.msra.mxu0 0.0
        %4869 = vmatprep.subr.mxu0 0.0
        %4870 = vmatpush1.msra.mxu0 0.0
        %4871 = vmatprep.subr.mxu0 0.0
        %4872 = vmatpush1.msra.mxu0 0.0
        %4873 = vmatprep.subr.mxu0 0.0
        %4874 = vmatpush1.msra.mxu0 0.0
        %4875 = vmatprep.subr.mxu0 0.0
        %4876 = vmatpush1.msra.mxu0 0.0
        %4877 = vmatprep.subr.mxu0 0.0
        %4878 = vmatpush1.msra.mxu0 0.0
        %4879 = vmatprep.subr.mxu0 0.0
        %4880 = vmatpush1.msra.mxu0 0.0
        %4881 = vmatprep.subr.mxu0 0.0
        %4882 = vmatpush1.msra.mxu0 0.0
        %4883 = vmatprep.subr.mxu0 0.0
        %4884 = vmatpush1.msra.mxu0 0.0
        %4885 = vmatprep.subr.mxu0 0.0
        %4886 = vmatpush1.msra.mxu0 0.0
        %4887 = vmatprep.subr.mxu0 0.0
        %4888 = vmatpush1.msra.mxu0 0.0
        %4889 = vmatprep.subr.mxu0 0.0
        %4890 = vmatpush1.msra.mxu0 0.0
        %4891 = vmatprep.subr.mxu0 0.0
        %4892 = vmatpush1.msra.mxu0 0.0
        %4893 = vmatprep.subr.mxu0 0.0
        %4894 = vmatpush1.msra.mxu0 0.0
        %4895 = vmatprep.subr.mxu0 0.0
        %4896 = vmatpush1.msra.mxu0 0.0
        %4897 = vmatprep.subr.mxu0 0.0
        %4898 = vmatpush1.msra.mxu0 0.0
        %4899 = vmatprep.subr.mxu0 0.0
        %4900 = vmatpush1.msra.mxu0 0.0
        %4901 = vmatprep.subr.mxu0 0.0
        %4902 = vmatpush1.msra.mxu0 0.0
        %4903 = vmatprep.subr.mxu0 0.0
        %4904 = vmatpush1.msra.mxu0 0.0
        %4905 = vmatprep.subr.mxu0 0.0
        %4906 = vmatpush1.msra.mxu0 0.0
        %4907 = vmatprep.subr.mxu0 0.0
        %4908 = vmatpush1.msra.mxu0 0.0
        %4909 = vmatprep.subr.mxu0 0.0
        %4910 = vmatpush1.msra.mxu0 0.0
        %4911 = vmatprep.subr.mxu0 0.0
        %4912 = vmatpush1.msra.mxu0 0.0
        %4913 = vmatprep.subr.mxu0 0.0
        %4914 = vmatpush1.msra.mxu0 0.0
        %4915 = vmatprep.subr.mxu0 0.0
        %4916 = vmatpush1.msra.mxu0 0.0
        %4917 = vmatprep.subr.mxu0 0.0
        %4918 = vmatpush1.msra.mxu0 0.0
        %4919 = vmatprep.subr.mxu0 0.0
        %4920 = vmatpush1.msra.mxu0 0.0
        %4921 = vmatprep.subr.mxu0 0.0
        %4922 = vmatpush1.msra.mxu0 0.0
        %4923 = vmatprep.subr.mxu0 0.0
        %4924 = vmatpush1.msra.mxu0 0.0
        %4925 = vmatprep.mubr.f32.mxu0 0.0
        %4926 = vmatmul.mubr.f32.gmra.mrb[0].mxu0 %v1880
        %v4927 = vpop.f32.mrb[0].mxu0
        %v4928 = vadd.f32 0.0, %v4927
        %v4929 = vpop.f32.mrb[0].mxu0
        %4930 = vdwg.mxu0
        %v4931 = vadd.f32 %v4858, %v4928
        %4932 = vmatprep.subr.mxu0 0.0
        %4933 = vmatpush1.msra.mxu0 %v4502
        %4934 = vmatprep.subr.mxu0 0.0
        %4935 = vmatpush1.msra.mxu0 0.0
        %4936 = vmatprep.subr.mxu0 0.0
        %4937 = vmatpush1.msra.mxu0 0.0
        %4938 = vmatprep.subr.mxu0 0.0
        %4939 = vmatpush1.msra.mxu0 0.0
        %4940 = vmatprep.subr.mxu0 0.0
        %4941 = vmatpush1.msra.mxu0 0.0
        %4942 = vmatprep.subr.mxu0 0.0
        %4943 = vmatpush1.msra.mxu0 0.0
        %4944 = vmatprep.subr.mxu0 0.0
        %4945 = vmatpush1.msra.mxu0 0.0
        %4946 = vmatprep.subr.mxu0 0.0
        %4947 = vmatpush1.msra.mxu0 0.0
        %4948 = vmatprep.subr.mxu0 0.0
        %4949 = vmatpush1.msra.mxu0 0.0
        %4950 = vmatprep.subr.mxu0 0.0
        %4951 = vmatpush1.msra.mxu0 0.0
        %4952 = vmatprep.subr.mxu0 0.0
        %4953 = vmatpush1.msra.mxu0 0.0
        %4954 = vmatprep.subr.mxu0 0.0
        %4955 = vmatpush1.msra.mxu0 0.0
        %4956 = vmatprep.subr.mxu0 0.0
        %4957 = vmatpush1.msra.mxu0 0.0
        %4958 = vmatprep.subr.mxu0 0.0
        %4959 = vmatpush1.msra.mxu0 0.0
        %4960 = vmatprep.subr.mxu0 0.0
        %4961 = vmatpush1.msra.mxu0 0.0
        %4962 = vmatprep.subr.mxu0 0.0
        %4963 = vmatpush1.msra.mxu0 0.0
        %4964 = vmatprep.subr.mxu0 0.0
        %4965 = vmatpush1.msra.mxu0 0.0
        %4966 = vmatprep.subr.mxu0 0.0
        %4967 = vmatpush1.msra.mxu0 0.0
        %4968 = vmatprep.subr.mxu0 0.0
        %4969 = vmatpush1.msra.mxu0 0.0
        %4970 = vmatprep.subr.mxu0 0.0
        %4971 = vmatpush1.msra.mxu0 0.0
        %4972 = vmatprep.subr.mxu0 0.0
        %4973 = vmatpush1.msra.mxu0 0.0
        %4974 = vmatprep.subr.mxu0 0.0
        %4975 = vmatpush1.msra.mxu0 0.0
        %4976 = vmatprep.subr.mxu0 0.0
        %4977 = vmatpush1.msra.mxu0 0.0
        %4978 = vmatprep.subr.mxu0 0.0
        %4979 = vmatpush1.msra.mxu0 0.0
        %4980 = vmatprep.subr.mxu0 0.0
        %4981 = vmatpush1.msra.mxu0 0.0
        %4982 = vmatprep.subr.mxu0 0.0
        %4983 = vmatpush1.msra.mxu0 0.0
        %4984 = vmatprep.subr.mxu0 0.0
        %4985 = vmatpush1.msra.mxu0 0.0
        %4986 = vmatprep.subr.mxu0 0.0
        %4987 = vmatpush1.msra.mxu0 0.0
        %4988 = vmatprep.subr.mxu0 0.0
        %4989 = vmatpush1.msra.mxu0 0.0
        %4990 = vmatprep.subr.mxu0 0.0
        %4991 = vmatpush1.msra.mxu0 0.0
        %4992 = vmatprep.subr.mxu0 0.0
        %4993 = vmatpush1.msra.mxu0 0.0
        %4994 = vmatprep.subr.mxu0 0.0
        %4995 = vmatpush1.msra.mxu0 0.0
        %4996 = vmatprep.mubr.f32.mxu0 0.0
        %4997 = vmatmul.mubr.f32.gmra.mrb[0].mxu0 %v2386
        %v4998 = vpop.f32.mrb[0].mxu0
        %v4999 = vadd.f32 0.0, %v4998
        %v5000 = vpop.f32.mrb[0].mxu0
        %5001 = vdwg.mxu0
        %v5002 = vadd.f32 %v4931, %v4999
        %5003 = vmatprep.subr.mxu0 0.0
        %5004 = vmatpush1.msra.mxu0 %v4644
        %5005 = vmatprep.subr.mxu0 0.0
        %5006 = vmatpush1.msra.mxu0 0.0
        %5007 = vmatprep.subr.mxu0 0.0
        %5008 = vmatpush1.msra.mxu0 0.0
        %5009 = vmatprep.subr.mxu0 0.0
        %5010 = vmatpush1.msra.mxu0 0.0
        %5011 = vmatprep.subr.mxu0 0.0
        %5012 = vmatpush1.msra.mxu0 0.0
        %5013 = vmatprep.subr.mxu0 0.0
        %5014 = vmatpush1.msra.mxu0 0.0
        %5015 = vmatprep.subr.mxu0 0.0
        %5016 = vmatpush1.msra.mxu0 0.0
        %5017 = vmatprep.subr.mxu0 0.0
        %5018 = vmatpush1.msra.mxu0 0.0
        %5019 = vmatprep.subr.mxu0 0.0
        %5020 = vmatpush1.msra.mxu0 0.0
        %5021 = vmatprep.subr.mxu0 0.0
        %5022 = vmatpush1.msra.mxu0 0.0
        %5023 = vmatprep.subr.mxu0 0.0
        %5024 = vmatpush1.msra.mxu0 0.0
        %5025 = vmatprep.subr.mxu0 0.0
        %5026 = vmatpush1.msra.mxu0 0.0
        %5027 = vmatprep.subr.mxu0 0.0
        %5028 = vmatpush1.msra.mxu0 0.0
        %5029 = vmatprep.subr.mxu0 0.0
        %5030 = vmatpush1.msra.mxu0 0.0
        %5031 = vmatprep.subr.mxu0 0.0
        %5032 = vmatpush1.msra.mxu0 0.0
        %5033 = vmatprep.subr.mxu0 0.0
        %5034 = vmatpush1.msra.mxu0 0.0
        %5035 = vmatprep.subr.mxu0 0.0
        %5036 = vmatpush1.msra.mxu0 0.0
        %5037 = vmatprep.subr.mxu0 0.0
        %5038 = vmatpush1.msra.mxu0 0.0
        %5039 = vmatprep.subr.mxu0 0.0
        %5040 = vmatpush1.msra.mxu0 0.0
        %5041 = vmatprep.subr.mxu0 0.0
        %5042 = vmatpush1.msra.mxu0 0.0
        %5043 = vmatprep.subr.mxu0 0.0
        %5044 = vmatpush1.msra.mxu0 0.0
        %5045 = vmatprep.subr.mxu0 0.0
        %5046 = vmatpush1.msra.mxu0 0.0
        %5047 = vmatprep.subr.mxu0 0.0
        %5048 = vmatpush1.msra.mxu0 0.0
        %5049 = vmatprep.subr.mxu0 0.0
        %5050 = vmatpush1.msra.mxu0 0.0
        %5051 = vmatprep.subr.mxu0 0.0
        %5052 = vmatpush1.msra.mxu0 0.0
        %5053 = vmatprep.subr.mxu0 0.0
        %5054 = vmatpush1.msra.mxu0 0.0
        %5055 = vmatprep.subr.mxu0 0.0
        %5056 = vmatpush1.msra.mxu0 0.0
        %5057 = vmatprep.subr.mxu0 0.0
        %5058 = vmatpush1.msra.mxu0 0.0
        %5059 = vmatprep.subr.mxu0 0.0
        %5060 = vmatpush1.msra.mxu0 0.0
        %5061 = vmatprep.subr.mxu0 0.0
        %5062 = vmatpush1.msra.mxu0 0.0
        %5063 = vmatprep.subr.mxu0 0.0
        %5064 = vmatpush1.msra.mxu0 0.0
        %5065 = vmatprep.subr.mxu0 0.0
        %5066 = vmatpush1.msra.mxu0 0.0
        %5067 = vmatprep.mubr.f32.mxu0 0.0
        %5068 = vmatmul.mubr.f32.gmra.mrb[0].mxu0 %v2894
        %v5069 = vpop.f32.mrb[0].mxu0
        %v5070 = vadd.f32 0.0, %v5069
        %v5071 = vpop.f32.mrb[0].mxu0
        %5072 = vdwg.mxu0
        %v5073 = vadd.f32 %v5002, %v5070
        %v5074 = vld [vmem:[%s11 + $0x4] sm:$0xf]
        %vm5075 = vcmask 31744
        %v5077 = vsel %vm5075, %v5073, 0
        %vm5079 = vcmask 1043456
        %v5081 = vsel %vm5079, %v5074, 0
        %5083 = vmatprep.subr.mxu0 0.0
        %5084 = vmatpush1.msra.mxu0 %v5081
        %5085 = vmatprep.subr.mxu0 0.0
        %5086 = vmatpush1.msra.mxu0 0.0
        %5087 = vmatprep.subr.mxu0 0.0
        %5088 = vmatpush1.msra.mxu0 0.0
        %5089 = vmatprep.subr.mxu0 0.0
        %5090 = vmatpush1.msra.mxu0 0.0
        %5091 = vmatprep.subr.mxu0 0.0
        %5092 = vmatpush1.msra.mxu0 0.0
        %5093 = vmatprep.subr.mxu0 0.0
        %5094 = vmatpush1.msra.mxu0 0.0
        %5095 = vmatprep.subr.mxu0 0.0
        %5096 = vmatpush1.msra.mxu0 0.0
        %5097 = vmatprep.subr.mxu0 0.0
        %5098 = vmatpush1.msra.mxu0 0.0
        %5099 = vmatprep.subr.mxu0 0.0
        %5100 = vmatpush1.msra.mxu0 0.0
        %5101 = vmatprep.subr.mxu0 0.0
        %5102 = vmatpush1.msra.mxu0 0.0
        %5103 = vmatprep.subr.mxu0 0.0
        %5104 = vmatpush1.msra.mxu0 0.0
        %5105 = vmatprep.subr.mxu0 0.0
        %5106 = vmatpush1.msra.mxu0 0.0
        %5107 = vmatprep.subr.mxu0 0.0
        %5108 = vmatpush1.msra.mxu0 0.0
        %5109 = vmatprep.subr.mxu0 0.0
        %5110 = vmatpush1.msra.mxu0 0.0
        %5111 = vmatprep.subr.mxu0 0.0
        %5112 = vmatpush1.msra.mxu0 0.0
        %5113 = vmatprep.subr.mxu0 0.0
        %5114 = vmatpush1.msra.mxu0 0.0
        %5115 = vmatprep.subr.mxu0 0.0
        %5116 = vmatpush1.msra.mxu0 0.0
        %5117 = vmatprep.subr.mxu0 0.0
        %5118 = vmatpush1.msra.mxu0 0.0
        %5119 = vmatprep.subr.mxu0 0.0
        %5120 = vmatpush1.msra.mxu0 0.0
        %5121 = vmatprep.subr.mxu0 0.0
        %5122 = vmatpush1.msra.mxu0 0.0
        %5123 = vmatprep.subr.mxu0 0.0
        %5124 = vmatpush1.msra.mxu0 0.0
        %5125 = vmatprep.subr.mxu0 0.0
        %5126 = vmatpush1.msra.mxu0 0.0
        %5127 = vmatprep.subr.mxu0 0.0
        %5128 = vmatpush1.msra.mxu0 0.0
        %5129 = vmatprep.subr.mxu0 0.0
        %5130 = vmatpush1.msra.mxu0 0.0
        %5131 = vmatprep.subr.mxu0 0.0
        %5132 = vmatpush1.msra.mxu0 0.0
        %5133 = vmatprep.subr.mxu0 0.0
        %5134 = vmatpush1.msra.mxu0 0.0
        %5135 = vmatprep.subr.mxu0 0.0
        %5136 = vmatpush1.msra.mxu0 0.0
        %5137 = vmatprep.subr.mxu0 0.0
        %5138 = vmatpush1.msra.mxu0 0.0
        %5139 = vmatprep.subr.mxu0 0.0
        %5140 = vmatpush1.msra.mxu0 0.0
        %5141 = vmatprep.subr.mxu0 0.0
        %5142 = vmatpush1.msra.mxu0 0.0
        %5143 = vmatprep.subr.mxu0 0.0
        %5144 = vmatpush1.msra.mxu0 0.0
        %5145 = vmatprep.subr.mxu0 0.0
        %5146 = vmatpush1.msra.mxu0 0.0
        %5147 = vmatprep.mubr.f32.mxu0 0.0
        %5148 = vmatmul.mubr.f32.gmra.mrb[0].mxu0 %v5077
        %v5149 = vpop.f32.mrb[0].mxu0
        %v5150 = vadd.f32 0.0, %v5149
        %v5151 = vpop.f32.mrb[0].mxu0
        %5152 = vdwg.mxu0
        %v5154 = vsel %vm5075, %v4715, 0
        %v5157 = vsel %vm5079, %v4716, 0
        %5159 = vmatprep.subr.mxu0 0.0
        %5160 = vmatpush1.msra.mxu0 %v5157
        %5161 = vmatprep.subr.mxu0 0.0
        %5162 = vmatpush1.msra.mxu0 0.0
        %5163 = vmatprep.subr.mxu0 0.0
        %5164 = vmatpush1.msra.mxu0 0.0
        %5165 = vmatprep.subr.mxu0 0.0
        %5166 = vmatpush1.msra.mxu0 0.0
        %5167 = vmatprep.subr.mxu0 0.0
        %5168 = vmatpush1.msra.mxu0 0.0
        %5169 = vmatprep.subr.mxu0 0.0
        %5170 = vmatpush1.msra.mxu0 0.0
        %5171 = vmatprep.subr.mxu0 0.0
        %5172 = vmatpush1.msra.mxu0 0.0
        %5173 = vmatprep.subr.mxu0 0.0
        %5174 = vmatpush1.msra.mxu0 0.0
        %5175 = vmatprep.subr.mxu0 0.0
        %5176 = vmatpush1.msra.mxu0 0.0
        %5177 = vmatprep.subr.mxu0 0.0
        %5178 = vmatpush1.msra.mxu0 0.0
        %5179 = vmatprep.subr.mxu0 0.0
        %5180 = vmatpush1.msra.mxu0 0.0
        %5181 = vmatprep.subr.mxu0 0.0
        %5182 = vmatpush1.msra.mxu0 0.0
        %5183 = vmatprep.subr.mxu0 0.0
        %5184 = vmatpush1.msra.mxu0 0.0
        %5185 = vmatprep.subr.mxu0 0.0
        %5186 = vmatpush1.msra.mxu0 0.0
        %5187 = vmatprep.subr.mxu0 0.0
        %5188 = vmatpush1.msra.mxu0 0.0
        %5189 = vmatprep.subr.mxu0 0.0
        %5190 = vmatpush1.msra.mxu0 0.0
        %5191 = vmatprep.subr.mxu0 0.0
        %5192 = vmatpush1.msra.mxu0 0.0
        %5193 = vmatprep.subr.mxu0 0.0
        %5194 = vmatpush1.msra.mxu0 0.0
        %5195 = vmatprep.subr.mxu0 0.0
        %5196 = vmatpush1.msra.mxu0 0.0
        %5197 = vmatprep.subr.mxu0 0.0
        %5198 = vmatpush1.msra.mxu0 0.0
        %5199 = vmatprep.subr.mxu0 0.0
        %5200 = vmatpush1.msra.mxu0 0.0
        %5201 = vmatprep.subr.mxu0 0.0
        %5202 = vmatpush1.msra.mxu0 0.0
        %5203 = vmatprep.subr.mxu0 0.0
        %5204 = vmatpush1.msra.mxu0 0.0
        %5205 = vmatprep.subr.mxu0 0.0
        %5206 = vmatpush1.msra.mxu0 0.0
        %5207 = vmatprep.subr.mxu0 0.0
        %5208 = vmatpush1.msra.mxu0 0.0
        %5209 = vmatprep.subr.mxu0 0.0
        %5210 = vmatpush1.msra.mxu0 0.0
        %5211 = vmatprep.subr.mxu0 0.0
        %5212 = vmatpush1.msra.mxu0 0.0
        %5213 = vmatprep.subr.mxu0 0.0
        %5214 = vmatpush1.msra.mxu0 0.0
        %5215 = vmatprep.subr.mxu0 0.0
        %5216 = vmatpush1.msra.mxu0 0.0
        %5217 = vmatprep.subr.mxu0 0.0
        %5218 = vmatpush1.msra.mxu0 0.0
        %5219 = vmatprep.subr.mxu0 0.0
        %5220 = vmatpush1.msra.mxu0 0.0
        %5221 = vmatprep.subr.mxu0 0.0
        %5222 = vmatpush1.msra.mxu0 0.0
        %5223 = vmatprep.mubr.f32.mxu0 0.0
        %5224 = vmatmul.mubr.f32.gmra.mrb[0].mxu0 %v5154
        %v5225 = vpop.f32.mrb[0].mxu0
        %v5226 = vadd.f32 %v5150, %v5225
        %v5227 = vpop.f32.mrb[0].mxu0
        %5228 = vdwg.mxu0
        %v5229 = vld [vmem:[%s7 + $0x4] sm:$0xf]
        %v5231 = vsel %vm5079, %v5229, 0
        %5233 = vmatprep.subr.mxu0 0.0
        %5234 = vmatpush1.msra.mxu0 %v5231
        %5235 = vmatprep.subr.mxu0 0.0
        %5236 = vmatpush1.msra.mxu0 0.0
        %5237 = vmatprep.subr.mxu0 0.0
        %5238 = vmatpush1.msra.mxu0 0.0
        %5239 = vmatprep.subr.mxu0 0.0
        %5240 = vmatpush1.msra.mxu0 0.0
        %5241 = vmatprep.subr.mxu0 0.0
        %5242 = vmatpush1.msra.mxu0 0.0
        %5243 = vmatprep.subr.mxu0 0.0
        %5244 = vmatpush1.msra.mxu0 0.0
        %5245 = vmatprep.subr.mxu0 0.0
        %5246 = vmatpush1.msra.mxu0 0.0
        %5247 = vmatprep.subr.mxu0 0.0
        %5248 = vmatpush1.msra.mxu0 0.0
        %5249 = vmatprep.subr.mxu0 0.0
        %5250 = vmatpush1.msra.mxu0 0.0
        %5251 = vmatprep.subr.mxu0 0.0
        %5252 = vmatpush1.msra.mxu0 0.0
        %5253 = vmatprep.subr.mxu0 0.0
        %5254 = vmatpush1.msra.mxu0 0.0
        %5255 = vmatprep.subr.mxu0 0.0
        %5256 = vmatpush1.msra.mxu0 0.0
        %5257 = vmatprep.subr.mxu0 0.0
        %5258 = vmatpush1.msra.mxu0 0.0
        %5259 = vmatprep.subr.mxu0 0.0
        %5260 = vmatpush1.msra.mxu0 0.0
        %5261 = vmatprep.subr.mxu0 0.0
        %5262 = vmatpush1.msra.mxu0 0.0
        %5263 = vmatprep.subr.mxu0 0.0
        %5264 = vmatpush1.msra.mxu0 0.0
        %5265 = vmatprep.subr.mxu0 0.0
        %5266 = vmatpush1.msra.mxu0 0.0
        %5267 = vmatprep.subr.mxu0 0.0
        %5268 = vmatpush1.msra.mxu0 0.0
        %5269 = vmatprep.subr.mxu0 0.0
        %5270 = vmatpush1.msra.mxu0 0.0
        %5271 = vmatprep.subr.mxu0 0.0
        %5272 = vmatpush1.msra.mxu0 0.0
        %5273 = vmatprep.subr.mxu0 0.0
        %5274 = vmatpush1.msra.mxu0 0.0
        %5275 = vmatprep.subr.mxu0 0.0
        %5276 = vmatpush1.msra.mxu0 0.0
        %5277 = vmatprep.subr.mxu0 0.0
        %5278 = vmatpush1.msra.mxu0 0.0
        %5279 = vmatprep.subr.mxu0 0.0
        %5280 = vmatpush1.msra.mxu0 0.0
        %5281 = vmatprep.subr.mxu0 0.0
        %5282 = vmatpush1.msra.mxu0 0.0
        %5283 = vmatprep.subr.mxu0 0.0
        %5284 = vmatpush1.msra.mxu0 0.0
        %5285 = vmatprep.subr.mxu0 0.0
        %5286 = vmatpush1.msra.mxu0 0.0
        %5287 = vmatprep.subr.mxu0 0.0
        %5288 = vmatpush1.msra.mxu0 0.0
        %5289 = vmatprep.subr.mxu0 0.0
        %5290 = vmatpush1.msra.mxu0 0.0
        %5291 = vmatprep.subr.mxu0 0.0
        %5292 = vmatpush1.msra.mxu0 0.0
        %5293 = vmatprep.subr.mxu0 0.0
        %5294 = vmatpush1.msra.mxu0 0.0
        %5295 = vmatprep.subr.mxu0 0.0
        %5296 = vmatpush1.msra.mxu0 0.0
        %5297 = vmatprep.mubr.f32.mxu0 0.0
        %5298 = vmatmul.mubr.f32.gmra.mrb[0].mxu0 %v5077
        %v5299 = vpop.f32.mrb[0].mxu0
        %v5300 = vadd.f32 0.0, %v5299
        %v5301 = vpop.f32.mrb[0].mxu0
        %5302 = vdwg.mxu0
        %v5304 = vsel %vm5079, %v4717, 0
        %5306 = vmatprep.subr.mxu0 0.0
        %5307 = vmatpush1.msra.mxu0 %v5304
        %5308 = vmatprep.subr.mxu0 0.0
        %5309 = vmatpush1.msra.mxu0 0.0
        %5310 = vmatprep.subr.mxu0 0.0
        %5311 = vmatpush1.msra.mxu0 0.0
        %5312 = vmatprep.subr.mxu0 0.0
        %5313 = vmatpush1.msra.mxu0 0.0
        %5314 = vmatprep.subr.mxu0 0.0
        %5315 = vmatpush1.msra.mxu0 0.0
        %5316 = vmatprep.subr.mxu0 0.0
        %5317 = vmatpush1.msra.mxu0 0.0
        %5318 = vmatprep.subr.mxu0 0.0
        %5319 = vmatpush1.msra.mxu0 0.0
        %5320 = vmatprep.subr.mxu0 0.0
        %5321 = vmatpush1.msra.mxu0 0.0
        %5322 = vmatprep.subr.mxu0 0.0
        %5323 = vmatpush1.msra.mxu0 0.0
        %5324 = vmatprep.subr.mxu0 0.0
        %5325 = vmatpush1.msra.mxu0 0.0
        %5326 = vmatprep.subr.mxu0 0.0
        %5327 = vmatpush1.msra.mxu0 0.0
        %5328 = vmatprep.subr.mxu0 0.0
        %5329 = vmatpush1.msra.mxu0 0.0
        %5330 = vmatprep.subr.mxu0 0.0
        %5331 = vmatpush1.msra.mxu0 0.0
        %5332 = vmatprep.subr.mxu0 0.0
        %5333 = vmatpush1.msra.mxu0 0.0
        %5334 = vmatprep.subr.mxu0 0.0
        %5335 = vmatpush1.msra.mxu0 0.0
        %5336 = vmatprep.subr.mxu0 0.0
        %5337 = vmatpush1.msra.mxu0 0.0
        %5338 = vmatprep.subr.mxu0 0.0
        %5339 = vmatpush1.msra.mxu0 0.0
        %5340 = vmatprep.subr.mxu0 0.0
        %5341 = vmatpush1.msra.mxu0 0.0
        %5342 = vmatprep.subr.mxu0 0.0
        %5343 = vmatpush1.msra.mxu0 0.0
        %5344 = vmatprep.subr.mxu0 0.0
        %5345 = vmatpush1.msra.mxu0 0.0
        %5346 = vmatprep.subr.mxu0 0.0
        %5347 = vmatpush1.msra.mxu0 0.0
        %5348 = vmatprep.subr.mxu0 0.0
        %5349 = vmatpush1.msra.mxu0 0.0
        %5350 = vmatprep.subr.mxu0 0.0
        %5351 = vmatpush1.msra.mxu0 0.0
        %5352 = vmatprep.subr.mxu0 0.0
        %5353 = vmatpush1.msra.mxu0 0.0
        %5354 = vmatprep.subr.mxu0 0.0
        %5355 = vmatpush1.msra.mxu0 0.0
        %5356 = vmatprep.subr.mxu0 0.0
        %5357 = vmatpush1.msra.mxu0 0.0
        %5358 = vmatprep.subr.mxu0 0.0
        %5359 = vmatpush1.msra.mxu0 0.0
        %5360 = vmatprep.subr.mxu0 0.0
        %5361 = vmatpush1.msra.mxu0 0.0
        %5362 = vmatprep.subr.mxu0 0.0
        %5363 = vmatpush1.msra.mxu0 0.0
        %5364 = vmatprep.subr.mxu0 0.0
        %5365 = vmatpush1.msra.mxu0 0.0
        %5366 = vmatprep.subr.mxu0 0.0
        %5367 = vmatpush1.msra.mxu0 0.0
        %5368 = vmatprep.subr.mxu0 0.0
        %5369 = vmatpush1.msra.mxu0 0.0
        %5370 = vmatprep.mubr.f32.mxu0 0.0
        %5371 = vmatmul.mubr.f32.gmra.mrb[0].mxu0 %v5154
        %v5372 = vpop.f32.mrb[0].mxu0
        %v5373 = vadd.f32 %v5300, %v5372
        %v5374 = vpop.f32.mrb[0].mxu0
        %5375 = vdwg.mxu0
        %5376 = vmatprep.subr.mxu0 0.0
        %5377 = vmatpush1.msra.mxu0 %v4720
        %5378 = vmatprep.subr.mxu0 0.0
        %5379 = vmatpush1.msra.mxu0 0.0
        %5380 = vmatprep.subr.mxu0 0.0
        %5381 = vmatpush1.msra.mxu0 0.0
        %5382 = vmatprep.subr.mxu0 0.0
        %5383 = vmatpush1.msra.mxu0 0.0
        %5384 = vmatprep.subr.mxu0 0.0
        %5385 = vmatpush1.msra.mxu0 0.0
        %5386 = vmatprep.subr.mxu0 0.0
        %5387 = vmatpush1.msra.mxu0 0.0
        %5388 = vmatprep.subr.mxu0 0.0
        %5389 = vmatpush1.msra.mxu0 0.0
        %5390 = vmatprep.subr.mxu0 0.0
        %5391 = vmatpush1.msra.mxu0 0.0
        %5392 = vmatprep.subr.mxu0 0.0
        %5393 = vmatpush1.msra.mxu0 0.0
        %5394 = vmatprep.subr.mxu0 0.0
        %5395 = vmatpush1.msra.mxu0 0.0
        %5396 = vmatprep.subr.mxu0 0.0
        %5397 = vmatpush1.msra.mxu0 0.0
        %5398 = vmatprep.subr.mxu0 0.0
        %5399 = vmatpush1.msra.mxu0 0.0
        %5400 = vmatprep.subr.mxu0 0.0
        %5401 = vmatpush1.msra.mxu0 0.0
        %5402 = vmatprep.subr.mxu0 0.0
        %5403 = vmatpush1.msra.mxu0 0.0
        %5404 = vmatprep.subr.mxu0 0.0
        %5405 = vmatpush1.msra.mxu0 0.0
        %5406 = vmatprep.subr.mxu0 0.0
        %5407 = vmatpush1.msra.mxu0 0.0
        %5408 = vmatprep.subr.mxu0 0.0
        %5409 = vmatpush1.msra.mxu0 0.0
        %5410 = vmatprep.subr.mxu0 0.0
        %5411 = vmatpush1.msra.mxu0 0.0
        %5412 = vmatprep.subr.mxu0 0.0
        %5413 = vmatpush1.msra.mxu0 0.0
        %5414 = vmatprep.subr.mxu0 0.0
        %5415 = vmatpush1.msra.mxu0 0.0
        %5416 = vmatprep.subr.mxu0 0.0
        %5417 = vmatpush1.msra.mxu0 0.0
        %5418 = vmatprep.subr.mxu0 0.0
        %5419 = vmatpush1.msra.mxu0 0.0
        %5420 = vmatprep.subr.mxu0 0.0
        %5421 = vmatpush1.msra.mxu0 0.0
        %5422 = vmatprep.subr.mxu0 0.0
        %5423 = vmatpush1.msra.mxu0 0.0
        %5424 = vmatprep.subr.mxu0 0.0
        %5425 = vmatpush1.msra.mxu0 0.0
        %5426 = vmatprep.subr.mxu0 0.0
        %5427 = vmatpush1.msra.mxu0 0.0
        %5428 = vmatprep.subr.mxu0 0.0
        %5429 = vmatpush1.msra.mxu0 0.0
        %5430 = vmatprep.subr.mxu0 0.0
        %5431 = vmatpush1.msra.mxu0 0.0
        %5432 = vmatprep.subr.mxu0 0.0
        %5433 = vmatpush1.msra.mxu0 0.0
        %5434 = vmatprep.subr.mxu0 0.0
        %5435 = vmatpush1.msra.mxu0 0.0
        %5436 = vmatprep.subr.mxu0 0.0
        %5437 = vmatpush1.msra.mxu0 0.0
        %5438 = vmatprep.subr.mxu0 0.0
        %5439 = vmatpush1.msra.mxu0 0.0
        %5440 = vmatprep.mubr.f32.mxu0 0.0
        %5441 = vmatmul.mubr.f32.gmra.mrb[0].mxu0 %v2386
        %v5442 = vpop.f32.mrb[0].mxu0
        %v5443 = vadd.f32 0.0, %v5442
        %v5444 = vpop.f32.mrb[0].mxu0
        %5445 = vdwg.mxu0
        %5446 = vmatprep.subr.mxu0 0.0
        %5447 = vmatpush1.msra.mxu0 %v4718
        %5448 = vmatprep.subr.mxu0 0.0
        %5449 = vmatpush1.msra.mxu0 0.0
        %5450 = vmatprep.subr.mxu0 0.0
        %5451 = vmatpush1.msra.mxu0 0.0
        %5452 = vmatprep.subr.mxu0 0.0
        %5453 = vmatpush1.msra.mxu0 0.0
        %5454 = vmatprep.subr.mxu0 0.0
        %5455 = vmatpush1.msra.mxu0 0.0
        %5456 = vmatprep.subr.mxu0 0.0
        %5457 = vmatpush1.msra.mxu0 0.0
        %5458 = vmatprep.subr.mxu0 0.0
        %5459 = vmatpush1.msra.mxu0 0.0
        %5460 = vmatprep.subr.mxu0 0.0
        %5461 = vmatpush1.msra.mxu0 0.0
        %5462 = vmatprep.subr.mxu0 0.0
        %5463 = vmatpush1.msra.mxu0 0.0
        %5464 = vmatprep.subr.mxu0 0.0
        %5465 = vmatpush1.msra.mxu0 0.0
        %5466 = vmatprep.subr.mxu0 0.0
        %5467 = vmatpush1.msra.mxu0 0.0
        %5468 = vmatprep.subr.mxu0 0.0
        %5469 = vmatpush1.msra.mxu0 0.0
        %5470 = vmatprep.subr.mxu0 0.0
        %5471 = vmatpush1.msra.mxu0 0.0
        %5472 = vmatprep.subr.mxu0 0.0
        %5473 = vmatpush1.msra.mxu0 0.0
        %5474 = vmatprep.subr.mxu0 0.0
        %5475 = vmatpush1.msra.mxu0 0.0
        %5476 = vmatprep.subr.mxu0 0.0
        %5477 = vmatpush1.msra.mxu0 0.0
        %5478 = vmatprep.subr.mxu0 0.0
        %5479 = vmatpush1.msra.mxu0 0.0
        %5480 = vmatprep.subr.mxu0 0.0
        %5481 = vmatpush1.msra.mxu0 0.0
        %5482 = vmatprep.subr.mxu0 0.0
        %5483 = vmatpush1.msra.mxu0 0.0
        %5484 = vmatprep.subr.mxu0 0.0
        %5485 = vmatpush1.msra.mxu0 0.0
        %5486 = vmatprep.subr.mxu0 0.0
        %5487 = vmatpush1.msra.mxu0 0.0
        %5488 = vmatprep.subr.mxu0 0.0
        %5489 = vmatpush1.msra.mxu0 0.0
        %5490 = vmatprep.subr.mxu0 0.0
        %5491 = vmatpush1.msra.mxu0 0.0
        %5492 = vmatprep.subr.mxu0 0.0
        %5493 = vmatpush1.msra.mxu0 0.0
        %5494 = vmatprep.subr.mxu0 0.0
        %5495 = vmatpush1.msra.mxu0 0.0
        %5496 = vmatprep.subr.mxu0 0.0
        %5497 = vmatpush1.msra.mxu0 0.0
        %5498 = vmatprep.subr.mxu0 0.0
        %5499 = vmatpush1.msra.mxu0 0.0
        %5500 = vmatprep.subr.mxu0 0.0
        %5501 = vmatpush1.msra.mxu0 0.0
        %5502 = vmatprep.subr.mxu0 0.0
        %5503 = vmatpush1.msra.mxu0 0.0
        %5504 = vmatprep.subr.mxu0 0.0
        %5505 = vmatpush1.msra.mxu0 0.0
        %5506 = vmatprep.subr.mxu0 0.0
        %5507 = vmatpush1.msra.mxu0 0.0
        %5508 = vmatprep.subr.mxu0 0.0
        %5509 = vmatpush1.msra.mxu0 0.0
        %5510 = vmatprep.mubr.f32.mxu0 0.0
        %5511 = vmatmul.mubr.f32.gmra.mrb[0].mxu0 %v1880
        %v5512 = vpop.f32.mrb[0].mxu0
        %v5513 = vadd.f32 %v5443, %v5512
        %v5514 = vpop.f32.mrb[0].mxu0
        %5515 = vdwg.mxu0
        %5516 = vmatprep.subr.mxu0 0.0
        %5517 = vmatpush1.msra.mxu0 %v4500
        %5518 = vmatprep.subr.mxu0 0.0
        %5519 = vmatpush1.msra.mxu0 0.0
        %5520 = vmatprep.subr.mxu0 0.0
        %5521 = vmatpush1.msra.mxu0 0.0
        %5522 = vmatprep.subr.mxu0 0.0
        %5523 = vmatpush1.msra.mxu0 0.0
        %5524 = vmatprep.subr.mxu0 0.0
        %5525 = vmatpush1.msra.mxu0 0.0
        %5526 = vmatprep.subr.mxu0 0.0
        %5527 = vmatpush1.msra.mxu0 0.0
        %5528 = vmatprep.subr.mxu0 0.0
        %5529 = vmatpush1.msra.mxu0 0.0
        %5530 = vmatprep.subr.mxu0 0.0
        %5531 = vmatpush1.msra.mxu0 0.0
        %5532 = vmatprep.subr.mxu0 0.0
        %5533 = vmatpush1.msra.mxu0 0.0
        %5534 = vmatprep.subr.mxu0 0.0
        %5535 = vmatpush1.msra.mxu0 0.0
        %5536 = vmatprep.subr.mxu0 0.0
        %5537 = vmatpush1.msra.mxu0 0.0
        %5538 = vmatprep.subr.mxu0 0.0
        %5539 = vmatpush1.msra.mxu0 0.0
        %5540 = vmatprep.subr.mxu0 0.0
        %5541 = vmatpush1.msra.mxu0 0.0
        %5542 = vmatprep.subr.mxu0 0.0
        %5543 = vmatpush1.msra.mxu0 0.0
        %5544 = vmatprep.subr.mxu0 0.0
        %5545 = vmatpush1.msra.mxu0 0.0
        %5546 = vmatprep.subr.mxu0 0.0
        %5547 = vmatpush1.msra.mxu0 0.0
        %5548 = vmatprep.subr.mxu0 0.0
        %5549 = vmatpush1.msra.mxu0 0.0
        %5550 = vmatprep.subr.mxu0 0.0
        %5551 = vmatpush1.msra.mxu0 0.0
        %5552 = vmatprep.subr.mxu0 0.0
        %5553 = vmatpush1.msra.mxu0 0.0
        %5554 = vmatprep.subr.mxu0 0.0
        %5555 = vmatpush1.msra.mxu0 0.0
        %5556 = vmatprep.subr.mxu0 0.0
        %5557 = vmatpush1.msra.mxu0 0.0
        %5558 = vmatprep.subr.mxu0 0.0
        %5559 = vmatpush1.msra.mxu0 0.0
        %5560 = vmatprep.subr.mxu0 0.0
        %5561 = vmatpush1.msra.mxu0 0.0
        %5562 = vmatprep.subr.mxu0 0.0
        %5563 = vmatpush1.msra.mxu0 0.0
        %5564 = vmatprep.subr.mxu0 0.0
        %5565 = vmatpush1.msra.mxu0 0.0
        %5566 = vmatprep.subr.mxu0 0.0
        %5567 = vmatpush1.msra.mxu0 0.0
        %5568 = vmatprep.subr.mxu0 0.0
        %5569 = vmatpush1.msra.mxu0 0.0
        %5570 = vmatprep.subr.mxu0 0.0
        %5571 = vmatpush1.msra.mxu0 0.0
        %5572 = vmatprep.subr.mxu0 0.0
        %5573 = vmatpush1.msra.mxu0 0.0
        %5574 = vmatprep.subr.mxu0 0.0
        %5575 = vmatpush1.msra.mxu0 0.0
        %5576 = vmatprep.subr.mxu0 0.0
        %5577 = vmatpush1.msra.mxu0 0.0
        %5578 = vmatprep.subr.mxu0 0.0
        %5579 = vmatpush1.msra.mxu0 0.0
        %5580 = vmatprep.mubr.f32.mxu0 0.0
        %5581 = vmatmul.mubr.f32.gmra.mrb[0].mxu0 %v2894
        %v5582 = vpop.f32.mrb[0].mxu0
        %v5583 = vadd.f32 0.0, %v5582
        %v5584 = vpop.f32.mrb[0].mxu0
        %5585 = vdwg.mxu0
        %v5586 = vadd.f32 %v5513, %v5583
        %5587 = vmatprep.subr.mxu0 0.0
        %5588 = vmatpush1.msra.mxu0 %v4502
        %5589 = vmatprep.subr.mxu0 0.0
        %5590 = vmatpush1.msra.mxu0 0.0
        %5591 = vmatprep.subr.mxu0 0.0
        %5592 = vmatpush1.msra.mxu0 0.0
        %5593 = vmatprep.subr.mxu0 0.0
        %5594 = vmatpush1.msra.mxu0 0.0
        %5595 = vmatprep.subr.mxu0 0.0
        %5596 = vmatpush1.msra.mxu0 0.0
        %5597 = vmatprep.subr.mxu0 0.0
        %5598 = vmatpush1.msra.mxu0 0.0
        %5599 = vmatprep.subr.mxu0 0.0
        %5600 = vmatpush1.msra.mxu0 0.0
        %5601 = vmatprep.subr.mxu0 0.0
        %5602 = vmatpush1.msra.mxu0 0.0
        %5603 = vmatprep.subr.mxu0 0.0
        %5604 = vmatpush1.msra.mxu0 0.0
        %5605 = vmatprep.subr.mxu0 0.0
        %5606 = vmatpush1.msra.mxu0 0.0
        %5607 = vmatprep.subr.mxu0 0.0
        %5608 = vmatpush1.msra.mxu0 0.0
        %5609 = vmatprep.subr.mxu0 0.0
        %5610 = vmatpush1.msra.mxu0 0.0
        %5611 = vmatprep.subr.mxu0 0.0
        %5612 = vmatpush1.msra.mxu0 0.0
        %5613 = vmatprep.subr.mxu0 0.0
        %5614 = vmatpush1.msra.mxu0 0.0
        %5615 = vmatprep.subr.mxu0 0.0
        %5616 = vmatpush1.msra.mxu0 0.0
        %5617 = vmatprep.subr.mxu0 0.0
        %5618 = vmatpush1.msra.mxu0 0.0
        %5619 = vmatprep.subr.mxu0 0.0
        %5620 = vmatpush1.msra.mxu0 0.0
        %5621 = vmatprep.subr.mxu0 0.0
        %5622 = vmatpush1.msra.mxu0 0.0
        %5623 = vmatprep.subr.mxu0 0.0
        %5624 = vmatpush1.msra.mxu0 0.0
        %5625 = vmatprep.subr.mxu0 0.0
        %5626 = vmatpush1.msra.mxu0 0.0
        %5627 = vmatprep.subr.mxu0 0.0
        %5628 = vmatpush1.msra.mxu0 0.0
        %5629 = vmatprep.subr.mxu0 0.0
        %5630 = vmatpush1.msra.mxu0 0.0
        %5631 = vmatprep.subr.mxu0 0.0
        %5632 = vmatpush1.msra.mxu0 0.0
        %5633 = vmatprep.subr.mxu0 0.0
        %5634 = vmatpush1.msra.mxu0 0.0
        %5635 = vmatprep.subr.mxu0 0.0
        %5636 = vmatpush1.msra.mxu0 0.0
        %5637 = vmatprep.subr.mxu0 0.0
        %5638 = vmatpush1.msra.mxu0 0.0
        %5639 = vmatprep.subr.mxu0 0.0
        %5640 = vmatpush1.msra.mxu0 0.0
        %5641 = vmatprep.subr.mxu0 0.0
        %5642 = vmatpush1.msra.mxu0 0.0
        %5643 = vmatprep.subr.mxu0 0.0
        %5644 = vmatpush1.msra.mxu0 0.0
        %5645 = vmatprep.subr.mxu0 0.0
        %5646 = vmatpush1.msra.mxu0 0.0
        %5647 = vmatprep.subr.mxu0 0.0
        %5648 = vmatpush1.msra.mxu0 0.0
        %5649 = vmatprep.subr.mxu0 0.0
        %5650 = vmatpush1.msra.mxu0 0.0
        %5651 = vmatprep.mubr.f32.mxu0 0.0
        %5652 = vmatmul.mubr.f32.gmra.mrb[0].mxu0 %v3402
        %v5653 = vpop.f32.mrb[0].mxu0
        %v5654 = vadd.f32 0.0, %v5653
        %v5655 = vpop.f32.mrb[0].mxu0
        %5656 = vdwg.mxu0
        %v5657 = vadd.f32 %v5586, %v5654
        %5658 = vmatprep.subr.mxu0 0.0
        %5659 = vmatpush1.msra.mxu0 %v4644
        %5660 = vmatprep.subr.mxu0 0.0
        %5661 = vmatpush1.msra.mxu0 0.0
        %5662 = vmatprep.subr.mxu0 0.0
        %5663 = vmatpush1.msra.mxu0 0.0
        %5664 = vmatprep.subr.mxu0 0.0
        %5665 = vmatpush1.msra.mxu0 0.0
        %5666 = vmatprep.subr.mxu0 0.0
        %5667 = vmatpush1.msra.mxu0 0.0
        %5668 = vmatprep.subr.mxu0 0.0
        %5669 = vmatpush1.msra.mxu0 0.0
        %5670 = vmatprep.subr.mxu0 0.0
        %5671 = vmatpush1.msra.mxu0 0.0
        %5672 = vmatprep.subr.mxu0 0.0
        %5673 = vmatpush1.msra.mxu0 0.0
        %5674 = vmatprep.subr.mxu0 0.0
        %5675 = vmatpush1.msra.mxu0 0.0
        %5676 = vmatprep.subr.mxu0 0.0
        %5677 = vmatpush1.msra.mxu0 0.0
        %5678 = vmatprep.subr.mxu0 0.0
        %5679 = vmatpush1.msra.mxu0 0.0
        %5680 = vmatprep.subr.mxu0 0.0
        %5681 = vmatpush1.msra.mxu0 0.0
        %5682 = vmatprep.subr.mxu0 0.0
        %5683 = vmatpush1.msra.mxu0 0.0
        %5684 = vmatprep.subr.mxu0 0.0
        %5685 = vmatpush1.msra.mxu0 0.0
        %5686 = vmatprep.subr.mxu0 0.0
        %5687 = vmatpush1.msra.mxu0 0.0
        %5688 = vmatprep.subr.mxu0 0.0
        %5689 = vmatpush1.msra.mxu0 0.0
        %5690 = vmatprep.subr.mxu0 0.0
        %5691 = vmatpush1.msra.mxu0 0.0
        %5692 = vmatprep.subr.mxu0 0.0
        %5693 = vmatpush1.msra.mxu0 0.0
        %5694 = vmatprep.subr.mxu0 0.0
        %5695 = vmatpush1.msra.mxu0 0.0
        %5696 = vmatprep.subr.mxu0 0.0
        %5697 = vmatpush1.msra.mxu0 0.0
        %5698 = vmatprep.subr.mxu0 0.0
        %5699 = vmatpush1.msra.mxu0 0.0
        %5700 = vmatprep.subr.mxu0 0.0
        %5701 = vmatpush1.msra.mxu0 0.0
        %5702 = vmatprep.subr.mxu0 0.0
        %5703 = vmatpush1.msra.mxu0 0.0
        %5704 = vmatprep.subr.mxu0 0.0
        %5705 = vmatpush1.msra.mxu0 0.0
        %5706 = vmatprep.subr.mxu0 0.0
        %5707 = vmatpush1.msra.mxu0 0.0
        %5708 = vmatprep.subr.mxu0 0.0
        %5709 = vmatpush1.msra.mxu0 0.0
        %5710 = vmatprep.subr.mxu0 0.0
        %5711 = vmatpush1.msra.mxu0 0.0
        %5712 = vmatprep.subr.mxu0 0.0
        %5713 = vmatpush1.msra.mxu0 0.0
        %5714 = vmatprep.subr.mxu0 0.0
        %5715 = vmatpush1.msra.mxu0 0.0
        %5716 = vmatprep.subr.mxu0 0.0
        %5717 = vmatpush1.msra.mxu0 0.0
        %5718 = vmatprep.subr.mxu0 0.0
        %5719 = vmatpush1.msra.mxu0 0.0
        %5720 = vmatprep.subr.mxu0 0.0
        %5721 = vmatpush1.msra.mxu0 0.0
        %5722 = vmatprep.mubr.f32.mxu0 0.0
        %5723 = vmatmul.mubr.f32.gmra.mrb[0].mxu0 %v3910
        %v5724 = vpop.f32.mrb[0].mxu0
        %v5725 = vadd.f32 0.0, %v5724
        %v5726 = vpop.f32.mrb[0].mxu0
        %5727 = vdwg.mxu0
        %v5728 = vadd.f32 %v5657, %v5725
        %v5729 = vld [vmem:[%s11 + $0x8] sm:$0xf]
        %v5731 = vsel %vm5075, %v5728, 0
        %v5734 = vsel %vm5079, %v5729, 0
        %5736 = vmatprep.subr.mxu0 0.0
        %5737 = vmatpush1.msra.mxu0 %v5734
        %5738 = vmatprep.subr.mxu0 0.0
        %5739 = vmatpush1.msra.mxu0 0.0
        %5740 = vmatprep.subr.mxu0 0.0
        %5741 = vmatpush1.msra.mxu0 0.0
        %5742 = vmatprep.subr.mxu0 0.0
        %5743 = vmatpush1.msra.mxu0 0.0
        %5744 = vmatprep.subr.mxu0 0.0
        %5745 = vmatpush1.msra.mxu0 0.0
        %5746 = vmatprep.subr.mxu0 0.0
        %5747 = vmatpush1.msra.mxu0 0.0
        %5748 = vmatprep.subr.mxu0 0.0
        %5749 = vmatpush1.msra.mxu0 0.0
        %5750 = vmatprep.subr.mxu0 0.0
        %5751 = vmatpush1.msra.mxu0 0.0
        %5752 = vmatprep.subr.mxu0 0.0
        %5753 = vmatpush1.msra.mxu0 0.0
        %5754 = vmatprep.subr.mxu0 0.0
        %5755 = vmatpush1.msra.mxu0 0.0
        %5756 = vmatprep.subr.mxu0 0.0
        %5757 = vmatpush1.msra.mxu0 0.0
        %5758 = vmatprep.subr.mxu0 0.0
        %5759 = vmatpush1.msra.mxu0 0.0
        %5760 = vmatprep.subr.mxu0 0.0
        %5761 = vmatpush1.msra.mxu0 0.0
        %5762 = vmatprep.subr.mxu0 0.0
        %5763 = vmatpush1.msra.mxu0 0.0
        %5764 = vmatprep.subr.mxu0 0.0
        %5765 = vmatpush1.msra.mxu0 0.0
        %5766 = vmatprep.subr.mxu0 0.0
        %5767 = vmatpush1.msra.mxu0 0.0
        %5768 = vmatprep.subr.mxu0 0.0
        %5769 = vmatpush1.msra.mxu0 0.0
        %5770 = vmatprep.subr.mxu0 0.0
        %5771 = vmatpush1.msra.mxu0 0.0
        %5772 = vmatprep.subr.mxu0 0.0
        %5773 = vmatpush1.msra.mxu0 0.0
        %5774 = vmatprep.subr.mxu0 0.0
        %5775 = vmatpush1.msra.mxu0 0.0
        %5776 = vmatprep.subr.mxu0 0.0
        %5777 = vmatpush1.msra.mxu0 0.0
        %5778 = vmatprep.subr.mxu0 0.0
        %5779 = vmatpush1.msra.mxu0 0.0
        %5780 = vmatprep.subr.mxu0 0.0
        %5781 = vmatpush1.msra.mxu0 0.0
        %5782 = vmatprep.subr.mxu0 0.0
        %5783 = vmatpush1.msra.mxu0 0.0
        %5784 = vmatprep.subr.mxu0 0.0
        %5785 = vmatpush1.msra.mxu0 0.0
        %5786 = vmatprep.subr.mxu0 0.0
        %5787 = vmatpush1.msra.mxu0 0.0
        %5788 = vmatprep.subr.mxu0 0.0
        %5789 = vmatpush1.msra.mxu0 0.0
        %5790 = vmatprep.subr.mxu0 0.0
        %5791 = vmatpush1.msra.mxu0 0.0
        %5792 = vmatprep.subr.mxu0 0.0
        %5793 = vmatpush1.msra.mxu0 0.0
        %5794 = vmatprep.subr.mxu0 0.0
        %5795 = vmatpush1.msra.mxu0 0.0
        %5796 = vmatprep.subr.mxu0 0.0
        %5797 = vmatpush1.msra.mxu0 0.0
        %5798 = vmatprep.subr.mxu0 0.0
        %5799 = vmatpush1.msra.mxu0 0.0
        %5800 = vmatprep.mubr.f32.mxu0 0.0
        %5801 = vmatmul.mubr.f32.gmra.mrb[0].mxu0 %v5731
        %v5802 = vpop.f32.mrb[0].mxu0
        %v5803 = vadd.f32 0.0, %v5802
        %v5804 = vpop.f32.mrb[0].mxu0
        %5805 = vdwg.mxu0
        %v5806 = vadd.f32 %v5226, %v5803
        %v5807 = vld [vmem:[%s7 + $0x8] sm:$0xf]
        %v5809 = vsel %vm5079, %v5807, 0
        %5811 = vmatprep.subr.mxu0 0.0
        %5812 = vmatpush1.msra.mxu0 %v5809
        %5813 = vmatprep.subr.mxu0 0.0
        %5814 = vmatpush1.msra.mxu0 0.0
        %5815 = vmatprep.subr.mxu0 0.0
        %5816 = vmatpush1.msra.mxu0 0.0
        %5817 = vmatprep.subr.mxu0 0.0
        %5818 = vmatpush1.msra.mxu0 0.0
        %5819 = vmatprep.subr.mxu0 0.0
        %5820 = vmatpush1.msra.mxu0 0.0
        %5821 = vmatprep.subr.mxu0 0.0
        %5822 = vmatpush1.msra.mxu0 0.0
        %5823 = vmatprep.subr.mxu0 0.0
        %5824 = vmatpush1.msra.mxu0 0.0
        %5825 = vmatprep.subr.mxu0 0.0
        %5826 = vmatpush1.msra.mxu0 0.0
        %5827 = vmatprep.subr.mxu0 0.0
        %5828 = vmatpush1.msra.mxu0 0.0
        %5829 = vmatprep.subr.mxu0 0.0
        %5830 = vmatpush1.msra.mxu0 0.0
        %5831 = vmatprep.subr.mxu0 0.0
        %5832 = vmatpush1.msra.mxu0 0.0
        %5833 = vmatprep.subr.mxu0 0.0
        %5834 = vmatpush1.msra.mxu0 0.0
        %5835 = vmatprep.subr.mxu0 0.0
        %5836 = vmatpush1.msra.mxu0 0.0
        %5837 = vmatprep.subr.mxu0 0.0
        %5838 = vmatpush1.msra.mxu0 0.0
        %5839 = vmatprep.subr.mxu0 0.0
        %5840 = vmatpush1.msra.mxu0 0.0
        %5841 = vmatprep.subr.mxu0 0.0
        %5842 = vmatpush1.msra.mxu0 0.0
        %5843 = vmatprep.subr.mxu0 0.0
        %5844 = vmatpush1.msra.mxu0 0.0
        %5845 = vmatprep.subr.mxu0 0.0
        %5846 = vmatpush1.msra.mxu0 0.0
        %5847 = vmatprep.subr.mxu0 0.0
        %5848 = vmatpush1.msra.mxu0 0.0
        %5849 = vmatprep.subr.mxu0 0.0
        %5850 = vmatpush1.msra.mxu0 0.0
        %5851 = vmatprep.subr.mxu0 0.0
        %5852 = vmatpush1.msra.mxu0 0.0
        %5853 = vmatprep.subr.mxu0 0.0
        %5854 = vmatpush1.msra.mxu0 0.0
        %5855 = vmatprep.subr.mxu0 0.0
        %5856 = vmatpush1.msra.mxu0 0.0
        %5857 = vmatprep.subr.mxu0 0.0
        %5858 = vmatpush1.msra.mxu0 0.0
        %5859 = vmatprep.subr.mxu0 0.0
        %5860 = vmatpush1.msra.mxu0 0.0
        %5861 = vmatprep.subr.mxu0 0.0
        %5862 = vmatpush1.msra.mxu0 0.0
        %5863 = vmatprep.subr.mxu0 0.0
        %5864 = vmatpush1.msra.mxu0 0.0
        %5865 = vmatprep.subr.mxu0 0.0
        %5866 = vmatpush1.msra.mxu0 0.0
        %5867 = vmatprep.subr.mxu0 0.0
        %5868 = vmatpush1.msra.mxu0 0.0
        %5869 = vmatprep.subr.mxu0 0.0
        %5870 = vmatpush1.msra.mxu0 0.0
        %5871 = vmatprep.subr.mxu0 0.0
        %5872 = vmatpush1.msra.mxu0 0.0
        %5873 = vmatprep.subr.mxu0 0.0
        %5874 = vmatpush1.msra.mxu0 0.0
        %5875 = vmatprep.mubr.f32.mxu0 0.0
        %5876 = vmatmul.mubr.f32.gmra.mrb[0].mxu0 %v5731
        %v5877 = vpop.f32.mrb[0].mxu0
        %v5878 = vadd.f32 0.0, %v5877
        %v5879 = vpop.f32.mrb[0].mxu0
        %5880 = vdwg.mxu0
        %v5881 = vadd.f32 %v5373, %v5878
        %5882 = vmatprep.subr.mxu0 0.0
        %5883 = vmatpush1.msra.mxu0 %v4720
        %5884 = vmatprep.subr.mxu0 0.0
        %5885 = vmatpush1.msra.mxu0 0.0
        %5886 = vmatprep.subr.mxu0 0.0
        %5887 = vmatpush1.msra.mxu0 0.0
        %5888 = vmatprep.subr.mxu0 0.0
        %5889 = vmatpush1.msra.mxu0 0.0
        %5890 = vmatprep.subr.mxu0 0.0
        %5891 = vmatpush1.msra.mxu0 0.0
        %5892 = vmatprep.subr.mxu0 0.0
        %5893 = vmatpush1.msra.mxu0 0.0
        %5894 = vmatprep.subr.mxu0 0.0
        %5895 = vmatpush1.msra.mxu0 0.0
        %5896 = vmatprep.subr.mxu0 0.0
        %5897 = vmatpush1.msra.mxu0 0.0
        %5898 = vmatprep.subr.mxu0 0.0
        %5899 = vmatpush1.msra.mxu0 0.0
        %5900 = vmatprep.subr.mxu0 0.0
        %5901 = vmatpush1.msra.mxu0 0.0
        %5902 = vmatprep.subr.mxu0 0.0
        %5903 = vmatpush1.msra.mxu0 0.0
        %5904 = vmatprep.subr.mxu0 0.0
        %5905 = vmatpush1.msra.mxu0 0.0
        %5906 = vmatprep.subr.mxu0 0.0
        %5907 = vmatpush1.msra.mxu0 0.0
        %5908 = vmatprep.subr.mxu0 0.0
        %5909 = vmatpush1.msra.mxu0 0.0
        %5910 = vmatprep.subr.mxu0 0.0
        %5911 = vmatpush1.msra.mxu0 0.0
        %5912 = vmatprep.subr.mxu0 0.0
        %5913 = vmatpush1.msra.mxu0 0.0
        %5914 = vmatprep.subr.mxu0 0.0
        %5915 = vmatpush1.msra.mxu0 0.0
        %5916 = vmatprep.subr.mxu0 0.0
        %5917 = vmatpush1.msra.mxu0 0.0
        %5918 = vmatprep.subr.mxu0 0.0
        %5919 = vmatpush1.msra.mxu0 0.0
        %5920 = vmatprep.subr.mxu0 0.0
        %5921 = vmatpush1.msra.mxu0 0.0
        %5922 = vmatprep.subr.mxu0 0.0
        %5923 = vmatpush1.msra.mxu0 0.0
        %5924 = vmatprep.subr.mxu0 0.0
        %5925 = vmatpush1.msra.mxu0 0.0
        %5926 = vmatprep.subr.mxu0 0.0
        %5927 = vmatpush1.msra.mxu0 0.0
        %5928 = vmatprep.subr.mxu0 0.0
        %5929 = vmatpush1.msra.mxu0 0.0
        %5930 = vmatprep.subr.mxu0 0.0
        %5931 = vmatpush1.msra.mxu0 0.0
        %5932 = vmatprep.subr.mxu0 0.0
        %5933 = vmatpush1.msra.mxu0 0.0
        %5934 = vmatprep.subr.mxu0 0.0
        %5935 = vmatpush1.msra.mxu0 0.0
        %5936 = vmatprep.subr.mxu0 0.0
        %5937 = vmatpush1.msra.mxu0 0.0
        %5938 = vmatprep.subr.mxu0 0.0
        %5939 = vmatpush1.msra.mxu0 0.0
        %5940 = vmatprep.subr.mxu0 0.0
        %5941 = vmatpush1.msra.mxu0 0.0
        %5942 = vmatprep.subr.mxu0 0.0
        %5943 = vmatpush1.msra.mxu0 0.0
        %5944 = vmatprep.subr.mxu0 0.0
        %5945 = vmatpush1.msra.mxu0 0.0
        %5946 = vmatprep.mubr.f32.mxu0 0.0
        %5947 = vmatmul.mubr.f32.gmra.mrb[0].mxu0 %v3402
        %v5948 = vpop.f32.mrb[0].mxu0
        %v5949 = vadd.f32 0.0, %v5948
        %v5950 = vpop.f32.mrb[0].mxu0
        %5951 = vdwg.mxu0
        %5952 = vmatprep.subr.mxu0 0.0
        %5953 = vmatpush1.msra.mxu0 %v4718
        %5954 = vmatprep.subr.mxu0 0.0
        %5955 = vmatpush1.msra.mxu0 0.0
        %5956 = vmatprep.subr.mxu0 0.0
        %5957 = vmatpush1.msra.mxu0 0.0
        %5958 = vmatprep.subr.mxu0 0.0
        %5959 = vmatpush1.msra.mxu0 0.0
        %5960 = vmatprep.subr.mxu0 0.0
        %5961 = vmatpush1.msra.mxu0 0.0
        %5962 = vmatprep.subr.mxu0 0.0
        %5963 = vmatpush1.msra.mxu0 0.0
        %5964 = vmatprep.subr.mxu0 0.0
        %5965 = vmatpush1.msra.mxu0 0.0
        %5966 = vmatprep.subr.mxu0 0.0
        %5967 = vmatpush1.msra.mxu0 0.0
        %5968 = vmatprep.subr.mxu0 0.0
        %5969 = vmatpush1.msra.mxu0 0.0
        %5970 = vmatprep.subr.mxu0 0.0
        %5971 = vmatpush1.msra.mxu0 0.0
        %5972 = vmatprep.subr.mxu0 0.0
        %5973 = vmatpush1.msra.mxu0 0.0
        %5974 = vmatprep.subr.mxu0 0.0
        %5975 = vmatpush1.msra.mxu0 0.0
        %5976 = vmatprep.subr.mxu0 0.0
        %5977 = vmatpush1.msra.mxu0 0.0
        %5978 = vmatprep.subr.mxu0 0.0
        %5979 = vmatpush1.msra.mxu0 0.0
        %5980 = vmatprep.subr.mxu0 0.0
        %5981 = vmatpush1.msra.mxu0 0.0
        %5982 = vmatprep.subr.mxu0 0.0
        %5983 = vmatpush1.msra.mxu0 0.0
        %5984 = vmatprep.subr.mxu0 0.0
        %5985 = vmatpush1.msra.mxu0 0.0
        %5986 = vmatprep.subr.mxu0 0.0
        %5987 = vmatpush1.msra.mxu0 0.0
        %5988 = vmatprep.subr.mxu0 0.0
        %5989 = vmatpush1.msra.mxu0 0.0
        %5990 = vmatprep.subr.mxu0 0.0
        %5991 = vmatpush1.msra.mxu0 0.0
        %5992 = vmatprep.subr.mxu0 0.0
        %5993 = vmatpush1.msra.mxu0 0.0
        %5994 = vmatprep.subr.mxu0 0.0
        %5995 = vmatpush1.msra.mxu0 0.0
        %5996 = vmatprep.subr.mxu0 0.0
        %5997 = vmatpush1.msra.mxu0 0.0
        %5998 = vmatprep.subr.mxu0 0.0
        %5999 = vmatpush1.msra.mxu0 0.0
        %6000 = vmatprep.subr.mxu0 0.0
        %6001 = vmatpush1.msra.mxu0 0.0
        %6002 = vmatprep.subr.mxu0 0.0
        %6003 = vmatpush1.msra.mxu0 0.0
        %6004 = vmatprep.subr.mxu0 0.0
        %6005 = vmatpush1.msra.mxu0 0.0
        %6006 = vmatprep.subr.mxu0 0.0
        %6007 = vmatpush1.msra.mxu0 0.0
        %6008 = vmatprep.subr.mxu0 0.0
        %6009 = vmatpush1.msra.mxu0 0.0
        %6010 = vmatprep.subr.mxu0 0.0
        %6011 = vmatpush1.msra.mxu0 0.0
        %6012 = vmatprep.subr.mxu0 0.0
        %6013 = vmatpush1.msra.mxu0 0.0
        %6014 = vmatprep.subr.mxu0 0.0
        %6015 = vmatpush1.msra.mxu0 0.0
        %6016 = vmatprep.mubr.f32.mxu0 0.0
        %6017 = vmatmul.mubr.f32.gmra.mrb[0].mxu0 %v2894
        %v6018 = vpop.f32.mrb[0].mxu0
        %v6019 = vadd.f32 %v5949, %v6018
        %v6020 = vpop.f32.mrb[0].mxu0
        %6021 = vdwg.mxu0
        %6022 = vmatprep.subr.mxu0 0.0
        %6023 = vmatpush1.msra.mxu0 %v4500
        %6024 = vmatprep.subr.mxu0 0.0
        %6025 = vmatpush1.msra.mxu0 0.0
        %6026 = vmatprep.subr.mxu0 0.0
        %6027 = vmatpush1.msra.mxu0 0.0
        %6028 = vmatprep.subr.mxu0 0.0
        %6029 = vmatpush1.msra.mxu0 0.0
        %6030 = vmatprep.subr.mxu0 0.0
        %6031 = vmatpush1.msra.mxu0 0.0
        %6032 = vmatprep.subr.mxu0 0.0
        %6033 = vmatpush1.msra.mxu0 0.0
        %6034 = vmatprep.subr.mxu0 0.0
        %6035 = vmatpush1.msra.mxu0 0.0
        %6036 = vmatprep.subr.mxu0 0.0
        %6037 = vmatpush1.msra.mxu0 0.0
        %6038 = vmatprep.subr.mxu0 0.0
        %6039 = vmatpush1.msra.mxu0 0.0
        %6040 = vmatprep.subr.mxu0 0.0
        %6041 = vmatpush1.msra.mxu0 0.0
        %6042 = vmatprep.subr.mxu0 0.0
        %6043 = vmatpush1.msra.mxu0 0.0
        %6044 = vmatprep.subr.mxu0 0.0
        %6045 = vmatpush1.msra.mxu0 0.0
        %6046 = vmatprep.subr.mxu0 0.0
        %6047 = vmatpush1.msra.mxu0 0.0
        %6048 = vmatprep.subr.mxu0 0.0
        %6049 = vmatpush1.msra.mxu0 0.0
        %6050 = vmatprep.subr.mxu0 0.0
        %6051 = vmatpush1.msra.mxu0 0.0
        %6052 = vmatprep.subr.mxu0 0.0
        %6053 = vmatpush1.msra.mxu0 0.0
        %6054 = vmatprep.subr.mxu0 0.0
        %6055 = vmatpush1.msra.mxu0 0.0
        %6056 = vmatprep.subr.mxu0 0.0
        %6057 = vmatpush1.msra.mxu0 0.0
        %6058 = vmatprep.subr.mxu0 0.0
        %6059 = vmatpush1.msra.mxu0 0.0
        %6060 = vmatprep.subr.mxu0 0.0
        %6061 = vmatpush1.msra.mxu0 0.0
        %6062 = vmatprep.subr.mxu0 0.0
        %6063 = vmatpush1.msra.mxu0 0.0
        %6064 = vmatprep.subr.mxu0 0.0
        %6065 = vmatpush1.msra.mxu0 0.0
        %6066 = vmatprep.subr.mxu0 0.0
        %6067 = vmatpush1.msra.mxu0 0.0
        %6068 = vmatprep.subr.mxu0 0.0
        %6069 = vmatpush1.msra.mxu0 0.0
        %6070 = vmatprep.subr.mxu0 0.0
        %6071 = vmatpush1.msra.mxu0 0.0
        %6072 = vmatprep.subr.mxu0 0.0
        %6073 = vmatpush1.msra.mxu0 0.0
        %6074 = vmatprep.subr.mxu0 0.0
        %6075 = vmatpush1.msra.mxu0 0.0
        %6076 = vmatprep.subr.mxu0 0.0
        %6077 = vmatpush1.msra.mxu0 0.0
        %6078 = vmatprep.subr.mxu0 0.0
        %6079 = vmatpush1.msra.mxu0 0.0
        %6080 = vmatprep.subr.mxu0 0.0
        %6081 = vmatpush1.msra.mxu0 0.0
        %6082 = vmatprep.subr.mxu0 0.0
        %6083 = vmatpush1.msra.mxu0 0.0
        %6084 = vmatprep.subr.mxu0 0.0
        %6085 = vmatpush1.msra.mxu0 0.0
        %6086 = vmatprep.mubr.f32.mxu0 0.0
        %6087 = vmatmul.mubr.f32.gmra.mrb[0].mxu0 %v3910
        %v6088 = vpop.f32.mrb[0].mxu0
        %v6089 = vadd.f32 0.0, %v6088
        %v6090 = vpop.f32.mrb[0].mxu0
        %6091 = vdwg.mxu0
        %v6092 = vadd.f32 %v6019, %v6089
        %6093 = vmatprep.subr.mxu0 0.0
        %6094 = vmatpush1.msra.mxu0 %v4502
        %6095 = vmatprep.subr.mxu0 0.0
        %6096 = vmatpush1.msra.mxu0 0.0
        %6097 = vmatprep.subr.mxu0 0.0
        %6098 = vmatpush1.msra.mxu0 0.0
        %6099 = vmatprep.subr.mxu0 0.0
        %6100 = vmatpush1.msra.mxu0 0.0
        %6101 = vmatprep.subr.mxu0 0.0
        %6102 = vmatpush1.msra.mxu0 0.0
        %6103 = vmatprep.subr.mxu0 0.0
        %6104 = vmatpush1.msra.mxu0 0.0
        %6105 = vmatprep.subr.mxu0 0.0
        %6106 = vmatpush1.msra.mxu0 0.0
        %6107 = vmatprep.subr.mxu0 0.0
        %6108 = vmatpush1.msra.mxu0 0.0
        %6109 = vmatprep.subr.mxu0 0.0
        %6110 = vmatpush1.msra.mxu0 0.0
        %6111 = vmatprep.subr.mxu0 0.0
        %6112 = vmatpush1.msra.mxu0 0.0
        %6113 = vmatprep.subr.mxu0 0.0
        %6114 = vmatpush1.msra.mxu0 0.0
        %6115 = vmatprep.subr.mxu0 0.0
        %6116 = vmatpush1.msra.mxu0 0.0
        %6117 = vmatprep.subr.mxu0 0.0
        %6118 = vmatpush1.msra.mxu0 0.0
        %6119 = vmatprep.subr.mxu0 0.0
        %6120 = vmatpush1.msra.mxu0 0.0
        %6121 = vmatprep.subr.mxu0 0.0
        %6122 = vmatpush1.msra.mxu0 0.0
        %6123 = vmatprep.subr.mxu0 0.0
        %6124 = vmatpush1.msra.mxu0 0.0
        %6125 = vmatprep.subr.mxu0 0.0
        %6126 = vmatpush1.msra.mxu0 0.0
        %6127 = vmatprep.subr.mxu0 0.0
        %6128 = vmatpush1.msra.mxu0 0.0
        %6129 = vmatprep.subr.mxu0 0.0
        %6130 = vmatpush1.msra.mxu0 0.0
        %6131 = vmatprep.subr.mxu0 0.0
        %6132 = vmatpush1.msra.mxu0 0.0
        %6133 = vmatprep.subr.mxu0 0.0
        %6134 = vmatpush1.msra.mxu0 0.0
        %6135 = vmatprep.subr.mxu0 0.0
        %6136 = vmatpush1.msra.mxu0 0.0
        %6137 = vmatprep.subr.mxu0 0.0
        %6138 = vmatpush1.msra.mxu0 0.0
        %6139 = vmatprep.subr.mxu0 0.0
        %6140 = vmatpush1.msra.mxu0 0.0
        %6141 = vmatprep.subr.mxu0 0.0
        %6142 = vmatpush1.msra.mxu0 0.0
        %6143 = vmatprep.subr.mxu0 0.0
        %6144 = vmatpush1.msra.mxu0 0.0
        %6145 = vmatprep.subr.mxu0 0.0
        %6146 = vmatpush1.msra.mxu0 0.0
        %6147 = vmatprep.subr.mxu0 0.0
        %6148 = vmatpush1.msra.mxu0 0.0
        %6149 = vmatprep.subr.mxu0 0.0
        %6150 = vmatpush1.msra.mxu0 0.0
        %6151 = vmatprep.subr.mxu0 0.0
        %6152 = vmatpush1.msra.mxu0 0.0
        %6153 = vmatprep.subr.mxu0 0.0
        %6154 = vmatpush1.msra.mxu0 0.0
        %6155 = vmatprep.subr.mxu0 0.0
        %6156 = vmatpush1.msra.mxu0 0.0
        %6157 = vmatprep.mubr.f32.mxu0 0.0
        %6158 = vmatmul.mubr.f32.gmra.mrb[0].mxu0 %v4343
        %v6159 = vpop.f32.mrb[0].mxu0
        %v6160 = vadd.f32 0.0, %v6159
        %v6161 = vpop.f32.mrb[0].mxu0
        %6162 = vdwg.mxu0
        %v6163 = vadd.f32 %v6092, %v6160
        %v6164 = vld [vmem:[%s11 + $0xc] sm:$0xf]
        %v6166 = vsel %vm5075, %v6163, 0
        %v6169 = vsel %vm5079, %v6164, 0
        %6171 = vmatprep.subr.mxu0 0.0
        %6172 = vmatpush1.msra.mxu0 %v6169
        %6173 = vmatprep.subr.mxu0 0.0
        %6174 = vmatpush1.msra.mxu0 0.0
        %6175 = vmatprep.subr.mxu0 0.0
        %6176 = vmatpush1.msra.mxu0 0.0
        %6177 = vmatprep.subr.mxu0 0.0
        %6178 = vmatpush1.msra.mxu0 0.0
        %6179 = vmatprep.subr.mxu0 0.0
        %6180 = vmatpush1.msra.mxu0 0.0
        %6181 = vmatprep.subr.mxu0 0.0
        %6182 = vmatpush1.msra.mxu0 0.0
        %6183 = vmatprep.subr.mxu0 0.0
        %6184 = vmatpush1.msra.mxu0 0.0
        %6185 = vmatprep.subr.mxu0 0.0
        %6186 = vmatpush1.msra.mxu0 0.0
        %6187 = vmatprep.subr.mxu0 0.0
        %6188 = vmatpush1.msra.mxu0 0.0
        %6189 = vmatprep.subr.mxu0 0.0
        %6190 = vmatpush1.msra.mxu0 0.0
        %6191 = vmatprep.subr.mxu0 0.0
        %6192 = vmatpush1.msra.mxu0 0.0
        %6193 = vmatprep.subr.mxu0 0.0
        %6194 = vmatpush1.msra.mxu0 0.0
        %6195 = vmatprep.subr.mxu0 0.0
        %6196 = vmatpush1.msra.mxu0 0.0
        %6197 = vmatprep.subr.mxu0 0.0
        %6198 = vmatpush1.msra.mxu0 0.0
        %6199 = vmatprep.subr.mxu0 0.0
        %6200 = vmatpush1.msra.mxu0 0.0
        %6201 = vmatprep.subr.mxu0 0.0
        %6202 = vmatpush1.msra.mxu0 0.0
        %6203 = vmatprep.subr.mxu0 0.0
        %6204 = vmatpush1.msra.mxu0 0.0
        %6205 = vmatprep.subr.mxu0 0.0
        %6206 = vmatpush1.msra.mxu0 0.0
        %6207 = vmatprep.subr.mxu0 0.0
        %6208 = vmatpush1.msra.mxu0 0.0
        %6209 = vmatprep.subr.mxu0 0.0
        %6210 = vmatpush1.msra.mxu0 0.0
        %6211 = vmatprep.subr.mxu0 0.0
        %6212 = vmatpush1.msra.mxu0 0.0
        %6213 = vmatprep.subr.mxu0 0.0
        %6214 = vmatpush1.msra.mxu0 0.0
        %6215 = vmatprep.subr.mxu0 0.0
        %6216 = vmatpush1.msra.mxu0 0.0
        %6217 = vmatprep.subr.mxu0 0.0
        %6218 = vmatpush1.msra.mxu0 0.0
        %6219 = vmatprep.subr.mxu0 0.0
        %6220 = vmatpush1.msra.mxu0 0.0
        %6221 = vmatprep.subr.mxu0 0.0
        %6222 = vmatpush1.msra.mxu0 0.0
        %6223 = vmatprep.subr.mxu0 0.0
        %6224 = vmatpush1.msra.mxu0 0.0
        %6225 = vmatprep.subr.mxu0 0.0
        %6226 = vmatpush1.msra.mxu0 0.0
        %6227 = vmatprep.subr.mxu0 0.0
        %6228 = vmatpush1.msra.mxu0 0.0
        %6229 = vmatprep.subr.mxu0 0.0
        %6230 = vmatpush1.msra.mxu0 0.0
        %6231 = vmatprep.subr.mxu0 0.0
        %6232 = vmatpush1.msra.mxu0 0.0
        %6233 = vmatprep.subr.mxu0 0.0
        %6234 = vmatpush1.msra.mxu0 0.0
        %6235 = vmatprep.mubr.f32.mxu0 0.0
        %6236 = vmatmul.mubr.f32.gmra.mrb[0].mxu0 %v6166
        %v6237 = vpop.f32.mrb[0].mxu0
        %v6238 = vadd.f32 0.0, %v6237
        %v6239 = vpop.f32.mrb[0].mxu0
        %6240 = vdwg.mxu0
        %v6241 = vadd.f32 %v5806, %v6238
        %v6242 = vld [vmem:[%s7 + $0xc] sm:$0xf]
        %v6244 = vsel %vm5079, %v6242, 0
        %6246 = vmatprep.subr.mxu0 0.0
        %6247 = vmatpush1.msra.mxu0 %v6244
        %6248 = vmatprep.subr.mxu0 0.0
        %6249 = vmatpush1.msra.mxu0 0.0
        %6250 = vmatprep.subr.mxu0 0.0
        %6251 = vmatpush1.msra.mxu0 0.0
        %6252 = vmatprep.subr.mxu0 0.0
        %6253 = vmatpush1.msra.mxu0 0.0
        %6254 = vmatprep.subr.mxu0 0.0
        %6255 = vmatpush1.msra.mxu0 0.0
        %6256 = vmatprep.subr.mxu0 0.0
        %6257 = vmatpush1.msra.mxu0 0.0
        %6258 = vmatprep.subr.mxu0 0.0
        %6259 = vmatpush1.msra.mxu0 0.0
        %6260 = vmatprep.subr.mxu0 0.0
        %6261 = vmatpush1.msra.mxu0 0.0
        %6262 = vmatprep.subr.mxu0 0.0
        %6263 = vmatpush1.msra.mxu0 0.0
        %6264 = vmatprep.subr.mxu0 0.0
        %6265 = vmatpush1.msra.mxu0 0.0
        %6266 = vmatprep.subr.mxu0 0.0
        %6267 = vmatpush1.msra.mxu0 0.0
        %6268 = vmatprep.subr.mxu0 0.0
        %6269 = vmatpush1.msra.mxu0 0.0
        %6270 = vmatprep.subr.mxu0 0.0
        %6271 = vmatpush1.msra.mxu0 0.0
        %6272 = vmatprep.subr.mxu0 0.0
        %6273 = vmatpush1.msra.mxu0 0.0
        %6274 = vmatprep.subr.mxu0 0.0
        %6275 = vmatpush1.msra.mxu0 0.0
        %6276 = vmatprep.subr.mxu0 0.0
        %6277 = vmatpush1.msra.mxu0 0.0
        %6278 = vmatprep.subr.mxu0 0.0
        %6279 = vmatpush1.msra.mxu0 0.0
        %6280 = vmatprep.subr.mxu0 0.0
        %6281 = vmatpush1.msra.mxu0 0.0
        %6282 = vmatprep.subr.mxu0 0.0
        %6283 = vmatpush1.msra.mxu0 0.0
        %6284 = vmatprep.subr.mxu0 0.0
        %6285 = vmatpush1.msra.mxu0 0.0
        %6286 = vmatprep.subr.mxu0 0.0
        %6287 = vmatpush1.msra.mxu0 0.0
        %6288 = vmatprep.subr.mxu0 0.0
        %6289 = vmatpush1.msra.mxu0 0.0
        %6290 = vmatprep.subr.mxu0 0.0
        %6291 = vmatpush1.msra.mxu0 0.0
        %6292 = vmatprep.subr.mxu0 0.0
        %6293 = vmatpush1.msra.mxu0 0.0
        %6294 = vmatprep.subr.mxu0 0.0
        %6295 = vmatpush1.msra.mxu0 0.0
        %6296 = vmatprep.subr.mxu0 0.0
        %6297 = vmatpush1.msra.mxu0 0.0
        %6298 = vmatprep.subr.mxu0 0.0
        %6299 = vmatpush1.msra.mxu0 0.0
        %6300 = vmatprep.subr.mxu0 0.0
        %6301 = vmatpush1.msra.mxu0 0.0
        %6302 = vmatprep.subr.mxu0 0.0
        %6303 = vmatpush1.msra.mxu0 0.0
        %6304 = vmatprep.subr.mxu0 0.0
        %6305 = vmatpush1.msra.mxu0 0.0
        %6306 = vmatprep.subr.mxu0 0.0
        %6307 = vmatpush1.msra.mxu0 0.0
        %6308 = vmatprep.subr.mxu0 0.0
        %6309 = vmatpush1.msra.mxu0 0.0
        %6310 = vmatprep.mubr.f32.mxu0 0.0
        %6311 = vmatmul.mubr.f32.gmra.mrb[0].mxu0 %v6166
        %v6312 = vpop.f32.mrb[0].mxu0
        %v6313 = vadd.f32 0.0, %v6312
        %v6314 = vpop.f32.mrb[0].mxu0
        %6315 = vdwg.mxu0
        %v6316 = vadd.f32 %v5881, %v6313
        %v6318 = vrot.slane %v6241, 4
        %v6320 = vmul.f32 %v520, %v6318
        %v6321 = vmul.f32 %v6320, 4.0
        %v6323 = vrot.slane %v6321, 4
        %v6325 = vsub.f32 %v4498, %v6323
        %v6326 = vmul.f32 %v521, %v6316
        %v6327 = vadd.f32 %v6325, %v6326
        %s6328 = scalar_lea.vmem %s3, 8
        %v6329 = vld [vmem:[%s6328] sm:$0xf]
        %s6330 = scalar_lea.vmem %s3, 12
        %v6331 = vld [vmem:[%s6330] sm:$0xf]
        %v6333 = vsel %vm5079, %v6331, 0
        %6335 = vmatprep.subr.mxu0 0.0
        %6336 = vmatpush1.msra.mxu0 %v6333
        %6337 = vmatprep.subr.mxu0 0.0
        %6338 = vmatpush1.msra.mxu0 0.0
        %6339 = vmatprep.subr.mxu0 0.0
        %6340 = vmatpush1.msra.mxu0 0.0
        %6341 = vmatprep.subr.mxu0 0.0
        %6342 = vmatpush1.msra.mxu0 0.0
        %6343 = vmatprep.subr.mxu0 0.0
        %6344 = vmatpush1.msra.mxu0 0.0
        %6345 = vmatprep.subr.mxu0 0.0
        %6346 = vmatpush1.msra.mxu0 0.0
        %6347 = vmatprep.subr.mxu0 0.0
        %6348 = vmatpush1.msra.mxu0 0.0
        %6349 = vmatprep.subr.mxu0 0.0
        %6350 = vmatpush1.msra.mxu0 0.0
        %6351 = vmatprep.subr.mxu0 0.0
        %6352 = vmatpush1.msra.mxu0 0.0
        %6353 = vmatprep.subr.mxu0 0.0
        %6354 = vmatpush1.msra.mxu0 0.0
        %6355 = vmatprep.subr.mxu0 0.0
        %6356 = vmatpush1.msra.mxu0 0.0
        %6357 = vmatprep.subr.mxu0 0.0
        %6358 = vmatpush1.msra.mxu0 0.0
        %6359 = vmatprep.subr.mxu0 0.0
        %6360 = vmatpush1.msra.mxu0 0.0
        %6361 = vmatprep.subr.mxu0 0.0
        %6362 = vmatpush1.msra.mxu0 0.0
        %6363 = vmatprep.subr.mxu0 0.0
        %6364 = vmatpush1.msra.mxu0 0.0
        %6365 = vmatprep.subr.mxu0 0.0
        %6366 = vmatpush1.msra.mxu0 0.0
        %6367 = vmatprep.subr.mxu0 0.0
        %6368 = vmatpush1.msra.mxu0 0.0
        %6369 = vmatprep.subr.mxu0 0.0
        %6370 = vmatpush1.msra.mxu0 0.0
        %6371 = vmatprep.subr.mxu0 0.0
        %6372 = vmatpush1.msra.mxu0 0.0
        %6373 = vmatprep.subr.mxu0 0.0
        %6374 = vmatpush1.msra.mxu0 0.0
        %6375 = vmatprep.subr.mxu0 0.0
        %6376 = vmatpush1.msra.mxu0 0.0
        %6377 = vmatprep.subr.mxu0 0.0
        %6378 = vmatpush1.msra.mxu0 0.0
        %6379 = vmatprep.subr.mxu0 0.0
        %6380 = vmatpush1.msra.mxu0 0.0
        %6381 = vmatprep.subr.mxu0 0.0
        %6382 = vmatpush1.msra.mxu0 0.0
        %6383 = vmatprep.subr.mxu0 0.0
        %6384 = vmatpush1.msra.mxu0 0.0
        %6385 = vmatprep.subr.mxu0 0.0
        %6386 = vmatpush1.msra.mxu0 0.0
        %6387 = vmatprep.subr.mxu0 0.0
        %6388 = vmatpush1.msra.mxu0 0.0
        %6389 = vmatprep.subr.mxu0 0.0
        %6390 = vmatpush1.msra.mxu0 0.0
        %6391 = vmatprep.subr.mxu0 0.0
        %6392 = vmatpush1.msra.mxu0 0.0
        %6393 = vmatprep.subr.mxu0 0.0
        %6394 = vmatpush1.msra.mxu0 0.0
        %6395 = vmatprep.subr.mxu0 0.0
        %6396 = vmatpush1.msra.mxu0 0.0
        %6397 = vmatprep.subr.mxu0 0.0
        %6398 = vmatpush1.msra.mxu0 0.0
        %6399 = vmatprep.mubr.f32.mxu0 0.0
        %6400 = vmatmul.mubr.f32.gmra.mrb[0].mxu0 %v5077
        %v6401 = vpop.f32.mrb[0].mxu0
        %v6402 = vadd.f32 0.0, %v6401
        %v6403 = vpop.f32.mrb[0].mxu0
        %6404 = vdwg.mxu0
        %v6406 = vsel %vm5079, %v6329, 0
        %6408 = vmatprep.subr.mxu0 0.0
        %6409 = vmatpush1.msra.mxu0 %v6406
        %6410 = vmatprep.subr.mxu0 0.0
        %6411 = vmatpush1.msra.mxu0 0.0
        %6412 = vmatprep.subr.mxu0 0.0
        %6413 = vmatpush1.msra.mxu0 0.0
        %6414 = vmatprep.subr.mxu0 0.0
        %6415 = vmatpush1.msra.mxu0 0.0
        %6416 = vmatprep.subr.mxu0 0.0
        %6417 = vmatpush1.msra.mxu0 0.0
        %6418 = vmatprep.subr.mxu0 0.0
        %6419 = vmatpush1.msra.mxu0 0.0
        %6420 = vmatprep.subr.mxu0 0.0
        %6421 = vmatpush1.msra.mxu0 0.0
        %6422 = vmatprep.subr.mxu0 0.0
        %6423 = vmatpush1.msra.mxu0 0.0
        %6424 = vmatprep.subr.mxu0 0.0
        %6425 = vmatpush1.msra.mxu0 0.0
        %6426 = vmatprep.subr.mxu0 0.0
        %6427 = vmatpush1.msra.mxu0 0.0
        %6428 = vmatprep.subr.mxu0 0.0
        %6429 = vmatpush1.msra.mxu0 0.0
        %6430 = vmatprep.subr.mxu0 0.0
        %6431 = vmatpush1.msra.mxu0 0.0
        %6432 = vmatprep.subr.mxu0 0.0
        %6433 = vmatpush1.msra.mxu0 0.0
        %6434 = vmatprep.subr.mxu0 0.0
        %6435 = vmatpush1.msra.mxu0 0.0
        %6436 = vmatprep.subr.mxu0 0.0
        %6437 = vmatpush1.msra.mxu0 0.0
        %6438 = vmatprep.subr.mxu0 0.0
        %6439 = vmatpush1.msra.mxu0 0.0
        %6440 = vmatprep.subr.mxu0 0.0
        %6441 = vmatpush1.msra.mxu0 0.0
        %6442 = vmatprep.subr.mxu0 0.0
        %6443 = vmatpush1.msra.mxu0 0.0
        %6444 = vmatprep.subr.mxu0 0.0
        %6445 = vmatpush1.msra.mxu0 0.0
        %6446 = vmatprep.subr.mxu0 0.0
        %6447 = vmatpush1.msra.mxu0 0.0
        %6448 = vmatprep.subr.mxu0 0.0
        %6449 = vmatpush1.msra.mxu0 0.0
        %6450 = vmatprep.subr.mxu0 0.0
        %6451 = vmatpush1.msra.mxu0 0.0
        %6452 = vmatprep.subr.mxu0 0.0
        %6453 = vmatpush1.msra.mxu0 0.0
        %6454 = vmatprep.subr.mxu0 0.0
        %6455 = vmatpush1.msra.mxu0 0.0
        %6456 = vmatprep.subr.mxu0 0.0
        %6457 = vmatpush1.msra.mxu0 0.0
        %6458 = vmatprep.subr.mxu0 0.0
        %6459 = vmatpush1.msra.mxu0 0.0
        %6460 = vmatprep.subr.mxu0 0.0
        %6461 = vmatpush1.msra.mxu0 0.0
        %6462 = vmatprep.subr.mxu0 0.0
        %6463 = vmatpush1.msra.mxu0 0.0
        %6464 = vmatprep.subr.mxu0 0.0
        %6465 = vmatpush1.msra.mxu0 0.0
        %6466 = vmatprep.subr.mxu0 0.0
        %6467 = vmatpush1.msra.mxu0 0.0
        %6468 = vmatprep.subr.mxu0 0.0
        %6469 = vmatpush1.msra.mxu0 0.0
        %6470 = vmatprep.subr.mxu0 0.0
        %6471 = vmatpush1.msra.mxu0 0.0
        %6472 = vmatprep.mubr.f32.mxu0 0.0
        %6473 = vmatmul.mubr.f32.gmra.mrb[0].mxu0 %v5154
        %v6474 = vpop.f32.mrb[0].mxu0
        %v6475 = vadd.f32 %v6402, %v6474
        %v6476 = vpop.f32.mrb[0].mxu0
        %6477 = vdwg.mxu0
        %s6478 = scalar_lea.vmem %s3, 16
        %v6479 = vld [vmem:[%s6478] sm:$0xf]
        %v6481 = vsel %vm5079, %v6479, 0
        %6483 = vmatprep.subr.mxu0 0.0
        %6484 = vmatpush1.msra.mxu0 %v6481
        %6485 = vmatprep.subr.mxu0 0.0
        %6486 = vmatpush1.msra.mxu0 0.0
        %6487 = vmatprep.subr.mxu0 0.0
        %6488 = vmatpush1.msra.mxu0 0.0
        %6489 = vmatprep.subr.mxu0 0.0
        %6490 = vmatpush1.msra.mxu0 0.0
        %6491 = vmatprep.subr.mxu0 0.0
        %6492 = vmatpush1.msra.mxu0 0.0
        %6493 = vmatprep.subr.mxu0 0.0
        %6494 = vmatpush1.msra.mxu0 0.0
        %6495 = vmatprep.subr.mxu0 0.0
        %6496 = vmatpush1.msra.mxu0 0.0
        %6497 = vmatprep.subr.mxu0 0.0
        %6498 = vmatpush1.msra.mxu0 0.0
        %6499 = vmatprep.subr.mxu0 0.0
        %6500 = vmatpush1.msra.mxu0 0.0
        %6501 = vmatprep.subr.mxu0 0.0
        %6502 = vmatpush1.msra.mxu0 0.0
        %6503 = vmatprep.subr.mxu0 0.0
        %6504 = vmatpush1.msra.mxu0 0.0
        %6505 = vmatprep.subr.mxu0 0.0
        %6506 = vmatpush1.msra.mxu0 0.0
        %6507 = vmatprep.subr.mxu0 0.0
        %6508 = vmatpush1.msra.mxu0 0.0
        %6509 = vmatprep.subr.mxu0 0.0
        %6510 = vmatpush1.msra.mxu0 0.0
        %6511 = vmatprep.subr.mxu0 0.0
        %6512 = vmatpush1.msra.mxu0 0.0
        %6513 = vmatprep.subr.mxu0 0.0
        %6514 = vmatpush1.msra.mxu0 0.0
        %6515 = vmatprep.subr.mxu0 0.0
        %6516 = vmatpush1.msra.mxu0 0.0
        %6517 = vmatprep.subr.mxu0 0.0
        %6518 = vmatpush1.msra.mxu0 0.0
        %6519 = vmatprep.subr.mxu0 0.0
        %6520 = vmatpush1.msra.mxu0 0.0
        %6521 = vmatprep.subr.mxu0 0.0
        %6522 = vmatpush1.msra.mxu0 0.0
        %6523 = vmatprep.subr.mxu0 0.0
        %6524 = vmatpush1.msra.mxu0 0.0
        %6525 = vmatprep.subr.mxu0 0.0
        %6526 = vmatpush1.msra.mxu0 0.0
        %6527 = vmatprep.subr.mxu0 0.0
        %6528 = vmatpush1.msra.mxu0 0.0
        %6529 = vmatprep.subr.mxu0 0.0
        %6530 = vmatpush1.msra.mxu0 0.0
        %6531 = vmatprep.subr.mxu0 0.0
        %6532 = vmatpush1.msra.mxu0 0.0
        %6533 = vmatprep.subr.mxu0 0.0
        %6534 = vmatpush1.msra.mxu0 0.0
        %6535 = vmatprep.subr.mxu0 0.0
        %6536 = vmatpush1.msra.mxu0 0.0
        %6537 = vmatprep.subr.mxu0 0.0
        %6538 = vmatpush1.msra.mxu0 0.0
        %6539 = vmatprep.subr.mxu0 0.0
        %6540 = vmatpush1.msra.mxu0 0.0
        %6541 = vmatprep.subr.mxu0 0.0
        %6542 = vmatpush1.msra.mxu0 0.0
        %6543 = vmatprep.subr.mxu0 0.0
        %6544 = vmatpush1.msra.mxu0 0.0
        %6545 = vmatprep.subr.mxu0 0.0
        %6546 = vmatpush1.msra.mxu0 0.0
        %6547 = vmatprep.mubr.f32.mxu0 0.0
        %6548 = vmatmul.mubr.f32.gmra.mrb[0].mxu0 %v5731
        %v6549 = vpop.f32.mrb[0].mxu0
        %v6550 = vadd.f32 0.0, %v6549
        %v6551 = vpop.f32.mrb[0].mxu0
        %6552 = vdwg.mxu0
        %v6553 = vadd.f32 %v6475, %v6550
        %v6554 = vld [vmem:[%s12] sm:$0x3]
        %v6555 = vld [vmem:[%s8] sm:$0x3]
        %v6556 = vld [vmem:[%s3] sm:$0xf]
        %s6557 = scalar_lea.vmem %s3, 4
        %v6558 = vld [vmem:[%s6557] sm:$0xf]
        %v6560 = vsel %vm5079, %v6558, 0
        %6562 = vmatprep.subr.mxu0 0.0
        %6563 = vmatpush1.msra.mxu0 %v6560
        %6564 = vmatprep.subr.mxu0 0.0
        %6565 = vmatpush1.msra.mxu0 0.0
        %6566 = vmatprep.subr.mxu0 0.0
        %6567 = vmatpush1.msra.mxu0 0.0
        %6568 = vmatprep.subr.mxu0 0.0
        %6569 = vmatpush1.msra.mxu0 0.0
        %6570 = vmatprep.subr.mxu0 0.0
        %6571 = vmatpush1.msra.mxu0 0.0
        %6572 = vmatprep.subr.mxu0 0.0
        %6573 = vmatpush1.msra.mxu0 0.0
        %6574 = vmatprep.subr.mxu0 0.0
        %6575 = vmatpush1.msra.mxu0 0.0
        %6576 = vmatprep.subr.mxu0 0.0
        %6577 = vmatpush1.msra.mxu0 0.0
        %6578 = vmatprep.subr.mxu0 0.0
        %6579 = vmatpush1.msra.mxu0 0.0
        %6580 = vmatprep.subr.mxu0 0.0
        %6581 = vmatpush1.msra.mxu0 0.0
        %6582 = vmatprep.subr.mxu0 0.0
        %6583 = vmatpush1.msra.mxu0 0.0
        %6584 = vmatprep.subr.mxu0 0.0
        %6585 = vmatpush1.msra.mxu0 0.0
        %6586 = vmatprep.subr.mxu0 0.0
        %6587 = vmatpush1.msra.mxu0 0.0
        %6588 = vmatprep.subr.mxu0 0.0
        %6589 = vmatpush1.msra.mxu0 0.0
        %6590 = vmatprep.subr.mxu0 0.0
        %6591 = vmatpush1.msra.mxu0 0.0
        %6592 = vmatprep.subr.mxu0 0.0
        %6593 = vmatpush1.msra.mxu0 0.0
        %6594 = vmatprep.subr.mxu0 0.0
        %6595 = vmatpush1.msra.mxu0 0.0
        %6596 = vmatprep.subr.mxu0 0.0
        %6597 = vmatpush1.msra.mxu0 0.0
        %6598 = vmatprep.subr.mxu0 0.0
        %6599 = vmatpush1.msra.mxu0 0.0
        %6600 = vmatprep.subr.mxu0 0.0
        %6601 = vmatpush1.msra.mxu0 0.0
        %6602 = vmatprep.subr.mxu0 0.0
        %6603 = vmatpush1.msra.mxu0 0.0
        %6604 = vmatprep.subr.mxu0 0.0
        %6605 = vmatpush1.msra.mxu0 0.0
        %6606 = vmatprep.subr.mxu0 0.0
        %6607 = vmatpush1.msra.mxu0 0.0
        %6608 = vmatprep.subr.mxu0 0.0
        %6609 = vmatpush1.msra.mxu0 0.0
        %6610 = vmatprep.subr.mxu0 0.0
        %6611 = vmatpush1.msra.mxu0 0.0
        %6612 = vmatprep.subr.mxu0 0.0
        %6613 = vmatpush1.msra.mxu0 0.0
        %6614 = vmatprep.subr.mxu0 0.0
        %6615 = vmatpush1.msra.mxu0 0.0
        %6616 = vmatprep.subr.mxu0 0.0
        %6617 = vmatpush1.msra.mxu0 0.0
        %6618 = vmatprep.subr.mxu0 0.0
        %6619 = vmatpush1.msra.mxu0 0.0
        %6620 = vmatprep.subr.mxu0 0.0
        %6621 = vmatpush1.msra.mxu0 0.0
        %6622 = vmatprep.subr.mxu0 0.0
        %6623 = vmatpush1.msra.mxu0 0.0
        %6624 = vmatprep.subr.mxu0 0.0
        %6625 = vmatpush1.msra.mxu0 0.0
        %6626 = vmatprep.mubr.f32.mxu0 0.0
        %6627 = vmatmul.mubr.f32.gmra.mrb[0].mxu0 %v5077
        %v6628 = vpop.f32.mrb[0].mxu0
        %v6629 = vadd.f32 0.0, %v6628
        %v6630 = vpop.f32.mrb[0].mxu0
        %6631 = vdwg.mxu0
        %v6633 = vsel %vm5079, %v6556, 0
        %6635 = vmatprep.subr.mxu0 0.0
        %6636 = vmatpush1.msra.mxu0 %v6633
        %6637 = vmatprep.subr.mxu0 0.0
        %6638 = vmatpush1.msra.mxu0 0.0
        %6639 = vmatprep.subr.mxu0 0.0
        %6640 = vmatpush1.msra.mxu0 0.0
        %6641 = vmatprep.subr.mxu0 0.0
        %6642 = vmatpush1.msra.mxu0 0.0
        %6643 = vmatprep.subr.mxu0 0.0
        %6644 = vmatpush1.msra.mxu0 0.0
        %6645 = vmatprep.subr.mxu0 0.0
        %6646 = vmatpush1.msra.mxu0 0.0
        %6647 = vmatprep.subr.mxu0 0.0
        %6648 = vmatpush1.msra.mxu0 0.0
        %6649 = vmatprep.subr.mxu0 0.0
        %6650 = vmatpush1.msra.mxu0 0.0
        %6651 = vmatprep.subr.mxu0 0.0
        %6652 = vmatpush1.msra.mxu0 0.0
        %6653 = vmatprep.subr.mxu0 0.0
        %6654 = vmatpush1.msra.mxu0 0.0
        %6655 = vmatprep.subr.mxu0 0.0
        %6656 = vmatpush1.msra.mxu0 0.0
        %6657 = vmatprep.subr.mxu0 0.0
        %6658 = vmatpush1.msra.mxu0 0.0
        %6659 = vmatprep.subr.mxu0 0.0
        %6660 = vmatpush1.msra.mxu0 0.0
        %6661 = vmatprep.subr.mxu0 0.0
        %6662 = vmatpush1.msra.mxu0 0.0
        %6663 = vmatprep.subr.mxu0 0.0
        %6664 = vmatpush1.msra.mxu0 0.0
        %6665 = vmatprep.subr.mxu0 0.0
        %6666 = vmatpush1.msra.mxu0 0.0
        %6667 = vmatprep.subr.mxu0 0.0
        %6668 = vmatpush1.msra.mxu0 0.0
        %6669 = vmatprep.subr.mxu0 0.0
        %6670 = vmatpush1.msra.mxu0 0.0
        %6671 = vmatprep.subr.mxu0 0.0
        %6672 = vmatpush1.msra.mxu0 0.0
        %6673 = vmatprep.subr.mxu0 0.0
        %6674 = vmatpush1.msra.mxu0 0.0
        %6675 = vmatprep.subr.mxu0 0.0
        %6676 = vmatpush1.msra.mxu0 0.0
        %6677 = vmatprep.subr.mxu0 0.0
        %6678 = vmatpush1.msra.mxu0 0.0
        %6679 = vmatprep.subr.mxu0 0.0
        %6680 = vmatpush1.msra.mxu0 0.0
        %6681 = vmatprep.subr.mxu0 0.0
        %6682 = vmatpush1.msra.mxu0 0.0
        %6683 = vmatprep.subr.mxu0 0.0
        %6684 = vmatpush1.msra.mxu0 0.0
        %6685 = vmatprep.subr.mxu0 0.0
        %6686 = vmatpush1.msra.mxu0 0.0
        %6687 = vmatprep.subr.mxu0 0.0
        %6688 = vmatpush1.msra.mxu0 0.0
        %6689 = vmatprep.subr.mxu0 0.0
        %6690 = vmatpush1.msra.mxu0 0.0
        %6691 = vmatprep.subr.mxu0 0.0
        %6692 = vmatpush1.msra.mxu0 0.0
        %6693 = vmatprep.subr.mxu0 0.0
        %6694 = vmatpush1.msra.mxu0 0.0
        %6695 = vmatprep.subr.mxu0 0.0
        %6696 = vmatpush1.msra.mxu0 0.0
        %6697 = vmatprep.subr.mxu0 0.0
        %6698 = vmatpush1.msra.mxu0 0.0
        %6699 = vmatprep.mubr.f32.mxu0 0.0
        %6700 = vmatmul.mubr.f32.gmra.mrb[0].mxu0 %v5154
        %v6701 = vpop.f32.mrb[0].mxu0
        %v6702 = vadd.f32 %v6629, %v6701
        %v6703 = vpop.f32.mrb[0].mxu0
        %6704 = vdwg.mxu0
        %6705 = vmatprep.subr.mxu0 0.0
        %6706 = vmatpush1.msra.mxu0 %v6406
        %6707 = vmatprep.subr.mxu0 0.0
        %6708 = vmatpush1.msra.mxu0 0.0
        %6709 = vmatprep.subr.mxu0 0.0
        %6710 = vmatpush1.msra.mxu0 0.0
        %6711 = vmatprep.subr.mxu0 0.0
        %6712 = vmatpush1.msra.mxu0 0.0
        %6713 = vmatprep.subr.mxu0 0.0
        %6714 = vmatpush1.msra.mxu0 0.0
        %6715 = vmatprep.subr.mxu0 0.0
        %6716 = vmatpush1.msra.mxu0 0.0
        %6717 = vmatprep.subr.mxu0 0.0
        %6718 = vmatpush1.msra.mxu0 0.0
        %6719 = vmatprep.subr.mxu0 0.0
        %6720 = vmatpush1.msra.mxu0 0.0
        %6721 = vmatprep.subr.mxu0 0.0
        %6722 = vmatpush1.msra.mxu0 0.0
        %6723 = vmatprep.subr.mxu0 0.0
        %6724 = vmatpush1.msra.mxu0 0.0
        %6725 = vmatprep.subr.mxu0 0.0
        %6726 = vmatpush1.msra.mxu0 0.0
        %6727 = vmatprep.subr.mxu0 0.0
        %6728 = vmatpush1.msra.mxu0 0.0
        %6729 = vmatprep.subr.mxu0 0.0
        %6730 = vmatpush1.msra.mxu0 0.0
        %6731 = vmatprep.subr.mxu0 0.0
        %6732 = vmatpush1.msra.mxu0 0.0
        %6733 = vmatprep.subr.mxu0 0.0
        %6734 = vmatpush1.msra.mxu0 0.0
        %6735 = vmatprep.subr.mxu0 0.0
        %6736 = vmatpush1.msra.mxu0 0.0
        %6737 = vmatprep.subr.mxu0 0.0
        %6738 = vmatpush1.msra.mxu0 0.0
        %6739 = vmatprep.subr.mxu0 0.0
        %6740 = vmatpush1.msra.mxu0 0.0
        %6741 = vmatprep.subr.mxu0 0.0
        %6742 = vmatpush1.msra.mxu0 0.0
        %6743 = vmatprep.subr.mxu0 0.0
        %6744 = vmatpush1.msra.mxu0 0.0
        %6745 = vmatprep.subr.mxu0 0.0
        %6746 = vmatpush1.msra.mxu0 0.0
        %6747 = vmatprep.subr.mxu0 0.0
        %6748 = vmatpush1.msra.mxu0 0.0
        %6749 = vmatprep.subr.mxu0 0.0
        %6750 = vmatpush1.msra.mxu0 0.0
        %6751 = vmatprep.subr.mxu0 0.0
        %6752 = vmatpush1.msra.mxu0 0.0
        %6753 = vmatprep.subr.mxu0 0.0
        %6754 = vmatpush1.msra.mxu0 0.0
        %6755 = vmatprep.subr.mxu0 0.0
        %6756 = vmatpush1.msra.mxu0 0.0
        %6757 = vmatprep.subr.mxu0 0.0
        %6758 = vmatpush1.msra.mxu0 0.0
        %6759 = vmatprep.subr.mxu0 0.0
        %6760 = vmatpush1.msra.mxu0 0.0
        %6761 = vmatprep.subr.mxu0 0.0
        %6762 = vmatpush1.msra.mxu0 0.0
        %6763 = vmatprep.subr.mxu0 0.0
        %6764 = vmatpush1.msra.mxu0 0.0
        %6765 = vmatprep.subr.mxu0 0.0
        %6766 = vmatpush1.msra.mxu0 0.0
        %6767 = vmatprep.subr.mxu0 0.0
        %6768 = vmatpush1.msra.mxu0 0.0
        %6769 = vmatprep.mubr.f32.mxu0 0.0
        %6770 = vmatmul.mubr.f32.gmra.mrb[0].mxu0 %v5731
        %v6771 = vpop.f32.mrb[0].mxu0
        %v6772 = vadd.f32 0.0, %v6771
        %v6773 = vpop.f32.mrb[0].mxu0
        %6774 = vdwg.mxu0
        %v6775 = vadd.f32 %v6702, %v6772
        %6776 = vmatprep.subr.mxu0 0.0
        %6777 = vmatpush1.msra.mxu0 %v6333
        %6778 = vmatprep.subr.mxu0 0.0
        %6779 = vmatpush1.msra.mxu0 0.0
        %6780 = vmatprep.subr.mxu0 0.0
        %6781 = vmatpush1.msra.mxu0 0.0
        %6782 = vmatprep.subr.mxu0 0.0
        %6783 = vmatpush1.msra.mxu0 0.0
        %6784 = vmatprep.subr.mxu0 0.0
        %6785 = vmatpush1.msra.mxu0 0.0
        %6786 = vmatprep.subr.mxu0 0.0
        %6787 = vmatpush1.msra.mxu0 0.0
        %6788 = vmatprep.subr.mxu0 0.0
        %6789 = vmatpush1.msra.mxu0 0.0
        %6790 = vmatprep.subr.mxu0 0.0
        %6791 = vmatpush1.msra.mxu0 0.0
        %6792 = vmatprep.subr.mxu0 0.0
        %6793 = vmatpush1.msra.mxu0 0.0
        %6794 = vmatprep.subr.mxu0 0.0
        %6795 = vmatpush1.msra.mxu0 0.0
        %6796 = vmatprep.subr.mxu0 0.0
        %6797 = vmatpush1.msra.mxu0 0.0
        %6798 = vmatprep.subr.mxu0 0.0
        %6799 = vmatpush1.msra.mxu0 0.0
        %6800 = vmatprep.subr.mxu0 0.0
        %6801 = vmatpush1.msra.mxu0 0.0
        %6802 = vmatprep.subr.mxu0 0.0
        %6803 = vmatpush1.msra.mxu0 0.0
        %6804 = vmatprep.subr.mxu0 0.0
        %6805 = vmatpush1.msra.mxu0 0.0
        %6806 = vmatprep.subr.mxu0 0.0
        %6807 = vmatpush1.msra.mxu0 0.0
        %6808 = vmatprep.subr.mxu0 0.0
        %6809 = vmatpush1.msra.mxu0 0.0
        %6810 = vmatprep.subr.mxu0 0.0
        %6811 = vmatpush1.msra.mxu0 0.0
        %6812 = vmatprep.subr.mxu0 0.0
        %6813 = vmatpush1.msra.mxu0 0.0
        %6814 = vmatprep.subr.mxu0 0.0
        %6815 = vmatpush1.msra.mxu0 0.0
        %6816 = vmatprep.subr.mxu0 0.0
        %6817 = vmatpush1.msra.mxu0 0.0
        %6818 = vmatprep.subr.mxu0 0.0
        %6819 = vmatpush1.msra.mxu0 0.0
        %6820 = vmatprep.subr.mxu0 0.0
        %6821 = vmatpush1.msra.mxu0 0.0
        %6822 = vmatprep.subr.mxu0 0.0
        %6823 = vmatpush1.msra.mxu0 0.0
        %6824 = vmatprep.subr.mxu0 0.0
        %6825 = vmatpush1.msra.mxu0 0.0
        %6826 = vmatprep.subr.mxu0 0.0
        %6827 = vmatpush1.msra.mxu0 0.0
        %6828 = vmatprep.subr.mxu0 0.0
        %6829 = vmatpush1.msra.mxu0 0.0
        %6830 = vmatprep.subr.mxu0 0.0
        %6831 = vmatpush1.msra.mxu0 0.0
        %6832 = vmatprep.subr.mxu0 0.0
        %6833 = vmatpush1.msra.mxu0 0.0
        %6834 = vmatprep.subr.mxu0 0.0
        %6835 = vmatpush1.msra.mxu0 0.0
        %6836 = vmatprep.subr.mxu0 0.0
        %6837 = vmatpush1.msra.mxu0 0.0
        %6838 = vmatprep.subr.mxu0 0.0
        %6839 = vmatpush1.msra.mxu0 0.0
        %6840 = vmatprep.mubr.f32.mxu0 0.0
        %6841 = vmatmul.mubr.f32.gmra.mrb[0].mxu0 %v6166
        %v6842 = vpop.f32.mrb[0].mxu0
        %v6843 = vadd.f32 0.0, %v6842
        %v6844 = vpop.f32.mrb[0].mxu0
        %6845 = vdwg.mxu0
        %v6846 = vadd.f32 %v6775, %v6843
        %v6847 = vld [vmem:[%s12 + $0x2] sm:$0x3]
        %vm6848 = vcmask 15360
        %v6850 = vsel %vm6848, %v6846, 0
        %vm6852 = vcmask 1041408
        %v6854 = vsel %vm6852, %v6847, 0
        %6856 = vmatprep.subr.mxu0 0.0
        %6857 = vmatpush1.msra.mxu0 %v6854
        %6858 = vmatprep.subr.mxu0 0.0
        %6859 = vmatpush1.msra.mxu0 0.0
        %6860 = vmatprep.subr.mxu0 0.0
        %6861 = vmatpush1.msra.mxu0 0.0
        %6862 = vmatprep.subr.mxu0 0.0
        %6863 = vmatpush1.msra.mxu0 0.0
        %6864 = vmatprep.subr.mxu0 0.0
        %6865 = vmatpush1.msra.mxu0 0.0
        %6866 = vmatprep.subr.mxu0 0.0
        %6867 = vmatpush1.msra.mxu0 0.0
        %6868 = vmatprep.subr.mxu0 0.0
        %6869 = vmatpush1.msra.mxu0 0.0
        %6870 = vmatprep.subr.mxu0 0.0
        %6871 = vmatpush1.msra.mxu0 0.0
        %6872 = vmatprep.subr.mxu0 0.0
        %6873 = vmatpush1.msra.mxu0 0.0
        %6874 = vmatprep.subr.mxu0 0.0
        %6875 = vmatpush1.msra.mxu0 0.0
        %6876 = vmatprep.subr.mxu0 0.0
        %6877 = vmatpush1.msra.mxu0 0.0
        %6878 = vmatprep.subr.mxu0 0.0
        %6879 = vmatpush1.msra.mxu0 0.0
        %6880 = vmatprep.subr.mxu0 0.0
        %6881 = vmatpush1.msra.mxu0 0.0
        %6882 = vmatprep.subr.mxu0 0.0
        %6883 = vmatpush1.msra.mxu0 0.0
        %6884 = vmatprep.subr.mxu0 0.0
        %6885 = vmatpush1.msra.mxu0 0.0
        %6886 = vmatprep.subr.mxu0 0.0
        %6887 = vmatpush1.msra.mxu0 0.0
        %6888 = vmatprep.subr.mxu0 0.0
        %6889 = vmatpush1.msra.mxu0 0.0
        %6890 = vmatprep.subr.mxu0 0.0
        %6891 = vmatpush1.msra.mxu0 0.0
        %6892 = vmatprep.subr.mxu0 0.0
        %6893 = vmatpush1.msra.mxu0 0.0
        %6894 = vmatprep.subr.mxu0 0.0
        %6895 = vmatpush1.msra.mxu0 0.0
        %6896 = vmatprep.subr.mxu0 0.0
        %6897 = vmatpush1.msra.mxu0 0.0
        %6898 = vmatprep.subr.mxu0 0.0
        %6899 = vmatpush1.msra.mxu0 0.0
        %6900 = vmatprep.subr.mxu0 0.0
        %6901 = vmatpush1.msra.mxu0 0.0
        %6902 = vmatprep.subr.mxu0 0.0
        %6903 = vmatpush1.msra.mxu0 0.0
        %6904 = vmatprep.subr.mxu0 0.0
        %6905 = vmatpush1.msra.mxu0 0.0
        %6906 = vmatprep.subr.mxu0 0.0
        %6907 = vmatpush1.msra.mxu0 0.0
        %6908 = vmatprep.subr.mxu0 0.0
        %6909 = vmatpush1.msra.mxu0 0.0
        %6910 = vmatprep.subr.mxu0 0.0
        %6911 = vmatpush1.msra.mxu0 0.0
        %6912 = vmatprep.subr.mxu0 0.0
        %6913 = vmatpush1.msra.mxu0 0.0
        %6914 = vmatprep.subr.mxu0 0.0
        %6915 = vmatpush1.msra.mxu0 0.0
        %6916 = vmatprep.subr.mxu0 0.0
        %6917 = vmatpush1.msra.mxu0 0.0
        %6918 = vmatprep.subr.mxu0 0.0
        %6919 = vmatpush1.msra.mxu0 0.0
        %6920 = vmatprep.mubr.f32.mxu0 0.0
        %6921 = vmatmul.mubr.f32.gmra.mrb[0].mxu0 %v6850
        %v6922 = vpop.f32.mrb[0].mxu0
        %v6923 = vadd.f32 0.0, %v6922
        %v6924 = vpop.f32.mrb[0].mxu0
        %6925 = vdwg.mxu0
        %v6927 = vsel %vm6848, %v6553, 0
        %v6930 = vsel %vm6852, %v6554, 0
        %6932 = vmatprep.subr.mxu0 0.0
        %6933 = vmatpush1.msra.mxu0 %v6930
        %6934 = vmatprep.subr.mxu0 0.0
        %6935 = vmatpush1.msra.mxu0 0.0
        %6936 = vmatprep.subr.mxu0 0.0
        %6937 = vmatpush1.msra.mxu0 0.0
        %6938 = vmatprep.subr.mxu0 0.0
        %6939 = vmatpush1.msra.mxu0 0.0
        %6940 = vmatprep.subr.mxu0 0.0
        %6941 = vmatpush1.msra.mxu0 0.0
        %6942 = vmatprep.subr.mxu0 0.0
        %6943 = vmatpush1.msra.mxu0 0.0
        %6944 = vmatprep.subr.mxu0 0.0
        %6945 = vmatpush1.msra.mxu0 0.0
        %6946 = vmatprep.subr.mxu0 0.0
        %6947 = vmatpush1.msra.mxu0 0.0
        %6948 = vmatprep.subr.mxu0 0.0
        %6949 = vmatpush1.msra.mxu0 0.0
        %6950 = vmatprep.subr.mxu0 0.0
        %6951 = vmatpush1.msra.mxu0 0.0
        %6952 = vmatprep.subr.mxu0 0.0
        %6953 = vmatpush1.msra.mxu0 0.0
        %6954 = vmatprep.subr.mxu0 0.0
        %6955 = vmatpush1.msra.mxu0 0.0
        %6956 = vmatprep.subr.mxu0 0.0
        %6957 = vmatpush1.msra.mxu0 0.0
        %6958 = vmatprep.subr.mxu0 0.0
        %6959 = vmatpush1.msra.mxu0 0.0
        %6960 = vmatprep.subr.mxu0 0.0
        %6961 = vmatpush1.msra.mxu0 0.0
        %6962 = vmatprep.subr.mxu0 0.0
        %6963 = vmatpush1.msra.mxu0 0.0
        %6964 = vmatprep.subr.mxu0 0.0
        %6965 = vmatpush1.msra.mxu0 0.0
        %6966 = vmatprep.subr.mxu0 0.0
        %6967 = vmatpush1.msra.mxu0 0.0
        %6968 = vmatprep.subr.mxu0 0.0
        %6969 = vmatpush1.msra.mxu0 0.0
        %6970 = vmatprep.subr.mxu0 0.0
        %6971 = vmatpush1.msra.mxu0 0.0
        %6972 = vmatprep.subr.mxu0 0.0
        %6973 = vmatpush1.msra.mxu0 0.0
        %6974 = vmatprep.subr.mxu0 0.0
        %6975 = vmatpush1.msra.mxu0 0.0
        %6976 = vmatprep.subr.mxu0 0.0
        %6977 = vmatpush1.msra.mxu0 0.0
        %6978 = vmatprep.subr.mxu0 0.0
        %6979 = vmatpush1.msra.mxu0 0.0
        %6980 = vmatprep.subr.mxu0 0.0
        %6981 = vmatpush1.msra.mxu0 0.0
        %6982 = vmatprep.subr.mxu0 0.0
        %6983 = vmatpush1.msra.mxu0 0.0
        %6984 = vmatprep.subr.mxu0 0.0
        %6985 = vmatpush1.msra.mxu0 0.0
        %6986 = vmatprep.subr.mxu0 0.0
        %6987 = vmatpush1.msra.mxu0 0.0
        %6988 = vmatprep.subr.mxu0 0.0
        %6989 = vmatpush1.msra.mxu0 0.0
        %6990 = vmatprep.subr.mxu0 0.0
        %6991 = vmatpush1.msra.mxu0 0.0
        %6992 = vmatprep.subr.mxu0 0.0
        %6993 = vmatpush1.msra.mxu0 0.0
        %6994 = vmatprep.subr.mxu0 0.0
        %6995 = vmatpush1.msra.mxu0 0.0
        %6996 = vmatprep.mubr.f32.mxu0 0.0
        %6997 = vmatmul.mubr.f32.gmra.mrb[0].mxu0 %v6927
        %v6998 = vpop.f32.mrb[0].mxu0
        %v6999 = vadd.f32 %v6923, %v6998
        %v7000 = vpop.f32.mrb[0].mxu0
        %7001 = vdwg.mxu0
        %v7002 = vld [vmem:[%s8 + $0x2] sm:$0x3]
        %v7004 = vsel %vm6852, %v7002, 0
        %7006 = vmatprep.subr.mxu0 0.0
        %7007 = vmatpush1.msra.mxu0 %v7004
        %7008 = vmatprep.subr.mxu0 0.0
        %7009 = vmatpush1.msra.mxu0 0.0
        %7010 = vmatprep.subr.mxu0 0.0
        %7011 = vmatpush1.msra.mxu0 0.0
        %7012 = vmatprep.subr.mxu0 0.0
        %7013 = vmatpush1.msra.mxu0 0.0
        %7014 = vmatprep.subr.mxu0 0.0
        %7015 = vmatpush1.msra.mxu0 0.0
        %7016 = vmatprep.subr.mxu0 0.0
        %7017 = vmatpush1.msra.mxu0 0.0
        %7018 = vmatprep.subr.mxu0 0.0
        %7019 = vmatpush1.msra.mxu0 0.0
        %7020 = vmatprep.subr.mxu0 0.0
        %7021 = vmatpush1.msra.mxu0 0.0
        %7022 = vmatprep.subr.mxu0 0.0
        %7023 = vmatpush1.msra.mxu0 0.0
        %7024 = vmatprep.subr.mxu0 0.0
        %7025 = vmatpush1.msra.mxu0 0.0
        %7026 = vmatprep.subr.mxu0 0.0
        %7027 = vmatpush1.msra.mxu0 0.0
        %7028 = vmatprep.subr.mxu0 0.0
        %7029 = vmatpush1.msra.mxu0 0.0
        %7030 = vmatprep.subr.mxu0 0.0
        %7031 = vmatpush1.msra.mxu0 0.0
        %7032 = vmatprep.subr.mxu0 0.0
        %7033 = vmatpush1.msra.mxu0 0.0
        %7034 = vmatprep.subr.mxu0 0.0
        %7035 = vmatpush1.msra.mxu0 0.0
        %7036 = vmatprep.subr.mxu0 0.0
        %7037 = vmatpush1.msra.mxu0 0.0
        %7038 = vmatprep.subr.mxu0 0.0
        %7039 = vmatpush1.msra.mxu0 0.0
        %7040 = vmatprep.subr.mxu0 0.0
        %7041 = vmatpush1.msra.mxu0 0.0
        %7042 = vmatprep.subr.mxu0 0.0
        %7043 = vmatpush1.msra.mxu0 0.0
        %7044 = vmatprep.subr.mxu0 0.0
        %7045 = vmatpush1.msra.mxu0 0.0
        %7046 = vmatprep.subr.mxu0 0.0
        %7047 = vmatpush1.msra.mxu0 0.0
        %7048 = vmatprep.subr.mxu0 0.0
        %7049 = vmatpush1.msra.mxu0 0.0
        %7050 = vmatprep.subr.mxu0 0.0
        %7051 = vmatpush1.msra.mxu0 0.0
        %7052 = vmatprep.subr.mxu0 0.0
        %7053 = vmatpush1.msra.mxu0 0.0
        %7054 = vmatprep.subr.mxu0 0.0
        %7055 = vmatpush1.msra.mxu0 0.0
        %7056 = vmatprep.subr.mxu0 0.0
        %7057 = vmatpush1.msra.mxu0 0.0
        %7058 = vmatprep.subr.mxu0 0.0
        %7059 = vmatpush1.msra.mxu0 0.0
        %7060 = vmatprep.subr.mxu0 0.0
        %7061 = vmatpush1.msra.mxu0 0.0
        %7062 = vmatprep.subr.mxu0 0.0
        %7063 = vmatpush1.msra.mxu0 0.0
        %7064 = vmatprep.subr.mxu0 0.0
        %7065 = vmatpush1.msra.mxu0 0.0
        %7066 = vmatprep.subr.mxu0 0.0
        %7067 = vmatpush1.msra.mxu0 0.0
        %7068 = vmatprep.subr.mxu0 0.0
        %7069 = vmatpush1.msra.mxu0 0.0
        %7070 = vmatprep.mubr.f32.mxu0 0.0
        %7071 = vmatmul.mubr.f32.gmra.mrb[0].mxu0 %v6850
        %v7072 = vpop.f32.mrb[0].mxu0
        %v7073 = vadd.f32 0.0, %v7072
        %v7074 = vpop.f32.mrb[0].mxu0
        %7075 = vdwg.mxu0
        %v7077 = vsel %vm6852, %v6555, 0
        %7079 = vmatprep.subr.mxu0 0.0
        %7080 = vmatpush1.msra.mxu0 %v7077
        %7081 = vmatprep.subr.mxu0 0.0
        %7082 = vmatpush1.msra.mxu0 0.0
        %7083 = vmatprep.subr.mxu0 0.0
        %7084 = vmatpush1.msra.mxu0 0.0
        %7085 = vmatprep.subr.mxu0 0.0
        %7086 = vmatpush1.msra.mxu0 0.0
        %7087 = vmatprep.subr.mxu0 0.0
        %7088 = vmatpush1.msra.mxu0 0.0
        %7089 = vmatprep.subr.mxu0 0.0
        %7090 = vmatpush1.msra.mxu0 0.0
        %7091 = vmatprep.subr.mxu0 0.0
        %7092 = vmatpush1.msra.mxu0 0.0
        %7093 = vmatprep.subr.mxu0 0.0
        %7094 = vmatpush1.msra.mxu0 0.0
        %7095 = vmatprep.subr.mxu0 0.0
        %7096 = vmatpush1.msra.mxu0 0.0
        %7097 = vmatprep.subr.mxu0 0.0
        %7098 = vmatpush1.msra.mxu0 0.0
        %7099 = vmatprep.subr.mxu0 0.0
        %7100 = vmatpush1.msra.mxu0 0.0
        %7101 = vmatprep.subr.mxu0 0.0
        %7102 = vmatpush1.msra.mxu0 0.0
        %7103 = vmatprep.subr.mxu0 0.0
        %7104 = vmatpush1.msra.mxu0 0.0
        %7105 = vmatprep.subr.mxu0 0.0
        %7106 = vmatpush1.msra.mxu0 0.0
        %7107 = vmatprep.subr.mxu0 0.0
        %7108 = vmatpush1.msra.mxu0 0.0
        %7109 = vmatprep.subr.mxu0 0.0
        %7110 = vmatpush1.msra.mxu0 0.0
        %7111 = vmatprep.subr.mxu0 0.0
        %7112 = vmatpush1.msra.mxu0 0.0
        %7113 = vmatprep.subr.mxu0 0.0
        %7114 = vmatpush1.msra.mxu0 0.0
        %7115 = vmatprep.subr.mxu0 0.0
        %7116 = vmatpush1.msra.mxu0 0.0
        %7117 = vmatprep.subr.mxu0 0.0
        %7118 = vmatpush1.msra.mxu0 0.0
        %7119 = vmatprep.subr.mxu0 0.0
        %7120 = vmatpush1.msra.mxu0 0.0
        %7121 = vmatprep.subr.mxu0 0.0
        %7122 = vmatpush1.msra.mxu0 0.0
        %7123 = vmatprep.subr.mxu0 0.0
        %7124 = vmatpush1.msra.mxu0 0.0
        %7125 = vmatprep.subr.mxu0 0.0
        %7126 = vmatpush1.msra.mxu0 0.0
        %7127 = vmatprep.subr.mxu0 0.0
        %7128 = vmatpush1.msra.mxu0 0.0
        %7129 = vmatprep.subr.mxu0 0.0
        %7130 = vmatpush1.msra.mxu0 0.0
        %7131 = vmatprep.subr.mxu0 0.0
        %7132 = vmatpush1.msra.mxu0 0.0
        %7133 = vmatprep.subr.mxu0 0.0
        %7134 = vmatpush1.msra.mxu0 0.0
        %7135 = vmatprep.subr.mxu0 0.0
        %7136 = vmatpush1.msra.mxu0 0.0
        %7137 = vmatprep.subr.mxu0 0.0
        %7138 = vmatpush1.msra.mxu0 0.0
        %7139 = vmatprep.subr.mxu0 0.0
        %7140 = vmatpush1.msra.mxu0 0.0
        %7141 = vmatprep.subr.mxu0 0.0
        %7142 = vmatpush1.msra.mxu0 0.0
        %7143 = vmatprep.mubr.f32.mxu0 0.0
        %7144 = vmatmul.mubr.f32.gmra.mrb[0].mxu0 %v6927
        %v7145 = vpop.f32.mrb[0].mxu0
        %v7146 = vadd.f32 %v7073, %v7145
        %v7147 = vpop.f32.mrb[0].mxu0
        %7148 = vdwg.mxu0
        %v7149 = vmul.f32 %v521, %v6999
        %v7150 = vmul.f32 %v7149, 4.0
        %v7151 = vsub.f32 %v6327, %v7150
        %v7153 = vrot.slane %v7146, 4
        %v7155 = vmul.f32 %v521, %v7153
        %v7157 = vrot.slane %v7155, 4
        %v7159 = vadd.f32 %v7151, %v7157
        %s7160 = scalar_lea.vmem %s4, 4
        %v7161 = vld [vmem:[%s7160] sm:$0x3]
        %s7162 = scalar_lea.vmem %s4, 6
        %v7163 = vld [vmem:[%s7162] sm:$0x3]
        %v7165 = vsel %vm6852, %v7163, 0
        %7167 = vmatprep.subr.mxu0 0.0
        %7168 = vmatpush1.msra.mxu0 %v7165
        %7169 = vmatprep.subr.mxu0 0.0
        %7170 = vmatpush1.msra.mxu0 0.0
        %7171 = vmatprep.subr.mxu0 0.0
        %7172 = vmatpush1.msra.mxu0 0.0
        %7173 = vmatprep.subr.mxu0 0.0
        %7174 = vmatpush1.msra.mxu0 0.0
        %7175 = vmatprep.subr.mxu0 0.0
        %7176 = vmatpush1.msra.mxu0 0.0
        %7177 = vmatprep.subr.mxu0 0.0
        %7178 = vmatpush1.msra.mxu0 0.0
        %7179 = vmatprep.subr.mxu0 0.0
        %7180 = vmatpush1.msra.mxu0 0.0
        %7181 = vmatprep.subr.mxu0 0.0
        %7182 = vmatpush1.msra.mxu0 0.0
        %7183 = vmatprep.subr.mxu0 0.0
        %7184 = vmatpush1.msra.mxu0 0.0
        %7185 = vmatprep.subr.mxu0 0.0
        %7186 = vmatpush1.msra.mxu0 0.0
        %7187 = vmatprep.subr.mxu0 0.0
        %7188 = vmatpush1.msra.mxu0 0.0
        %7189 = vmatprep.subr.mxu0 0.0
        %7190 = vmatpush1.msra.mxu0 0.0
        %7191 = vmatprep.subr.mxu0 0.0
        %7192 = vmatpush1.msra.mxu0 0.0
        %7193 = vmatprep.subr.mxu0 0.0
        %7194 = vmatpush1.msra.mxu0 0.0
        %7195 = vmatprep.subr.mxu0 0.0
        %7196 = vmatpush1.msra.mxu0 0.0
        %7197 = vmatprep.subr.mxu0 0.0
        %7198 = vmatpush1.msra.mxu0 0.0
        %7199 = vmatprep.subr.mxu0 0.0
        %7200 = vmatpush1.msra.mxu0 0.0
        %7201 = vmatprep.subr.mxu0 0.0
        %7202 = vmatpush1.msra.mxu0 0.0
        %7203 = vmatprep.subr.mxu0 0.0
        %7204 = vmatpush1.msra.mxu0 0.0
        %7205 = vmatprep.subr.mxu0 0.0
        %7206 = vmatpush1.msra.mxu0 0.0
        %7207 = vmatprep.subr.mxu0 0.0
        %7208 = vmatpush1.msra.mxu0 0.0
        %7209 = vmatprep.subr.mxu0 0.0
        %7210 = vmatpush1.msra.mxu0 0.0
        %7211 = vmatprep.subr.mxu0 0.0
        %7212 = vmatpush1.msra.mxu0 0.0
        %7213 = vmatprep.subr.mxu0 0.0
        %7214 = vmatpush1.msra.mxu0 0.0
        %7215 = vmatprep.subr.mxu0 0.0
        %7216 = vmatpush1.msra.mxu0 0.0
        %7217 = vmatprep.subr.mxu0 0.0
        %7218 = vmatpush1.msra.mxu0 0.0
        %7219 = vmatprep.subr.mxu0 0.0
        %7220 = vmatpush1.msra.mxu0 0.0
        %7221 = vmatprep.subr.mxu0 0.0
        %7222 = vmatpush1.msra.mxu0 0.0
        %7223 = vmatprep.subr.mxu0 0.0
        %7224 = vmatpush1.msra.mxu0 0.0
        %7225 = vmatprep.subr.mxu0 0.0
        %7226 = vmatpush1.msra.mxu0 0.0
        %7227 = vmatprep.subr.mxu0 0.0
        %7228 = vmatpush1.msra.mxu0 0.0
        %7229 = vmatprep.subr.mxu0 0.0
        %7230 = vmatpush1.msra.mxu0 0.0
        %7231 = vmatprep.mubr.f32.mxu0 0.0
        %7232 = vmatmul.mubr.f32.gmra.mrb[0].mxu0 %v6850
        %v7233 = vpop.f32.mrb[0].mxu0
        %v7234 = vadd.f32 0.0, %v7233
        %v7235 = vpop.f32.mrb[0].mxu0
        %7236 = vdwg.mxu0
        %v7238 = vsel %vm6852, %v7161, 0
        %7240 = vmatprep.subr.mxu0 0.0
        %7241 = vmatpush1.msra.mxu0 %v7238
        %7242 = vmatprep.subr.mxu0 0.0
        %7243 = vmatpush1.msra.mxu0 0.0
        %7244 = vmatprep.subr.mxu0 0.0
        %7245 = vmatpush1.msra.mxu0 0.0
        %7246 = vmatprep.subr.mxu0 0.0
        %7247 = vmatpush1.msra.mxu0 0.0
        %7248 = vmatprep.subr.mxu0 0.0
        %7249 = vmatpush1.msra.mxu0 0.0
        %7250 = vmatprep.subr.mxu0 0.0
        %7251 = vmatpush1.msra.mxu0 0.0
        %7252 = vmatprep.subr.mxu0 0.0
        %7253 = vmatpush1.msra.mxu0 0.0
        %7254 = vmatprep.subr.mxu0 0.0
        %7255 = vmatpush1.msra.mxu0 0.0
        %7256 = vmatprep.subr.mxu0 0.0
        %7257 = vmatpush1.msra.mxu0 0.0
        %7258 = vmatprep.subr.mxu0 0.0
        %7259 = vmatpush1.msra.mxu0 0.0
        %7260 = vmatprep.subr.mxu0 0.0
        %7261 = vmatpush1.msra.mxu0 0.0
        %7262 = vmatprep.subr.mxu0 0.0
        %7263 = vmatpush1.msra.mxu0 0.0
        %7264 = vmatprep.subr.mxu0 0.0
        %7265 = vmatpush1.msra.mxu0 0.0
        %7266 = vmatprep.subr.mxu0 0.0
        %7267 = vmatpush1.msra.mxu0 0.0
        %7268 = vmatprep.subr.mxu0 0.0
        %7269 = vmatpush1.msra.mxu0 0.0
        %7270 = vmatprep.subr.mxu0 0.0
        %7271 = vmatpush1.msra.mxu0 0.0
        %7272 = vmatprep.subr.mxu0 0.0
        %7273 = vmatpush1.msra.mxu0 0.0
        %7274 = vmatprep.subr.mxu0 0.0
        %7275 = vmatpush1.msra.mxu0 0.0
        %7276 = vmatprep.subr.mxu0 0.0
        %7277 = vmatpush1.msra.mxu0 0.0
        %7278 = vmatprep.subr.mxu0 0.0
        %7279 = vmatpush1.msra.mxu0 0.0
        %7280 = vmatprep.subr.mxu0 0.0
        %7281 = vmatpush1.msra.mxu0 0.0
        %7282 = vmatprep.subr.mxu0 0.0
        %7283 = vmatpush1.msra.mxu0 0.0
        %7284 = vmatprep.subr.mxu0 0.0
        %7285 = vmatpush1.msra.mxu0 0.0
        %7286 = vmatprep.subr.mxu0 0.0
        %7287 = vmatpush1.msra.mxu0 0.0
        %7288 = vmatprep.subr.mxu0 0.0
        %7289 = vmatpush1.msra.mxu0 0.0
        %7290 = vmatprep.subr.mxu0 0.0
        %7291 = vmatpush1.msra.mxu0 0.0
        %7292 = vmatprep.subr.mxu0 0.0
        %7293 = vmatpush1.msra.mxu0 0.0
        %7294 = vmatprep.subr.mxu0 0.0
        %7295 = vmatpush1.msra.mxu0 0.0
        %7296 = vmatprep.subr.mxu0 0.0
        %7297 = vmatpush1.msra.mxu0 0.0
        %7298 = vmatprep.subr.mxu0 0.0
        %7299 = vmatpush1.msra.mxu0 0.0
        %7300 = vmatprep.subr.mxu0 0.0
        %7301 = vmatpush1.msra.mxu0 0.0
        %7302 = vmatprep.subr.mxu0 0.0
        %7303 = vmatpush1.msra.mxu0 0.0
        %7304 = vmatprep.mubr.f32.mxu0 0.0
        %7305 = vmatmul.mubr.f32.gmra.mrb[0].mxu0 %v6927
        %v7306 = vpop.f32.mrb[0].mxu0
        %v7307 = vadd.f32 %v7234, %v7306
        %v7308 = vpop.f32.mrb[0].mxu0
        %7309 = vdwg.mxu0
        %v7310 = vld [vmem:[%s13] sm:$0x1]
        %vm7311 = vcmask 7168
        %v7313 = vsel %vm7311, %v7307, 0
        %vm7315 = vcmask 1040384
        %v7317 = vsel %vm7315, %v7310, 0
        %7319 = vmatprep.subr.mxu0 0.0
        %7320 = vmatpush1.msra.mxu0 %v7317
        %7321 = vmatprep.subr.mxu0 0.0
        %7322 = vmatpush1.msra.mxu0 0.0
        %7323 = vmatprep.subr.mxu0 0.0
        %7324 = vmatpush1.msra.mxu0 0.0
        %7325 = vmatprep.subr.mxu0 0.0
        %7326 = vmatpush1.msra.mxu0 0.0
        %7327 = vmatprep.subr.mxu0 0.0
        %7328 = vmatpush1.msra.mxu0 0.0
        %7329 = vmatprep.subr.mxu0 0.0
        %7330 = vmatpush1.msra.mxu0 0.0
        %7331 = vmatprep.subr.mxu0 0.0
        %7332 = vmatpush1.msra.mxu0 0.0
        %7333 = vmatprep.subr.mxu0 0.0
        %7334 = vmatpush1.msra.mxu0 0.0
        %7335 = vmatprep.subr.mxu0 0.0
        %7336 = vmatpush1.msra.mxu0 0.0
        %7337 = vmatprep.subr.mxu0 0.0
        %7338 = vmatpush1.msra.mxu0 0.0
        %7339 = vmatprep.subr.mxu0 0.0
        %7340 = vmatpush1.msra.mxu0 0.0
        %7341 = vmatprep.subr.mxu0 0.0
        %7342 = vmatpush1.msra.mxu0 0.0
        %7343 = vmatprep.subr.mxu0 0.0
        %7344 = vmatpush1.msra.mxu0 0.0
        %7345 = vmatprep.subr.mxu0 0.0
        %7346 = vmatpush1.msra.mxu0 0.0
        %7347 = vmatprep.subr.mxu0 0.0
        %7348 = vmatpush1.msra.mxu0 0.0
        %7349 = vmatprep.subr.mxu0 0.0
        %7350 = vmatpush1.msra.mxu0 0.0
        %7351 = vmatprep.subr.mxu0 0.0
        %7352 = vmatpush1.msra.mxu0 0.0
        %7353 = vmatprep.subr.mxu0 0.0
        %7354 = vmatpush1.msra.mxu0 0.0
        %7355 = vmatprep.subr.mxu0 0.0
        %7356 = vmatpush1.msra.mxu0 0.0
        %7357 = vmatprep.subr.mxu0 0.0
        %7358 = vmatpush1.msra.mxu0 0.0
        %7359 = vmatprep.subr.mxu0 0.0
        %7360 = vmatpush1.msra.mxu0 0.0
        %7361 = vmatprep.subr.mxu0 0.0
        %7362 = vmatpush1.msra.mxu0 0.0
        %7363 = vmatprep.subr.mxu0 0.0
        %7364 = vmatpush1.msra.mxu0 0.0
        %7365 = vmatprep.subr.mxu0 0.0
        %7366 = vmatpush1.msra.mxu0 0.0
        %7367 = vmatprep.subr.mxu0 0.0
        %7368 = vmatpush1.msra.mxu0 0.0
        %7369 = vmatprep.subr.mxu0 0.0
        %7370 = vmatpush1.msra.mxu0 0.0
        %7371 = vmatprep.subr.mxu0 0.0
        %7372 = vmatpush1.msra.mxu0 0.0
        %7373 = vmatprep.subr.mxu0 0.0
        %7374 = vmatpush1.msra.mxu0 0.0
        %7375 = vmatprep.subr.mxu0 0.0
        %7376 = vmatpush1.msra.mxu0 0.0
        %7377 = vmatprep.subr.mxu0 0.0
        %7378 = vmatpush1.msra.mxu0 0.0
        %7379 = vmatprep.subr.mxu0 0.0
        %7380 = vmatpush1.msra.mxu0 0.0
        %7381 = vmatprep.subr.mxu0 0.0
        %7382 = vmatpush1.msra.mxu0 0.0
        %7383 = vmatprep.mubr.f32.mxu0 0.0
        %7384 = vmatmul.mubr.f32.gmra.mrb[0].mxu0 %v7313
        %v7385 = vpop.f32.mrb[0].mxu0
        %v7386 = vadd.f32 0.0, %v7385
        %v7387 = vpop.f32.mrb[0].mxu0
        %7388 = vdwg.mxu0
        %v7389 = vld [vmem:[%s9] sm:$0x1]
        %v7391 = vsel %vm7315, %v7389, 0
        %7393 = vmatprep.subr.mxu0 0.0
        %7394 = vmatpush1.msra.mxu0 %v7391
        %7395 = vmatprep.subr.mxu0 0.0
        %7396 = vmatpush1.msra.mxu0 0.0
        %7397 = vmatprep.subr.mxu0 0.0
        %7398 = vmatpush1.msra.mxu0 0.0
        %7399 = vmatprep.subr.mxu0 0.0
        %7400 = vmatpush1.msra.mxu0 0.0
        %7401 = vmatprep.subr.mxu0 0.0
        %7402 = vmatpush1.msra.mxu0 0.0
        %7403 = vmatprep.subr.mxu0 0.0
        %7404 = vmatpush1.msra.mxu0 0.0
        %7405 = vmatprep.subr.mxu0 0.0
        %7406 = vmatpush1.msra.mxu0 0.0
        %7407 = vmatprep.subr.mxu0 0.0
        %7408 = vmatpush1.msra.mxu0 0.0
        %7409 = vmatprep.subr.mxu0 0.0
        %7410 = vmatpush1.msra.mxu0 0.0
        %7411 = vmatprep.subr.mxu0 0.0
        %7412 = vmatpush1.msra.mxu0 0.0
        %7413 = vmatprep.subr.mxu0 0.0
        %7414 = vmatpush1.msra.mxu0 0.0
        %7415 = vmatprep.subr.mxu0 0.0
        %7416 = vmatpush1.msra.mxu0 0.0
        %7417 = vmatprep.subr.mxu0 0.0
        %7418 = vmatpush1.msra.mxu0 0.0
        %7419 = vmatprep.subr.mxu0 0.0
        %7420 = vmatpush1.msra.mxu0 0.0
        %7421 = vmatprep.subr.mxu0 0.0
        %7422 = vmatpush1.msra.mxu0 0.0
        %7423 = vmatprep.subr.mxu0 0.0
        %7424 = vmatpush1.msra.mxu0 0.0
        %7425 = vmatprep.subr.mxu0 0.0
        %7426 = vmatpush1.msra.mxu0 0.0
        %7427 = vmatprep.subr.mxu0 0.0
        %7428 = vmatpush1.msra.mxu0 0.0
        %7429 = vmatprep.subr.mxu0 0.0
        %7430 = vmatpush1.msra.mxu0 0.0
        %7431 = vmatprep.subr.mxu0 0.0
        %7432 = vmatpush1.msra.mxu0 0.0
        %7433 = vmatprep.subr.mxu0 0.0
        %7434 = vmatpush1.msra.mxu0 0.0
        %7435 = vmatprep.subr.mxu0 0.0
        %7436 = vmatpush1.msra.mxu0 0.0
        %7437 = vmatprep.subr.mxu0 0.0
        %7438 = vmatpush1.msra.mxu0 0.0
        %7439 = vmatprep.subr.mxu0 0.0
        %7440 = vmatpush1.msra.mxu0 0.0
        %7441 = vmatprep.subr.mxu0 0.0
        %7442 = vmatpush1.msra.mxu0 0.0
        %7443 = vmatprep.subr.mxu0 0.0
        %7444 = vmatpush1.msra.mxu0 0.0
        %7445 = vmatprep.subr.mxu0 0.0
        %7446 = vmatpush1.msra.mxu0 0.0
        %7447 = vmatprep.subr.mxu0 0.0
        %7448 = vmatpush1.msra.mxu0 0.0
        %7449 = vmatprep.subr.mxu0 0.0
        %7450 = vmatpush1.msra.mxu0 0.0
        %7451 = vmatprep.subr.mxu0 0.0
        %7452 = vmatpush1.msra.mxu0 0.0
        %7453 = vmatprep.subr.mxu0 0.0
        %7454 = vmatpush1.msra.mxu0 0.0
        %7455 = vmatprep.subr.mxu0 0.0
        %7456 = vmatpush1.msra.mxu0 0.0
        %7457 = vmatprep.mubr.f32.mxu0 0.0
        %7458 = vmatmul.mubr.f32.gmra.mrb[0].mxu0 %v7313
        %v7459 = vpop.f32.mrb[0].mxu0
        %v7460 = vadd.f32 0.0, %v7459
        %v7461 = vpop.f32.mrb[0].mxu0
        %7462 = vdwg.mxu0
        %v7464 = vrot.slane %v7386, 4
        %v7466 = vmul.f32 %v521, %v7464
        %v7467 = vmul.f32 %v7466, 4.0
        %v7469 = vrot.slane %v7467, 4
        %v7471 = vsub.f32 %v7159, %v7469
        %v7472 = vmul.f32 %v522, %v7460
        %v7473 = vadd.f32 %v7471, %v7472
        %v7474 = vsel %vm5079, %v7473, 0.0
        %v7475 = vrot.slane %v7474, 4
        %v7476 = vadd.f32 %v7474, %v7475
        %v7477 = vrot.slane %v7476, 2
        %v7478 = vadd.f32 %v7476, %v7477
        %v7479 = vrot.slane %v7478, 1
        %v7480 = vadd.f32 %v7478, %v7479
        %v7481 = vld [vmem:[%s15] sm:$0x1]
        %v7482 = vadd.f32 %v7480, %v7481
        %7483 = vst [vmem:[%s513] sm:$0x1] %v7482
        %s7484 = sand.u32 %s379, 1
        %s7485 = scalar_lea.sflag [#allocation3], %s7484
        %s7486 = sand.u32 %s379, 1
        %s7487 = scalar_lea.vmem [#allocation2], %s7486
        // Predicated region
        $region85: #{spatial_transformer_pyramid2d.1} parent=83 // pred_check
          %p7488 = pneg %p389
        $region86: #{spatial_transformer_pyramid2d.1} parent=83 // pred_check_branch
          %7490 = sbr.rel (%p7488) target = $region88
        $region87: #{spatial_transformer_pyramid2d.1} parent=83 // pred_region
          %s7492 = ssub.s32 16, 16
          %7493 = vsyncadd %s7485, %s7492
          %s7494 = smul.addr %s30, 16
          %s7495 = scalar_lea.hbm %s16, %s7494
          %s7497 = sshll.u32 %s7487, 4
          %s7498 = int_to_ptr.vmem [resolvable:$true] %s7497
          %7500 = dma.vmem_to_hbm [thread:$0]  %s7498, 16, %s7495, %s7485
        $region88: #{spatial_transformer_pyramid2d.1} parent=83 // pred_fallthru
          _
      $region84: #{spatial_transformer_pyramid2d.1} parent=5 // pred_fallthru
        _
      %p7501 = scmp.le.s32.totalorder 2, %s25
      // Predicated region
      $region89: #{spatial_transformer_pyramid2d.1} parent=5 // pred_check
        %p7502 = pneg %p7501
      $region90: #{spatial_transformer_pyramid2d.1} parent=5 // pred_check_branch
        %7504 = sbr.rel (%p7502) target = $region92
      $region91: #{spatial_transformer_pyramid2d.1} parent=5 // pred_region
        %s7505 = ssub.s32 %s25, 2
        // Predicated region
        $region93: #{spatial_transformer_pyramid2d.1} parent=91 // pred_check
          %p7506 = pneg %p395
        $region94: #{spatial_transformer_pyramid2d.1} parent=91 // pred_check_branch
          %7508 = sbr.rel (%p7506) target = $region96
        $region95: #{spatial_transformer_pyramid2d.1} parent=91 // pred_region
          %s7509 = sand.u32 %s380, 1
          %s7510 = scalar_lea.sflag [#allocation3], %s7509
          %s7511 = sand.u32 %s380, 1
          %s7512 = scalar_lea.vmem [#allocation2], %s7511
          %7513 = dma.done %s7510, 16
        $region96: #{spatial_transformer_pyramid2d.1} parent=91 // pred_fallthru
          _
      $region92: #{spatial_transformer_pyramid2d.1} parent=5 // pred_fallthru
        _
    $region6: #{spatial_transformer_pyramid2d.1} parent=1 // loop_footer
      %s29 = sadd.s32 1, %s25
    $region7: #{spatial_transformer_pyramid2d.1} parent=1 // loop_footer_branch
      %24 = sbr.rel target = $region3
    $region8: #{spatial_transformer_pyramid2d.1} parent=1 // loop_exit
      _
    %7514 = vsyncpa [#allocation3], 1
    %s7515 = scalar_lea.sflag [#allocation3], 1
    %7516 = vsyncpa %s7515, 1

</llo_original>
